<compile_context>
chip_gen: v7x
topology: tpu7x:2x2x1
jax: 0.10.0
libtpu: 0.0.40
codegen_flags: <defaults>
</compile_context>

<pallas_src>
from functools import partial

import numpy as np
import jax
import jax.numpy as jnp
from jax.experimental import pallas as pl
from jax.experimental.pallas import tpu as pltpu

EMBED_ATOM = 90
EMBED_BOND = [21, 3, 4]
EMBED_POS = 16
DIM_WARP = 32
RESCALE_NODE = (1, 1)   # (resca_norm, resca_act) -- not given in snippet
RESCALE_EDGE = (1, 1)

EPS = 1e-5
MAX_TILE = 256          # row tile (sweepable 128/256/512); well under v7x VMEM

_CP = pltpu.CompilerParams(
    dimension_semantics=("parallel",),
    vmem_limit_bytes=64 * 1024 * 1024,
)


# ---------------------------------------------------------------------------
# In-kernel helpers
# ---------------------------------------------------------------------------
def _group_norm(h, nhead):
    """GroupNorm(nhead, C, affine=False) on f32 (rows, C).

    Groups are contiguous lane segments; statistics are computed with per-group
    lane reductions (no MXU) and a centered variance (no cancellation)."""
    c = h.shape[-1]
    gs = c // nhead
    parts = []
    for g in range(nhead):
        hg = h[:, g * gs:(g + 1) * gs]
        mu = jnp.mean(hg, axis=-1, keepdims=True)
        cg = hg - mu
        var = jnp.mean(cg * cg, axis=-1, keepdims=True)
        parts.append(cg * jax.lax.rsqrt(var + EPS))
    return jnp.concatenate(parts, axis=-1) if nhead > 1 else parts[0]


# ---------------------------------------------------------------------------
# Pallas kernels
# ---------------------------------------------------------------------------
def _dense_kernel(x_ref, w_ref, o_ref):
    # o = x @ W   (DenseLayer: Conv1d kernel=1, no bias); bf16 MXU, f32 accumulate.
    o_ref[...] = jnp.dot(x_ref[...].astype(jnp.bfloat16), w_ref[...],
                         preferred_element_type=jnp.float32).astype(o_ref.dtype)


def _glb_kernel(*refs, nhead, skip_pre, has_bias, gate_dense, prologue,
                residual, has_mask):
    # Fused GatedLinearBlock with optional fused surroundings:
    #   [prologue]  x  = scale0 * x + bias0 + res          (MetaBlock mix0 + res add)
    #   h  = x @ W_pre                                     (skipped when skip_pre)
    #   xn = GroupNorm(nhead, affine=False)(h)
    #   [gate_dense] gb = gscale * GroupNorm(gx @ W_gate) + gbias   (VirtBlock gate)
    #   xx = ReLU((xn [+ gb]) @ W_gate) * (xn @ W_value)
    #        (fused single [cnorm, 2*cact] matmul when no gate bias)
    #   out = xx @ W_post
    #   [residual]  out = scale1 * x_prologue + bias1 + out         (MetaBlock mix1)
    #   [has_mask]  out = out * mask                                 (padded edges)
    refs = list(refs)
    o_ref = refs.pop()

    x = refs.pop(0)[...]
    if prologue:
        res = refs.pop(0)[...]
        s0 = refs.pop(0)[...]
        b0 = refs.pop(0)[...]
        x = s0 * x + b0 + res
    x_pro = x

    gb = None
    if has_bias:
        if gate_dense:
            gx = refs.pop(0)[...]
            wg = refs.pop(0)[...]
            gs = refs.pop(0)[...]
            gbi = refs.pop(0)[...]
            gh = jnp.dot(gx.astype(jnp.bfloat16), wg,
                         preferred_element_type=jnp.float32)
            gb = gs * _group_norm(gh, nhead) + gbi
        else:
            gb = refs.pop(0)[...]

    if skip_pre:
        h = x
    else:
        w_pre = refs.pop(0)[...]
        h = jnp.dot(x.astype(jnp.bfloat16), w_pre,
                    preferred_element_type=jnp.float32)

    w_gv = refs.pop(0)[...]
    w_post = refs.pop(0)[...]
    cact = w_gv.shape[1] // 2

    xn = _group_norm(h, nhead)

    if has_bias:
        # gate LHS differs from value LHS -> two dots sharing the resident weight
        xg = jnp.dot((xn + gb).astype(jnp.bfloat16), w_gv[:, :cact],
                     preferred_element_type=jnp.float32)
        xv = jnp.dot(xn.astype(jnp.bfloat16), w_gv[:, cact:],
                     preferred_element_type=jnp.float32)
    else:
        gv = jnp.dot(xn.astype(jnp.bfloat16), w_gv,
                     preferred_element_type=jnp.float32)
        xg, xv = gv[:, :cact], gv[:, cact:]

    xx = jnp.maximum(xg, 0.0) * xv
    out = jnp.dot(xx.astype(jnp.bfloat16), w_post,
                  preferred_element_type=jnp.float32)

    if residual:
        s1 = refs.pop(0)[...]
        b1 = refs.pop(0)[...]
        out = s1 * x_pro + b1 + out
    if has_mask:
        out = out * refs.pop(0)[...]

    o_ref[...] = out.astype(o_ref.dtype)


# ---------------------------------------------------------------------------
# Pallas wrappers (rows are pre-padded; no per-call pad / slice)
# ---------------------------------------------------------------------------
def _row_block(n):
    blk = min(MAX_TILE, n)
    assert n % blk == 0, f"row count {n} must be pre-padded to a multiple of {blk}"
    return blk


def pallas_dense(x, w):
    n, cin = x.shape
    cout = w.shape[1]
    blk = _row_block(n)
    return pl.pallas_call(
        _dense_kernel,
        out_shape=jax.ShapeDtypeStruct((n, cout), jnp.float32),
        grid=(n // blk,),
        in_specs=[pl.BlockSpec((blk, cin), lambda i: (i, 0)),
                  pl.BlockSpec((cin, cout), lambda i: (0, 0))],
        out_specs=pl.BlockSpec((blk, cout), lambda i: (i, 0)),
        compiler_params=_CP,
    )(x, w)


def pallas_glb(x, p, nhead, *, gate_bias=None, gate_dense=None,
               prologue=None, residual=None, mask=None):
    """Fused GatedLinearBlock forward (inference: dropout is identity).

    gate_bias:  [n, cnorm] rows added to the gate input (ConvBlock bond encoder).
    gate_dense: dict(x, w, scale, bias) -> compute gate bias in-kernel (VirtBlock).
    prologue:   dict(res, scale, bias) -> x = scale*x + bias + res before the GLB.
    residual:   dict(scale, bias)      -> out = scale*x_pro + bias + out after it.
    mask:       [n, 1] multiplicative output mask (padded edges)."""
    n, cin = x.shape
    w_pre, w_gv, w_post = p["w_pre"], p["w_gv"], p["w_post"]
    skip_pre = w_pre is None
    has_bias = (gate_bias is not None) or (gate_dense is not None)
    cnorm = w_gv.shape[0]
    cout = w_post.shape[1]
    blk = _row_block(n)

    def row(c):
        return pl.BlockSpec((blk, c), lambda i: (i, 0))

    def rep(shape):
        return pl.BlockSpec(shape, lambda i: (0, 0))

    args, specs = [x], [row(cin)]
    if prologue is not None:
        args += [prologue["res"], prologue["scale"], prologue["bias"]]
        specs += [row(cin), rep((1, cin)), rep((1, cin))]
    if gate_dense is not None:
        gx = gate_dense["x"]
        args += [gx, gate_dense["w"], gate_dense["scale"], gate_dense["bias"]]
        specs += [row(gx.shape[1]), rep(gate_dense["w"].shape),
                  rep((1, cnorm)), rep((1, cnorm))]
    elif gate_bias is not None:
        args.append(gate_bias)
        specs.append(row(cnorm))
    if not skip_pre:
        args.append(w_pre)
        specs.append(rep(w_pre.shape))
    args += [w_gv, w_post]
    specs += [rep(w_gv.shape), rep(w_post.shape)]
    if residual is not None:
        args += [residual["scale"], residual["bias"]]
        specs += [rep((1, cout)), rep((1, cout))]
    if mask is not None:
        args.append(mask)
        specs.append(row(1))

    kern = partial(_glb_kernel, nhead=nhead, skip_pre=skip_pre, has_bias=has_bias,
                   gate_dense=gate_dense is not None,
                   prologue=prologue is not None,
                   residual=residual is not None,
                   has_mask=mask is not None)
    return pl.pallas_call(
        kern,
        out_shape=jax.ShapeDtypeStruct((n, cout), jnp.float32),
        grid=(n // blk,),
        in_specs=specs,
        out_specs=row(cout),
        compiler_params=_CP,
    )(*args)


# ---------------------------------------------------------------------------
# Parameter construction (deterministic, mirrors the PyTorch module shapes)
# ---------------------------------------------------------------------------
class KeyGen:
    def __init__(self, key):
        self.key = key

    def __call__(self):
        self.key, sub = jax.random.split(self.key)
        return sub


def init_dense(key, cin, cout):
    return jax.random.normal(key, (cin, cout), jnp.float32) / np.sqrt(cin)


def init_grouped(key, cin, cout, nhead):
    # groups=nhead conv1d (kernel 1) == block-diagonal matrix (mathematically identical)
    cgi, cgo = cin // nhead, cout // nhead
    blocks = np.asarray(jax.random.normal(key, (nhead, cgi, cgo), jnp.float32)) / np.sqrt(cgi)
    w = np.zeros((cin, cout), np.float32)
    for g in range(nhead):
        w[g * cgi:(g + 1) * cgi, g * cgo:(g + 1) * cgo] = blocks[g]
    return jnp.asarray(w)


def init_glb(kg, nhead, width, resca_norm=1, resca_act=1, width_in=None,
             skip_pre=False, width_out=None):
    if width_in is None:
        width_in = width
    cnorm = DIM_WARP * nhead * resca_norm
    cact = DIM_WARP * nhead * resca_act
    if width_out is None:
        width_out = width
    if skip_pre:
        assert width_in == cnorm
        w_pre = None                                  # skip_pre => GroupNorm on input
    else:
        w_pre = init_dense(kg(), width_in, cnorm).astype(jnp.bfloat16)
    w_gate = init_grouped(kg(), cnorm, cact, nhead)
    w_value = init_grouped(kg(), cnorm, cact, nhead)
    return dict(
        w_pre=w_pre,
        w_gv=jnp.concatenate([w_gate, w_value], axis=1).astype(jnp.bfloat16),
        w_post=init_dense(kg(), cact, width_out).astype(jnp.bfloat16),
    )


def build_params(key, width, nhead, depth, kernel_list, hop):
    kg = KeyGen(key)
    params = {}
    atom_emb = jax.random.normal(kg(), (EMBED_ATOM, width), jnp.float32) * 0.1
    params["atom_emb"] = atom_emb.at[0].set(0.0)                       # padding_idx=0
    params["atom_pos"] = init_glb(kg, nhead, width, *RESCALE_NODE, width_in=EMBED_POS)

    layers = []
    for layer in range(depth):
        skip_virt = (layer == 0)
        nk = kernel_list[layer]
        klist = []
        for k in range(nk):
            kp = {}
            if not skip_virt:
                wn = DIM_WARP * nhead * RESCALE_NODE[0]
                kp["virt"] = dict(
                    msg=init_glb(kg, nhead, width, *RESCALE_NODE),
                    w_gate=init_dense(kg(), width, wn).astype(jnp.bfloat16),
                    scale=jnp.ones((1, wn), jnp.float32),   # ScaleLayer init
                    bias=jnp.zeros((1, wn), jnp.float32),
                )
            else:
                kp["virt"] = None
            convs = []
            for h in range(hop):
                wne = DIM_WARP * nhead * RESCALE_EDGE[0]
                emb = jax.random.normal(kg(), (EMBED_BOND[h], wne), jnp.float32) * 0.1
                w_src = init_dense(kg(), width, wne)
                w_tgt = init_dense(kg(), width, wne)
                convs.append(dict(
                    w_st=jnp.concatenate([w_src, w_tgt], axis=1).astype(jnp.bfloat16),
                    emb=emb.at[0].set(0.0),                 # padding_idx=0
                    msg=init_glb(kg, nhead, width, *RESCALE_EDGE,
                                 width_in=wne, skip_pre=True),
                ))
            kp["conv"] = convs
            use_res = k < nk - 1
            kp["meta"] = dict(
                mix0_scale=jnp.ones((1, width), jnp.float32),
                mix0_bias=jnp.zeros((1, width), jnp.float32),
                mix1_scale=jnp.ones((1, width), jnp.float32) if use_res else None,
                mix1_bias=jnp.zeros((1, width), jnp.float32) if use_res else None,
                ffn=init_glb(kg, nhead, width, *RESCALE_NODE),
            )
            klist.append(kp)
        layers.append(klist)
    params["layers"] = layers
    params["head"] = dict(glb=init_glb(kg, nhead, width, 1, 1, width_out=1),
                          bias=jnp.ones((1,), jnp.float32))
    return params


# ---------------------------------------------------------------------------
# One-time padding of the graph batch (so kernels never pad / slice per call)
# ---------------------------------------------------------------------------
def _pad_count(n):
    n8 = -(-max(n, 1) // 8) * 8
    if n8 <= MAX_TILE:
        return n8
    return -(-n // MAX_TILE) * MAX_TILE


def pad_inputs(atom_x, pos, batch, edges, num_graphs):
    n = atom_x.shape[0]
    n_pad = _pad_count(n)
    g_pad = _pad_count(num_graphs + 1)   # +1 dummy graph segment collects padded nodes
    atom_x = jnp.pad(atom_x, ((0, n_pad - n), (0, 0)))            # idx 0 == padding
    pos = jnp.pad(pos, ((0, n_pad - n), (0, 0)))
    batch = jnp.pad(batch, (0, n_pad - n), constant_values=num_graphs)
    edges_p = []
    for idx, attr in edges:
        e = idx.shape[1]
        e_pad = _pad_count(e)
        idx = jnp.pad(idx, ((0, 0), (0, e_pad - e)))              # padded edges -> node 0
        attr = jnp.pad(attr, ((0, e_pad - e), (0, 0)))            # attr 0 == padding
        mask = (jnp.arange(e_pad) < e).astype(jnp.float32)[:, None]
        edges_p.append((idx, attr, mask))
    return atom_x, pos, batch, edges_p, g_pad


# ---------------------------------------------------------------------------
# Forward pass (glue: embedding bags, gathers, segment sums)
# ---------------------------------------------------------------------------
def embedding_bag_mean(table, idx):
    # nn.EmbeddingBag mode='mean' with padding_idx=0 excluded from the reduction.
    emb = jnp.take(table, idx, axis=0)                 # (rows, F, C); table row 0 is zero
    s = emb.sum(axis=1)
    cnt = (idx != 0).sum(axis=1, keepdims=True).astype(jnp.float32)
    return s / jnp.maximum(cnt, 1.0)


def conv_block(x, edge_idx, edge_attr, edge_mask, p, num_nodes, nhead):
    st = pallas_dense(x, p["w_st"])                    # fused [W_src | W_tgt]
    wne = p["w_st"].shape[1] // 2
    xs, xt = st[:, :wne], st[:, wne:]
    # TODO(synk): per-edge gather (xs[ei0]+xt[ei1]) kept in JAX glue (dynamic indices).
    xx = xs[edge_idx[0]] + xt[edge_idx[1]]
    gb = embedding_bag_mean(p["emb"], edge_attr)
    xx = pallas_glb(xx, p["msg"], nhead, gate_bias=gb, mask=edge_mask)
    # TODO(synk): scatter-add (segment_coo) kept in JAX glue (dynamic indices).
    return jax.ops.segment_sum(xx, edge_idx[1], num_segments=num_nodes)


def virt_block(x, virt_res, batch, p, num_graphs_pad, nhead):
    seg = jax.ops.segment_sum(x, batch, num_segments=num_graphs_pad)   # segment_csr 'sum'
    virt_res = seg if virt_res is None else seg + virt_res
    # gate (Dense -> GroupNorm -> ScaleLayer) fused into the msg GLB kernel
    xx = pallas_glb(virt_res[batch], p["msg"], nhead,
                    gate_dense=dict(x=x, w=p["w_gate"],
                                    scale=p["scale"], bias=p["bias"]))
    return xx, virt_res


def meta_block(x, res, p, nhead):
    # mix0 + residual-add prologue and mix1 residual epilogue fused into the FFN GLB.
    residual = None
    if p["mix1_scale"] is not None:
        residual = dict(scale=p["mix1_scale"], bias=p["mix1_bias"])
    return pallas_glb(x, p["ffn"], nhead,
                      prologue=dict(res=res, scale=p["mix0_scale"],
                                    bias=p["mix0_bias"]),
                      residual=residual)


def head_block(x, batch, num_graphs_pad, p, nhead):
    xx = jax.ops.segment_sum(x, batch, num_segments=num_graphs_pad)
    out = pallas_glb(xx, p["glb"], nhead)              # out_norm's xn unused downstream
    return (out + p["bias"]) * 5.6


def metagin_forward(params, atom_x, pos, batch, edges, *, num_graphs,
                    num_graphs_pad, hop, nhead):
    num_nodes = atom_x.shape[0]
    h = embedding_bag_mean(params["atom_emb"], atom_x) + \
        pallas_glb(pos, params["atom_pos"], nhead)
    virt = None
    for layer in params["layers"]:
        for kp in layer:
            x_in = h
            if kp["virt"] is not None:
                x_out, virt = virt_block(x_in, virt, batch, kp["virt"],
                                         num_graphs_pad, nhead)
            else:
                x_out = 0.0
            x_hop = x_in
            for hh in range(hop):
                ei, ea, em = edges[hh]
                x_hop = conv_block(x_hop, ei, ea, em, kp["conv"][hh],
                                   num_nodes, nhead)
                x_out = x_out + x_hop
            h = meta_block(x_in, x_out, kp["meta"], nhead)
    out = head_block(h, batch, num_graphs_pad, params["head"], nhead)
    return out[:num_graphs]


# ---------------------------------------------------------------------------
if __name__ == "__main__":
    # width=128 / nhead=4 keeps every channel dimension 128- or 256-lane dense.
    width, nhead, depth, kernel_list, hop = 128, 4, 2, [2, 1], 2
    N, G = 24, 2

    key = jax.random.PRNGKey(0)
    k_inp, k_par = jax.random.split(key)
    ks = jax.random.split(k_inp, 8)

    atom_x = jax.random.randint(ks[0], (N, 3), 1, EMBED_ATOM, dtype=jnp.int32)
    pos_rw = jax.random.normal(ks[1], (N, EMBED_POS), jnp.float32)
    batch = jnp.asarray([0] * 12 + [1] * 12, dtype=jnp.int32)      # idxptr = [0, 12, 24]

    # hop 0: bond edges, hop 1: angle edges (attrs clamped to EMBED_BOND[1]-1)
    E1, E2 = 40, 20
    bond_idx = jax.random.randint(ks[2], (2, E1), 0, N, dtype=jnp.int32)
    bond_attr = jax.random.randint(ks[3], (E1, 3), 1, EMBED_BOND[0], dtype=jnp.int32)
    ang_idx = jax.random.randint(ks[4], (2, E2), 0, N, dtype=jnp.int32)
    ang_attr = jax.random.randint(ks[5], (E2, 2), 0, 5, dtype=jnp.int32)
    ang_attr = jnp.minimum(ang_attr, EMBED_BOND[1] - 1)            # attr2.clamp_(None, ...)
    edges = [(bond_idx, bond_attr), (ang_idx, ang_attr)]

    params = build_params(k_par, width, nhead, depth, kernel_list, hop)

    atom_x_p, pos_p, batch_p, edges_p, g_pad = pad_inputs(atom_x, pos_rw, batch, edges, G)

    fwd = jax.jit(metagin_forward,
                  static_argnames=("num_graphs", "num_graphs_pad", "hop", "nhead"))
    h_out = fwd(params, atom_x_p, pos_p, batch_p, edges_p,
                num_graphs=G, num_graphs_pad=g_pad, hop=hop, nhead=nhead)
    h_out = jax.block_until_ready(h_out)

    assert h_out.shape == (G, 1) and h_out.dtype == jnp.float32
    assert bool(jnp.all(jnp.isfinite(h_out)))
    print("KERNEL_OK")
</pallas_src>

<mosaic_0001>
module attributes {stable_mosaic.version = 11 : i64} {
  func.func @_glb_kernel(%arg0: i32, %arg1: memref<24x16xf32, #tpu.memory_space<vmem>>, %arg2: memref<16x128xbf16, #tpu.memory_space<vmem>>, %arg3: memref<128x256xbf16, #tpu.memory_space<vmem>>, %arg4: memref<128x128xbf16, #tpu.memory_space<vmem>>, %arg5: memref<24x128xf32, #tpu.memory_space<vmem>>) attributes {dimension_semantics = [#tpu.dimension_semantics<parallel>], iteration_bounds = array<i64: 1>, scalar_prefetch = 0 : i64, scratch_operands = 0 : i64, tpu.core_type = #tpu.core_type<tc>, window_params = [{transform_indices = @transform_0, window_bounds = array<i64: 24, 16>}, {pipeline_mode = #tpu.pipeline_mode<synchronous>, transform_indices = @transform_1, window_bounds = array<i64: 16, 128>}, {pipeline_mode = #tpu.pipeline_mode<synchronous>, transform_indices = @transform_2, window_bounds = array<i64: 128, 256>}, {pipeline_mode = #tpu.pipeline_mode<synchronous>, transform_indices = @transform_3, window_bounds = array<i64: 128, 128>}, {transform_indices = @transform_4, window_bounds = array<i64: 24, 128>}]} {
    %c0 = arith.constant 0 : index
    %c0_0 = arith.constant 0 : index
    %0 = vector.load %arg1[%c0, %c0_0] : memref<24x16xf32, #tpu.memory_space<vmem>>, vector<24x16xf32>
    %c0_1 = arith.constant 0 : index
    %c0_2 = arith.constant 0 : index
    %1 = vector.load %arg2[%c0_1, %c0_2] : memref<16x128xbf16, #tpu.memory_space<vmem>>, vector<16x128xbf16>
    %2 = arith.truncf %0 : vector<24x16xf32> to vector<24x16xbf16>
    %cst = arith.constant dense<0.000000e+00> : vector<24x128xf32>
    %3 = tpu.matmul %2, %1, %cst {dimension_numbers = #tpu.dot_dimension_numbers<[1], [0], [0], [1], [0, 0, 1, 1], [], []>} : vector<24x16xbf16>, vector<16x128xbf16>, vector<24x128xf32> -> vector<24x128xf32>
    %c0_3 = arith.constant 0 : index
    %c0_4 = arith.constant 0 : index
    %4 = vector.load %arg3[%c0_3, %c0_4] : memref<128x256xbf16, #tpu.memory_space<vmem>>, vector<128x256xbf16>
    %c0_5 = arith.constant 0 : index
    %c0_6 = arith.constant 0 : index
    %5 = vector.load %arg4[%c0_5, %c0_6] : memref<128x128xbf16, #tpu.memory_space<vmem>>, vector<128x128xbf16>
    %6 = vector.extract_strided_slice %3 {offsets = [0, 0], sizes = [24, 32], strides = [1, 1]} : vector<24x128xf32> to vector<24x32xf32>
    %cst_7 = arith.constant dense<0.000000e+00> : vector<24xf32>
    %7 = vector.multi_reduction <add>, %6, %cst_7 [1] : vector<24x32xf32> to vector<24xf32>
    %8 = vector.shape_cast %7 : vector<24xf32> to vector<24x1xf32>
    %cst_8 = arith.constant 3.200000e+01 : f32
    %9 = vector.broadcast %cst_8 : f32 to vector<24x1xf32>
    %10 = arith.divf %8, %9 : vector<24x1xf32>
    %11 = vector.broadcast %10 : vector<24x1xf32> to vector<24x32xf32>
    %12 = arith.subf %6, %11 : vector<24x32xf32>
    %13 = arith.mulf %12, %12 : vector<24x32xf32>
    %cst_9 = arith.constant dense<0.000000e+00> : vector<24xf32>
    %14 = vector.multi_reduction <add>, %13, %cst_9 [1] : vector<24x32xf32> to vector<24xf32>
    %15 = vector.shape_cast %14 : vector<24xf32> to vector<24x1xf32>
    %cst_10 = arith.constant 3.200000e+01 : f32
    %16 = vector.broadcast %cst_10 : f32 to vector<24x1xf32>
    %17 = arith.divf %15, %16 : vector<24x1xf32>
    %cst_11 = arith.constant 9.99999974E-6 : f32
    %18 = vector.broadcast %cst_11 : f32 to vector<24x1xf32>
    %19 = arith.addf %17, %18 : vector<24x1xf32>
    %20 = math.rsqrt %19 : vector<24x1xf32>
    %21 = vector.broadcast %20 : vector<24x1xf32> to vector<24x32xf32>
    %22 = arith.mulf %12, %21 : vector<24x32xf32>
    %23 = vector.extract_strided_slice %3 {offsets = [0, 32], sizes = [24, 32], strides = [1, 1]} : vector<24x128xf32> to vector<24x32xf32>
    %cst_12 = arith.constant dense<0.000000e+00> : vector<24xf32>
    %24 = vector.multi_reduction <add>, %23, %cst_12 [1] : vector<24x32xf32> to vector<24xf32>
    %25 = vector.shape_cast %24 : vector<24xf32> to vector<24x1xf32>
    %cst_13 = arith.constant 3.200000e+01 : f32
    %26 = vector.broadcast %cst_13 : f32 to vector<24x1xf32>
    %27 = arith.divf %25, %26 : vector<24x1xf32>
    %28 = vector.broadcast %27 : vector<24x1xf32> to vector<24x32xf32>
    %29 = arith.subf %23, %28 : vector<24x32xf32>
    %30 = arith.mulf %29, %29 : vector<24x32xf32>
    %cst_14 = arith.constant dense<0.000000e+00> : vector<24xf32>
    %31 = vector.multi_reduction <add>, %30, %cst_14 [1] : vector<24x32xf32> to vector<24xf32>
    %32 = vector.shape_cast %31 : vector<24xf32> to vector<24x1xf32>
    %cst_15 = arith.constant 3.200000e+01 : f32
    %33 = vector.broadcast %cst_15 : f32 to vector<24x1xf32>
    %34 = arith.divf %32, %33 : vector<24x1xf32>
    %cst_16 = arith.constant 9.99999974E-6 : f32
    %35 = vector.broadcast %cst_16 : f32 to vector<24x1xf32>
    %36 = arith.addf %34, %35 : vector<24x1xf32>
    %37 = math.rsqrt %36 : vector<24x1xf32>
    %38 = vector.broadcast %37 : vector<24x1xf32> to vector<24x32xf32>
    %39 = arith.mulf %29, %38 : vector<24x32xf32>
    %40 = vector.extract_strided_slice %3 {offsets = [0, 64], sizes = [24, 32], strides = [1, 1]} : vector<24x128xf32> to vector<24x32xf32>
    %cst_17 = arith.constant dense<0.000000e+00> : vector<24xf32>
    %41 = vector.multi_reduction <add>, %40, %cst_17 [1] : vector<24x32xf32> to vector<24xf32>
    %42 = vector.shape_cast %41 : vector<24xf32> to vector<24x1xf32>
    %cst_18 = arith.constant 3.200000e+01 : f32
    %43 = vector.broadcast %cst_18 : f32 to vector<24x1xf32>
    %44 = arith.divf %42, %43 : vector<24x1xf32>
    %45 = vector.broadcast %44 : vector<24x1xf32> to vector<24x32xf32>
    %46 = arith.subf %40, %45 : vector<24x32xf32>
    %47 = arith.mulf %46, %46 : vector<24x32xf32>
    %cst_19 = arith.constant dense<0.000000e+00> : vector<24xf32>
    %48 = vector.multi_reduction <add>, %47, %cst_19 [1] : vector<24x32xf32> to vector<24xf32>
    %49 = vector.shape_cast %48 : vector<24xf32> to vector<24x1xf32>
    %cst_20 = arith.constant 3.200000e+01 : f32
    %50 = vector.broadcast %cst_20 : f32 to vector<24x1xf32>
    %51 = arith.divf %49, %50 : vector<24x1xf32>
    %cst_21 = arith.constant 9.99999974E-6 : f32
    %52 = vector.broadcast %cst_21 : f32 to vector<24x1xf32>
    %53 = arith.addf %51, %52 : vector<24x1xf32>
    %54 = math.rsqrt %53 : vector<24x1xf32>
    %55 = vector.broadcast %54 : vector<24x1xf32> to vector<24x32xf32>
    %56 = arith.mulf %46, %55 : vector<24x32xf32>
    %57 = vector.extract_strided_slice %3 {offsets = [0, 96], sizes = [24, 32], strides = [1, 1]} : vector<24x128xf32> to vector<24x32xf32>
    %cst_22 = arith.constant dense<0.000000e+00> : vector<24xf32>
    %58 = vector.multi_reduction <add>, %57, %cst_22 [1] : vector<24x32xf32> to vector<24xf32>
    %59 = vector.shape_cast %58 : vector<24xf32> to vector<24x1xf32>
    %cst_23 = arith.constant 3.200000e+01 : f32
    %60 = vector.broadcast %cst_23 : f32 to vector<24x1xf32>
    %61 = arith.divf %59, %60 : vector<24x1xf32>
    %62 = vector.broadcast %61 : vector<24x1xf32> to vector<24x32xf32>
    %63 = arith.subf %57, %62 : vector<24x32xf32>
    %64 = arith.mulf %63, %63 : vector<24x32xf32>
    %cst_24 = arith.constant dense<0.000000e+00> : vector<24xf32>
    %65 = vector.multi_reduction <add>, %64, %cst_24 [1] : vector<24x32xf32> to vector<24xf32>
    %66 = vector.shape_cast %65 : vector<24xf32> to vector<24x1xf32>
    %cst_25 = arith.constant 3.200000e+01 : f32
    %67 = vector.broadcast %cst_25 : f32 to vector<24x1xf32>
    %68 = arith.divf %66, %67 : vector<24x1xf32>
    %cst_26 = arith.constant 9.99999974E-6 : f32
    %69 = vector.broadcast %cst_26 : f32 to vector<24x1xf32>
    %70 = arith.addf %68, %69 : vector<24x1xf32>
    %71 = math.rsqrt %70 : vector<24x1xf32>
    %72 = vector.broadcast %71 : vector<24x1xf32> to vector<24x32xf32>
    %73 = arith.mulf %63, %72 : vector<24x32xf32>
    %74 = tpu.concatenate %22, %39, %56, %73 in 1 : vector<24x32xf32>, vector<24x32xf32>, vector<24x32xf32>, vector<24x32xf32> -> vector<24x128xf32>
    %75 = arith.truncf %74 : vector<24x128xf32> to vector<24x128xbf16>
    %cst_27 = arith.constant dense<0.000000e+00> : vector<24x256xf32>
    %76 = tpu.matmul %75, %4, %cst_27 {dimension_numbers = #tpu.dot_dimension_numbers<[1], [0], [0], [1], [0, 0, 1, 1], [], []>} : vector<24x128xbf16>, vector<128x256xbf16>, vector<24x256xf32> -> vector<24x256xf32>
    %77 = vector.extract_strided_slice %76 {offsets = [0, 0], sizes = [24, 128], strides = [1, 1]} : vector<24x256xf32> to vector<24x128xf32>
    %78 = vector.extract_strided_slice %76 {offsets = [0, 128], sizes = [24, 128], strides = [1, 1]} : vector<24x256xf32> to vector<24x128xf32>
    %cst_28 = arith.constant 0.000000e+00 : f32
    %79 = vector.broadcast %cst_28 : f32 to vector<24x128xf32>
    %80 = arith.maximumf %77, %79 : vector<24x128xf32>
    %81 = arith.mulf %80, %78 : vector<24x128xf32>
    %82 = arith.truncf %81 : vector<24x128xf32> to vector<24x128xbf16>
    %cst_29 = arith.constant dense<0.000000e+00> : vector<24x128xf32>
    %83 = tpu.matmul %82, %5, %cst_29 {dimension_numbers = #tpu.dot_dimension_numbers<[1], [0], [0], [1], [0, 0, 1, 1], [], []>} : vector<24x128xbf16>, vector<128x128xbf16>, vector<24x128xf32> -> vector<24x128xf32>
    %c0_30 = arith.constant 0 : index
    %c0_31 = arith.constant 0 : index
    %84 = vector.load %arg5[%c0_30, %c0_31] : memref<24x128xf32, #tpu.memory_space<vmem>>, vector<24x128xf32>
    tpu.vector_store %arg5[%c0_30, %c0_31], %83 {strides = array<i32>} : memref<24x128xf32, #tpu.memory_space<vmem>>, vector<24x128xf32>,
    return
  }
  func.func @transform_0(%arg0: i32) -> (i32, i32) {
    %c0_i32 = arith.constant 0 : i32
    %c0_i32_0 = arith.constant 0 : i32
    return %arg0, %c0_i32 : i32, i32
  }
  func.func @transform_1(%arg0: i32) -> (i32, i32) {
    %c0_i32 = arith.constant 0 : i32
    %c0_i32_0 = arith.constant 0 : i32
    %c0_i32_1 = arith.constant 0 : i32
    return %c0_i32, %c0_i32_0 : i32, i32
  }
  func.func @transform_2(%arg0: i32) -> (i32, i32) {
    %c0_i32 = arith.constant 0 : i32
    %c0_i32_0 = arith.constant 0 : i32
    %c0_i32_1 = arith.constant 0 : i32
    return %c0_i32, %c0_i32_0 : i32, i32
  }
  func.func @transform_3(%arg0: i32) -> (i32, i32) {
    %c0_i32 = arith.constant 0 : i32
    %c0_i32_0 = arith.constant 0 : i32
    %c0_i32_1 = arith.constant 0 : i32
    return %c0_i32, %c0_i32_0 : i32, i32
  }
  func.func @transform_4(%arg0: i32) -> (i32, i32) {
    %c0_i32 = arith.constant 0 : i32
    %c0_i32_0 = arith.constant 0 : i32
    return %arg0, %c0_i32 : i32, i32
  }
}

module attributes {stable_mosaic.version = 11 : i64} {
  func.func @_dense_kernel(%arg0: i32, %arg1: memref<24x128xf32, #tpu.memory_space<vmem>>, %arg2: memref<128x256xbf16, #tpu.memory_space<vmem>>, %arg3: memref<24x256xf32, #tpu.memory_space<vmem>>) attributes {dimension_semantics = [#tpu.dimension_semantics<parallel>], iteration_bounds = array<i64: 1>, scalar_prefetch = 0 : i64, scratch_operands = 0 : i64, tpu.core_type = #tpu.core_type<tc>, window_params = [{transform_indices = @transform_0, window_bounds = array<i64: 24, 128>}, {pipeline_mode = #tpu.pipeline_mode<synchronous>, transform_indices = @transform_1, window_bounds = array<i64: 128, 256>}, {transform_indices = @transform_2, window_bounds = array<i64: 24, 256>}]} {
    %c0 = arith.constant 0 : index
    %c0_0 = arith.constant 0 : index
    %0 = vector.load %arg1[%c0, %c0_0] : memref<24x128xf32, #tpu.memory_space<vmem>>, vector<24x128xf32>
    %1 = arith.truncf %0 : vector<24x128xf32> to vector<24x128xbf16>
    %c0_1 = arith.constant 0 : index
    %c0_2 = arith.constant 0 : index
    %2 = vector.load %arg2[%c0_1, %c0_2] : memref<128x256xbf16, #tpu.memory_space<vmem>>, vector<128x256xbf16>
    %cst = arith.constant dense<0.000000e+00> : vector<24x256xf32>
    %3 = tpu.matmul %1, %2, %cst {dimension_numbers = #tpu.dot_dimension_numbers<[1], [0], [0], [1], [0, 0, 1, 1], [], []>} : vector<24x128xbf16>, vector<128x256xbf16>, vector<24x256xf32> -> vector<24x256xf32>
    %c0_3 = arith.constant 0 : index
    %c0_4 = arith.constant 0 : index
    %4 = vector.load %arg3[%c0_3, %c0_4] : memref<24x256xf32, #tpu.memory_space<vmem>>, vector<24x256xf32>
    tpu.vector_store %arg3[%c0_3, %c0_4], %3 {strides = array<i32>} : memref<24x256xf32, #tpu.memory_space<vmem>>, vector<24x256xf32>,
    return
  }
  func.func @transform_0(%arg0: i32) -> (i32, i32) {
    %c0_i32 = arith.constant 0 : i32
    %c0_i32_0 = arith.constant 0 : i32
    return %arg0, %c0_i32 : i32, i32
  }
  func.func @transform_1(%arg0: i32) -> (i32, i32) {
    %c0_i32 = arith.constant 0 : i32
    %c0_i32_0 = arith.constant 0 : i32
    %c0_i32_1 = arith.constant 0 : i32
    return %c0_i32, %c0_i32_0 : i32, i32
  }
  func.func @transform_2(%arg0: i32) -> (i32, i32) {
    %c0_i32 = arith.constant 0 : i32
    %c0_i32_0 = arith.constant 0 : i32
    return %arg0, %c0_i32 : i32, i32
  }
}

module attributes {stable_mosaic.version = 11 : i64} {
  func.func @_glb_kernel(%arg0: i32, %arg1: memref<40x128xf32, #tpu.memory_space<vmem>>, %arg2: memref<40x128xf32, #tpu.memory_space<vmem>>, %arg3: memref<128x256xbf16, #tpu.memory_space<vmem>>, %arg4: memref<128x128xbf16, #tpu.memory_space<vmem>>, %arg5: memref<40x1xf32, #tpu.memory_space<vmem>>, %arg6: memref<40x128xf32, #tpu.memory_space<vmem>>) attributes {dimension_semantics = [#tpu.dimension_semantics<parallel>], iteration_bounds = array<i64: 1>, scalar_prefetch = 0 : i64, scratch_operands = 0 : i64, tpu.core_type = #tpu.core_type<tc>, window_params = [{transform_indices = @transform_0, window_bounds = array<i64: 40, 128>}, {transform_indices = @transform_1, window_bounds = array<i64: 40, 128>}, {pipeline_mode = #tpu.pipeline_mode<synchronous>, transform_indices = @transform_2, window_bounds = array<i64: 128, 256>}, {pipeline_mode = #tpu.pipeline_mode<synchronous>, transform_indices = @transform_3, window_bounds = array<i64: 128, 128>}, {transform_indices = @transform_4, window_bounds = array<i64: 40, 1>}, {transform_indices = @transform_5, window_bounds = array<i64: 40, 128>}]} {
    %c0 = arith.constant 0 : index
    %c0_0 = arith.constant 0 : index
    %0 = vector.load %arg1[%c0, %c0_0] : memref<40x128xf32, #tpu.memory_space<vmem>>, vector<40x128xf32>
    %c0_1 = arith.constant 0 : index
    %c0_2 = arith.constant 0 : index
    %1 = vector.load %arg2[%c0_1, %c0_2] : memref<40x128xf32, #tpu.memory_space<vmem>>, vector<40x128xf32>
    %c0_3 = arith.constant 0 : index
    %c0_4 = arith.constant 0 : index
    %2 = vector.load %arg3[%c0_3, %c0_4] : memref<128x256xbf16, #tpu.memory_space<vmem>>, vector<128x256xbf16>
    %c0_5 = arith.constant 0 : index
    %c0_6 = arith.constant 0 : index
    %3 = vector.load %arg4[%c0_5, %c0_6] : memref<128x128xbf16, #tpu.memory_space<vmem>>, vector<128x128xbf16>
    %4 = vector.extract_strided_slice %0 {offsets = [0, 0], sizes = [40, 32], strides = [1, 1]} : vector<40x128xf32> to vector<40x32xf32>
    %cst = arith.constant dense<0.000000e+00> : vector<40xf32>
    %5 = vector.multi_reduction <add>, %4, %cst [1] : vector<40x32xf32> to vector<40xf32>
    %6 = vector.shape_cast %5 : vector<40xf32> to vector<40x1xf32>
    %cst_7 = arith.constant 3.200000e+01 : f32
    %7 = vector.broadcast %cst_7 : f32 to vector<40x1xf32>
    %8 = arith.divf %6, %7 : vector<40x1xf32>
    %9 = vector.broadcast %8 : vector<40x1xf32> to vector<40x32xf32>
    %10 = arith.subf %4, %9 : vector<40x32xf32>
    %11 = arith.mulf %10, %10 : vector<40x32xf32>
    %cst_8 = arith.constant dense<0.000000e+00> : vector<40xf32>
    %12 = vector.multi_reduction <add>, %11, %cst_8 [1] : vector<40x32xf32> to vector<40xf32>
    %13 = vector.shape_cast %12 : vector<40xf32> to vector<40x1xf32>
    %cst_9 = arith.constant 3.200000e+01 : f32
    %14 = vector.broadcast %cst_9 : f32 to vector<40x1xf32>
    %15 = arith.divf %13, %14 : vector<40x1xf32>
    %cst_10 = arith.constant 9.99999974E-6 : f32
    %16 = vector.broadcast %cst_10 : f32 to vector<40x1xf32>
    %17 = arith.addf %15, %16 : vector<40x1xf32>
    %18 = math.rsqrt %17 : vector<40x1xf32>
    %19 = vector.broadcast %18 : vector<40x1xf32> to vector<40x32xf32>
    %20 = arith.mulf %10, %19 : vector<40x32xf32>
    %21 = vector.extract_strided_slice %0 {offsets = [0, 32], sizes = [40, 32], strides = [1, 1]} : vector<40x128xf32> to vector<40x32xf32>
    %cst_11 = arith.constant dense<0.000000e+00> : vector<40xf32>
    %22 = vector.multi_reduction <add>, %21, %cst_11 [1] : vector<40x32xf32> to vector<40xf32>
    %23 = vector.shape_cast %22 : vector<40xf32> to vector<40x1xf32>
    %cst_12 = arith.constant 3.200000e+01 : f32
    %24 = vector.broadcast %cst_12 : f32 to vector<40x1xf32>
    %25 = arith.divf %23, %24 : vector<40x1xf32>
    %26 = vector.broadcast %25 : vector<40x1xf32> to vector<40x32xf32>
    %27 = arith.subf %21, %26 : vector<40x32xf32>
    %28 = arith.mulf %27, %27 : vector<40x32xf32>
    %cst_13 = arith.constant dense<0.000000e+00> : vector<40xf32>
    %29 = vector.multi_reduction <add>, %28, %cst_13 [1] : vector<40x32xf32> to vector<40xf32>
    %30 = vector.shape_cast %29 : vector<40xf32> to vector<40x1xf32>
    %cst_14 = arith.constant 3.200000e+01 : f32
    %31 = vector.broadcast %cst_14 : f32 to vector<40x1xf32>
    %32 = arith.divf %30, %31 : vector<40x1xf32>
    %cst_15 = arith.constant 9.99999974E-6 : f32
    %33 = vector.broadcast %cst_15 : f32 to vector<40x1xf32>
    %34 = arith.addf %32, %33 : vector<40x1xf32>
    %35 = math.rsqrt %34 : vector<40x1xf32>
    %36 = vector.broadcast %35 : vector<40x1xf32> to vector<40x32xf32>
    %37 = arith.mulf %27, %36 : vector<40x32xf32>
    %38 = vector.extract_strided_slice %0 {offsets = [0, 64], sizes = [40, 32], strides = [1, 1]} : vector<40x128xf32> to vector<40x32xf32>
    %cst_16 = arith.constant dense<0.000000e+00> : vector<40xf32>
    %39 = vector.multi_reduction <add>, %38, %cst_16 [1] : vector<40x32xf32> to vector<40xf32>
    %40 = vector.shape_cast %39 : vector<40xf32> to vector<40x1xf32>
    %cst_17 = arith.constant 3.200000e+01 : f32
    %41 = vector.broadcast %cst_17 : f32 to vector<40x1xf32>
    %42 = arith.divf %40, %41 : vector<40x1xf32>
    %43 = vector.broadcast %42 : vector<40x1xf32> to vector<40x32xf32>
    %44 = arith.subf %38, %43 : vector<40x32xf32>
    %45 = arith.mulf %44, %44 : vector<40x32xf32>
    %cst_18 = arith.constant dense<0.000000e+00> : vector<40xf32>
    %46 = vector.multi_reduction <add>, %45, %cst_18 [1] : vector<40x32xf32> to vector<40xf32>
    %47 = vector.shape_cast %46 : vector<40xf32> to vector<40x1xf32>
    %cst_19 = arith.constant 3.200000e+01 : f32
    %48 = vector.broadcast %cst_19 : f32 to vector<40x1xf32>
    %49 = arith.divf %47, %48 : vector<40x1xf32>
    %cst_20 = arith.constant 9.99999974E-6 : f32
    %50 = vector.broadcast %cst_20 : f32 to vector<40x1xf32>
    %51 = arith.addf %49, %50 : vector<40x1xf32>
    %52 = math.rsqrt %51 : vector<40x1xf32>
    %53 = vector.broadcast %52 : vector<40x1xf32> to vector<40x32xf32>
    %54 = arith.mulf %44, %53 : vector<40x32xf32>
    %55 = vector.extract_strided_slice %0 {offsets = [0, 96], sizes = [40, 32], strides = [1, 1]} : vector<40x128xf32> to vector<40x32xf32>
    %cst_21 = arith.constant dense<0.000000e+00> : vector<40xf32>
    %56 = vector.multi_reduction <add>, %55, %cst_21 [1] : vector<40x32xf32> to vector<40xf32>
    %57 = vector.shape_cast %56 : vector<40xf32> to vector<40x1xf32>
    %cst_22 = arith.constant 3.200000e+01 : f32
    %58 = vector.broadcast %cst_22 : f32 to vector<40x1xf32>
    %59 = arith.divf %57, %58 : vector<40x1xf32>
    %60 = vector.broadcast %59 : vector<40x1xf32> to vector<40x32xf32>
    %61 = arith.subf %55, %60 : vector<40x32xf32>
    %62 = arith.mulf %61, %61 : vector<40x32xf32>
    %cst_23 = arith.constant dense<0.000000e+00> : vector<40xf32>
    %63 = vector.multi_reduction <add>, %62, %cst_23 [1] : vector<40x32xf32> to vector<40xf32>
    %64 = vector.shape_cast %63 : vector<40xf32> to vector<40x1xf32>
    %cst_24 = arith.constant 3.200000e+01 : f32
    %65 = vector.broadcast %cst_24 : f32 to vector<40x1xf32>
    %66 = arith.divf %64, %65 : vector<40x1xf32>
    %cst_25 = arith.constant 9.99999974E-6 : f32
    %67 = vector.broadcast %cst_25 : f32 to vector<40x1xf32>
    %68 = arith.addf %66, %67 : vector<40x1xf32>
    %69 = math.rsqrt %68 : vector<40x1xf32>
    %70 = vector.broadcast %69 : vector<40x1xf32> to vector<40x32xf32>
    %71 = arith.mulf %61, %70 : vector<40x32xf32>
    %72 = tpu.concatenate %20, %37, %54, %71 in 1 : vector<40x32xf32>, vector<40x32xf32>, vector<40x32xf32>, vector<40x32xf32> -> vector<40x128xf32>
    %73 = arith.addf %72, %1 : vector<40x128xf32>
    %74 = arith.truncf %73 : vector<40x128xf32> to vector<40x128xbf16>
    %75 = vector.extract_strided_slice %2 {offsets = [0, 0], sizes = [128, 128], strides = [1, 1]} : vector<128x256xbf16> to vector<128x128xbf16>
    %cst_26 = arith.constant dense<0.000000e+00> : vector<40x128xf32>
    %76 = tpu.matmul %74, %75, %cst_26 {dimension_numbers = #tpu.dot_dimension_numbers<[1], [0], [0], [1], [0, 0, 1, 1], [], []>} : vector<40x128xbf16>, vector<128x128xbf16>, vector<40x128xf32> -> vector<40x128xf32>
    %77 = arith.truncf %72 : vector<40x128xf32> to vector<40x128xbf16>
    %78 = vector.extract_strided_slice %2 {offsets = [0, 128], sizes = [128, 128], strides = [1, 1]} : vector<128x256xbf16> to vector<128x128xbf16>
    %cst_27 = arith.constant dense<0.000000e+00> : vector<40x128xf32>
    %79 = tpu.matmul %77, %78, %cst_27 {dimension_numbers = #tpu.dot_dimension_numbers<[1], [0], [0], [1], [0, 0, 1, 1], [], []>} : vector<40x128xbf16>, vector<128x128xbf16>, vector<40x128xf32> -> vector<40x128xf32>
    %cst_28 = arith.constant 0.000000e+00 : f32
    %80 = vector.broadcast %cst_28 : f32 to vector<40x128xf32>
    %81 = arith.maximumf %76, %80 : vector<40x128xf32>
    %82 = arith.mulf %81, %79 : vector<40x128xf32>
    %83 = arith.truncf %82 : vector<40x128xf32> to vector<40x128xbf16>
    %cst_29 = arith.constant dense<0.000000e+00> : vector<40x128xf32>
    %84 = tpu.matmul %83, %3, %cst_29 {dimension_numbers = #tpu.dot_dimension_numbers<[1], [0], [0], [1], [0, 0, 1, 1], [], []>} : vector<40x128xbf16>, vector<128x128xbf16>, vector<40x128xf32> -> vector<40x128xf32>
    %c0_30 = arith.constant 0 : index
    %c0_31 = arith.constant 0 : index
    %85 = vector.load %arg5[%c0_30, %c0_31] : memref<40x1xf32, #tpu.memory_space<vmem>>, vector<40x1xf32>
    %86 = vector.broadcast %85 : vector<40x1xf32> to vector<40x128xf32>
    %87 = arith.mulf %84, %86 : vector<40x128xf32>
    %c0_32 = arith.constant 0 : index
    %c0_33 = arith.constant 0 : index
    %88 = vector.load %arg6[%c0_32, %c0_33] : memref<40x128xf32, #tpu.memory_space<vmem>>, vector<40x128xf32>
    tpu.vector_store %arg6[%c0_32, %c0_33], %87 {strides = array<i32>} : memref<40x128xf32, #tpu.memory_space<vmem>>, vector<40x128xf32>,
    return
  }
  func.func @transform_0(%arg0: i32) -> (i32, i32) {
    %c0_i32 = arith.constant 0 : i32
    %c0_i32_0 = arith.constant 0 : i32
    return %arg0, %c0_i32 : i32, i32
  }
  func.func @transform_1(%arg0: i32) -> (i32, i32) {
    %c0_i32 = arith.constant 0 : i32
    %c0_i32_0 = arith.constant 0 : i32
    return %arg0, %c0_i32 : i32, i32
  }
  func.func @transform_2(%arg0: i32) -> (i32, i32) {
    %c0_i32 = arith.constant 0 : i32
    %c0_i32_0 = arith.constant 0 : i32
    %c0_i32_1 = arith.constant 0 : i32
    return %c0_i32, %c0_i32_0 : i32, i32
  }
  func.func @transform_3(%arg0: i32) -> (i32, i32) {
    %c0_i32 = arith.constant 0 : i32
    %c0_i32_0 = arith.constant 0 : i32
    %c0_i32_1 = arith.constant 0 : i32
    return %c0_i32, %c0_i32_0 : i32, i32
  }
  func.func @transform_4(%arg0: i32) -> (i32, i32) {
    %c0_i32 = arith.constant 0 : i32
    %c0_i32_0 = arith.constant 0 : i32
    return %arg0, %c0_i32 : i32, i32
  }
  func.func @transform_5(%arg0: i32) -> (i32, i32) {
    %c0_i32 = arith.constant 0 : i32
    %c0_i32_0 = arith.constant 0 : i32
    return %arg0, %c0_i32 : i32, i32
  }
}

module attributes {stable_mosaic.version = 11 : i64} {
  func.func @_glb_kernel(%arg0: i32, %arg1: memref<24x128xf32, #tpu.memory_space<vmem>>, %arg2: memref<24x128xf32, #tpu.memory_space<vmem>>, %arg3: memref<128x256xbf16, #tpu.memory_space<vmem>>, %arg4: memref<128x128xbf16, #tpu.memory_space<vmem>>, %arg5: memref<24x1xf32, #tpu.memory_space<vmem>>, %arg6: memref<24x128xf32, #tpu.memory_space<vmem>>) attributes {dimension_semantics = [#tpu.dimension_semantics<parallel>], iteration_bounds = array<i64: 1>, scalar_prefetch = 0 : i64, scratch_operands = 0 : i64, tpu.core_type = #tpu.core_type<tc>, window_params = [{transform_indices = @transform_0, window_bounds = array<i64: 24, 128>}, {transform_indices = @transform_1, window_bounds = array<i64: 24, 128>}, {pipeline_mode = #tpu.pipeline_mode<synchronous>, transform_indices = @transform_2, window_bounds = array<i64: 128, 256>}, {pipeline_mode = #tpu.pipeline_mode<synchronous>, transform_indices = @transform_3, window_bounds = array<i64: 128, 128>}, {transform_indices = @transform_4, window_bounds = array<i64: 24, 1>}, {transform_indices = @transform_5, window_bounds = array<i64: 24, 128>}]} {
    %c0 = arith.constant 0 : index
    %c0_0 = arith.constant 0 : index
    %0 = vector.load %arg1[%c0, %c0_0] : memref<24x128xf32, #tpu.memory_space<vmem>>, vector<24x128xf32>
    %c0_1 = arith.constant 0 : index
    %c0_2 = arith.constant 0 : index
    %1 = vector.load %arg2[%c0_1, %c0_2] : memref<24x128xf32, #tpu.memory_space<vmem>>, vector<24x128xf32>
    %c0_3 = arith.constant 0 : index
    %c0_4 = arith.constant 0 : index
    %2 = vector.load %arg3[%c0_3, %c0_4] : memref<128x256xbf16, #tpu.memory_space<vmem>>, vector<128x256xbf16>
    %c0_5 = arith.constant 0 : index
    %c0_6 = arith.constant 0 : index
    %3 = vector.load %arg4[%c0_5, %c0_6] : memref<128x128xbf16, #tpu.memory_space<vmem>>, vector<128x128xbf16>
    %4 = vector.extract_strided_slice %0 {offsets = [0, 0], sizes = [24, 32], strides = [1, 1]} : vector<24x128xf32> to vector<24x32xf32>
    %cst = arith.constant dense<0.000000e+00> : vector<24xf32>
    %5 = vector.multi_reduction <add>, %4, %cst [1] : vector<24x32xf32> to vector<24xf32>
    %6 = vector.shape_cast %5 : vector<24xf32> to vector<24x1xf32>
    %cst_7 = arith.constant 3.200000e+01 : f32
    %7 = vector.broadcast %cst_7 : f32 to vector<24x1xf32>
    %8 = arith.divf %6, %7 : vector<24x1xf32>
    %9 = vector.broadcast %8 : vector<24x1xf32> to vector<24x32xf32>
    %10 = arith.subf %4, %9 : vector<24x32xf32>
    %11 = arith.mulf %10, %10 : vector<24x32xf32>
    %cst_8 = arith.constant dense<0.000000e+00> : vector<24xf32>
    %12 = vector.multi_reduction <add>, %11, %cst_8 [1] : vector<24x32xf32> to vector<24xf32>
    %13 = vector.shape_cast %12 : vector<24xf32> to vector<24x1xf32>
    %cst_9 = arith.constant 3.200000e+01 : f32
    %14 = vector.broadcast %cst_9 : f32 to vector<24x1xf32>
    %15 = arith.divf %13, %14 : vector<24x1xf32>
    %cst_10 = arith.constant 9.99999974E-6 : f32
    %16 = vector.broadcast %cst_10 : f32 to vector<24x1xf32>
    %17 = arith.addf %15, %16 : vector<24x1xf32>
    %18 = math.rsqrt %17 : vector<24x1xf32>
    %19 = vector.broadcast %18 : vector<24x1xf32> to vector<24x32xf32>
    %20 = arith.mulf %10, %19 : vector<24x32xf32>
    %21 = vector.extract_strided_slice %0 {offsets = [0, 32], sizes = [24, 32], strides = [1, 1]} : vector<24x128xf32> to vector<24x32xf32>
    %cst_11 = arith.constant dense<0.000000e+00> : vector<24xf32>
    %22 = vector.multi_reduction <add>, %21, %cst_11 [1] : vector<24x32xf32> to vector<24xf32>
    %23 = vector.shape_cast %22 : vector<24xf32> to vector<24x1xf32>
    %cst_12 = arith.constant 3.200000e+01 : f32
    %24 = vector.broadcast %cst_12 : f32 to vector<24x1xf32>
    %25 = arith.divf %23, %24 : vector<24x1xf32>
    %26 = vector.broadcast %25 : vector<24x1xf32> to vector<24x32xf32>
    %27 = arith.subf %21, %26 : vector<24x32xf32>
    %28 = arith.mulf %27, %27 : vector<24x32xf32>
    %cst_13 = arith.constant dense<0.000000e+00> : vector<24xf32>
    %29 = vector.multi_reduction <add>, %28, %cst_13 [1] : vector<24x32xf32> to vector<24xf32>
    %30 = vector.shape_cast %29 : vector<24xf32> to vector<24x1xf32>
    %cst_14 = arith.constant 3.200000e+01 : f32
    %31 = vector.broadcast %cst_14 : f32 to vector<24x1xf32>
    %32 = arith.divf %30, %31 : vector<24x1xf32>
    %cst_15 = arith.constant 9.99999974E-6 : f32
    %33 = vector.broadcast %cst_15 : f32 to vector<24x1xf32>
    %34 = arith.addf %32, %33 : vector<24x1xf32>
    %35 = math.rsqrt %34 : vector<24x1xf32>
    %36 = vector.broadcast %35 : vector<24x1xf32> to vector<24x32xf32>
    %37 = arith.mulf %27, %36 : vector<24x32xf32>
    %38 = vector.extract_strided_slice %0 {offsets = [0, 64], sizes = [24, 32], strides = [1, 1]} : vector<24x128xf32> to vector<24x32xf32>
    %cst_16 = arith.constant dense<0.000000e+00> : vector<24xf32>
    %39 = vector.multi_reduction <add>, %38, %cst_16 [1] : vector<24x32xf32> to vector<24xf32>
    %40 = vector.shape_cast %39 : vector<24xf32> to vector<24x1xf32>
    %cst_17 = arith.constant 3.200000e+01 : f32
    %41 = vector.broadcast %cst_17 : f32 to vector<24x1xf32>
    %42 = arith.divf %40, %41 : vector<24x1xf32>
    %43 = vector.broadcast %42 : vector<24x1xf32> to vector<24x32xf32>
    %44 = arith.subf %38, %43 : vector<24x32xf32>
    %45 = arith.mulf %44, %44 : vector<24x32xf32>
    %cst_18 = arith.constant dense<0.000000e+00> : vector<24xf32>
    %46 = vector.multi_reduction <add>, %45, %cst_18 [1] : vector<24x32xf32> to vector<24xf32>
    %47 = vector.shape_cast %46 : vector<24xf32> to vector<24x1xf32>
    %cst_19 = arith.constant 3.200000e+01 : f32
    %48 = vector.broadcast %cst_19 : f32 to vector<24x1xf32>
    %49 = arith.divf %47, %48 : vector<24x1xf32>
    %cst_20 = arith.constant 9.99999974E-6 : f32
    %50 = vector.broadcast %cst_20 : f32 to vector<24x1xf32>
    %51 = arith.addf %49, %50 : vector<24x1xf32>
    %52 = math.rsqrt %51 : vector<24x1xf32>
    %53 = vector.broadcast %52 : vector<24x1xf32> to vector<24x32xf32>
    %54 = arith.mulf %44, %53 : vector<24x32xf32>
    %55 = vector.extract_strided_slice %0 {offsets = [0, 96], sizes = [24, 32], strides = [1, 1]} : vector<24x128xf32> to vector<24x32xf32>
    %cst_21 = arith.constant dense<0.000000e+00> : vector<24xf32>
    %56 = vector.multi_reduction <add>, %55, %cst_21 [1] : vector<24x32xf32> to vector<24xf32>
    %57 = vector.shape_cast %56 : vector<24xf32> to vector<24x1xf32>
    %cst_22 = arith.constant 3.200000e+01 : f32
    %58 = vector.broadcast %cst_22 : f32 to vector<24x1xf32>
    %59 = arith.divf %57, %58 : vector<24x1xf32>
    %60 = vector.broadcast %59 : vector<24x1xf32> to vector<24x32xf32>
    %61 = arith.subf %55, %60 : vector<24x32xf32>
    %62 = arith.mulf %61, %61 : vector<24x32xf32>
    %cst_23 = arith.constant dense<0.000000e+00> : vector<24xf32>
    %63 = vector.multi_reduction <add>, %62, %cst_23 [1] : vector<24x32xf32> to vector<24xf32>
    %64 = vector.shape_cast %63 : vector<24xf32> to vector<24x1xf32>
    %cst_24 = arith.constant 3.200000e+01 : f32
    %65 = vector.broadcast %cst_24 : f32 to vector<24x1xf32>
    %66 = arith.divf %64, %65 : vector<24x1xf32>
    %cst_25 = arith.constant 9.99999974E-6 : f32
    %67 = vector.broadcast %cst_25 : f32 to vector<24x1xf32>
    %68 = arith.addf %66, %67 : vector<24x1xf32>
    %69 = math.rsqrt %68 : vector<24x1xf32>
    %70 = vector.broadcast %69 : vector<24x1xf32> to vector<24x32xf32>
    %71 = arith.mulf %61, %70 : vector<24x32xf32>
    %72 = tpu.concatenate %20, %37, %54, %71 in 1 : vector<24x32xf32>, vector<24x32xf32>, vector<24x32xf32>, vector<24x32xf32> -> vector<24x128xf32>
    %73 = arith.addf %72, %1 : vector<24x128xf32>
    %74 = arith.truncf %73 : vector<24x128xf32> to vector<24x128xbf16>
    %75 = vector.extract_strided_slice %2 {offsets = [0, 0], sizes = [128, 128], strides = [1, 1]} : vector<128x256xbf16> to vector<128x128xbf16>
    %cst_26 = arith.constant dense<0.000000e+00> : vector<24x128xf32>
    %76 = tpu.matmul %74, %75, %cst_26 {dimension_numbers = #tpu.dot_dimension_numbers<[1], [0], [0], [1], [0, 0, 1, 1], [], []>} : vector<24x128xbf16>, vector<128x128xbf16>, vector<24x128xf32> -> vector<24x128xf32>
    %77 = arith.truncf %72 : vector<24x128xf32> to vector<24x128xbf16>
    %78 = vector.extract_strided_slice %2 {offsets = [0, 128], sizes = [128, 128], strides = [1, 1]} : vector<128x256xbf16> to vector<128x128xbf16>
    %cst_27 = arith.constant dense<0.000000e+00> : vector<24x128xf32>
    %79 = tpu.matmul %77, %78, %cst_27 {dimension_numbers = #tpu.dot_dimension_numbers<[1], [0], [0], [1], [0, 0, 1, 1], [], []>} : vector<24x128xbf16>, vector<128x128xbf16>, vector<24x128xf32> -> vector<24x128xf32>
    %cst_28 = arith.constant 0.000000e+00 : f32
    %80 = vector.broadcast %cst_28 : f32 to vector<24x128xf32>
    %81 = arith.maximumf %76, %80 : vector<24x128xf32>
    %82 = arith.mulf %81, %79 : vector<24x128xf32>
    %83 = arith.truncf %82 : vector<24x128xf32> to vector<24x128xbf16>
    %cst_29 = arith.constant dense<0.000000e+00> : vector<24x128xf32>
    %84 = tpu.matmul %83, %3, %cst_29 {dimension_numbers = #tpu.dot_dimension_numbers<[1], [0], [0], [1], [0, 0, 1, 1], [], []>} : vector<24x128xbf16>, vector<128x128xbf16>, vector<24x128xf32> -> vector<24x128xf32>
    %c0_30 = arith.constant 0 : index
    %c0_31 = arith.constant 0 : index
    %85 = vector.load %arg5[%c0_30, %c0_31] : memref<24x1xf32, #tpu.memory_space<vmem>>, vector<24x1xf32>
    %86 = vector.broadcast %85 : vector<24x1xf32> to vector<24x128xf32>
    %87 = arith.mulf %84, %86 : vector<24x128xf32>
    %c0_32 = arith.constant 0 : index
    %c0_33 = arith.constant 0 : index
    %88 = vector.load %arg6[%c0_32, %c0_33] : memref<24x128xf32, #tpu.memory_space<vmem>>, vector<24x128xf32>
    tpu.vector_store %arg6[%c0_32, %c0_33], %87 {strides = array<i32>} : memref<24x128xf32, #tpu.memory_space<vmem>>, vector<24x128xf32>,
    return
  }
  func.func @transform_0(%arg0: i32) -> (i32, i32) {
    %c0_i32 = arith.constant 0 : i32
    %c0_i32_0 = arith.constant 0 : i32
    return %arg0, %c0_i32 : i32, i32
  }
  func.func @transform_1(%arg0: i32) -> (i32, i32) {
    %c0_i32 = arith.constant 0 : i32
    %c0_i32_0 = arith.constant 0 : i32
    return %arg0, %c0_i32 : i32, i32
  }
  func.func @transform_2(%arg0: i32) -> (i32, i32) {
    %c0_i32 = arith.constant 0 : i32
    %c0_i32_0 = arith.constant 0 : i32
    %c0_i32_1 = arith.constant 0 : i32
    return %c0_i32, %c0_i32_0 : i32, i32
  }
  func.func @transform_3(%arg0: i32) -> (i32, i32) {
    %c0_i32 = arith.constant 0 : i32
    %c0_i32_0 = arith.constant 0 : i32
    %c0_i32_1 = arith.constant 0 : i32
    return %c0_i32, %c0_i32_0 : i32, i32
  }
  func.func @transform_4(%arg0: i32) -> (i32, i32) {
    %c0_i32 = arith.constant 0 : i32
    %c0_i32_0 = arith.constant 0 : i32
    return %arg0, %c0_i32 : i32, i32
  }
  func.func @transform_5(%arg0: i32) -> (i32, i32) {
    %c0_i32 = arith.constant 0 : i32
    %c0_i32_0 = arith.constant 0 : i32
    return %arg0, %c0_i32 : i32, i32
  }
}

module attributes {stable_mosaic.version = 11 : i64} {
  func.func @_glb_kernel(%arg0: i32, %arg1: memref<24x128xf32, #tpu.memory_space<vmem>>, %arg2: memref<24x128xf32, #tpu.memory_space<vmem>>, %arg3: memref<1x128xf32, #tpu.memory_space<vmem>>, %arg4: memref<1x128xf32, #tpu.memory_space<vmem>>, %arg5: memref<128x128xbf16, #tpu.memory_space<vmem>>, %arg6: memref<128x256xbf16, #tpu.memory_space<vmem>>, %arg7: memref<128x128xbf16, #tpu.memory_space<vmem>>, %arg8: memref<1x128xf32, #tpu.memory_space<vmem>>, %arg9: memref<1x128xf32, #tpu.memory_space<vmem>>, %arg10: memref<24x128xf32, #tpu.memory_space<vmem>>) attributes {dimension_semantics = [#tpu.dimension_semantics<parallel>], iteration_bounds = array<i64: 1>, scalar_prefetch = 0 : i64, scratch_operands = 0 : i64, tpu.core_type = #tpu.core_type<tc>, window_params = [{transform_indices = @transform_0, window_bounds = array<i64: 24, 128>}, {transform_indices = @transform_1, window_bounds = array<i64: 24, 128>}, {pipeline_mode = #tpu.pipeline_mode<synchronous>, transform_indices = @transform_2, window_bounds = array<i64: 1, 128>}, {pipeline_mode = #tpu.pipeline_mode<synchronous>, transform_indices = @transform_3, window_bounds = array<i64: 1, 128>}, {pipeline_mode = #tpu.pipeline_mode<synchronous>, transform_indices = @transform_4, window_bounds = array<i64: 128, 128>}, {pipeline_mode = #tpu.pipeline_mode<synchronous>, transform_indices = @transform_5, window_bounds = array<i64: 128, 256>}, {pipeline_mode = #tpu.pipeline_mode<synchronous>, transform_indices = @transform_6, window_bounds = array<i64: 128, 128>}, {pipeline_mode = #tpu.pipeline_mode<synchronous>, transform_indices = @transform_7, window_bounds = array<i64: 1, 128>}, {pipeline_mode = #tpu.pipeline_mode<synchronous>, transform_indices = @transform_8, window_bounds = array<i64: 1, 128>}, {transform_indices = @transform_9, window_bounds = array<i64: 24, 128>}]} {
    %c0 = arith.constant 0 : index
    %c0_0 = arith.constant 0 : index
    %0 = vector.load %arg1[%c0, %c0_0] : memref<24x128xf32, #tpu.memory_space<vmem>>, vector<24x128xf32>
    %c0_1 = arith.constant 0 : index
    %c0_2 = arith.constant 0 : index
    %1 = vector.load %arg2[%c0_1, %c0_2] : memref<24x128xf32, #tpu.memory_space<vmem>>, vector<24x128xf32>
    %c0_3 = arith.constant 0 : index
    %c0_4 = arith.constant 0 : index
    %2 = vector.load %arg3[%c0_3, %c0_4] : memref<1x128xf32, #tpu.memory_space<vmem>>, vector<1x128xf32>
    %c0_5 = arith.constant 0 : index
    %c0_6 = arith.constant 0 : index
    %3 = vector.load %arg4[%c0_5, %c0_6] : memref<1x128xf32, #tpu.memory_space<vmem>>, vector<1x128xf32>
    %4 = vector.broadcast %2 : vector<1x128xf32> to vector<24x128xf32>
    %5 = arith.mulf %4, %0 : vector<24x128xf32>
    %6 = vector.broadcast %3 : vector<1x128xf32> to vector<24x128xf32>
    %7 = arith.addf %5, %6 : vector<24x128xf32>
    %8 = arith.addf %7, %1 : vector<24x128xf32>
    %c0_7 = arith.constant 0 : index
    %c0_8 = arith.constant 0 : index
    %9 = vector.load %arg5[%c0_7, %c0_8] : memref<128x128xbf16, #tpu.memory_space<vmem>>, vector<128x128xbf16>
    %10 = arith.truncf %8 : vector<24x128xf32> to vector<24x128xbf16>
    %cst = arith.constant dense<0.000000e+00> : vector<24x128xf32>
    %11 = tpu.matmul %10, %9, %cst {dimension_numbers = #tpu.dot_dimension_numbers<[1], [0], [0], [1], [0, 0, 1, 1], [], []>} : vector<24x128xbf16>, vector<128x128xbf16>, vector<24x128xf32> -> vector<24x128xf32>
    %c0_9 = arith.constant 0 : index
    %c0_10 = arith.constant 0 : index
    %12 = vector.load %arg6[%c0_9, %c0_10] : memref<128x256xbf16, #tpu.memory_space<vmem>>, vector<128x256xbf16>
    %c0_11 = arith.constant 0 : index
    %c0_12 = arith.constant 0 : index
    %13 = vector.load %arg7[%c0_11, %c0_12] : memref<128x128xbf16, #tpu.memory_space<vmem>>, vector<128x128xbf16>
    %14 = vector.extract_strided_slice %11 {offsets = [0, 0], sizes = [24, 32], strides = [1, 1]} : vector<24x128xf32> to vector<24x32xf32>
    %cst_13 = arith.constant dense<0.000000e+00> : vector<24xf32>
    %15 = vector.multi_reduction <add>, %14, %cst_13 [1] : vector<24x32xf32> to vector<24xf32>
    %16 = vector.shape_cast %15 : vector<24xf32> to vector<24x1xf32>
    %cst_14 = arith.constant 3.200000e+01 : f32
    %17 = vector.broadcast %cst_14 : f32 to vector<24x1xf32>
    %18 = arith.divf %16, %17 : vector<24x1xf32>
    %19 = vector.broadcast %18 : vector<24x1xf32> to vector<24x32xf32>
    %20 = arith.subf %14, %19 : vector<24x32xf32>
    %21 = arith.mulf %20, %20 : vector<24x32xf32>
    %cst_15 = arith.constant dense<0.000000e+00> : vector<24xf32>
    %22 = vector.multi_reduction <add>, %21, %cst_15 [1] : vector<24x32xf32> to vector<24xf32>
    %23 = vector.shape_cast %22 : vector<24xf32> to vector<24x1xf32>
    %cst_16 = arith.constant 3.200000e+01 : f32
    %24 = vector.broadcast %cst_16 : f32 to vector<24x1xf32>
    %25 = arith.divf %23, %24 : vector<24x1xf32>
    %cst_17 = arith.constant 9.99999974E-6 : f32
    %26 = vector.broadcast %cst_17 : f32 to vector<24x1xf32>
    %27 = arith.addf %25, %26 : vector<24x1xf32>
    %28 = math.rsqrt %27 : vector<24x1xf32>
    %29 = vector.broadcast %28 : vector<24x1xf32> to vector<24x32xf32>
    %30 = arith.mulf %20, %29 : vector<24x32xf32>
    %31 = vector.extract_strided_slice %11 {offsets = [0, 32], sizes = [24, 32], strides = [1, 1]} : vector<24x128xf32> to vector<24x32xf32>
    %cst_18 = arith.constant dense<0.000000e+00> : vector<24xf32>
    %32 = vector.multi_reduction <add>, %31, %cst_18 [1] : vector<24x32xf32> to vector<24xf32>
    %33 = vector.shape_cast %32 : vector<24xf32> to vector<24x1xf32>
    %cst_19 = arith.constant 3.200000e+01 : f32
    %34 = vector.broadcast %cst_19 : f32 to vector<24x1xf32>
    %35 = arith.divf %33, %34 : vector<24x1xf32>
    %36 = vector.broadcast %35 : vector<24x1xf32> to vector<24x32xf32>
    %37 = arith.subf %31, %36 : vector<24x32xf32>
    %38 = arith.mulf %37, %37 : vector<24x32xf32>
    %cst_20 = arith.constant dense<0.000000e+00> : vector<24xf32>
    %39 = vector.multi_reduction <add>, %38, %cst_20 [1] : vector<24x32xf32> to vector<24xf32>
    %40 = vector.shape_cast %39 : vector<24xf32> to vector<24x1xf32>
    %cst_21 = arith.constant 3.200000e+01 : f32
    %41 = vector.broadcast %cst_21 : f32 to vector<24x1xf32>
    %42 = arith.divf %40, %41 : vector<24x1xf32>
    %cst_22 = arith.constant 9.99999974E-6 : f32
    %43 = vector.broadcast %cst_22 : f32 to vector<24x1xf32>
    %44 = arith.addf %42, %43 : vector<24x1xf32>
    %45 = math.rsqrt %44 : vector<24x1xf32>
    %46 = vector.broadcast %45 : vector<24x1xf32> to vector<24x32xf32>
    %47 = arith.mulf %37, %46 : vector<24x32xf32>
    %48 = vector.extract_strided_slice %11 {offsets = [0, 64], sizes = [24, 32], strides = [1, 1]} : vector<24x128xf32> to vector<24x32xf32>
    %cst_23 = arith.constant dense<0.000000e+00> : vector<24xf32>
    %49 = vector.multi_reduction <add>, %48, %cst_23 [1] : vector<24x32xf32> to vector<24xf32>
    %50 = vector.shape_cast %49 : vector<24xf32> to vector<24x1xf32>
    %cst_24 = arith.constant 3.200000e+01 : f32
    %51 = vector.broadcast %cst_24 : f32 to vector<24x1xf32>
    %52 = arith.divf %50, %51 : vector<24x1xf32>
    %53 = vector.broadcast %52 : vector<24x1xf32> to vector<24x32xf32>
    %54 = arith.subf %48, %53 : vector<24x32xf32>
    %55 = arith.mulf %54, %54 : vector<24x32xf32>
    %cst_25 = arith.constant dense<0.000000e+00> : vector<24xf32>
    %56 = vector.multi_reduction <add>, %55, %cst_25 [1] : vector<24x32xf32> to vector<24xf32>
    %57 = vector.shape_cast %56 : vector<24xf32> to vector<24x1xf32>
    %cst_26 = arith.constant 3.200000e+01 : f32
    %58 = vector.broadcast %cst_26 : f32 to vector<24x1xf32>
    %59 = arith.divf %57, %58 : vector<24x1xf32>
    %cst_27 = arith.constant 9.99999974E-6 : f32
    %60 = vector.broadcast %cst_27 : f32 to vector<24x1xf32>
    %61 = arith.addf %59, %60 : vector<24x1xf32>
    %62 = math.rsqrt %61 : vector<24x1xf32>
    %63 = vector.broadcast %62 : vector<24x1xf32> to vector<24x32xf32>
    %64 = arith.mulf %54, %63 : vector<24x32xf32>
    %65 = vector.extract_strided_slice %11 {offsets = [0, 96], sizes = [24, 32], strides = [1, 1]} : vector<24x128xf32> to vector<24x32xf32>
    %cst_28 = arith.constant dense<0.000000e+00> : vector<24xf32>
    %66 = vector.multi_reduction <add>, %65, %cst_28 [1] : vector<24x32xf32> to vector<24xf32>
    %67 = vector.shape_cast %66 : vector<24xf32> to vector<24x1xf32>
    %cst_29 = arith.constant 3.200000e+01 : f32
    %68 = vector.broadcast %cst_29 : f32 to vector<24x1xf32>
    %69 = arith.divf %67, %68 : vector<24x1xf32>
    %70 = vector.broadcast %69 : vector<24x1xf32> to vector<24x32xf32>
    %71 = arith.subf %65, %70 : vector<24x32xf32>
    %72 = arith.mulf %71, %71 : vector<24x32xf32>
    %cst_30 = arith.constant dense<0.000000e+00> : vector<24xf32>
    %73 = vector.multi_reduction <add>, %72, %cst_30 [1] : vector<24x32xf32> to vector<24xf32>
    %74 = vector.shape_cast %73 : vector<24xf32> to vector<24x1xf32>
    %cst_31 = arith.constant 3.200000e+01 : f32
    %75 = vector.broadcast %cst_31 : f32 to vector<24x1xf32>
    %76 = arith.divf %74, %75 : vector<24x1xf32>
    %cst_32 = arith.constant 9.99999974E-6 : f32
    %77 = vector.broadcast %cst_32 : f32 to vector<24x1xf32>
    %78 = arith.addf %76, %77 : vector<24x1xf32>
    %79 = math.rsqrt %78 : vector<24x1xf32>
    %80 = vector.broadcast %79 : vector<24x1xf32> to vector<24x32xf32>
    %81 = arith.mulf %71, %80 : vector<24x32xf32>
    %82 = tpu.concatenate %30, %47, %64, %81 in 1 : vector<24x32xf32>, vector<24x32xf32>, vector<24x32xf32>, vector<24x32xf32> -> vector<24x128xf32>
    %83 = arith.truncf %82 : vector<24x128xf32> to vector<24x128xbf16>
    %cst_33 = arith.constant dense<0.000000e+00> : vector<24x256xf32>
    %84 = tpu.matmul %83, %12, %cst_33 {dimension_numbers = #tpu.dot_dimension_numbers<[1], [0], [0], [1], [0, 0, 1, 1], [], []>} : vector<24x128xbf16>, vector<128x256xbf16>, vector<24x256xf32> -> vector<24x256xf32>
    %85 = vector.extract_strided_slice %84 {offsets = [0, 0], sizes = [24, 128], strides = [1, 1]} : vector<24x256xf32> to vector<24x128xf32>
    %86 = vector.extract_strided_slice %84 {offsets = [0, 128], sizes = [24, 128], strides = [1, 1]} : vector<24x256xf32> to vector<24x128xf32>
    %cst_34 = arith.constant 0.000000e+00 : f32
    %87 = vector.broadcast %cst_34 : f32 to vector<24x128xf32>
    %88 = arith.maximumf %85, %87 : vector<24x128xf32>
    %89 = arith.mulf %88, %86 : vector<24x128xf32>
    %90 = arith.truncf %89 : vector<24x128xf32> to vector<24x128xbf16>
    %cst_35 = arith.constant dense<0.000000e+00> : vector<24x128xf32>
    %91 = tpu.matmul %90, %13, %cst_35 {dimension_numbers = #tpu.dot_dimension_numbers<[1], [0], [0], [1], [0, 0, 1, 1], [], []>} : vector<24x128xbf16>, vector<128x128xbf16>, vector<24x128xf32> -> vector<24x128xf32>
    %c0_36 = arith.constant 0 : index
    %c0_37 = arith.constant 0 : index
    %92 = vector.load %arg8[%c0_36, %c0_37] : memref<1x128xf32, #tpu.memory_space<vmem>>, vector<1x128xf32>
    %c0_38 = arith.constant 0 : index
    %c0_39 = arith.constant 0 : index
    %93 = vector.load %arg9[%c0_38, %c0_39] : memref<1x128xf32, #tpu.memory_space<vmem>>, vector<1x128xf32>
    %94 = vector.broadcast %92 : vector<1x128xf32> to vector<24x128xf32>
    %95 = arith.mulf %94, %8 : vector<24x128xf32>
    %96 = vector.broadcast %93 : vector<1x128xf32> to vector<24x128xf32>
    %97 = arith.addf %95, %96 : vector<24x128xf32>
    %98 = arith.addf %97, %91 : vector<24x128xf32>
    %c0_40 = arith.constant 0 : index
    %c0_41 = arith.constant 0 : index
    %99 = vector.load %arg10[%c0_40, %c0_41] : memref<24x128xf32, #tpu.memory_space<vmem>>, vector<24x128xf32>
    tpu.vector_store %arg10[%c0_40, %c0_41], %98 {strides = array<i32>} : memref<24x128xf32, #tpu.memory_space<vmem>>, vector<24x128xf32>,
    return
  }
  func.func @transform_0(%arg0: i32) -> (i32, i32) {
    %c0_i32 = arith.constant 0 : i32
    %c0_i32_0 = arith.constant 0 : i32
    return %arg0, %c0_i32 : i32, i32
  }
  func.func @transform_1(%arg0: i32) -> (i32, i32) {
    %c0_i32 = arith.constant 0 : i32
    %c0_i32_0 = arith.constant 0 : i32
    return %arg0, %c0_i32 : i32, i32
  }
  func.func @transform_2(%arg0: i32) -> (i32, i32) {
    %c0_i32 = arith.constant 0 : i32
    %c0_i32_0 = arith.constant 0 : i32
    %c0_i32_1 = arith.constant 0 : i32
    return %c0_i32, %c0_i32_0 : i32, i32
  }
  func.func @transform_3(%arg0: i32) -> (i32, i32) {
    %c0_i32 = arith.constant 0 : i32
    %c0_i32_0 = arith.constant 0 : i32
    %c0_i32_1 = arith.constant 0 : i32
    return %c0_i32, %c0_i32_0 : i32, i32
  }
  func.func @transform_4(%arg0: i32) -> (i32, i32) {
    %c0_i32 = arith.constant 0 : i32
    %c0_i32_0 = arith.constant 0 : i32
    %c0_i32_1 = arith.constant 0 : i32
    return %c0_i32, %c0_i32_0 : i32, i32
  }
  func.func @transform_5(%arg0: i32) -> (i32, i32) {
    %c0_i32 = arith.constant 0 : i32
    %c0_i32_0 = arith.constant 0 : i32
    %c0_i32_1 = arith.constant 0 : i32
    return %c0_i32, %c0_i32_0 : i32, i32
  }
  func.func @transform_6(%arg0: i32) -> (i32, i32) {
    %c0_i32 = arith.constant 0 : i32
    %c0_i32_0 = arith.constant 0 : i32
    %c0_i32_1 = arith.constant 0 : i32
    return %c0_i32, %c0_i32_0 : i32, i32
  }
  func.func @transform_7(%arg0: i32) -> (i32, i32) {
    %c0_i32 = arith.constant 0 : i32
    %c0_i32_0 = arith.constant 0 : i32
    %c0_i32_1 = arith.constant 0 : i32
    return %c0_i32, %c0_i32_0 : i32, i32
  }
  func.func @transform_8(%arg0: i32) -> (i32, i32) {
    %c0_i32 = arith.constant 0 : i32
    %c0_i32_0 = arith.constant 0 : i32
    %c0_i32_1 = arith.constant 0 : i32
    return %c0_i32, %c0_i32_0 : i32, i32
  }
  func.func @transform_9(%arg0: i32) -> (i32, i32) {
    %c0_i32 = arith.constant 0 : i32
    %c0_i32_0 = arith.constant 0 : i32
    return %arg0, %c0_i32 : i32, i32
  }
}

module attributes {stable_mosaic.version = 11 : i64} {
  func.func @_glb_kernel(%arg0: i32, %arg1: memref<24x128xf32, #tpu.memory_space<vmem>>, %arg2: memref<24x128xf32, #tpu.memory_space<vmem>>, %arg3: memref<1x128xf32, #tpu.memory_space<vmem>>, %arg4: memref<1x128xf32, #tpu.memory_space<vmem>>, %arg5: memref<128x128xbf16, #tpu.memory_space<vmem>>, %arg6: memref<128x256xbf16, #tpu.memory_space<vmem>>, %arg7: memref<128x128xbf16, #tpu.memory_space<vmem>>, %arg8: memref<24x128xf32, #tpu.memory_space<vmem>>) attributes {dimension_semantics = [#tpu.dimension_semantics<parallel>], iteration_bounds = array<i64: 1>, scalar_prefetch = 0 : i64, scratch_operands = 0 : i64, tpu.core_type = #tpu.core_type<tc>, window_params = [{transform_indices = @transform_0, window_bounds = array<i64: 24, 128>}, {transform_indices = @transform_1, window_bounds = array<i64: 24, 128>}, {pipeline_mode = #tpu.pipeline_mode<synchronous>, transform_indices = @transform_2, window_bounds = array<i64: 1, 128>}, {pipeline_mode = #tpu.pipeline_mode<synchronous>, transform_indices = @transform_3, window_bounds = array<i64: 1, 128>}, {pipeline_mode = #tpu.pipeline_mode<synchronous>, transform_indices = @transform_4, window_bounds = array<i64: 128, 128>}, {pipeline_mode = #tpu.pipeline_mode<synchronous>, transform_indices = @transform_5, window_bounds = array<i64: 128, 256>}, {pipeline_mode = #tpu.pipeline_mode<synchronous>, transform_indices = @transform_6, window_bounds = array<i64: 128, 128>}, {transform_indices = @transform_7, window_bounds = array<i64: 24, 128>}]} {
    %c0 = arith.constant 0 : index
    %c0_0 = arith.constant 0 : index
    %0 = vector.load %arg1[%c0, %c0_0] : memref<24x128xf32, #tpu.memory_space<vmem>>, vector<24x128xf32>
    %c0_1 = arith.constant 0 : index
    %c0_2 = arith.constant 0 : index
    %1 = vector.load %arg2[%c0_1, %c0_2] : memref<24x128xf32, #tpu.memory_space<vmem>>, vector<24x128xf32>
    %c0_3 = arith.constant 0 : index
    %c0_4 = arith.constant 0 : index
    %2 = vector.load %arg3[%c0_3, %c0_4] : memref<1x128xf32, #tpu.memory_space<vmem>>, vector<1x128xf32>
    %c0_5 = arith.constant 0 : index
    %c0_6 = arith.constant 0 : index
    %3 = vector.load %arg4[%c0_5, %c0_6] : memref<1x128xf32, #tpu.memory_space<vmem>>, vector<1x128xf32>
    %4 = vector.broadcast %2 : vector<1x128xf32> to vector<24x128xf32>
    %5 = arith.mulf %4, %0 : vector<24x128xf32>
    %6 = vector.broadcast %3 : vector<1x128xf32> to vector<24x128xf32>
    %7 = arith.addf %5, %6 : vector<24x128xf32>
    %8 = arith.addf %7, %1 : vector<24x128xf32>
    %c0_7 = arith.constant 0 : index
    %c0_8 = arith.constant 0 : index
    %9 = vector.load %arg5[%c0_7, %c0_8] : memref<128x128xbf16, #tpu.memory_space<vmem>>, vector<128x128xbf16>
    %10 = arith.truncf %8 : vector<24x128xf32> to vector<24x128xbf16>
    %cst = arith.constant dense<0.000000e+00> : vector<24x128xf32>
    %11 = tpu.matmul %10, %9, %cst {dimension_numbers = #tpu.dot_dimension_numbers<[1], [0], [0], [1], [0, 0, 1, 1], [], []>} : vector<24x128xbf16>, vector<128x128xbf16>, vector<24x128xf32> -> vector<24x128xf32>
    %c0_9 = arith.constant 0 : index
    %c0_10 = arith.constant 0 : index
    %12 = vector.load %arg6[%c0_9, %c0_10] : memref<128x256xbf16, #tpu.memory_space<vmem>>, vector<128x256xbf16>
    %c0_11 = arith.constant 0 : index
    %c0_12 = arith.constant 0 : index
    %13 = vector.load %arg7[%c0_11, %c0_12] : memref<128x128xbf16, #tpu.memory_space<vmem>>, vector<128x128xbf16>
    %14 = vector.extract_strided_slice %11 {offsets = [0, 0], sizes = [24, 32], strides = [1, 1]} : vector<24x128xf32> to vector<24x32xf32>
    %cst_13 = arith.constant dense<0.000000e+00> : vector<24xf32>
    %15 = vector.multi_reduction <add>, %14, %cst_13 [1] : vector<24x32xf32> to vector<24xf32>
    %16 = vector.shape_cast %15 : vector<24xf32> to vector<24x1xf32>
    %cst_14 = arith.constant 3.200000e+01 : f32
    %17 = vector.broadcast %cst_14 : f32 to vector<24x1xf32>
    %18 = arith.divf %16, %17 : vector<24x1xf32>
    %19 = vector.broadcast %18 : vector<24x1xf32> to vector<24x32xf32>
    %20 = arith.subf %14, %19 : vector<24x32xf32>
    %21 = arith.mulf %20, %20 : vector<24x32xf32>
    %cst_15 = arith.constant dense<0.000000e+00> : vector<24xf32>
    %22 = vector.multi_reduction <add>, %21, %cst_15 [1] : vector<24x32xf32> to vector<24xf32>
    %23 = vector.shape_cast %22 : vector<24xf32> to vector<24x1xf32>
    %cst_16 = arith.constant 3.200000e+01 : f32
    %24 = vector.broadcast %cst_16 : f32 to vector<24x1xf32>
    %25 = arith.divf %23, %24 : vector<24x1xf32>
    %cst_17 = arith.constant 9.99999974E-6 : f32
    %26 = vector.broadcast %cst_17 : f32 to vector<24x1xf32>
    %27 = arith.addf %25, %26 : vector<24x1xf32>
    %28 = math.rsqrt %27 : vector<24x1xf32>
    %29 = vector.broadcast %28 : vector<24x1xf32> to vector<24x32xf32>
    %30 = arith.mulf %20, %29 : vector<24x32xf32>
    %31 = vector.extract_strided_slice %11 {offsets = [0, 32], sizes = [24, 32], strides = [1, 1]} : vector<24x128xf32> to vector<24x32xf32>
    %cst_18 = arith.constant dense<0.000000e+00> : vector<24xf32>
    %32 = vector.multi_reduction <add>, %31, %cst_18 [1] : vector<24x32xf32> to vector<24xf32>
    %33 = vector.shape_cast %32 : vector<24xf32> to vector<24x1xf32>
    %cst_19 = arith.constant 3.200000e+01 : f32
    %34 = vector.broadcast %cst_19 : f32 to vector<24x1xf32>
    %35 = arith.divf %33, %34 : vector<24x1xf32>
    %36 = vector.broadcast %35 : vector<24x1xf32> to vector<24x32xf32>
    %37 = arith.subf %31, %36 : vector<24x32xf32>
    %38 = arith.mulf %37, %37 : vector<24x32xf32>
    %cst_20 = arith.constant dense<0.000000e+00> : vector<24xf32>
    %39 = vector.multi_reduction <add>, %38, %cst_20 [1] : vector<24x32xf32> to vector<24xf32>
    %40 = vector.shape_cast %39 : vector<24xf32> to vector<24x1xf32>
    %cst_21 = arith.constant 3.200000e+01 : f32
    %41 = vector.broadcast %cst_21 : f32 to vector<24x1xf32>
    %42 = arith.divf %40, %41 : vector<24x1xf32>
    %cst_22 = arith.constant 9.99999974E-6 : f32
    %43 = vector.broadcast %cst_22 : f32 to vector<24x1xf32>
    %44 = arith.addf %42, %43 : vector<24x1xf32>
    %45 = math.rsqrt %44 : vector<24x1xf32>
    %46 = vector.broadcast %45 : vector<24x1xf32> to vector<24x32xf32>
    %47 = arith.mulf %37, %46 : vector<24x32xf32>
    %48 = vector.extract_strided_slice %11 {offsets = [0, 64], sizes = [24, 32], strides = [1, 1]} : vector<24x128xf32> to vector<24x32xf32>
    %cst_23 = arith.constant dense<0.000000e+00> : vector<24xf32>
    %49 = vector.multi_reduction <add>, %48, %cst_23 [1] : vector<24x32xf32> to vector<24xf32>
    %50 = vector.shape_cast %49 : vector<24xf32> to vector<24x1xf32>
    %cst_24 = arith.constant 3.200000e+01 : f32
    %51 = vector.broadcast %cst_24 : f32 to vector<24x1xf32>
    %52 = arith.divf %50, %51 : vector<24x1xf32>
    %53 = vector.broadcast %52 : vector<24x1xf32> to vector<24x32xf32>
    %54 = arith.subf %48, %53 : vector<24x32xf32>
    %55 = arith.mulf %54, %54 : vector<24x32xf32>
    %cst_25 = arith.constant dense<0.000000e+00> : vector<24xf32>
    %56 = vector.multi_reduction <add>, %55, %cst_25 [1] : vector<24x32xf32> to vector<24xf32>
    %57 = vector.shape_cast %56 : vector<24xf32> to vector<24x1xf32>
    %cst_26 = arith.constant 3.200000e+01 : f32
    %58 = vector.broadcast %cst_26 : f32 to vector<24x1xf32>
    %59 = arith.divf %57, %58 : vector<24x1xf32>
    %cst_27 = arith.constant 9.99999974E-6 : f32
    %60 = vector.broadcast %cst_27 : f32 to vector<24x1xf32>
    %61 = arith.addf %59, %60 : vector<24x1xf32>
    %62 = math.rsqrt %61 : vector<24x1xf32>
    %63 = vector.broadcast %62 : vector<24x1xf32> to vector<24x32xf32>
    %64 = arith.mulf %54, %63 : vector<24x32xf32>
    %65 = vector.extract_strided_slice %11 {offsets = [0, 96], sizes = [24, 32], strides = [1, 1]} : vector<24x128xf32> to vector<24x32xf32>
    %cst_28 = arith.constant dense<0.000000e+00> : vector<24xf32>
    %66 = vector.multi_reduction <add>, %65, %cst_28 [1] : vector<24x32xf32> to vector<24xf32>
    %67 = vector.shape_cast %66 : vector<24xf32> to vector<24x1xf32>
    %cst_29 = arith.constant 3.200000e+01 : f32
    %68 = vector.broadcast %cst_29 : f32 to vector<24x1xf32>
    %69 = arith.divf %67, %68 : vector<24x1xf32>
    %70 = vector.broadcast %69 : vector<24x1xf32> to vector<24x32xf32>
    %71 = arith.subf %65, %70 : vector<24x32xf32>
    %72 = arith.mulf %71, %71 : vector<24x32xf32>
    %cst_30 = arith.constant dense<0.000000e+00> : vector<24xf32>
    %73 = vector.multi_reduction <add>, %72, %cst_30 [1] : vector<24x32xf32> to vector<24xf32>
    %74 = vector.shape_cast %73 : vector<24xf32> to vector<24x1xf32>
    %cst_31 = arith.constant 3.200000e+01 : f32
    %75 = vector.broadcast %cst_31 : f32 to vector<24x1xf32>
    %76 = arith.divf %74, %75 : vector<24x1xf32>
    %cst_32 = arith.constant 9.99999974E-6 : f32
    %77 = vector.broadcast %cst_32 : f32 to vector<24x1xf32>
    %78 = arith.addf %76, %77 : vector<24x1xf32>
    %79 = math.rsqrt %78 : vector<24x1xf32>
    %80 = vector.broadcast %79 : vector<24x1xf32> to vector<24x32xf32>
    %81 = arith.mulf %71, %80 : vector<24x32xf32>
    %82 = tpu.concatenate %30, %47, %64, %81 in 1 : vector<24x32xf32>, vector<24x32xf32>, vector<24x32xf32>, vector<24x32xf32> -> vector<24x128xf32>
    %83 = arith.truncf %82 : vector<24x128xf32> to vector<24x128xbf16>
    %cst_33 = arith.constant dense<0.000000e+00> : vector<24x256xf32>
    %84 = tpu.matmul %83, %12, %cst_33 {dimension_numbers = #tpu.dot_dimension_numbers<[1], [0], [0], [1], [0, 0, 1, 1], [], []>} : vector<24x128xbf16>, vector<128x256xbf16>, vector<24x256xf32> -> vector<24x256xf32>
    %85 = vector.extract_strided_slice %84 {offsets = [0, 0], sizes = [24, 128], strides = [1, 1]} : vector<24x256xf32> to vector<24x128xf32>
    %86 = vector.extract_strided_slice %84 {offsets = [0, 128], sizes = [24, 128], strides = [1, 1]} : vector<24x256xf32> to vector<24x128xf32>
    %cst_34 = arith.constant 0.000000e+00 : f32
    %87 = vector.broadcast %cst_34 : f32 to vector<24x128xf32>
    %88 = arith.maximumf %85, %87 : vector<24x128xf32>
    %89 = arith.mulf %88, %86 : vector<24x128xf32>
    %90 = arith.truncf %89 : vector<24x128xf32> to vector<24x128xbf16>
    %cst_35 = arith.constant dense<0.000000e+00> : vector<24x128xf32>
    %91 = tpu.matmul %90, %13, %cst_35 {dimension_numbers = #tpu.dot_dimension_numbers<[1], [0], [0], [1], [0, 0, 1, 1], [], []>} : vector<24x128xbf16>, vector<128x128xbf16>, vector<24x128xf32> -> vector<24x128xf32>
    %c0_36 = arith.constant 0 : index
    %c0_37 = arith.constant 0 : index
    %92 = vector.load %arg8[%c0_36, %c0_37] : memref<24x128xf32, #tpu.memory_space<vmem>>, vector<24x128xf32>
    tpu.vector_store %arg8[%c0_36, %c0_37], %91 {strides = array<i32>} : memref<24x128xf32, #tpu.memory_space<vmem>>, vector<24x128xf32>,
    return
  }
  func.func @transform_0(%arg0: i32) -> (i32, i32) {
    %c0_i32 = arith.constant 0 : i32
    %c0_i32_0 = arith.constant 0 : i32
    return %arg0, %c0_i32 : i32, i32
  }
  func.func @transform_1(%arg0: i32) -> (i32, i32) {
    %c0_i32 = arith.constant 0 : i32
    %c0_i32_0 = arith.constant 0 : i32
    return %arg0, %c0_i32 : i32, i32
  }
  func.func @transform_2(%arg0: i32) -> (i32, i32) {
    %c0_i32 = arith.constant 0 : i32
    %c0_i32_0 = arith.constant 0 : i32
    %c0_i32_1 = arith.constant 0 : i32
    return %c0_i32, %c0_i32_0 : i32, i32
  }
  func.func @transform_3(%arg0: i32) -> (i32, i32) {
    %c0_i32 = arith.constant 0 : i32
    %c0_i32_0 = arith.constant 0 : i32
    %c0_i32_1 = arith.constant 0 : i32
    return %c0_i32, %c0_i32_0 : i32, i32
  }
  func.func @transform_4(%arg0: i32) -> (i32, i32) {
    %c0_i32 = arith.constant 0 : i32
    %c0_i32_0 = arith.constant 0 : i32
    %c0_i32_1 = arith.constant 0 : i32
    return %c0_i32, %c0_i32_0 : i32, i32
  }
  func.func @transform_5(%arg0: i32) -> (i32, i32) {
    %c0_i32 = arith.constant 0 : i32
    %c0_i32_0 = arith.constant 0 : i32
    %c0_i32_1 = arith.constant 0 : i32
    return %c0_i32, %c0_i32_0 : i32, i32
  }
  func.func @transform_6(%arg0: i32) -> (i32, i32) {
    %c0_i32 = arith.constant 0 : i32
    %c0_i32_0 = arith.constant 0 : i32
    %c0_i32_1 = arith.constant 0 : i32
    return %c0_i32, %c0_i32_0 : i32, i32
  }
  func.func @transform_7(%arg0: i32) -> (i32, i32) {
    %c0_i32 = arith.constant 0 : i32
    %c0_i32_0 = arith.constant 0 : i32
    return %arg0, %c0_i32 : i32, i32
  }
}

module attributes {stable_mosaic.version = 11 : i64} {
  func.func @_glb_kernel(%arg0: i32, %arg1: memref<24x128xf32, #tpu.memory_space<vmem>>, %arg2: memref<24x128xf32, #tpu.memory_space<vmem>>, %arg3: memref<128x128xbf16, #tpu.memory_space<vmem>>, %arg4: memref<1x128xf32, #tpu.memory_space<vmem>>, %arg5: memref<1x128xf32, #tpu.memory_space<vmem>>, %arg6: memref<128x128xbf16, #tpu.memory_space<vmem>>, %arg7: memref<128x256xbf16, #tpu.memory_space<vmem>>, %arg8: memref<128x128xbf16, #tpu.memory_space<vmem>>, %arg9: memref<24x128xf32, #tpu.memory_space<vmem>>) attributes {dimension_semantics = [#tpu.dimension_semantics<parallel>], iteration_bounds = array<i64: 1>, scalar_prefetch = 0 : i64, scratch_operands = 0 : i64, tpu.core_type = #tpu.core_type<tc>, window_params = [{transform_indices = @transform_0, window_bounds = array<i64: 24, 128>}, {transform_indices = @transform_1, window_bounds = array<i64: 24, 128>}, {pipeline_mode = #tpu.pipeline_mode<synchronous>, transform_indices = @transform_2, window_bounds = array<i64: 128, 128>}, {pipeline_mode = #tpu.pipeline_mode<synchronous>, transform_indices = @transform_3, window_bounds = array<i64: 1, 128>}, {pipeline_mode = #tpu.pipeline_mode<synchronous>, transform_indices = @transform_4, window_bounds = array<i64: 1, 128>}, {pipeline_mode = #tpu.pipeline_mode<synchronous>, transform_indices = @transform_5, window_bounds = array<i64: 128, 128>}, {pipeline_mode = #tpu.pipeline_mode<synchronous>, transform_indices = @transform_6, window_bounds = array<i64: 128, 256>}, {pipeline_mode = #tpu.pipeline_mode<synchronous>, transform_indices = @transform_7, window_bounds = array<i64: 128, 128>}, {transform_indices = @transform_8, window_bounds = array<i64: 24, 128>}]} {
    %c0 = arith.constant 0 : index
    %c0_0 = arith.constant 0 : index
    %0 = vector.load %arg1[%c0, %c0_0] : memref<24x128xf32, #tpu.memory_space<vmem>>, vector<24x128xf32>
    %c0_1 = arith.constant 0 : index
    %c0_2 = arith.constant 0 : index
    %1 = vector.load %arg2[%c0_1, %c0_2] : memref<24x128xf32, #tpu.memory_space<vmem>>, vector<24x128xf32>
    %c0_3 = arith.constant 0 : index
    %c0_4 = arith.constant 0 : index
    %2 = vector.load %arg3[%c0_3, %c0_4] : memref<128x128xbf16, #tpu.memory_space<vmem>>, vector<128x128xbf16>
    %c0_5 = arith.constant 0 : index
    %c0_6 = arith.constant 0 : index
    %3 = vector.load %arg4[%c0_5, %c0_6] : memref<1x128xf32, #tpu.memory_space<vmem>>, vector<1x128xf32>
    %c0_7 = arith.constant 0 : index
    %c0_8 = arith.constant 0 : index
    %4 = vector.load %arg5[%c0_7, %c0_8] : memref<1x128xf32, #tpu.memory_space<vmem>>, vector<1x128xf32>
    %5 = arith.truncf %1 : vector<24x128xf32> to vector<24x128xbf16>
    %cst = arith.constant dense<0.000000e+00> : vector<24x128xf32>
    %6 = tpu.matmul %5, %2, %cst {dimension_numbers = #tpu.dot_dimension_numbers<[1], [0], [0], [1], [0, 0, 1, 1], [], []>} : vector<24x128xbf16>, vector<128x128xbf16>, vector<24x128xf32> -> vector<24x128xf32>
    %7 = vector.extract_strided_slice %6 {offsets = [0, 0], sizes = [24, 32], strides = [1, 1]} : vector<24x128xf32> to vector<24x32xf32>
    %cst_9 = arith.constant dense<0.000000e+00> : vector<24xf32>
    %8 = vector.multi_reduction <add>, %7, %cst_9 [1] : vector<24x32xf32> to vector<24xf32>
    %9 = vector.shape_cast %8 : vector<24xf32> to vector<24x1xf32>
    %cst_10 = arith.constant 3.200000e+01 : f32
    %10 = vector.broadcast %cst_10 : f32 to vector<24x1xf32>
    %11 = arith.divf %9, %10 : vector<24x1xf32>
    %12 = vector.broadcast %11 : vector<24x1xf32> to vector<24x32xf32>
    %13 = arith.subf %7, %12 : vector<24x32xf32>
    %14 = arith.mulf %13, %13 : vector<24x32xf32>
    %cst_11 = arith.constant dense<0.000000e+00> : vector<24xf32>
    %15 = vector.multi_reduction <add>, %14, %cst_11 [1] : vector<24x32xf32> to vector<24xf32>
    %16 = vector.shape_cast %15 : vector<24xf32> to vector<24x1xf32>
    %cst_12 = arith.constant 3.200000e+01 : f32
    %17 = vector.broadcast %cst_12 : f32 to vector<24x1xf32>
    %18 = arith.divf %16, %17 : vector<24x1xf32>
    %cst_13 = arith.constant 9.99999974E-6 : f32
    %19 = vector.broadcast %cst_13 : f32 to vector<24x1xf32>
    %20 = arith.addf %18, %19 : vector<24x1xf32>
    %21 = math.rsqrt %20 : vector<24x1xf32>
    %22 = vector.broadcast %21 : vector<24x1xf32> to vector<24x32xf32>
    %23 = arith.mulf %13, %22 : vector<24x32xf32>
    %24 = vector.extract_strided_slice %6 {offsets = [0, 32], sizes = [24, 32], strides = [1, 1]} : vector<24x128xf32> to vector<24x32xf32>
    %cst_14 = arith.constant dense<0.000000e+00> : vector<24xf32>
    %25 = vector.multi_reduction <add>, %24, %cst_14 [1] : vector<24x32xf32> to vector<24xf32>
    %26 = vector.shape_cast %25 : vector<24xf32> to vector<24x1xf32>
    %cst_15 = arith.constant 3.200000e+01 : f32
    %27 = vector.broadcast %cst_15 : f32 to vector<24x1xf32>
    %28 = arith.divf %26, %27 : vector<24x1xf32>
    %29 = vector.broadcast %28 : vector<24x1xf32> to vector<24x32xf32>
    %30 = arith.subf %24, %29 : vector<24x32xf32>
    %31 = arith.mulf %30, %30 : vector<24x32xf32>
    %cst_16 = arith.constant dense<0.000000e+00> : vector<24xf32>
    %32 = vector.multi_reduction <add>, %31, %cst_16 [1] : vector<24x32xf32> to vector<24xf32>
    %33 = vector.shape_cast %32 : vector<24xf32> to vector<24x1xf32>
    %cst_17 = arith.constant 3.200000e+01 : f32
    %34 = vector.broadcast %cst_17 : f32 to vector<24x1xf32>
    %35 = arith.divf %33, %34 : vector<24x1xf32>
    %cst_18 = arith.constant 9.99999974E-6 : f32
    %36 = vector.broadcast %cst_18 : f32 to vector<24x1xf32>
    %37 = arith.addf %35, %36 : vector<24x1xf32>
    %38 = math.rsqrt %37 : vector<24x1xf32>
    %39 = vector.broadcast %38 : vector<24x1xf32> to vector<24x32xf32>
    %40 = arith.mulf %30, %39 : vector<24x32xf32>
    %41 = vector.extract_strided_slice %6 {offsets = [0, 64], sizes = [24, 32], strides = [1, 1]} : vector<24x128xf32> to vector<24x32xf32>
    %cst_19 = arith.constant dense<0.000000e+00> : vector<24xf32>
    %42 = vector.multi_reduction <add>, %41, %cst_19 [1] : vector<24x32xf32> to vector<24xf32>
    %43 = vector.shape_cast %42 : vector<24xf32> to vector<24x1xf32>
    %cst_20 = arith.constant 3.200000e+01 : f32
    %44 = vector.broadcast %cst_20 : f32 to vector<24x1xf32>
    %45 = arith.divf %43, %44 : vector<24x1xf32>
    %46 = vector.broadcast %45 : vector<24x1xf32> to vector<24x32xf32>
    %47 = arith.subf %41, %46 : vector<24x32xf32>
    %48 = arith.mulf %47, %47 : vector<24x32xf32>
    %cst_21 = arith.constant dense<0.000000e+00> : vector<24xf32>
    %49 = vector.multi_reduction <add>, %48, %cst_21 [1] : vector<24x32xf32> to vector<24xf32>
    %50 = vector.shape_cast %49 : vector<24xf32> to vector<24x1xf32>
    %cst_22 = arith.constant 3.200000e+01 : f32
    %51 = vector.broadcast %cst_22 : f32 to vector<24x1xf32>
    %52 = arith.divf %50, %51 : vector<24x1xf32>
    %cst_23 = arith.constant 9.99999974E-6 : f32
    %53 = vector.broadcast %cst_23 : f32 to vector<24x1xf32>
    %54 = arith.addf %52, %53 : vector<24x1xf32>
    %55 = math.rsqrt %54 : vector<24x1xf32>
    %56 = vector.broadcast %55 : vector<24x1xf32> to vector<24x32xf32>
    %57 = arith.mulf %47, %56 : vector<24x32xf32>
    %58 = vector.extract_strided_slice %6 {offsets = [0, 96], sizes = [24, 32], strides = [1, 1]} : vector<24x128xf32> to vector<24x32xf32>
    %cst_24 = arith.constant dense<0.000000e+00> : vector<24xf32>
    %59 = vector.multi_reduction <add>, %58, %cst_24 [1] : vector<24x32xf32> to vector<24xf32>
    %60 = vector.shape_cast %59 : vector<24xf32> to vector<24x1xf32>
    %cst_25 = arith.constant 3.200000e+01 : f32
    %61 = vector.broadcast %cst_25 : f32 to vector<24x1xf32>
    %62 = arith.divf %60, %61 : vector<24x1xf32>
    %63 = vector.broadcast %62 : vector<24x1xf32> to vector<24x32xf32>
    %64 = arith.subf %58, %63 : vector<24x32xf32>
    %65 = arith.mulf %64, %64 : vector<24x32xf32>
    %cst_26 = arith.constant dense<0.000000e+00> : vector<24xf32>
    %66 = vector.multi_reduction <add>, %65, %cst_26 [1] : vector<24x32xf32> to vector<24xf32>
    %67 = vector.shape_cast %66 : vector<24xf32> to vector<24x1xf32>
    %cst_27 = arith.constant 3.200000e+01 : f32
    %68 = vector.broadcast %cst_27 : f32 to vector<24x1xf32>
    %69 = arith.divf %67, %68 : vector<24x1xf32>
    %cst_28 = arith.constant 9.99999974E-6 : f32
    %70 = vector.broadcast %cst_28 : f32 to vector<24x1xf32>
    %71 = arith.addf %69, %70 : vector<24x1xf32>
    %72 = math.rsqrt %71 : vector<24x1xf32>
    %73 = vector.broadcast %72 : vector<24x1xf32> to vector<24x32xf32>
    %74 = arith.mulf %64, %73 : vector<24x32xf32>
    %75 = tpu.concatenate %23, %40, %57, %74 in 1 : vector<24x32xf32>, vector<24x32xf32>, vector<24x32xf32>, vector<24x32xf32> -> vector<24x128xf32>
    %76 = vector.broadcast %3 : vector<1x128xf32> to vector<24x128xf32>
    %77 = arith.mulf %76, %75 : vector<24x128xf32>
    %78 = vector.broadcast %4 : vector<1x128xf32> to vector<24x128xf32>
    %79 = arith.addf %77, %78 : vector<24x128xf32>
    %c0_29 = arith.constant 0 : index
    %c0_30 = arith.constant 0 : index
    %80 = vector.load %arg6[%c0_29, %c0_30] : memref<128x128xbf16, #tpu.memory_space<vmem>>, vector<128x128xbf16>
    %81 = arith.truncf %0 : vector<24x128xf32> to vector<24x128xbf16>
    %cst_31 = arith.constant dense<0.000000e+00> : vector<24x128xf32>
    %82 = tpu.matmul %81, %80, %cst_31 {dimension_numbers = #tpu.dot_dimension_numbers<[1], [0], [0], [1], [0, 0, 1, 1], [], []>} : vector<24x128xbf16>, vector<128x128xbf16>, vector<24x128xf32> -> vector<24x128xf32>
    %c0_32 = arith.constant 0 : index
    %c0_33 = arith.constant 0 : index
    %83 = vector.load %arg7[%c0_32, %c0_33] : memref<128x256xbf16, #tpu.memory_space<vmem>>, vector<128x256xbf16>
    %c0_34 = arith.constant 0 : index
    %c0_35 = arith.constant 0 : index
    %84 = vector.load %arg8[%c0_34, %c0_35] : memref<128x128xbf16, #tpu.memory_space<vmem>>, vector<128x128xbf16>
    %85 = vector.extract_strided_slice %82 {offsets = [0, 0], sizes = [24, 32], strides = [1, 1]} : vector<24x128xf32> to vector<24x32xf32>
    %cst_36 = arith.constant dense<0.000000e+00> : vector<24xf32>
    %86 = vector.multi_reduction <add>, %85, %cst_36 [1] : vector<24x32xf32> to vector<24xf32>
    %87 = vector.shape_cast %86 : vector<24xf32> to vector<24x1xf32>
    %cst_37 = arith.constant 3.200000e+01 : f32
    %88 = vector.broadcast %cst_37 : f32 to vector<24x1xf32>
    %89 = arith.divf %87, %88 : vector<24x1xf32>
    %90 = vector.broadcast %89 : vector<24x1xf32> to vector<24x32xf32>
    %91 = arith.subf %85, %90 : vector<24x32xf32>
    %92 = arith.mulf %91, %91 : vector<24x32xf32>
    %cst_38 = arith.constant dense<0.000000e+00> : vector<24xf32>
    %93 = vector.multi_reduction <add>, %92, %cst_38 [1] : vector<24x32xf32> to vector<24xf32>
    %94 = vector.shape_cast %93 : vector<24xf32> to vector<24x1xf32>
    %cst_39 = arith.constant 3.200000e+01 : f32
    %95 = vector.broadcast %cst_39 : f32 to vector<24x1xf32>
    %96 = arith.divf %94, %95 : vector<24x1xf32>
    %cst_40 = arith.constant 9.99999974E-6 : f32
    %97 = vector.broadcast %cst_40 : f32 to vector<24x1xf32>
    %98 = arith.addf %96, %97 : vector<24x1xf32>
    %99 = math.rsqrt %98 : vector<24x1xf32>
    %100 = vector.broadcast %99 : vector<24x1xf32> to vector<24x32xf32>
    %101 = arith.mulf %91, %100 : vector<24x32xf32>
    %102 = vector.extract_strided_slice %82 {offsets = [0, 32], sizes = [24, 32], strides = [1, 1]} : vector<24x128xf32> to vector<24x32xf32>
    %cst_41 = arith.constant dense<0.000000e+00> : vector<24xf32>
    %103 = vector.multi_reduction <add>, %102, %cst_41 [1] : vector<24x32xf32> to vector<24xf32>
    %104 = vector.shape_cast %103 : vector<24xf32> to vector<24x1xf32>
    %cst_42 = arith.constant 3.200000e+01 : f32
    %105 = vector.broadcast %cst_42 : f32 to vector<24x1xf32>
    %106 = arith.divf %104, %105 : vector<24x1xf32>
    %107 = vector.broadcast %106 : vector<24x1xf32> to vector<24x32xf32>
    %108 = arith.subf %102, %107 : vector<24x32xf32>
    %109 = arith.mulf %108, %108 : vector<24x32xf32>
    %cst_43 = arith.constant dense<0.000000e+00> : vector<24xf32>
    %110 = vector.multi_reduction <add>, %109, %cst_43 [1] : vector<24x32xf32> to vector<24xf32>
    %111 = vector.shape_cast %110 : vector<24xf32> to vector<24x1xf32>
    %cst_44 = arith.constant 3.200000e+01 : f32
    %112 = vector.broadcast %cst_44 : f32 to vector<24x1xf32>
    %113 = arith.divf %111, %112 : vector<24x1xf32>
    %cst_45 = arith.constant 9.99999974E-6 : f32
    %114 = vector.broadcast %cst_45 : f32 to vector<24x1xf32>
    %115 = arith.addf %113, %114 : vector<24x1xf32>
    %116 = math.rsqrt %115 : vector<24x1xf32>
    %117 = vector.broadcast %116 : vector<24x1xf32> to vector<24x32xf32>
    %118 = arith.mulf %108, %117 : vector<24x32xf32>
    %119 = vector.extract_strided_slice %82 {offsets = [0, 64], sizes = [24, 32], strides = [1, 1]} : vector<24x128xf32> to vector<24x32xf32>
    %cst_46 = arith.constant dense<0.000000e+00> : vector<24xf32>
    %120 = vector.multi_reduction <add>, %119, %cst_46 [1] : vector<24x32xf32> to vector<24xf32>
    %121 = vector.shape_cast %120 : vector<24xf32> to vector<24x1xf32>
    %cst_47 = arith.constant 3.200000e+01 : f32
    %122 = vector.broadcast %cst_47 : f32 to vector<24x1xf32>
    %123 = arith.divf %121, %122 : vector<24x1xf32>
    %124 = vector.broadcast %123 : vector<24x1xf32> to vector<24x32xf32>
    %125 = arith.subf %119, %124 : vector<24x32xf32>
    %126 = arith.mulf %125, %125 : vector<24x32xf32>
    %cst_48 = arith.constant dense<0.000000e+00> : vector<24xf32>
    %127 = vector.multi_reduction <add>, %126, %cst_48 [1] : vector<24x32xf32> to vector<24xf32>
    %128 = vector.shape_cast %127 : vector<24xf32> to vector<24x1xf32>
    %cst_49 = arith.constant 3.200000e+01 : f32
    %129 = vector.broadcast %cst_49 : f32 to vector<24x1xf32>
    %130 = arith.divf %128, %129 : vector<24x1xf32>
    %cst_50 = arith.constant 9.99999974E-6 : f32
    %131 = vector.broadcast %cst_50 : f32 to vector<24x1xf32>
    %132 = arith.addf %130, %131 : vector<24x1xf32>
    %133 = math.rsqrt %132 : vector<24x1xf32>
    %134 = vector.broadcast %133 : vector<24x1xf32> to vector<24x32xf32>
    %135 = arith.mulf %125, %134 : vector<24x32xf32>
    %136 = vector.extract_strided_slice %82 {offsets = [0, 96], sizes = [24, 32], strides = [1, 1]} : vector<24x128xf32> to vector<24x32xf32>
    %cst_51 = arith.constant dense<0.000000e+00> : vector<24xf32>
    %137 = vector.multi_reduction <add>, %136, %cst_51 [1] : vector<24x32xf32> to vector<24xf32>
    %138 = vector.shape_cast %137 : vector<24xf32> to vector<24x1xf32>
    %cst_52 = arith.constant 3.200000e+01 : f32
    %139 = vector.broadcast %cst_52 : f32 to vector<24x1xf32>
    %140 = arith.divf %138, %139 : vector<24x1xf32>
    %141 = vector.broadcast %140 : vector<24x1xf32> to vector<24x32xf32>
    %142 = arith.subf %136, %141 : vector<24x32xf32>
    %143 = arith.mulf %142, %142 : vector<24x32xf32>
    %cst_53 = arith.constant dense<0.000000e+00> : vector<24xf32>
    %144 = vector.multi_reduction <add>, %143, %cst_53 [1] : vector<24x32xf32> to vector<24xf32>
    %145 = vector.shape_cast %144 : vector<24xf32> to vector<24x1xf32>
    %cst_54 = arith.constant 3.200000e+01 : f32
    %146 = vector.broadcast %cst_54 : f32 to vector<24x1xf32>
    %147 = arith.divf %145, %146 : vector<24x1xf32>
    %cst_55 = arith.constant 9.99999974E-6 : f32
    %148 = vector.broadcast %cst_55 : f32 to vector<24x1xf32>
    %149 = arith.addf %147, %148 : vector<24x1xf32>
    %150 = math.rsqrt %149 : vector<24x1xf32>
    %151 = vector.broadcast %150 : vector<24x1xf32> to vector<24x32xf32>
    %152 = arith.mulf %142, %151 : vector<24x32xf32>
    %153 = tpu.concatenate %101, %118, %135, %152 in 1 : vector<24x32xf32>, vector<24x32xf32>, vector<24x32xf32>, vector<24x32xf32> -> vector<24x128xf32>
    %154 = arith.addf %153, %79 : vector<24x128xf32>
    %155 = arith.truncf %154 : vector<24x128xf32> to vector<24x128xbf16>
    %156 = vector.extract_strided_slice %83 {offsets = [0, 0], sizes = [128, 128], strides = [1, 1]} : vector<128x256xbf16> to vector<128x128xbf16>
    %cst_56 = arith.constant dense<0.000000e+00> : vector<24x128xf32>
    %157 = tpu.matmul %155, %156, %cst_56 {dimension_numbers = #tpu.dot_dimension_numbers<[1], [0], [0], [1], [0, 0, 1, 1], [], []>} : vector<24x128xbf16>, vector<128x128xbf16>, vector<24x128xf32> -> vector<24x128xf32>
    %158 = arith.truncf %153 : vector<24x128xf32> to vector<24x128xbf16>
    %159 = vector.extract_strided_slice %83 {offsets = [0, 128], sizes = [128, 128], strides = [1, 1]} : vector<128x256xbf16> to vector<128x128xbf16>
    %cst_57 = arith.constant dense<0.000000e+00> : vector<24x128xf32>
    %160 = tpu.matmul %158, %159, %cst_57 {dimension_numbers = #tpu.dot_dimension_numbers<[1], [0], [0], [1], [0, 0, 1, 1], [], []>} : vector<24x128xbf16>, vector<128x128xbf16>, vector<24x128xf32> -> vector<24x128xf32>
    %cst_58 = arith.constant 0.000000e+00 : f32
    %161 = vector.broadcast %cst_58 : f32 to vector<24x128xf32>
    %162 = arith.maximumf %157, %161 : vector<24x128xf32>
    %163 = arith.mulf %162, %160 : vector<24x128xf32>
    %164 = arith.truncf %163 : vector<24x128xf32> to vector<24x128xbf16>
    %cst_59 = arith.constant dense<0.000000e+00> : vector<24x128xf32>
    %165 = tpu.matmul %164, %84, %cst_59 {dimension_numbers = #tpu.dot_dimension_numbers<[1], [0], [0], [1], [0, 0, 1, 1], [], []>} : vector<24x128xbf16>, vector<128x128xbf16>, vector<24x128xf32> -> vector<24x128xf32>
    %c0_60 = arith.constant 0 : index
    %c0_61 = arith.constant 0 : index
    %166 = vector.load %arg9[%c0_60, %c0_61] : memref<24x128xf32, #tpu.memory_space<vmem>>, vector<24x128xf32>
    tpu.vector_store %arg9[%c0_60, %c0_61], %165 {strides = array<i32>} : memref<24x128xf32, #tpu.memory_space<vmem>>, vector<24x128xf32>,
    return
  }
  func.func @transform_0(%arg0: i32) -> (i32, i32) {
    %c0_i32 = arith.constant 0 : i32
    %c0_i32_0 = arith.constant 0 : i32
    return %arg0, %c0_i32 : i32, i32
  }
  func.func @transform_1(%arg0: i32) -> (i32, i32) {
    %c0_i32 = arith.constant 0 : i32
    %c0_i32_0 = arith.constant 0 : i32
    return %arg0, %c0_i32 : i32, i32
  }
  func.func @transform_2(%arg0: i32) -> (i32, i32) {
    %c0_i32 = arith.constant 0 : i32
    %c0_i32_0 = arith.constant 0 : i32
    %c0_i32_1 = arith.constant 0 : i32
    return %c0_i32, %c0_i32_0 : i32, i32
  }
  func.func @transform_3(%arg0: i32) -> (i32, i32) {
    %c0_i32 = arith.constant 0 : i32
    %c0_i32_0 = arith.constant 0 : i32
    %c0_i32_1 = arith.constant 0 : i32
    return %c0_i32, %c0_i32_0 : i32, i32
  }
  func.func @transform_4(%arg0: i32) -> (i32, i32) {
    %c0_i32 = arith.constant 0 : i32
    %c0_i32_0 = arith.constant 0 : i32
    %c0_i32_1 = arith.constant 0 : i32
    return %c0_i32, %c0_i32_0 : i32, i32
  }
  func.func @transform_5(%arg0: i32) -> (i32, i32) {
    %c0_i32 = arith.constant 0 : i32
    %c0_i32_0 = arith.constant 0 : i32
    %c0_i32_1 = arith.constant 0 : i32
    return %c0_i32, %c0_i32_0 : i32, i32
  }
  func.func @transform_6(%arg0: i32) -> (i32, i32) {
    %c0_i32 = arith.constant 0 : i32
    %c0_i32_0 = arith.constant 0 : i32
    %c0_i32_1 = arith.constant 0 : i32
    return %c0_i32, %c0_i32_0 : i32, i32
  }
  func.func @transform_7(%arg0: i32) -> (i32, i32) {
    %c0_i32 = arith.constant 0 : i32
    %c0_i32_0 = arith.constant 0 : i32
    %c0_i32_1 = arith.constant 0 : i32
    return %c0_i32, %c0_i32_0 : i32, i32
  }
  func.func @transform_8(%arg0: i32) -> (i32, i32) {
    %c0_i32 = arith.constant 0 : i32
    %c0_i32_0 = arith.constant 0 : i32
    return %arg0, %c0_i32 : i32, i32
  }
}

module attributes {stable_mosaic.version = 11 : i64} {
  func.func @_glb_kernel(%arg0: i32, %arg1: memref<8x128xf32, #tpu.memory_space<vmem>>, %arg2: memref<128x128xbf16, #tpu.memory_space<vmem>>, %arg3: memref<128x256xbf16, #tpu.memory_space<vmem>>, %arg4: memref<128x1xbf16, #tpu.memory_space<vmem>>, %arg5: memref<8x1xf32, #tpu.memory_space<vmem>>) attributes {dimension_semantics = [#tpu.dimension_semantics<parallel>], iteration_bounds = array<i64: 1>, scalar_prefetch = 0 : i64, scratch_operands = 0 : i64, tpu.core_type = #tpu.core_type<tc>, window_params = [{transform_indices = @transform_0, window_bounds = array<i64: 8, 128>}, {pipeline_mode = #tpu.pipeline_mode<synchronous>, transform_indices = @transform_1, window_bounds = array<i64: 128, 128>}, {pipeline_mode = #tpu.pipeline_mode<synchronous>, transform_indices = @transform_2, window_bounds = array<i64: 128, 256>}, {pipeline_mode = #tpu.pipeline_mode<synchronous>, transform_indices = @transform_3, window_bounds = array<i64: 128, 1>}, {transform_indices = @transform_4, window_bounds = array<i64: 8, 1>}]} {
    %c0 = arith.constant 0 : index
    %c0_0 = arith.constant 0 : index
    %0 = vector.load %arg1[%c0, %c0_0] : memref<8x128xf32, #tpu.memory_space<vmem>>, vector<8x128xf32>
    %c0_1 = arith.constant 0 : index
    %c0_2 = arith.constant 0 : index
    %1 = vector.load %arg2[%c0_1, %c0_2] : memref<128x128xbf16, #tpu.memory_space<vmem>>, vector<128x128xbf16>
    %2 = arith.truncf %0 : vector<8x128xf32> to vector<8x128xbf16>
    %cst = arith.constant dense<0.000000e+00> : vector<8x128xf32>
    %3 = tpu.matmul %2, %1, %cst {dimension_numbers = #tpu.dot_dimension_numbers<[1], [0], [0], [1], [0, 0, 1, 1], [], []>} : vector<8x128xbf16>, vector<128x128xbf16>, vector<8x128xf32> -> vector<8x128xf32>
    %c0_3 = arith.constant 0 : index
    %c0_4 = arith.constant 0 : index
    %4 = vector.load %arg3[%c0_3, %c0_4] : memref<128x256xbf16, #tpu.memory_space<vmem>>, vector<128x256xbf16>
    %c0_5 = arith.constant 0 : index
    %c0_6 = arith.constant 0 : index
    %5 = vector.load %arg4[%c0_5, %c0_6] : memref<128x1xbf16, #tpu.memory_space<vmem>>, vector<128x1xbf16>
    %6 = vector.extract_strided_slice %3 {offsets = [0, 0], sizes = [8, 32], strides = [1, 1]} : vector<8x128xf32> to vector<8x32xf32>
    %cst_7 = arith.constant dense<0.000000e+00> : vector<8xf32>
    %7 = vector.multi_reduction <add>, %6, %cst_7 [1] : vector<8x32xf32> to vector<8xf32>
    %8 = vector.shape_cast %7 : vector<8xf32> to vector<8x1xf32>
    %cst_8 = arith.constant 3.200000e+01 : f32
    %9 = vector.broadcast %cst_8 : f32 to vector<8x1xf32>
    %10 = arith.divf %8, %9 : vector<8x1xf32>
    %11 = vector.broadcast %10 : vector<8x1xf32> to vector<8x32xf32>
    %12 = arith.subf %6, %11 : vector<8x32xf32>
    %13 = arith.mulf %12, %12 : vector<8x32xf32>
    %cst_9 = arith.constant dense<0.000000e+00> : vector<8xf32>
    %14 = vector.multi_reduction <add>, %13, %cst_9 [1] : vector<8x32xf32> to vector<8xf32>
    %15 = vector.shape_cast %14 : vector<8xf32> to vector<8x1xf32>
    %cst_10 = arith.constant 3.200000e+01 : f32
    %16 = vector.broadcast %cst_10 : f32 to vector<8x1xf32>
    %17 = arith.divf %15, %16 : vector<8x1xf32>
    %cst_11 = arith.constant 9.99999974E-6 : f32
    %18 = vector.broadcast %cst_11 : f32 to vector<8x1xf32>
    %19 = arith.addf %17, %18 : vector<8x1xf32>
    %20 = math.rsqrt %19 : vector<8x1xf32>
    %21 = vector.broadcast %20 : vector<8x1xf32> to vector<8x32xf32>
    %22 = arith.mulf %12, %21 : vector<8x32xf32>
    %23 = vector.extract_strided_slice %3 {offsets = [0, 32], sizes = [8, 32], strides = [1, 1]} : vector<8x128xf32> to vector<8x32xf32>
    %cst_12 = arith.constant dense<0.000000e+00> : vector<8xf32>
    %24 = vector.multi_reduction <add>, %23, %cst_12 [1] : vector<8x32xf32> to vector<8xf32>
    %25 = vector.shape_cast %24 : vector<8xf32> to vector<8x1xf32>
    %cst_13 = arith.constant 3.200000e+01 : f32
    %26 = vector.broadcast %cst_13 : f32 to vector<8x1xf32>
    %27 = arith.divf %25, %26 : vector<8x1xf32>
    %28 = vector.broadcast %27 : vector<8x1xf32> to vector<8x32xf32>
    %29 = arith.subf %23, %28 : vector<8x32xf32>
    %30 = arith.mulf %29, %29 : vector<8x32xf32>
    %cst_14 = arith.constant dense<0.000000e+00> : vector<8xf32>
    %31 = vector.multi_reduction <add>, %30, %cst_14 [1] : vector<8x32xf32> to vector<8xf32>
    %32 = vector.shape_cast %31 : vector<8xf32> to vector<8x1xf32>
    %cst_15 = arith.constant 3.200000e+01 : f32
    %33 = vector.broadcast %cst_15 : f32 to vector<8x1xf32>
    %34 = arith.divf %32, %33 : vector<8x1xf32>
    %cst_16 = arith.constant 9.99999974E-6 : f32
    %35 = vector.broadcast %cst_16 : f32 to vector<8x1xf32>
    %36 = arith.addf %34, %35 : vector<8x1xf32>
    %37 = math.rsqrt %36 : vector<8x1xf32>
    %38 = vector.broadcast %37 : vector<8x1xf32> to vector<8x32xf32>
    %39 = arith.mulf %29, %38 : vector<8x32xf32>
    %40 = vector.extract_strided_slice %3 {offsets = [0, 64], sizes = [8, 32], strides = [1, 1]} : vector<8x128xf32> to vector<8x32xf32>
    %cst_17 = arith.constant dense<0.000000e+00> : vector<8xf32>
    %41 = vector.multi_reduction <add>, %40, %cst_17 [1] : vector<8x32xf32> to vector<8xf32>
    %42 = vector.shape_cast %41 : vector<8xf32> to vector<8x1xf32>
    %cst_18 = arith.constant 3.200000e+01 : f32
    %43 = vector.broadcast %cst_18 : f32 to vector<8x1xf32>
    %44 = arith.divf %42, %43 : vector<8x1xf32>
    %45 = vector.broadcast %44 : vector<8x1xf32> to vector<8x32xf32>
    %46 = arith.subf %40, %45 : vector<8x32xf32>
    %47 = arith.mulf %46, %46 : vector<8x32xf32>
    %cst_19 = arith.constant dense<0.000000e+00> : vector<8xf32>
    %48 = vector.multi_reduction <add>, %47, %cst_19 [1] : vector<8x32xf32> to vector<8xf32>
    %49 = vector.shape_cast %48 : vector<8xf32> to vector<8x1xf32>
    %cst_20 = arith.constant 3.200000e+01 : f32
    %50 = vector.broadcast %cst_20 : f32 to vector<8x1xf32>
    %51 = arith.divf %49, %50 : vector<8x1xf32>
    %cst_21 = arith.constant 9.99999974E-6 : f32
    %52 = vector.broadcast %cst_21 : f32 to vector<8x1xf32>
    %53 = arith.addf %51, %52 : vector<8x1xf32>
    %54 = math.rsqrt %53 : vector<8x1xf32>
    %55 = vector.broadcast %54 : vector<8x1xf32> to vector<8x32xf32>
    %56 = arith.mulf %46, %55 : vector<8x32xf32>
    %57 = vector.extract_strided_slice %3 {offsets = [0, 96], sizes = [8, 32], strides = [1, 1]} : vector<8x128xf32> to vector<8x32xf32>
    %cst_22 = arith.constant dense<0.000000e+00> : vector<8xf32>
    %58 = vector.multi_reduction <add>, %57, %cst_22 [1] : vector<8x32xf32> to vector<8xf32>
    %59 = vector.shape_cast %58 : vector<8xf32> to vector<8x1xf32>
    %cst_23 = arith.constant 3.200000e+01 : f32
    %60 = vector.broadcast %cst_23 : f32 to vector<8x1xf32>
    %61 = arith.divf %59, %60 : vector<8x1xf32>
    %62 = vector.broadcast %61 : vector<8x1xf32> to vector<8x32xf32>
    %63 = arith.subf %57, %62 : vector<8x32xf32>
    %64 = arith.mulf %63, %63 : vector<8x32xf32>
    %cst_24 = arith.constant dense<0.000000e+00> : vector<8xf32>
    %65 = vector.multi_reduction <add>, %64, %cst_24 [1] : vector<8x32xf32> to vector<8xf32>
    %66 = vector.shape_cast %65 : vector<8xf32> to vector<8x1xf32>
    %cst_25 = arith.constant 3.200000e+01 : f32
    %67 = vector.broadcast %cst_25 : f32 to vector<8x1xf32>
    %68 = arith.divf %66, %67 : vector<8x1xf32>
    %cst_26 = arith.constant 9.99999974E-6 : f32
    %69 = vector.broadcast %cst_26 : f32 to vector<8x1xf32>
    %70 = arith.addf %68, %69 : vector<8x1xf32>
    %71 = math.rsqrt %70 : vector<8x1xf32>
    %72 = vector.broadcast %71 : vector<8x1xf32> to vector<8x32xf32>
    %73 = arith.mulf %63, %72 : vector<8x32xf32>
    %74 = tpu.concatenate %22, %39, %56, %73 in 1 : vector<8x32xf32>, vector<8x32xf32>, vector<8x32xf32>, vector<8x32xf32> -> vector<8x128xf32>
    %75 = arith.truncf %74 : vector<8x128xf32> to vector<8x128xbf16>
    %cst_27 = arith.constant dense<0.000000e+00> : vector<8x256xf32>
    %76 = tpu.matmul %75, %4, %cst_27 {dimension_numbers = #tpu.dot_dimension_numbers<[1], [0], [0], [1], [0, 0, 1, 1], [], []>} : vector<8x128xbf16>, vector<128x256xbf16>, vector<8x256xf32> -> vector<8x256xf32>
    %77 = vector.extract_strided_slice %76 {offsets = [0, 0], sizes = [8, 128], strides = [1, 1]} : vector<8x256xf32> to vector<8x128xf32>
    %78 = vector.extract_strided_slice %76 {offsets = [0, 128], sizes = [8, 128], strides = [1, 1]} : vector<8x256xf32> to vector<8x128xf32>
    %cst_28 = arith.constant 0.000000e+00 : f32
    %79 = vector.broadcast %cst_28 : f32 to vector<8x128xf32>
    %80 = arith.maximumf %77, %79 : vector<8x128xf32>
    %81 = arith.mulf %80, %78 : vector<8x128xf32>
    %82 = arith.truncf %81 : vector<8x128xf32> to vector<8x128xbf16>
    %cst_29 = arith.constant dense<0.000000e+00> : vector<8x1xf32>
    %83 = tpu.matmul %82, %5, %cst_29 {dimension_numbers = #tpu.dot_dimension_numbers<[1], [0], [0], [1], [0, 0, 1, 1], [], []>} : vector<8x128xbf16>, vector<128x1xbf16>, vector<8x1xf32> -> vector<8x1xf32>
    %c0_30 = arith.constant 0 : index
    %c0_31 = arith.constant 0 : index
    %84 = vector.load %arg5[%c0_30, %c0_31] : memref<8x1xf32, #tpu.memory_space<vmem>>, vector<8x1xf32>
    tpu.vector_store %arg5[%c0_30, %c0_31], %83 {strides = array<i32>} : memref<8x1xf32, #tpu.memory_space<vmem>>, vector<8x1xf32>,
    return
  }
  func.func @transform_0(%arg0: i32) -> (i32, i32) {
    %c0_i32 = arith.constant 0 : i32
    %c0_i32_0 = arith.constant 0 : i32
    return %arg0, %c0_i32 : i32, i32
  }
  func.func @transform_1(%arg0: i32) -> (i32, i32) {
    %c0_i32 = arith.constant 0 : i32
    %c0_i32_0 = arith.constant 0 : i32
    %c0_i32_1 = arith.constant 0 : i32
    return %c0_i32, %c0_i32_0 : i32, i32
  }
  func.func @transform_2(%arg0: i32) -> (i32, i32) {
    %c0_i32 = arith.constant 0 : i32
    %c0_i32_0 = arith.constant 0 : i32
    %c0_i32_1 = arith.constant 0 : i32
    return %c0_i32, %c0_i32_0 : i32, i32
  }
  func.func @transform_3(%arg0: i32) -> (i32, i32) {
    %c0_i32 = arith.constant 0 : i32
    %c0_i32_0 = arith.constant 0 : i32
    %c0_i32_1 = arith.constant 0 : i32
    return %c0_i32, %c0_i32_0 : i32, i32
  }
  func.func @transform_4(%arg0: i32) -> (i32, i32) {
    %c0_i32 = arith.constant 0 : i32
    %c0_i32_0 = arith.constant 0 : i32
    return %arg0, %c0_i32 : i32, i32
  }
}

</mosaic_0001>

<llo_original>
// kernel: metagin_forward.19
$region0: #{metagin_forward.19}
  #allocation0 [shape = 'u32[]', space=smem, size = 0x4, offset = 0x4, fixed_abs, tag = 'smem constant byte address 0x4 - core index']
  #allocation1 [shape = 'u32[144,128]{1,0:T(1,128)}', space=vmem, size = 0x12000, scoped, tag = 'internal scratch']
  %s0 = inlined_call_operand.hbm [shape: f32[24,128], index: 0, kind: input, shape index: {}]
  %s1 = inlined_call_operand.hbm [shape: bf16[128,256], index: 1, kind: input, shape index: {}]
  %s2 = inlined_call_operand.hbm [shape: f32[24,256], index: 2, kind: output, shape index: {}]
  %s3 = sld [smem:[#allocation0]]
  $region26: #{metagin_forward.19} parent=0
    _
  %s5 = ssub.s32 1, %s3
  %s6 = scalar_select 0, %s5, %s3
  $region1: #{metagin_forward.19} parent=0
    #allocation2 [shape = 'u8[12288]{0}', space=vmem, size = 0x3000, scoped, tag = 'input window, operand 0, single buffered']
    #allocation3 [shape = 's32[1]{0}', space=sflag, size = 0x4, scoped, tag = 'scoped memory for metagin_forward.19']
    #allocation4 [shape = 's32[1]{0}', space=sflag, size = 0x4, scoped, tag = 'scoped memory for metagin_forward.19']
    #allocation5 [shape = 'u8[65536]{0}', space=vmem, size = 0x10000, scoped, tag = 'input window, operand 1, single buffered']
    #allocation6 [shape = 's32[1]{0}', space=sflag, size = 0x4, scoped, tag = 'scoped memory for metagin_forward.19']
    #allocation7 [shape = 'u8[24576]{0}', space=vmem, size = 0x6000, scoped, tag = 'output window, operand 0, single buffered']
    %7 = vsyncpa [#allocation3], 0
    %8 = vsyncpa [#allocation6], 0
    %9 = vsyncpa [#allocation4], 0
    // Predicated region
    $region2: #{metagin_forward.19} parent=1 // pred_check
      _
    $region3: #{metagin_forward.19} parent=1 // pred_check_branch
      %11 = sbr.rel (0) target = $region5
    $region4: #{metagin_forward.19} parent=1 // pred_region
      %s13 = ssub.s32 384, 384
      %14 = vsyncadd [#allocation3], %s13
      %s15 = sshll.u32 [#allocation2], 4
      %s16 = int_to_ptr.vmem [resolvable:$true] %s15
      %21 = dma.hbm_to_vmem [thread:$0]  %s0, 384, %s16, [#allocation3], 128, 128, 8
    $region5: #{metagin_forward.19} parent=1 // pred_fallthru
      _
    // Predicated region
    $region6: #{metagin_forward.19} parent=1 // pred_check
      _
    $region7: #{metagin_forward.19} parent=1 // pred_check_branch
      %23 = sbr.rel (0) target = $region9
    $region8: #{metagin_forward.19} parent=1 // pred_region
      %s25 = ssub.s32 2048, 2048
      %26 = vsyncadd [#allocation6], %s25
      %s27 = sshll.u32 [#allocation5], 4
      %s28 = int_to_ptr.vmem [resolvable:$true] %s27
      %33 = dma.hbm_to_vmem [thread:$0]  %s1, 2048, %s28, [#allocation6], 128, 128, 8
    $region9: #{metagin_forward.19} parent=1 // pred_fallthru
      _
    // Predicated region
    $region10: #{metagin_forward.19} parent=1 // pred_check
      _
    $region11: #{metagin_forward.19} parent=1 // pred_check_branch
      %35 = sbr.rel (0) target = $region13
    $region12: #{metagin_forward.19} parent=1 // pred_region
      %36 = dma.done [#allocation3], 384
    $region13: #{metagin_forward.19} parent=1 // pred_fallthru
      _
    // Predicated region
    $region14: #{metagin_forward.19} parent=1 // pred_check
      _
    $region15: #{metagin_forward.19} parent=1 // pred_check_branch
      %38 = sbr.rel (0) target = $region17
    $region16: #{metagin_forward.19} parent=1 // pred_region
      %39 = dma.done [#allocation6], 2048
    $region17: #{metagin_forward.19} parent=1 // pred_fallthru
      _
    %v41 = vld [vmem:[#allocation2] sm:$0xff]
    %v42 = vld [vmem:[#allocation2 + $0x8] sm:$0xff]
    %v43 = vld [vmem:[#allocation2 + $0x10] sm:$0xff]
    %v44 = vpack.c.bf16 %v42, %v41
    %v45 = vpack.c.bf16 %v43, %v43
    %v46 = vld [vmem:[#allocation5] sm:$0xff]
    %v47 = vld [vmem:[#allocation5 + $0x8] sm:$0xff]
    %v48 = vld [vmem:[#allocation5 + $0x10] sm:$0xff]
    %v49 = vld [vmem:[#allocation5 + $0x18] sm:$0xff]
    %v50 = vld [vmem:[#allocation5 + $0x20] sm:$0xff]
    %v51 = vld [vmem:[#allocation5 + $0x28] sm:$0xff]
    %v52 = vld [vmem:[#allocation5 + $0x30] sm:$0xff]
    %v53 = vld [vmem:[#allocation5 + $0x38] sm:$0xff]
    %v54 = vld [vmem:[#allocation5 + $0x40] sm:$0xff]
    %v55 = vld [vmem:[#allocation5 + $0x48] sm:$0xff]
    %v56 = vld [vmem:[#allocation5 + $0x50] sm:$0xff]
    %v57 = vld [vmem:[#allocation5 + $0x58] sm:$0xff]
    %v58 = vld [vmem:[#allocation5 + $0x60] sm:$0xff]
    %v59 = vld [vmem:[#allocation5 + $0x68] sm:$0xff]
    %v60 = vld [vmem:[#allocation5 + $0x70] sm:$0xff]
    %v61 = vld [vmem:[#allocation5 + $0x78] sm:$0xff]
    %v78 = vunpack.c.l.b16 %v46
    %v79 = vunpack.c.h.b16 %v46
    %v80 = vunpack.c.l.b16 %v47
    %v81 = vunpack.c.h.b16 %v47
    %v82 = vunpack.c.l.b16 %v48
    %v83 = vunpack.c.h.b16 %v48
    %v84 = vunpack.c.l.b16 %v49
    %v85 = vunpack.c.h.b16 %v49
    %v86 = vunpack.c.l.b16 %v50
    %v87 = vunpack.c.h.b16 %v50
    %v88 = vunpack.c.l.b16 %v51
    %v89 = vunpack.c.h.b16 %v51
    %v90 = vunpack.c.l.b16 %v52
    %v91 = vunpack.c.h.b16 %v52
    %v92 = vunpack.c.l.b16 %v53
    %v93 = vunpack.c.h.b16 %v53
    %v94 = vunpack.c.l.b16 %v54
    %v95 = vunpack.c.h.b16 %v54
    %v96 = vunpack.c.l.b16 %v55
    %v97 = vunpack.c.h.b16 %v55
    %v98 = vunpack.c.l.b16 %v56
    %v99 = vunpack.c.h.b16 %v56
    %v100 = vunpack.c.l.b16 %v57
    %v101 = vunpack.c.h.b16 %v57
    %v102 = vunpack.c.l.b16 %v58
    %v103 = vunpack.c.h.b16 %v58
    %v104 = vunpack.c.l.b16 %v59
    %v105 = vunpack.c.h.b16 %v59
    %v106 = vunpack.c.l.b16 %v60
    %v107 = vunpack.c.h.b16 %v60
    %v108 = vunpack.c.l.b16 %v61
    %v109 = vunpack.c.h.b16 %v61
    %v110 = vpack.c.b16 %v80, %v78
    %v111 = vpack.c.b16 %v81, %v79
    %v112 = vpack.c.b16 %v84, %v82
    %v113 = vpack.c.b16 %v85, %v83
    %v114 = vpack.c.b16 %v88, %v86
    %v115 = vpack.c.b16 %v89, %v87
    %v116 = vpack.c.b16 %v92, %v90
    %v117 = vpack.c.b16 %v93, %v91
    %v118 = vpack.c.b16 %v96, %v94
    %v119 = vpack.c.b16 %v97, %v95
    %v120 = vpack.c.b16 %v100, %v98
    %v121 = vpack.c.b16 %v101, %v99
    %v122 = vpack.c.b16 %v104, %v102
    %v123 = vpack.c.b16 %v105, %v103
    %v124 = vpack.c.b16 %v108, %v106
    %v125 = vpack.c.b16 %v109, %v107
    %142 = vmatprep.subr.bf16.mxu0 %v111
    %143 = vmatpush1.bf16.msra.mxu0 %v110
    %144 = vmatprep.subr.bf16.mxu0 %v113
    %145 = vmatpush1.bf16.msra.mxu0 %v112
    %146 = vmatprep.subr.bf16.mxu0 %v115
    %147 = vmatpush1.bf16.msra.mxu0 %v114
    %148 = vmatprep.subr.bf16.mxu0 %v117
    %149 = vmatpush1.bf16.msra.mxu0 %v116
    %150 = vmatprep.subr.bf16.mxu0 %v119
    %151 = vmatpush1.bf16.msra.mxu0 %v118
    %152 = vmatprep.subr.bf16.mxu0 %v121
    %153 = vmatpush1.bf16.msra.mxu0 %v120
    %154 = vmatprep.subr.bf16.mxu0 %v123
    %155 = vmatpush1.bf16.msra.mxu0 %v122
    %156 = vmatprep.subr.bf16.mxu0 %v125
    %157 = vmatpush1.bf16.msra.mxu0 %v124
    %158 = vmatprep.subr.bf16.mxu0 0
    %159 = vmatpush1.bf16.msra.mxu0 0
    %160 = vmatprep.subr.bf16.mxu0 0
    %161 = vmatpush1.bf16.msra.mxu0 0
    %162 = vmatprep.subr.bf16.mxu0 0
    %163 = vmatpush1.bf16.msra.mxu0 0
    %164 = vmatprep.subr.bf16.mxu0 0
    %165 = vmatpush1.bf16.msra.mxu0 0
    %166 = vmatprep.subr.bf16.mxu0 0
    %167 = vmatpush1.bf16.msra.mxu0 0
    %168 = vmatprep.subr.bf16.mxu0 0
    %169 = vmatpush1.bf16.msra.mxu0 0
    %170 = vmatprep.subr.bf16.mxu0 0
    %171 = vmatpush1.bf16.msra.mxu0 0
    %172 = vmatprep.subr.bf16.mxu0 0
    %173 = vmatpush1.bf16.msra.mxu0 0
    %174 = vmatprep.mubr.bf16.mxu0 0
    %175 = vmatmul.mubr.bf16.gmra.mrb[0].mxu0 %v44
    %v176 = vpop.f32.mrb[0].mxu0
    %v177 = vadd.f32 0.0, %v176
    %v178 = vpop.f32.mrb[0].mxu0
    %v179 = vadd.f32 0.0, %v178
    %v180 = vpop.f32.mrb[0].mxu0
    %v181 = vadd.f32 0.0, %v180
    %v182 = vpop.f32.mrb[0].mxu0
    %v183 = vadd.f32 0.0, %v182
    %184 = vmatprep.mubr.bf16.mxu0 0
    %185 = vmatmul.mubr.bf16.gmra.mrb[0].mxu0 %v45
    %v186 = vpop.f32.mrb[0].mxu0
    %v187 = vadd.f32 0.0, %v186
    %v188 = vpop.f32.mrb[0].mxu0
    %v189 = vadd.f32 0.0, %v188
    %v190 = vpop.f32.mrb[0].mxu0
    %v191 = vpop.f32.mrb[0].mxu0
    %192 = vdwg.mxu0
    %193 = vst [vmem:[#allocation7] sm:$0xff] %v177
    %194 = vst [vmem:[#allocation7 + $0x8] sm:$0xff] %v179
    %195 = vst [vmem:[#allocation7 + $0x10] sm:$0xff] %v181
    %196 = vst [vmem:[#allocation7 + $0x18] sm:$0xff] %v183
    %197 = vst [vmem:[#allocation7 + $0x20] sm:$0xff] %v187
    %198 = vst [vmem:[#allocation7 + $0x28] sm:$0xff] %v189
    // Predicated region
    $region18: #{metagin_forward.19} parent=1 // pred_check
      _
    $region19: #{metagin_forward.19} parent=1 // pred_check_branch
      %200 = sbr.rel (0) target = $region21
    $region20: #{metagin_forward.19} parent=1 // pred_region
      %s202 = ssub.s32 768, 768
      %203 = vsyncadd [#allocation4], %s202
      %s204 = sshll.u32 [#allocation7], 4
      %s205 = int_to_ptr.vmem [resolvable:$true] %s204
      %210 = dma.vmem_to_hbm [thread:$0]  %s205, 768, %s2, [#allocation4], 256, 256, 16
    $region21: #{metagin_forward.19} parent=1 // pred_fallthru
      _
    // Predicated region
    $region22: #{metagin_forward.19} parent=1 // pred_check
      _
    $region23: #{metagin_forward.19} parent=1 // pred_check_branch
      %212 = sbr.rel (0) target = $region25
    $region24: #{metagin_forward.19} parent=1 // pred_region
      %213 = dma.done [#allocation4], 768
    $region25: #{metagin_forward.19} parent=1 // pred_fallthru
      _
    %214 = vsyncpa [#allocation3], 1
    %215 = vsyncpa [#allocation6], 1
    %216 = vsyncpa [#allocation4], 1

// kernel: metagin_forward.18
$region0: #{metagin_forward.18}
  #allocation0 [shape = 'u32[]', space=smem, size = 0x4, offset = 0x4, fixed_abs, tag = 'smem constant byte address 0x4 - core index']
  #allocation1 [shape = 'u32[144,128]{1,0:T(1,128)}', space=vmem, size = 0x12000, scoped, tag = 'internal scratch']
  %s0 = inlined_call_operand.hbm [shape: f32[24,16], index: 0, kind: input, shape index: {}]
  %s1 = inlined_call_operand.hbm [shape: bf16[16,128], index: 1, kind: input, shape index: {}]
  %s2 = inlined_call_operand.hbm [shape: bf16[128,256], index: 2, kind: input, shape index: {}]
  %s3 = inlined_call_operand.hbm [shape: bf16[128,128], index: 3, kind: input, shape index: {}]
  %s4 = inlined_call_operand.hbm [shape: f32[24,128], index: 4, kind: output, shape index: {}]
  %s5 = sld [smem:[#allocation0]]
  $region42: #{metagin_forward.18} parent=0
    _
  %s7 = ssub.s32 1, %s5
  %s8 = scalar_select 0, %s7, %s5
  $region1: #{metagin_forward.18} parent=0
    #allocation2 [shape = 'u8[12288]{0}', space=vmem, size = 0x3000, scoped, tag = 'input window, operand 0, single buffered']
    #allocation3 [shape = 's32[1]{0}', space=sflag, size = 0x4, scoped, tag = 'scoped memory for metagin_forward.18']
    #allocation4 [shape = 's32[1]{0}', space=sflag, size = 0x4, scoped, tag = 'scoped memory for metagin_forward.18']
    #allocation5 [shape = 'u8[4096]{0}', space=vmem, size = 0x1000, scoped, tag = 'input window, operand 1, single buffered']
    #allocation6 [shape = 's32[1]{0}', space=sflag, size = 0x4, scoped, tag = 'scoped memory for metagin_forward.18']
    #allocation7 [shape = 'u8[65536]{0}', space=vmem, size = 0x10000, scoped, tag = 'input window, operand 2, single buffered']
    #allocation8 [shape = 'u8[32768]{0}', space=vmem, size = 0x8000, scoped, tag = 'input window, operand 3, single buffered']
    #allocation9 [shape = 's32[1]{0}', space=sflag, size = 0x4, scoped, tag = 'scoped memory for metagin_forward.18']
    #allocation10 [shape = 'u8[12288]{0}', space=vmem, size = 0x3000, scoped, tag = 'output window, operand 0, single buffered']
    %9 = vsyncpa [#allocation3], 0
    %10 = vsyncpa [#allocation6], 0
    %11 = vsyncpa [#allocation9], 0
    %12 = vsyncpa [#allocation4], 0
    // Predicated region
    $region2: #{metagin_forward.18} parent=1 // pred_check
      _
    $region3: #{metagin_forward.18} parent=1 // pred_check_branch
      %14 = sbr.rel (0) target = $region5
    $region4: #{metagin_forward.18} parent=1 // pred_region
      %s16 = ssub.s32 384, 384
      %17 = vsyncadd [#allocation3], %s16
      %s18 = sshll.u32 [#allocation2], 4
      %s19 = int_to_ptr.vmem [resolvable:$true] %s18
      %24 = dma.hbm_to_vmem [thread:$0]  %s0, 384, %s19, [#allocation3], 128, 128, 8
    $region5: #{metagin_forward.18} parent=1 // pred_fallthru
      _
    // Predicated region
    $region6: #{metagin_forward.18} parent=1 // pred_check
      _
    $region7: #{metagin_forward.18} parent=1 // pred_check_branch
      %26 = sbr.rel (0) target = $region9
    $region8: #{metagin_forward.18} parent=1 // pred_region
      %s28 = ssub.s32 128, 128
      %29 = vsyncadd [#allocation6], %s28
      %s30 = sshll.u32 [#allocation5], 4
      %s31 = int_to_ptr.vmem [resolvable:$true] %s30
      %36 = dma.hbm_to_vmem [thread:$0]  %s1, 128, %s31, [#allocation6], 64, 64, 4
    $region9: #{metagin_forward.18} parent=1 // pred_fallthru
      _
    // Predicated region
    $region10: #{metagin_forward.18} parent=1 // pred_check
      _
    $region11: #{metagin_forward.18} parent=1 // pred_check_branch
      %38 = sbr.rel (0) target = $region13
    $region12: #{metagin_forward.18} parent=1 // pred_region
      %s40 = ssub.s32 2048, 2048
      %41 = vsyncadd [#allocation6], %s40
      %s42 = sshll.u32 [#allocation7], 4
      %s43 = int_to_ptr.vmem [resolvable:$true] %s42
      %48 = dma.hbm_to_vmem [thread:$0]  %s2, 2048, %s43, [#allocation6], 128, 128, 8
    $region13: #{metagin_forward.18} parent=1 // pred_fallthru
      _
    // Predicated region
    $region14: #{metagin_forward.18} parent=1 // pred_check
      _
    $region15: #{metagin_forward.18} parent=1 // pred_check_branch
      %50 = sbr.rel (0) target = $region17
    $region16: #{metagin_forward.18} parent=1 // pred_region
      %s52 = ssub.s32 1024, 1024
      %53 = vsyncadd [#allocation9], %s52
      %s54 = sshll.u32 [#allocation8], 4
      %s55 = int_to_ptr.vmem [resolvable:$true] %s54
      %60 = dma.hbm_to_vmem [thread:$0]  %s3, 1024, %s55, [#allocation9], 64, 64, 4
    $region17: #{metagin_forward.18} parent=1 // pred_fallthru
      _
    // Predicated region
    $region18: #{metagin_forward.18} parent=1 // pred_check
      _
    $region19: #{metagin_forward.18} parent=1 // pred_check_branch
      %62 = sbr.rel (0) target = $region21
    $region20: #{metagin_forward.18} parent=1 // pred_region
      %63 = dma.done [#allocation3], 384
    $region21: #{metagin_forward.18} parent=1 // pred_fallthru
      _
    // Predicated region
    $region22: #{metagin_forward.18} parent=1 // pred_check
      _
    $region23: #{metagin_forward.18} parent=1 // pred_check_branch
      %65 = sbr.rel (0) target = $region25
    $region24: #{metagin_forward.18} parent=1 // pred_region
      %66 = dma.done [#allocation6], 128
    $region25: #{metagin_forward.18} parent=1 // pred_fallthru
      _
    // Predicated region
    $region26: #{metagin_forward.18} parent=1 // pred_check
      _
    $region27: #{metagin_forward.18} parent=1 // pred_check_branch
      %68 = sbr.rel (0) target = $region29
    $region28: #{metagin_forward.18} parent=1 // pred_region
      %69 = dma.done [#allocation6], 2048
    $region29: #{metagin_forward.18} parent=1 // pred_fallthru
      _
    // Predicated region
    $region30: #{metagin_forward.18} parent=1 // pred_check
      _
    $region31: #{metagin_forward.18} parent=1 // pred_check_branch
      %71 = sbr.rel (0) target = $region33
    $region32: #{metagin_forward.18} parent=1 // pred_region
      %72 = dma.done [#allocation9], 1024
    $region33: #{metagin_forward.18} parent=1 // pred_fallthru
      _
    %v74 = vld [vmem:[#allocation2] sm:$0xff]
    %v75 = vld [vmem:[#allocation2 + $0x8] sm:$0xff]
    %v76 = vld [vmem:[#allocation2 + $0x10] sm:$0xff]
    %v77 = vld [vmem:[#allocation5] sm:$0xf]
    %v78 = vld [vmem:[#allocation5 + $0x4] sm:$0xf]
    %v79 = vpack.c.bf16 %v75, %v74
    %v80 = vpack.c.bf16 %v76, %v76
    %v83 = vunpack.c.l.b16 %v77
    %v84 = vunpack.c.l.b16 %v78
    %v85 = vpack.c.b16 %v84, %v83
    %vm87 = vcmask 130048
    %v89 = vsel %vm87, %v79, 0
    %v92 = vsel %vm87, %v80, 0
    %94 = vmatprep.subr.bf16.mxu0 0
    %95 = vmatpush1.bf16.msra.mxu0 %v85
    %96 = vmatprep.subr.bf16.mxu0 0
    %97 = vmatpush1.bf16.msra.mxu0 0
    %98 = vmatprep.subr.bf16.mxu0 0
    %99 = vmatpush1.bf16.msra.mxu0 0
    %100 = vmatprep.subr.bf16.mxu0 0
    %101 = vmatpush1.bf16.msra.mxu0 0
    %102 = vmatprep.subr.bf16.mxu0 0
    %103 = vmatpush1.bf16.msra.mxu0 0
    %104 = vmatprep.subr.bf16.mxu0 0
    %105 = vmatpush1.bf16.msra.mxu0 0
    %106 = vmatprep.subr.bf16.mxu0 0
    %107 = vmatpush1.bf16.msra.mxu0 0
    %108 = vmatprep.subr.bf16.mxu0 0
    %109 = vmatpush1.bf16.msra.mxu0 0
    %110 = vmatprep.subr.bf16.mxu0 0
    %111 = vmatpush1.bf16.msra.mxu0 0
    %112 = vmatprep.subr.bf16.mxu0 0
    %113 = vmatpush1.bf16.msra.mxu0 0
    %114 = vmatprep.subr.bf16.mxu0 0
    %115 = vmatpush1.bf16.msra.mxu0 0
    %116 = vmatprep.subr.bf16.mxu0 0
    %117 = vmatpush1.bf16.msra.mxu0 0
    %118 = vmatprep.subr.bf16.mxu0 0
    %119 = vmatpush1.bf16.msra.mxu0 0
    %120 = vmatprep.subr.bf16.mxu0 0
    %121 = vmatpush1.bf16.msra.mxu0 0
    %122 = vmatprep.subr.bf16.mxu0 0
    %123 = vmatpush1.bf16.msra.mxu0 0
    %124 = vmatprep.subr.bf16.mxu0 0
    %125 = vmatpush1.bf16.msra.mxu0 0
    %126 = vmatprep.mubr.bf16.mxu0 0
    %127 = vmatmul.mubr.bf16.gmra.mrb[0].mxu0 %v89
    %v128 = vpop.f32.mrb[0].mxu0
    %v129 = vadd.f32 0.0, %v128
    %v130 = vpop.f32.mrb[0].mxu0
    %v131 = vpop.f32.mrb[0].mxu0
    %v132 = vadd.f32 0.0, %v131
    %v133 = vpop.f32.mrb[0].mxu0
    %134 = vmatprep.mubr.bf16.mxu0 0
    %135 = vmatmul.mubr.bf16.gmra.mrb[0].mxu0 %v92
    %v136 = vpop.f32.mrb[0].mxu0
    %v137 = vadd.f32 0.0, %v136
    %v138 = vpop.f32.mrb[0].mxu0
    %v139 = vpop.f32.mrb[0].mxu0
    %v140 = vpop.f32.mrb[0].mxu0
    %141 = vdwg.mxu0
    %v142 = vld [vmem:[#allocation7] sm:$0xff]
    %v143 = vld [vmem:[#allocation7 + $0x8] sm:$0xff]
    %v144 = vld [vmem:[#allocation7 + $0x10] sm:$0xff]
    %v145 = vld [vmem:[#allocation7 + $0x18] sm:$0xff]
    %v146 = vld [vmem:[#allocation7 + $0x20] sm:$0xff]
    %v147 = vld [vmem:[#allocation7 + $0x28] sm:$0xff]
    %v148 = vld [vmem:[#allocation7 + $0x30] sm:$0xff]
    %v149 = vld [vmem:[#allocation7 + $0x38] sm:$0xff]
    %v150 = vld [vmem:[#allocation7 + $0x40] sm:$0xff]
    %v151 = vld [vmem:[#allocation7 + $0x48] sm:$0xff]
    %v152 = vld [vmem:[#allocation7 + $0x50] sm:$0xff]
    %v153 = vld [vmem:[#allocation7 + $0x58] sm:$0xff]
    %v154 = vld [vmem:[#allocation7 + $0x60] sm:$0xff]
    %v155 = vld [vmem:[#allocation7 + $0x68] sm:$0xff]
    %v156 = vld [vmem:[#allocation7 + $0x70] sm:$0xff]
    %v157 = vld [vmem:[#allocation7 + $0x78] sm:$0xff]
    %v158 = vld [vmem:[#allocation8] sm:$0xf]
    %v159 = vld [vmem:[#allocation8 + $0x4] sm:$0xf]
    %v160 = vld [vmem:[#allocation8 + $0x8] sm:$0xf]
    %v161 = vld [vmem:[#allocation8 + $0xc] sm:$0xf]
    %v162 = vld [vmem:[#allocation8 + $0x10] sm:$0xf]
    %v163 = vld [vmem:[#allocation8 + $0x14] sm:$0xf]
    %v164 = vld [vmem:[#allocation8 + $0x18] sm:$0xf]
    %v165 = vld [vmem:[#allocation8 + $0x1c] sm:$0xf]
    %v166 = vld [vmem:[#allocation8 + $0x20] sm:$0xf]
    %v167 = vld [vmem:[#allocation8 + $0x24] sm:$0xf]
    %v168 = vld [vmem:[#allocation8 + $0x28] sm:$0xf]
    %v169 = vld [vmem:[#allocation8 + $0x2c] sm:$0xf]
    %v170 = vld [vmem:[#allocation8 + $0x30] sm:$0xf]
    %v171 = vld [vmem:[#allocation8 + $0x34] sm:$0xf]
    %v172 = vld [vmem:[#allocation8 + $0x38] sm:$0xf]
    %v173 = vld [vmem:[#allocation8 + $0x3c] sm:$0xf]
    %vm174 = vcmask 261120
    %v175 = vsel %vm174, %v129, 0.0
    %176 = vadd.xlane.f32.xlu0 %v175
    %v177 = vpop.xlane.xlu0 %176
    %v178 = vsel %vm174, %v132, 0.0
    %179 = vadd.xlane.f32.xlu0 %v178
    %v180 = vpop.xlane.xlu0 %179
    %v181 = vsel %vm174, %v137, 0.0
    %182 = vadd.xlane.f32.xlu0 %v181
    %v183 = vpop.xlane.xlu0 %182
    %v184 = vrcp.pop 32.0
    %v185 = vmul.f32 %v177, %v184
    %v186 = vmul.f32 %v180, %v184
    %v187 = vmul.f32 %v183, %v184
    %v188 = vsub.f32 %v129, %v185
    %v189 = vsub.f32 %v132, %v186
    %v190 = vsub.f32 %v137, %v187
    %v191 = vmul.f32 %v188, %v188
    %v192 = vmul.f32 %v189, %v189
    %v193 = vmul.f32 %v190, %v190
    %v194 = vsel %vm174, %v191, 0.0
    %195 = vadd.xlane.f32.xlu0 %v194
    %v196 = vpop.xlane.xlu0 %195
    %v197 = vsel %vm174, %v192, 0.0
    %198 = vadd.xlane.f32.xlu0 %v197
    %v199 = vpop.xlane.xlu0 %198
    %v200 = vsel %vm174, %v193, 0.0
    %201 = vadd.xlane.f32.xlu0 %v200
    %v202 = vpop.xlane.xlu0 %201
    %v203 = vmul.f32 %v196, %v184
    %v204 = vmul.f32 %v199, %v184
    %v205 = vmul.f32 %v202, %v184
    %v206 = vadd.f32 %v203, 1e-05
    %v207 = vadd.f32 %v204, 1e-05
    %v208 = vadd.f32 %v205, 1e-05
    %v209 = vrsqrt.pop %v206
    %v210 = vrsqrt.pop %v207
    %v211 = vrsqrt.pop %v208
    %v212 = vmul.f32 %v188, %v209
    %v213 = vmul.f32 %v189, %v210
    %v214 = vmul.f32 %v190, %v211
    %218 = vrot.lane.b32.xlu0 %v129, 96
    %v219 = vpop.permute.xlu0 %218
    %220 = vrot.lane.b32.xlu0 %v132, 96
    %v221 = vpop.permute.xlu0 %220
    %222 = vrot.lane.b32.xlu0 %v137, 96
    %v223 = vpop.permute.xlu0 %222
    %v227 = vsel %vm174, %v219, 0.0
    %228 = vadd.xlane.f32.xlu0 %v227
    %v229 = vpop.xlane.xlu0 %228
    %v230 = vsel %vm174, %v221, 0.0
    %231 = vadd.xlane.f32.xlu0 %v230
    %v232 = vpop.xlane.xlu0 %231
    %v233 = vsel %vm174, %v223, 0.0
    %234 = vadd.xlane.f32.xlu0 %v233
    %v235 = vpop.xlane.xlu0 %234
    %v236 = vmul.f32 %v229, %v184
    %v237 = vmul.f32 %v232, %v184
    %v238 = vmul.f32 %v235, %v184
    %v239 = vsub.f32 %v129, %v236
    %v240 = vsub.f32 %v132, %v237
    %v241 = vsub.f32 %v137, %v238
    %v242 = vmul.f32 %v239, %v239
    %v243 = vmul.f32 %v240, %v240
    %v244 = vmul.f32 %v241, %v241
    %248 = vrot.lane.b32.xlu0 %v242, 96
    %v249 = vpop.permute.xlu0 %248
    %250 = vrot.lane.b32.xlu0 %v243, 96
    %v251 = vpop.permute.xlu0 %250
    %252 = vrot.lane.b32.xlu0 %v244, 96
    %v253 = vpop.permute.xlu0 %252
    %v257 = vsel %vm174, %v249, 0.0
    %258 = vadd.xlane.f32.xlu0 %v257
    %v259 = vpop.xlane.xlu0 %258
    %v260 = vsel %vm174, %v251, 0.0
    %261 = vadd.xlane.f32.xlu0 %v260
    %v262 = vpop.xlane.xlu0 %261
    %v263 = vsel %vm174, %v253, 0.0
    %264 = vadd.xlane.f32.xlu0 %v263
    %v265 = vpop.xlane.xlu0 %264
    %v266 = vmul.f32 %v259, %v184
    %v267 = vmul.f32 %v262, %v184
    %v268 = vmul.f32 %v265, %v184
    %v269 = vadd.f32 %v266, 1e-05
    %v270 = vadd.f32 %v267, 1e-05
    %v271 = vadd.f32 %v268, 1e-05
    %v272 = vrsqrt.pop %v269
    %v273 = vrsqrt.pop %v270
    %v274 = vrsqrt.pop %v271
    %v275 = vmul.f32 %v239, %v272
    %v276 = vmul.f32 %v240, %v273
    %v277 = vmul.f32 %v241, %v274
    %278 = vrot.lane.b32.xlu0 %v129, 64
    %v279 = vpop.permute.xlu0 %278
    %280 = vrot.lane.b32.xlu0 %v132, 64
    %v281 = vpop.permute.xlu0 %280
    %282 = vrot.lane.b32.xlu0 %v137, 64
    %v283 = vpop.permute.xlu0 %282
    %v287 = vsel %vm174, %v279, 0.0
    %288 = vadd.xlane.f32.xlu0 %v287
    %v289 = vpop.xlane.xlu0 %288
    %v290 = vsel %vm174, %v281, 0.0
    %291 = vadd.xlane.f32.xlu0 %v290
    %v292 = vpop.xlane.xlu0 %291
    %v293 = vsel %vm174, %v283, 0.0
    %294 = vadd.xlane.f32.xlu0 %v293
    %v295 = vpop.xlane.xlu0 %294
    %v296 = vmul.f32 %v289, %v184
    %v297 = vmul.f32 %v292, %v184
    %v298 = vmul.f32 %v295, %v184
    %v299 = vsub.f32 %v129, %v296
    %v300 = vsub.f32 %v132, %v297
    %v301 = vsub.f32 %v137, %v298
    %v302 = vmul.f32 %v299, %v299
    %v303 = vmul.f32 %v300, %v300
    %v304 = vmul.f32 %v301, %v301
    %308 = vrot.lane.b32.xlu0 %v302, 64
    %v309 = vpop.permute.xlu0 %308
    %310 = vrot.lane.b32.xlu0 %v303, 64
    %v311 = vpop.permute.xlu0 %310
    %312 = vrot.lane.b32.xlu0 %v304, 64
    %v313 = vpop.permute.xlu0 %312
    %v317 = vsel %vm174, %v309, 0.0
    %318 = vadd.xlane.f32.xlu0 %v317
    %v319 = vpop.xlane.xlu0 %318
    %v320 = vsel %vm174, %v311, 0.0
    %321 = vadd.xlane.f32.xlu0 %v320
    %v322 = vpop.xlane.xlu0 %321
    %v323 = vsel %vm174, %v313, 0.0
    %324 = vadd.xlane.f32.xlu0 %v323
    %v325 = vpop.xlane.xlu0 %324
    %v326 = vmul.f32 %v319, %v184
    %v327 = vmul.f32 %v322, %v184
    %v328 = vmul.f32 %v325, %v184
    %v329 = vadd.f32 %v326, 1e-05
    %v330 = vadd.f32 %v327, 1e-05
    %v331 = vadd.f32 %v328, 1e-05
    %v332 = vrsqrt.pop %v329
    %v333 = vrsqrt.pop %v330
    %v334 = vrsqrt.pop %v331
    %v335 = vmul.f32 %v299, %v332
    %v336 = vmul.f32 %v300, %v333
    %v337 = vmul.f32 %v301, %v334
    %338 = vrot.lane.b32.xlu0 %v129, 32
    %v339 = vpop.permute.xlu0 %338
    %340 = vrot.lane.b32.xlu0 %v132, 32
    %v341 = vpop.permute.xlu0 %340
    %342 = vrot.lane.b32.xlu0 %v137, 32
    %v343 = vpop.permute.xlu0 %342
    %v347 = vsel %vm174, %v339, 0.0
    %348 = vadd.xlane.f32.xlu0 %v347
    %v349 = vpop.xlane.xlu0 %348
    %v350 = vsel %vm174, %v341, 0.0
    %351 = vadd.xlane.f32.xlu0 %v350
    %v352 = vpop.xlane.xlu0 %351
    %v353 = vsel %vm174, %v343, 0.0
    %354 = vadd.xlane.f32.xlu0 %v353
    %v355 = vpop.xlane.xlu0 %354
    %v356 = vmul.f32 %v349, %v184
    %v357 = vmul.f32 %v352, %v184
    %v358 = vmul.f32 %v355, %v184
    %v359 = vsub.f32 %v129, %v356
    %v360 = vsub.f32 %v132, %v357
    %v361 = vsub.f32 %v137, %v358
    %v362 = vmul.f32 %v359, %v359
    %v363 = vmul.f32 %v360, %v360
    %v364 = vmul.f32 %v361, %v361
    %368 = vrot.lane.b32.xlu0 %v362, 32
    %v369 = vpop.permute.xlu0 %368
    %370 = vrot.lane.b32.xlu0 %v363, 32
    %v371 = vpop.permute.xlu0 %370
    %372 = vrot.lane.b32.xlu0 %v364, 32
    %v373 = vpop.permute.xlu0 %372
    %v377 = vsel %vm174, %v369, 0.0
    %378 = vadd.xlane.f32.xlu0 %v377
    %v379 = vpop.xlane.xlu0 %378
    %v380 = vsel %vm174, %v371, 0.0
    %381 = vadd.xlane.f32.xlu0 %v380
    %v382 = vpop.xlane.xlu0 %381
    %v383 = vsel %vm174, %v373, 0.0
    %384 = vadd.xlane.f32.xlu0 %v383
    %v385 = vpop.xlane.xlu0 %384
    %v386 = vmul.f32 %v379, %v184
    %v387 = vmul.f32 %v382, %v184
    %v388 = vmul.f32 %v385, %v184
    %v389 = vadd.f32 %v386, 1e-05
    %v390 = vadd.f32 %v387, 1e-05
    %v391 = vadd.f32 %v388, 1e-05
    %v392 = vrsqrt.pop %v389
    %v393 = vrsqrt.pop %v390
    %v394 = vrsqrt.pop %v391
    %v395 = vmul.f32 %v359, %v392
    %v396 = vmul.f32 %v360, %v393
    %v397 = vmul.f32 %v361, %v394
    %v398 = vsel %vm174, %v212, %v275
    %v399 = vsel %vm174, %v213, %v276
    %v400 = vsel %vm174, %v214, %v277
    %vm401 = vcmask 523264
    %v402 = vsel %vm401, %v398, %v335
    %v403 = vsel %vm401, %v399, %v336
    %v404 = vsel %vm401, %v400, %v337
    %vm405 = vcmask 785408
    %v406 = vsel %vm405, %v402, %v395
    %v407 = vsel %vm405, %v403, %v396
    %v408 = vsel %vm405, %v404, %v397
    %v409 = vpack.c.bf16 %v407, %v406
    %v410 = vpack.c.bf16 %v408, %v408
    %v427 = vunpack.c.l.b16 %v142
    %v428 = vunpack.c.h.b16 %v142
    %v429 = vunpack.c.l.b16 %v143
    %v430 = vunpack.c.h.b16 %v143
    %v431 = vunpack.c.l.b16 %v144
    %v432 = vunpack.c.h.b16 %v144
    %v433 = vunpack.c.l.b16 %v145
    %v434 = vunpack.c.h.b16 %v145
    %v435 = vunpack.c.l.b16 %v146
    %v436 = vunpack.c.h.b16 %v146
    %v437 = vunpack.c.l.b16 %v147
    %v438 = vunpack.c.h.b16 %v147
    %v439 = vunpack.c.l.b16 %v148
    %v440 = vunpack.c.h.b16 %v148
    %v441 = vunpack.c.l.b16 %v149
    %v442 = vunpack.c.h.b16 %v149
    %v443 = vunpack.c.l.b16 %v150
    %v444 = vunpack.c.h.b16 %v150
    %v445 = vunpack.c.l.b16 %v151
    %v446 = vunpack.c.h.b16 %v151
    %v447 = vunpack.c.l.b16 %v152
    %v448 = vunpack.c.h.b16 %v152
    %v449 = vunpack.c.l.b16 %v153
    %v450 = vunpack.c.h.b16 %v153
    %v451 = vunpack.c.l.b16 %v154
    %v452 = vunpack.c.h.b16 %v154
    %v453 = vunpack.c.l.b16 %v155
    %v454 = vunpack.c.h.b16 %v155
    %v455 = vunpack.c.l.b16 %v156
    %v456 = vunpack.c.h.b16 %v156
    %v457 = vunpack.c.l.b16 %v157
    %v458 = vunpack.c.h.b16 %v157
    %v459 = vpack.c.b16 %v429, %v427
    %v460 = vpack.c.b16 %v430, %v428
    %v461 = vpack.c.b16 %v433, %v431
    %v462 = vpack.c.b16 %v434, %v432
    %v463 = vpack.c.b16 %v437, %v435
    %v464 = vpack.c.b16 %v438, %v436
    %v465 = vpack.c.b16 %v441, %v439
    %v466 = vpack.c.b16 %v442, %v440
    %v467 = vpack.c.b16 %v445, %v443
    %v468 = vpack.c.b16 %v446, %v444
    %v469 = vpack.c.b16 %v449, %v447
    %v470 = vpack.c.b16 %v450, %v448
    %v471 = vpack.c.b16 %v453, %v451
    %v472 = vpack.c.b16 %v454, %v452
    %v473 = vpack.c.b16 %v457, %v455
    %v474 = vpack.c.b16 %v458, %v456
    %491 = vmatprep.subr.bf16.mxu0 %v460
    %492 = vmatpush1.bf16.msra.mxu0 %v459
    %493 = vmatprep.subr.bf16.mxu0 %v462
    %494 = vmatpush1.bf16.msra.mxu0 %v461
    %495 = vmatprep.subr.bf16.mxu0 %v464
    %496 = vmatpush1.bf16.msra.mxu0 %v463
    %497 = vmatprep.subr.bf16.mxu0 %v466
    %498 = vmatpush1.bf16.msra.mxu0 %v465
    %499 = vmatprep.subr.bf16.mxu0 %v468
    %500 = vmatpush1.bf16.msra.mxu0 %v467
    %501 = vmatprep.subr.bf16.mxu0 %v470
    %502 = vmatpush1.bf16.msra.mxu0 %v469
    %503 = vmatprep.subr.bf16.mxu0 %v472
    %504 = vmatpush1.bf16.msra.mxu0 %v471
    %505 = vmatprep.subr.bf16.mxu0 %v474
    %506 = vmatpush1.bf16.msra.mxu0 %v473
    %507 = vmatprep.subr.bf16.mxu0 0
    %508 = vmatpush1.bf16.msra.mxu0 0
    %509 = vmatprep.subr.bf16.mxu0 0
    %510 = vmatpush1.bf16.msra.mxu0 0
    %511 = vmatprep.subr.bf16.mxu0 0
    %512 = vmatpush1.bf16.msra.mxu0 0
    %513 = vmatprep.subr.bf16.mxu0 0
    %514 = vmatpush1.bf16.msra.mxu0 0
    %515 = vmatprep.subr.bf16.mxu0 0
    %516 = vmatpush1.bf16.msra.mxu0 0
    %517 = vmatprep.subr.bf16.mxu0 0
    %518 = vmatpush1.bf16.msra.mxu0 0
    %519 = vmatprep.subr.bf16.mxu0 0
    %520 = vmatpush1.bf16.msra.mxu0 0
    %521 = vmatprep.subr.bf16.mxu0 0
    %522 = vmatpush1.bf16.msra.mxu0 0
    %523 = vmatprep.mubr.bf16.mxu0 0
    %524 = vmatmul.mubr.bf16.gmra.mrb[0].mxu0 %v409
    %v525 = vpop.f32.mrb[0].mxu0
    %v526 = vadd.f32 0.0, %v525
    %v527 = vpop.f32.mrb[0].mxu0
    %v528 = vadd.f32 0.0, %v527
    %v529 = vpop.f32.mrb[0].mxu0
    %v530 = vadd.f32 0.0, %v529
    %v531 = vpop.f32.mrb[0].mxu0
    %v532 = vadd.f32 0.0, %v531
    %533 = vmatprep.mubr.bf16.mxu0 0
    %534 = vmatmul.mubr.bf16.gmra.mrb[0].mxu0 %v410
    %v535 = vpop.f32.mrb[0].mxu0
    %v536 = vadd.f32 0.0, %v535
    %v537 = vpop.f32.mrb[0].mxu0
    %v538 = vadd.f32 0.0, %v537
    %v539 = vpop.f32.mrb[0].mxu0
    %v540 = vpop.f32.mrb[0].mxu0
    %541 = vdwg.mxu0
    %v542 = vmax.f32 %v526, 0.0
    %v543 = vmax.f32 %v530, 0.0
    %v544 = vmax.f32 %v536, 0.0
    %v545 = vmul.f32 %v542, %v528
    %v546 = vmul.f32 %v543, %v532
    %v547 = vmul.f32 %v544, %v538
    %v548 = vpack.c.bf16 %v546, %v545
    %v549 = vpack.c.bf16 %v547, %v547
    %v566 = vunpack.c.l.b16 %v158
    %v567 = vunpack.c.l.b16 %v159
    %v568 = vunpack.c.l.b16 %v160
    %v569 = vunpack.c.l.b16 %v161
    %v570 = vunpack.c.l.b16 %v162
    %v571 = vunpack.c.l.b16 %v163
    %v572 = vunpack.c.l.b16 %v164
    %v573 = vunpack.c.l.b16 %v165
    %v574 = vunpack.c.l.b16 %v166
    %v575 = vunpack.c.l.b16 %v167
    %v576 = vunpack.c.l.b16 %v168
    %v577 = vunpack.c.l.b16 %v169
    %v578 = vunpack.c.l.b16 %v170
    %v579 = vunpack.c.l.b16 %v171
    %v580 = vunpack.c.l.b16 %v172
    %v581 = vunpack.c.l.b16 %v173
    %v582 = vpack.c.b16 %v567, %v566
    %v583 = vpack.c.b16 %v569, %v568
    %v584 = vpack.c.b16 %v571, %v570
    %v585 = vpack.c.b16 %v573, %v572
    %v586 = vpack.c.b16 %v575, %v574
    %v587 = vpack.c.b16 %v577, %v576
    %v588 = vpack.c.b16 %v579, %v578
    %v589 = vpack.c.b16 %v581, %v580
    %598 = vmatprep.subr.bf16.mxu0 0
    %599 = vmatpush1.bf16.msra.mxu0 %v582
    %600 = vmatprep.subr.bf16.mxu0 0
    %601 = vmatpush1.bf16.msra.mxu0 %v583
    %602 = vmatprep.subr.bf16.mxu0 0
    %603 = vmatpush1.bf16.msra.mxu0 %v584
    %604 = vmatprep.subr.bf16.mxu0 0
    %605 = vmatpush1.bf16.msra.mxu0 %v585
    %606 = vmatprep.subr.bf16.mxu0 0
    %607 = vmatpush1.bf16.msra.mxu0 %v586
    %608 = vmatprep.subr.bf16.mxu0 0
    %609 = vmatpush1.bf16.msra.mxu0 %v587
    %610 = vmatprep.subr.bf16.mxu0 0
    %611 = vmatpush1.bf16.msra.mxu0 %v588
    %612 = vmatprep.subr.bf16.mxu0 0
    %613 = vmatpush1.bf16.msra.mxu0 %v589
    %614 = vmatprep.subr.bf16.mxu0 0
    %615 = vmatpush1.bf16.msra.mxu0 0
    %616 = vmatprep.subr.bf16.mxu0 0
    %617 = vmatpush1.bf16.msra.mxu0 0
    %618 = vmatprep.subr.bf16.mxu0 0
    %619 = vmatpush1.bf16.msra.mxu0 0
    %620 = vmatprep.subr.bf16.mxu0 0
    %621 = vmatpush1.bf16.msra.mxu0 0
    %622 = vmatprep.subr.bf16.mxu0 0
    %623 = vmatpush1.bf16.msra.mxu0 0
    %624 = vmatprep.subr.bf16.mxu0 0
    %625 = vmatpush1.bf16.msra.mxu0 0
    %626 = vmatprep.subr.bf16.mxu0 0
    %627 = vmatpush1.bf16.msra.mxu0 0
    %628 = vmatprep.subr.bf16.mxu0 0
    %629 = vmatpush1.bf16.msra.mxu0 0
    %630 = vmatprep.mubr.bf16.mxu0 0
    %631 = vmatmul.mubr.bf16.gmra.mrb[0].mxu0 %v548
    %v632 = vpop.f32.mrb[0].mxu0
    %v633 = vadd.f32 0.0, %v632
    %v634 = vpop.f32.mrb[0].mxu0
    %v635 = vpop.f32.mrb[0].mxu0
    %v636 = vadd.f32 0.0, %v635
    %v637 = vpop.f32.mrb[0].mxu0
    %638 = vmatprep.mubr.bf16.mxu0 0
    %639 = vmatmul.mubr.bf16.gmra.mrb[0].mxu0 %v549
    %v640 = vpop.f32.mrb[0].mxu0
    %v641 = vadd.f32 0.0, %v640
    %v642 = vpop.f32.mrb[0].mxu0
    %v643 = vpop.f32.mrb[0].mxu0
    %v644 = vpop.f32.mrb[0].mxu0
    %645 = vdwg.mxu0
    %646 = vst [vmem:[#allocation10] sm:$0xff] %v633
    %647 = vst [vmem:[#allocation10 + $0x8] sm:$0xff] %v636
    %648 = vst [vmem:[#allocation10 + $0x10] sm:$0xff] %v641
    // Predicated region
    $region34: #{metagin_forward.18} parent=1 // pred_check
      _
    $region35: #{metagin_forward.18} parent=1 // pred_check_branch
      %650 = sbr.rel (0) target = $region37
    $region36: #{metagin_forward.18} parent=1 // pred_region
      %s652 = ssub.s32 384, 384
      %653 = vsyncadd [#allocation4], %s652
      %s654 = sshll.u32 [#allocation10], 4
      %s655 = int_to_ptr.vmem [resolvable:$true] %s654
      %660 = dma.vmem_to_hbm [thread:$0]  %s655, 384, %s4, [#allocation4], 128, 128, 8
    $region37: #{metagin_forward.18} parent=1 // pred_fallthru
      _
    // Predicated region
    $region38: #{metagin_forward.18} parent=1 // pred_check
      _
    $region39: #{metagin_forward.18} parent=1 // pred_check_branch
      %662 = sbr.rel (0) target = $region41
    $region40: #{metagin_forward.18} parent=1 // pred_region
      %663 = dma.done [#allocation4], 384
    $region41: #{metagin_forward.18} parent=1 // pred_fallthru
      _
    %664 = vsyncpa [#allocation3], 1
    %665 = vsyncpa [#allocation6], 1
    %666 = vsyncpa [#allocation9], 1
    %667 = vsyncpa [#allocation4], 1

// kernel: metagin_forward.20
$region0: #{metagin_forward.20}
  #allocation0 [shape = 'u32[]', space=smem, size = 0x4, offset = 0x4, fixed_abs, tag = 'smem constant byte address 0x4 - core index']
  #allocation1 [shape = 'u32[144,128]{1,0:T(1,128)}', space=vmem, size = 0x12000, scoped, tag = 'internal scratch']
  %s0 = inlined_call_operand.hbm [shape: f32[40,128], index: 0, kind: input, shape index: {}]
  %s1 = inlined_call_operand.hbm [shape: f32[40,128], index: 1, kind: input, shape index: {}]
  %s2 = inlined_call_operand.hbm [shape: bf16[128,256], index: 2, kind: input, shape index: {}]
  %s3 = inlined_call_operand.hbm [shape: bf16[128,128], index: 3, kind: input, shape index: {}]
  %s4 = inlined_call_operand.hbm [shape: f32[40,1], index: 4, kind: input, shape index: {}]
  %s5 = inlined_call_operand.hbm [shape: f32[40,128], index: 5, kind: output, shape index: {}]
  %s6 = sld [smem:[#allocation0]]
  $region50: #{metagin_forward.20} parent=0
    _
  %s8 = ssub.s32 1, %s6
  %s9 = scalar_select 0, %s8, %s6
  $region1: #{metagin_forward.20} parent=0
    #allocation2 [shape = 'u8[20480]{0}', space=vmem, size = 0x5000, scoped, tag = 'input window, operand 0, single buffered']
    #allocation3 [shape = 's32[1]{0}', space=sflag, size = 0x4, scoped, tag = 'scoped memory for metagin_forward.20']
    #allocation4 [shape = 's32[1]{0}', space=sflag, size = 0x4, scoped, tag = 'scoped memory for metagin_forward.20']
    #allocation5 [shape = 'u8[20480]{0}', space=vmem, size = 0x5000, scoped, tag = 'input window, operand 1, single buffered']
    #allocation6 [shape = 's32[1]{0}', space=sflag, size = 0x4, scoped, tag = 'scoped memory for metagin_forward.20']
    #allocation7 [shape = 'u8[65536]{0}', space=vmem, size = 0x10000, scoped, tag = 'input window, operand 2, single buffered']
    #allocation8 [shape = 'u8[32768]{0}', space=vmem, size = 0x8000, scoped, tag = 'input window, operand 3, single buffered']
    #allocation9 [shape = 's32[1]{0}', space=sflag, size = 0x4, scoped, tag = 'scoped memory for metagin_forward.20']
    #allocation10 [shape = 'u8[20480]{0}', space=vmem, size = 0x5000, scoped, tag = 'input window, operand 4, single buffered']
    #allocation11 [shape = 'u8[20480]{0}', space=vmem, size = 0x5000, scoped, tag = 'output window, operand 0, single buffered']
    %10 = vsyncpa [#allocation3], 0
    %11 = vsyncpa [#allocation6], 0
    %12 = vsyncpa [#allocation9], 0
    %13 = vsyncpa [#allocation4], 0
    // Predicated region
    $region2: #{metagin_forward.20} parent=1 // pred_check
      _
    $region3: #{metagin_forward.20} parent=1 // pred_check_branch
      %15 = sbr.rel (0) target = $region5
    $region4: #{metagin_forward.20} parent=1 // pred_region
      %s17 = ssub.s32 640, 640
      %18 = vsyncadd [#allocation3], %s17
      %s19 = sshll.u32 [#allocation2], 4
      %s20 = int_to_ptr.vmem [resolvable:$true] %s19
      %25 = dma.hbm_to_vmem [thread:$0]  %s0, 640, %s20, [#allocation3], 128, 128, 8
    $region5: #{metagin_forward.20} parent=1 // pred_fallthru
      _
    // Predicated region
    $region6: #{metagin_forward.20} parent=1 // pred_check
      _
    $region7: #{metagin_forward.20} parent=1 // pred_check_branch
      %27 = sbr.rel (0) target = $region9
    $region8: #{metagin_forward.20} parent=1 // pred_region
      %s29 = ssub.s32 640, 640
      %30 = vsyncadd [#allocation6], %s29
      %s31 = sshll.u32 [#allocation5], 4
      %s32 = int_to_ptr.vmem [resolvable:$true] %s31
      %37 = dma.hbm_to_vmem [thread:$0]  %s1, 640, %s32, [#allocation6], 128, 128, 8
    $region9: #{metagin_forward.20} parent=1 // pred_fallthru
      _
    // Predicated region
    $region10: #{metagin_forward.20} parent=1 // pred_check
      _
    $region11: #{metagin_forward.20} parent=1 // pred_check_branch
      %39 = sbr.rel (0) target = $region13
    $region12: #{metagin_forward.20} parent=1 // pred_region
      %s41 = ssub.s32 2048, 2048
      %42 = vsyncadd [#allocation6], %s41
      %s43 = sshll.u32 [#allocation7], 4
      %s44 = int_to_ptr.vmem [resolvable:$true] %s43
      %49 = dma.hbm_to_vmem [thread:$0]  %s2, 2048, %s44, [#allocation6], 128, 128, 8
    $region13: #{metagin_forward.20} parent=1 // pred_fallthru
      _
    // Predicated region
    $region14: #{metagin_forward.20} parent=1 // pred_check
      _
    $region15: #{metagin_forward.20} parent=1 // pred_check_branch
      %51 = sbr.rel (0) target = $region17
    $region16: #{metagin_forward.20} parent=1 // pred_region
      %s53 = ssub.s32 1024, 1024
      %54 = vsyncadd [#allocation9], %s53
      %s55 = sshll.u32 [#allocation8], 4
      %s56 = int_to_ptr.vmem [resolvable:$true] %s55
      %61 = dma.hbm_to_vmem [thread:$0]  %s3, 1024, %s56, [#allocation9], 64, 64, 4
    $region17: #{metagin_forward.20} parent=1 // pred_fallthru
      _
    // Predicated region
    $region18: #{metagin_forward.20} parent=1 // pred_check
      _
    $region19: #{metagin_forward.20} parent=1 // pred_check_branch
      %63 = sbr.rel (0) target = $region21
    $region20: #{metagin_forward.20} parent=1 // pred_region
      %s65 = ssub.s32 640, 640
      %66 = vsyncadd [#allocation9], %s65
      %s67 = sshll.u32 [#allocation10], 4
      %s68 = int_to_ptr.vmem [resolvable:$true] %s67
      %73 = dma.hbm_to_vmem [thread:$0]  %s4, 640, %s68, [#allocation9], 128, 128, 8
    $region21: #{metagin_forward.20} parent=1 // pred_fallthru
      _
    // Predicated region
    $region22: #{metagin_forward.20} parent=1 // pred_check
      _
    $region23: #{metagin_forward.20} parent=1 // pred_check_branch
      %75 = sbr.rel (0) target = $region25
    $region24: #{metagin_forward.20} parent=1 // pred_region
      %76 = dma.done [#allocation3], 640
    $region25: #{metagin_forward.20} parent=1 // pred_fallthru
      _
    // Predicated region
    $region26: #{metagin_forward.20} parent=1 // pred_check
      _
    $region27: #{metagin_forward.20} parent=1 // pred_check_branch
      %78 = sbr.rel (0) target = $region29
    $region28: #{metagin_forward.20} parent=1 // pred_region
      %79 = dma.done [#allocation6], 640
    $region29: #{metagin_forward.20} parent=1 // pred_fallthru
      _
    // Predicated region
    $region30: #{metagin_forward.20} parent=1 // pred_check
      _
    $region31: #{metagin_forward.20} parent=1 // pred_check_branch
      %81 = sbr.rel (0) target = $region33
    $region32: #{metagin_forward.20} parent=1 // pred_region
      %82 = dma.done [#allocation6], 2048
    $region33: #{metagin_forward.20} parent=1 // pred_fallthru
      _
    // Predicated region
    $region34: #{metagin_forward.20} parent=1 // pred_check
      _
    $region35: #{metagin_forward.20} parent=1 // pred_check_branch
      %84 = sbr.rel (0) target = $region37
    $region36: #{metagin_forward.20} parent=1 // pred_region
      %85 = dma.done [#allocation9], 1024
    $region37: #{metagin_forward.20} parent=1 // pred_fallthru
      _
    // Predicated region
    $region38: #{metagin_forward.20} parent=1 // pred_check
      _
    $region39: #{metagin_forward.20} parent=1 // pred_check_branch
      %87 = sbr.rel (0) target = $region41
    $region40: #{metagin_forward.20} parent=1 // pred_region
      %88 = dma.done [#allocation9], 640
    $region41: #{metagin_forward.20} parent=1 // pred_fallthru
      _
    %v90 = vld [vmem:[#allocation2] sm:$0xff]
    %v91 = vld [vmem:[#allocation2 + $0x8] sm:$0xff]
    %v92 = vld [vmem:[#allocation2 + $0x10] sm:$0xff]
    %v93 = vld [vmem:[#allocation2 + $0x18] sm:$0xff]
    %v94 = vld [vmem:[#allocation2 + $0x20] sm:$0xff]
    %v95 = vld [vmem:[#allocation5] sm:$0xff]
    %v96 = vld [vmem:[#allocation5 + $0x8] sm:$0xff]
    %v97 = vld [vmem:[#allocation5 + $0x10] sm:$0xff]
    %v98 = vld [vmem:[#allocation5 + $0x18] sm:$0xff]
    %v99 = vld [vmem:[#allocation5 + $0x20] sm:$0xff]
    %v100 = vld [vmem:[#allocation7] sm:$0xff]
    %v101 = vld [vmem:[#allocation7 + $0x8] sm:$0xff]
    %v102 = vld [vmem:[#allocation7 + $0x10] sm:$0xff]
    %v103 = vld [vmem:[#allocation7 + $0x18] sm:$0xff]
    %v104 = vld [vmem:[#allocation7 + $0x20] sm:$0xff]
    %v105 = vld [vmem:[#allocation7 + $0x28] sm:$0xff]
    %v106 = vld [vmem:[#allocation7 + $0x30] sm:$0xff]
    %v107 = vld [vmem:[#allocation7 + $0x38] sm:$0xff]
    %v108 = vld [vmem:[#allocation7 + $0x40] sm:$0xff]
    %v109 = vld [vmem:[#allocation7 + $0x48] sm:$0xff]
    %v110 = vld [vmem:[#allocation7 + $0x50] sm:$0xff]
    %v111 = vld [vmem:[#allocation7 + $0x58] sm:$0xff]
    %v112 = vld [vmem:[#allocation7 + $0x60] sm:$0xff]
    %v113 = vld [vmem:[#allocation7 + $0x68] sm:$0xff]
    %v114 = vld [vmem:[#allocation7 + $0x70] sm:$0xff]
    %v115 = vld [vmem:[#allocation7 + $0x78] sm:$0xff]
    %v116 = vld [vmem:[#allocation8] sm:$0xf]
    %v117 = vld [vmem:[#allocation8 + $0x4] sm:$0xf]
    %v118 = vld [vmem:[#allocation8 + $0x8] sm:$0xf]
    %v119 = vld [vmem:[#allocation8 + $0xc] sm:$0xf]
    %v120 = vld [vmem:[#allocation8 + $0x10] sm:$0xf]
    %v121 = vld [vmem:[#allocation8 + $0x14] sm:$0xf]
    %v122 = vld [vmem:[#allocation8 + $0x18] sm:$0xf]
    %v123 = vld [vmem:[#allocation8 + $0x1c] sm:$0xf]
    %v124 = vld [vmem:[#allocation8 + $0x20] sm:$0xf]
    %v125 = vld [vmem:[#allocation8 + $0x24] sm:$0xf]
    %v126 = vld [vmem:[#allocation8 + $0x28] sm:$0xf]
    %v127 = vld [vmem:[#allocation8 + $0x2c] sm:$0xf]
    %v128 = vld [vmem:[#allocation8 + $0x30] sm:$0xf]
    %v129 = vld [vmem:[#allocation8 + $0x34] sm:$0xf]
    %v130 = vld [vmem:[#allocation8 + $0x38] sm:$0xf]
    %v131 = vld [vmem:[#allocation8 + $0x3c] sm:$0xf]
    %vm132 = vcmask 261120
    %v133 = vsel %vm132, %v90, 0.0
    %134 = vadd.xlane.f32.xlu0 %v133
    %v135 = vpop.xlane.xlu0 %134
    %v136 = vsel %vm132, %v91, 0.0
    %137 = vadd.xlane.f32.xlu0 %v136
    %v138 = vpop.xlane.xlu0 %137
    %v139 = vsel %vm132, %v92, 0.0
    %140 = vadd.xlane.f32.xlu0 %v139
    %v141 = vpop.xlane.xlu0 %140
    %v142 = vsel %vm132, %v93, 0.0
    %143 = vadd.xlane.f32.xlu0 %v142
    %v144 = vpop.xlane.xlu0 %143
    %v145 = vsel %vm132, %v94, 0.0
    %146 = vadd.xlane.f32.xlu0 %v145
    %v147 = vpop.xlane.xlu0 %146
    %v148 = vrcp.pop 32.0
    %v149 = vmul.f32 %v135, %v148
    %v150 = vmul.f32 %v138, %v148
    %v151 = vmul.f32 %v141, %v148
    %v152 = vmul.f32 %v144, %v148
    %v153 = vmul.f32 %v147, %v148
    %v154 = vsub.f32 %v90, %v149
    %v155 = vsub.f32 %v91, %v150
    %v156 = vsub.f32 %v92, %v151
    %v157 = vsub.f32 %v93, %v152
    %v158 = vsub.f32 %v94, %v153
    %v159 = vmul.f32 %v154, %v154
    %v160 = vmul.f32 %v155, %v155
    %v161 = vmul.f32 %v156, %v156
    %v162 = vmul.f32 %v157, %v157
    %v163 = vmul.f32 %v158, %v158
    %v164 = vsel %vm132, %v159, 0.0
    %165 = vadd.xlane.f32.xlu0 %v164
    %v166 = vpop.xlane.xlu0 %165
    %v167 = vsel %vm132, %v160, 0.0
    %168 = vadd.xlane.f32.xlu0 %v167
    %v169 = vpop.xlane.xlu0 %168
    %v170 = vsel %vm132, %v161, 0.0
    %171 = vadd.xlane.f32.xlu0 %v170
    %v172 = vpop.xlane.xlu0 %171
    %v173 = vsel %vm132, %v162, 0.0
    %174 = vadd.xlane.f32.xlu0 %v173
    %v175 = vpop.xlane.xlu0 %174
    %v176 = vsel %vm132, %v163, 0.0
    %177 = vadd.xlane.f32.xlu0 %v176
    %v178 = vpop.xlane.xlu0 %177
    %v179 = vmul.f32 %v166, %v148
    %v180 = vmul.f32 %v169, %v148
    %v181 = vmul.f32 %v172, %v148
    %v182 = vmul.f32 %v175, %v148
    %v183 = vmul.f32 %v178, %v148
    %v184 = vadd.f32 %v179, 1e-05
    %v185 = vadd.f32 %v180, 1e-05
    %v186 = vadd.f32 %v181, 1e-05
    %v187 = vadd.f32 %v182, 1e-05
    %v188 = vadd.f32 %v183, 1e-05
    %v189 = vrsqrt.pop %v184
    %v190 = vrsqrt.pop %v185
    %v191 = vrsqrt.pop %v186
    %v192 = vrsqrt.pop %v187
    %v193 = vrsqrt.pop %v188
    %v194 = vmul.f32 %v154, %v189
    %v195 = vmul.f32 %v155, %v190
    %v196 = vmul.f32 %v156, %v191
    %v197 = vmul.f32 %v157, %v192
    %v198 = vmul.f32 %v158, %v193
    %204 = vrot.lane.b32.xlu0 %v90, 96
    %v205 = vpop.permute.xlu0 %204
    %206 = vrot.lane.b32.xlu0 %v91, 96
    %v207 = vpop.permute.xlu0 %206
    %208 = vrot.lane.b32.xlu0 %v92, 96
    %v209 = vpop.permute.xlu0 %208
    %210 = vrot.lane.b32.xlu0 %v93, 96
    %v211 = vpop.permute.xlu0 %210
    %212 = vrot.lane.b32.xlu0 %v94, 96
    %v213 = vpop.permute.xlu0 %212
    %v219 = vsel %vm132, %v205, 0.0
    %220 = vadd.xlane.f32.xlu0 %v219
    %v221 = vpop.xlane.xlu0 %220
    %v222 = vsel %vm132, %v207, 0.0
    %223 = vadd.xlane.f32.xlu0 %v222
    %v224 = vpop.xlane.xlu0 %223
    %v225 = vsel %vm132, %v209, 0.0
    %226 = vadd.xlane.f32.xlu0 %v225
    %v227 = vpop.xlane.xlu0 %226
    %v228 = vsel %vm132, %v211, 0.0
    %229 = vadd.xlane.f32.xlu0 %v228
    %v230 = vpop.xlane.xlu0 %229
    %v231 = vsel %vm132, %v213, 0.0
    %232 = vadd.xlane.f32.xlu0 %v231
    %v233 = vpop.xlane.xlu0 %232
    %v234 = vmul.f32 %v221, %v148
    %v235 = vmul.f32 %v224, %v148
    %v236 = vmul.f32 %v227, %v148
    %v237 = vmul.f32 %v230, %v148
    %v238 = vmul.f32 %v233, %v148
    %v239 = vsub.f32 %v90, %v234
    %v240 = vsub.f32 %v91, %v235
    %v241 = vsub.f32 %v92, %v236
    %v242 = vsub.f32 %v93, %v237
    %v243 = vsub.f32 %v94, %v238
    %v244 = vmul.f32 %v239, %v239
    %v245 = vmul.f32 %v240, %v240
    %v246 = vmul.f32 %v241, %v241
    %v247 = vmul.f32 %v242, %v242
    %v248 = vmul.f32 %v243, %v243
    %254 = vrot.lane.b32.xlu0 %v244, 96
    %v255 = vpop.permute.xlu0 %254
    %256 = vrot.lane.b32.xlu0 %v245, 96
    %v257 = vpop.permute.xlu0 %256
    %258 = vrot.lane.b32.xlu0 %v246, 96
    %v259 = vpop.permute.xlu0 %258
    %260 = vrot.lane.b32.xlu0 %v247, 96
    %v261 = vpop.permute.xlu0 %260
    %262 = vrot.lane.b32.xlu0 %v248, 96
    %v263 = vpop.permute.xlu0 %262
    %v269 = vsel %vm132, %v255, 0.0
    %270 = vadd.xlane.f32.xlu0 %v269
    %v271 = vpop.xlane.xlu0 %270
    %v272 = vsel %vm132, %v257, 0.0
    %273 = vadd.xlane.f32.xlu0 %v272
    %v274 = vpop.xlane.xlu0 %273
    %v275 = vsel %vm132, %v259, 0.0
    %276 = vadd.xlane.f32.xlu0 %v275
    %v277 = vpop.xlane.xlu0 %276
    %v278 = vsel %vm132, %v261, 0.0
    %279 = vadd.xlane.f32.xlu0 %v278
    %v280 = vpop.xlane.xlu0 %279
    %v281 = vsel %vm132, %v263, 0.0
    %282 = vadd.xlane.f32.xlu0 %v281
    %v283 = vpop.xlane.xlu0 %282
    %v284 = vmul.f32 %v271, %v148
    %v285 = vmul.f32 %v274, %v148
    %v286 = vmul.f32 %v277, %v148
    %v287 = vmul.f32 %v280, %v148
    %v288 = vmul.f32 %v283, %v148
    %v289 = vadd.f32 %v284, 1e-05
    %v290 = vadd.f32 %v285, 1e-05
    %v291 = vadd.f32 %v286, 1e-05
    %v292 = vadd.f32 %v287, 1e-05
    %v293 = vadd.f32 %v288, 1e-05
    %v294 = vrsqrt.pop %v289
    %v295 = vrsqrt.pop %v290
    %v296 = vrsqrt.pop %v291
    %v297 = vrsqrt.pop %v292
    %v298 = vrsqrt.pop %v293
    %v299 = vmul.f32 %v239, %v294
    %v300 = vmul.f32 %v240, %v295
    %v301 = vmul.f32 %v241, %v296
    %v302 = vmul.f32 %v242, %v297
    %v303 = vmul.f32 %v243, %v298
    %304 = vrot.lane.b32.xlu0 %v90, 64
    %v305 = vpop.permute.xlu0 %304
    %306 = vrot.lane.b32.xlu0 %v91, 64
    %v307 = vpop.permute.xlu0 %306
    %308 = vrot.lane.b32.xlu0 %v92, 64
    %v309 = vpop.permute.xlu0 %308
    %310 = vrot.lane.b32.xlu0 %v93, 64
    %v311 = vpop.permute.xlu0 %310
    %312 = vrot.lane.b32.xlu0 %v94, 64
    %v313 = vpop.permute.xlu0 %312
    %v319 = vsel %vm132, %v305, 0.0
    %320 = vadd.xlane.f32.xlu0 %v319
    %v321 = vpop.xlane.xlu0 %320
    %v322 = vsel %vm132, %v307, 0.0
    %323 = vadd.xlane.f32.xlu0 %v322
    %v324 = vpop.xlane.xlu0 %323
    %v325 = vsel %vm132, %v309, 0.0
    %326 = vadd.xlane.f32.xlu0 %v325
    %v327 = vpop.xlane.xlu0 %326
    %v328 = vsel %vm132, %v311, 0.0
    %329 = vadd.xlane.f32.xlu0 %v328
    %v330 = vpop.xlane.xlu0 %329
    %v331 = vsel %vm132, %v313, 0.0
    %332 = vadd.xlane.f32.xlu0 %v331
    %v333 = vpop.xlane.xlu0 %332
    %v334 = vmul.f32 %v321, %v148
    %v335 = vmul.f32 %v324, %v148
    %v336 = vmul.f32 %v327, %v148
    %v337 = vmul.f32 %v330, %v148
    %v338 = vmul.f32 %v333, %v148
    %v339 = vsub.f32 %v90, %v334
    %v340 = vsub.f32 %v91, %v335
    %v341 = vsub.f32 %v92, %v336
    %v342 = vsub.f32 %v93, %v337
    %v343 = vsub.f32 %v94, %v338
    %v344 = vmul.f32 %v339, %v339
    %v345 = vmul.f32 %v340, %v340
    %v346 = vmul.f32 %v341, %v341
    %v347 = vmul.f32 %v342, %v342
    %v348 = vmul.f32 %v343, %v343
    %354 = vrot.lane.b32.xlu0 %v344, 64
    %v355 = vpop.permute.xlu0 %354
    %356 = vrot.lane.b32.xlu0 %v345, 64
    %v357 = vpop.permute.xlu0 %356
    %358 = vrot.lane.b32.xlu0 %v346, 64
    %v359 = vpop.permute.xlu0 %358
    %360 = vrot.lane.b32.xlu0 %v347, 64
    %v361 = vpop.permute.xlu0 %360
    %362 = vrot.lane.b32.xlu0 %v348, 64
    %v363 = vpop.permute.xlu0 %362
    %v369 = vsel %vm132, %v355, 0.0
    %370 = vadd.xlane.f32.xlu0 %v369
    %v371 = vpop.xlane.xlu0 %370
    %v372 = vsel %vm132, %v357, 0.0
    %373 = vadd.xlane.f32.xlu0 %v372
    %v374 = vpop.xlane.xlu0 %373
    %v375 = vsel %vm132, %v359, 0.0
    %376 = vadd.xlane.f32.xlu0 %v375
    %v377 = vpop.xlane.xlu0 %376
    %v378 = vsel %vm132, %v361, 0.0
    %379 = vadd.xlane.f32.xlu0 %v378
    %v380 = vpop.xlane.xlu0 %379
    %v381 = vsel %vm132, %v363, 0.0
    %382 = vadd.xlane.f32.xlu0 %v381
    %v383 = vpop.xlane.xlu0 %382
    %v384 = vmul.f32 %v371, %v148
    %v385 = vmul.f32 %v374, %v148
    %v386 = vmul.f32 %v377, %v148
    %v387 = vmul.f32 %v380, %v148
    %v388 = vmul.f32 %v383, %v148
    %v389 = vadd.f32 %v384, 1e-05
    %v390 = vadd.f32 %v385, 1e-05
    %v391 = vadd.f32 %v386, 1e-05
    %v392 = vadd.f32 %v387, 1e-05
    %v393 = vadd.f32 %v388, 1e-05
    %v394 = vrsqrt.pop %v389
    %v395 = vrsqrt.pop %v390
    %v396 = vrsqrt.pop %v391
    %v397 = vrsqrt.pop %v392
    %v398 = vrsqrt.pop %v393
    %v399 = vmul.f32 %v339, %v394
    %v400 = vmul.f32 %v340, %v395
    %v401 = vmul.f32 %v341, %v396
    %v402 = vmul.f32 %v342, %v397
    %v403 = vmul.f32 %v343, %v398
    %404 = vrot.lane.b32.xlu0 %v90, 32
    %v405 = vpop.permute.xlu0 %404
    %406 = vrot.lane.b32.xlu0 %v91, 32
    %v407 = vpop.permute.xlu0 %406
    %408 = vrot.lane.b32.xlu0 %v92, 32
    %v409 = vpop.permute.xlu0 %408
    %410 = vrot.lane.b32.xlu0 %v93, 32
    %v411 = vpop.permute.xlu0 %410
    %412 = vrot.lane.b32.xlu0 %v94, 32
    %v413 = vpop.permute.xlu0 %412
    %v419 = vsel %vm132, %v405, 0.0
    %420 = vadd.xlane.f32.xlu0 %v419
    %v421 = vpop.xlane.xlu0 %420
    %v422 = vsel %vm132, %v407, 0.0
    %423 = vadd.xlane.f32.xlu0 %v422
    %v424 = vpop.xlane.xlu0 %423
    %v425 = vsel %vm132, %v409, 0.0
    %426 = vadd.xlane.f32.xlu0 %v425
    %v427 = vpop.xlane.xlu0 %426
    %v428 = vsel %vm132, %v411, 0.0
    %429 = vadd.xlane.f32.xlu0 %v428
    %v430 = vpop.xlane.xlu0 %429
    %v431 = vsel %vm132, %v413, 0.0
    %432 = vadd.xlane.f32.xlu0 %v431
    %v433 = vpop.xlane.xlu0 %432
    %v434 = vmul.f32 %v421, %v148
    %v435 = vmul.f32 %v424, %v148
    %v436 = vmul.f32 %v427, %v148
    %v437 = vmul.f32 %v430, %v148
    %v438 = vmul.f32 %v433, %v148
    %v439 = vsub.f32 %v90, %v434
    %v440 = vsub.f32 %v91, %v435
    %v441 = vsub.f32 %v92, %v436
    %v442 = vsub.f32 %v93, %v437
    %v443 = vsub.f32 %v94, %v438
    %v444 = vmul.f32 %v439, %v439
    %v445 = vmul.f32 %v440, %v440
    %v446 = vmul.f32 %v441, %v441
    %v447 = vmul.f32 %v442, %v442
    %v448 = vmul.f32 %v443, %v443
    %454 = vrot.lane.b32.xlu0 %v444, 32
    %v455 = vpop.permute.xlu0 %454
    %456 = vrot.lane.b32.xlu0 %v445, 32
    %v457 = vpop.permute.xlu0 %456
    %458 = vrot.lane.b32.xlu0 %v446, 32
    %v459 = vpop.permute.xlu0 %458
    %460 = vrot.lane.b32.xlu0 %v447, 32
    %v461 = vpop.permute.xlu0 %460
    %462 = vrot.lane.b32.xlu0 %v448, 32
    %v463 = vpop.permute.xlu0 %462
    %v469 = vsel %vm132, %v455, 0.0
    %470 = vadd.xlane.f32.xlu0 %v469
    %v471 = vpop.xlane.xlu0 %470
    %v472 = vsel %vm132, %v457, 0.0
    %473 = vadd.xlane.f32.xlu0 %v472
    %v474 = vpop.xlane.xlu0 %473
    %v475 = vsel %vm132, %v459, 0.0
    %476 = vadd.xlane.f32.xlu0 %v475
    %v477 = vpop.xlane.xlu0 %476
    %v478 = vsel %vm132, %v461, 0.0
    %479 = vadd.xlane.f32.xlu0 %v478
    %v480 = vpop.xlane.xlu0 %479
    %v481 = vsel %vm132, %v463, 0.0
    %482 = vadd.xlane.f32.xlu0 %v481
    %v483 = vpop.xlane.xlu0 %482
    %v484 = vmul.f32 %v471, %v148
    %v485 = vmul.f32 %v474, %v148
    %v486 = vmul.f32 %v477, %v148
    %v487 = vmul.f32 %v480, %v148
    %v488 = vmul.f32 %v483, %v148
    %v489 = vadd.f32 %v484, 1e-05
    %v490 = vadd.f32 %v485, 1e-05
    %v491 = vadd.f32 %v486, 1e-05
    %v492 = vadd.f32 %v487, 1e-05
    %v493 = vadd.f32 %v488, 1e-05
    %v494 = vrsqrt.pop %v489
    %v495 = vrsqrt.pop %v490
    %v496 = vrsqrt.pop %v491
    %v497 = vrsqrt.pop %v492
    %v498 = vrsqrt.pop %v493
    %v499 = vmul.f32 %v439, %v494
    %v500 = vmul.f32 %v440, %v495
    %v501 = vmul.f32 %v441, %v496
    %v502 = vmul.f32 %v442, %v497
    %v503 = vmul.f32 %v443, %v498
    %v504 = vsel %vm132, %v194, %v299
    %v505 = vsel %vm132, %v195, %v300
    %v506 = vsel %vm132, %v196, %v301
    %v507 = vsel %vm132, %v197, %v302
    %v508 = vsel %vm132, %v198, %v303
    %vm509 = vcmask 523264
    %v510 = vsel %vm509, %v504, %v399
    %v511 = vsel %vm509, %v505, %v400
    %v512 = vsel %vm509, %v506, %v401
    %v513 = vsel %vm509, %v507, %v402
    %v514 = vsel %vm509, %v508, %v403
    %vm515 = vcmask 785408
    %v516 = vsel %vm515, %v510, %v499
    %v517 = vsel %vm515, %v511, %v500
    %v518 = vsel %vm515, %v512, %v501
    %v519 = vsel %vm515, %v513, %v502
    %v520 = vsel %vm515, %v514, %v503
    %v521 = vadd.f32 %v516, %v95
    %v522 = vadd.f32 %v517, %v96
    %v523 = vadd.f32 %v518, %v97
    %v524 = vadd.f32 %v519, %v98
    %v525 = vadd.f32 %v520, %v99
    %v526 = vpack.c.bf16 %v522, %v521
    %v527 = vpack.c.bf16 %v524, %v523
    %v528 = vpack.c.bf16 %v525, %v525
    %v545 = vunpack.c.l.b16 %v100
    %v546 = vunpack.c.l.b16 %v101
    %v547 = vunpack.c.l.b16 %v102
    %v548 = vunpack.c.l.b16 %v103
    %v549 = vunpack.c.l.b16 %v104
    %v550 = vunpack.c.l.b16 %v105
    %v551 = vunpack.c.l.b16 %v106
    %v552 = vunpack.c.l.b16 %v107
    %v553 = vunpack.c.l.b16 %v108
    %v554 = vunpack.c.l.b16 %v109
    %v555 = vunpack.c.l.b16 %v110
    %v556 = vunpack.c.l.b16 %v111
    %v557 = vunpack.c.l.b16 %v112
    %v558 = vunpack.c.l.b16 %v113
    %v559 = vunpack.c.l.b16 %v114
    %v560 = vunpack.c.l.b16 %v115
    %v561 = vpack.c.b16 %v546, %v545
    %v562 = vpack.c.b16 %v548, %v547
    %v563 = vpack.c.b16 %v550, %v549
    %v564 = vpack.c.b16 %v552, %v551
    %v565 = vpack.c.b16 %v554, %v553
    %v566 = vpack.c.b16 %v556, %v555
    %v567 = vpack.c.b16 %v558, %v557
    %v568 = vpack.c.b16 %v560, %v559
    %577 = vmatprep.subr.bf16.mxu0 0
    %578 = vmatpush1.bf16.msra.mxu0 %v561
    %579 = vmatprep.subr.bf16.mxu0 0
    %580 = vmatpush1.bf16.msra.mxu0 %v562
    %581 = vmatprep.subr.bf16.mxu0 0
    %582 = vmatpush1.bf16.msra.mxu0 %v563
    %583 = vmatprep.subr.bf16.mxu0 0
    %584 = vmatpush1.bf16.msra.mxu0 %v564
    %585 = vmatprep.subr.bf16.mxu0 0
    %586 = vmatpush1.bf16.msra.mxu0 %v565
    %587 = vmatprep.subr.bf16.mxu0 0
    %588 = vmatpush1.bf16.msra.mxu0 %v566
    %589 = vmatprep.subr.bf16.mxu0 0
    %590 = vmatpush1.bf16.msra.mxu0 %v567
    %591 = vmatprep.subr.bf16.mxu0 0
    %592 = vmatpush1.bf16.msra.mxu0 %v568
    %593 = vmatprep.subr.bf16.mxu0 0
    %594 = vmatpush1.bf16.msra.mxu0 0
    %595 = vmatprep.subr.bf16.mxu0 0
    %596 = vmatpush1.bf16.msra.mxu0 0
    %597 = vmatprep.subr.bf16.mxu0 0
    %598 = vmatpush1.bf16.msra.mxu0 0
    %599 = vmatprep.subr.bf16.mxu0 0
    %600 = vmatpush1.bf16.msra.mxu0 0
    %601 = vmatprep.subr.bf16.mxu0 0
    %602 = vmatpush1.bf16.msra.mxu0 0
    %603 = vmatprep.subr.bf16.mxu0 0
    %604 = vmatpush1.bf16.msra.mxu0 0
    %605 = vmatprep.subr.bf16.mxu0 0
    %606 = vmatpush1.bf16.msra.mxu0 0
    %607 = vmatprep.subr.bf16.mxu0 0
    %608 = vmatpush1.bf16.msra.mxu0 0
    %609 = vmatprep.mubr.bf16.mxu0 0
    %610 = vmatmul.mubr.bf16.gmra.mrb[0].mxu0 %v526
    %v611 = vpop.f32.mrb[0].mxu0
    %v612 = vadd.f32 0.0, %v611
    %v613 = vpop.f32.mrb[0].mxu0
    %v614 = vpop.f32.mrb[0].mxu0
    %v615 = vadd.f32 0.0, %v614
    %v616 = vpop.f32.mrb[0].mxu0
    %617 = vmatprep.mubr.bf16.mxu0 0
    %618 = vmatmul.mubr.bf16.gmra.mrb[0].mxu0 %v527
    %v619 = vpop.f32.mrb[0].mxu0
    %v620 = vadd.f32 0.0, %v619
    %v621 = vpop.f32.mrb[0].mxu0
    %v622 = vpop.f32.mrb[0].mxu0
    %v623 = vadd.f32 0.0, %v622
    %v624 = vpop.f32.mrb[0].mxu0
    %625 = vmatprep.mubr.bf16.mxu0 0
    %626 = vmatmul.mubr.bf16.gmra.mrb[0].mxu0 %v528
    %v627 = vpop.f32.mrb[0].mxu0
    %v628 = vadd.f32 0.0, %v627
    %v629 = vpop.f32.mrb[0].mxu0
    %v630 = vpop.f32.mrb[0].mxu0
    %v631 = vpop.f32.mrb[0].mxu0
    %632 = vdwg.mxu0
    %v633 = vpack.c.bf16 %v517, %v516
    %v634 = vpack.c.bf16 %v519, %v518
    %v635 = vpack.c.bf16 %v520, %v520
    %v636 = vunpack.c.h.b16 %v100
    %v637 = vunpack.c.h.b16 %v101
    %v638 = vunpack.c.h.b16 %v102
    %v639 = vunpack.c.h.b16 %v103
    %v640 = vunpack.c.h.b16 %v104
    %v641 = vunpack.c.h.b16 %v105
    %v642 = vunpack.c.h.b16 %v106
    %v643 = vunpack.c.h.b16 %v107
    %v644 = vunpack.c.h.b16 %v108
    %v645 = vunpack.c.h.b16 %v109
    %v646 = vunpack.c.h.b16 %v110
    %v647 = vunpack.c.h.b16 %v111
    %v648 = vunpack.c.h.b16 %v112
    %v649 = vunpack.c.h.b16 %v113
    %v650 = vunpack.c.h.b16 %v114
    %v651 = vunpack.c.h.b16 %v115
    %v652 = vpack.c.b16 %v637, %v636
    %v653 = vpack.c.b16 %v639, %v638
    %v654 = vpack.c.b16 %v641, %v640
    %v655 = vpack.c.b16 %v643, %v642
    %v656 = vpack.c.b16 %v645, %v644
    %v657 = vpack.c.b16 %v647, %v646
    %v658 = vpack.c.b16 %v649, %v648
    %v659 = vpack.c.b16 %v651, %v650
    %668 = vmatprep.subr.bf16.mxu0 0
    %669 = vmatpush1.bf16.msra.mxu0 %v652
    %670 = vmatprep.subr.bf16.mxu0 0
    %671 = vmatpush1.bf16.msra.mxu0 %v653
    %672 = vmatprep.subr.bf16.mxu0 0
    %673 = vmatpush1.bf16.msra.mxu0 %v654
    %674 = vmatprep.subr.bf16.mxu0 0
    %675 = vmatpush1.bf16.msra.mxu0 %v655
    %676 = vmatprep.subr.bf16.mxu0 0
    %677 = vmatpush1.bf16.msra.mxu0 %v656
    %678 = vmatprep.subr.bf16.mxu0 0
    %679 = vmatpush1.bf16.msra.mxu0 %v657
    %680 = vmatprep.subr.bf16.mxu0 0
    %681 = vmatpush1.bf16.msra.mxu0 %v658
    %682 = vmatprep.subr.bf16.mxu0 0
    %683 = vmatpush1.bf16.msra.mxu0 %v659
    %684 = vmatprep.subr.bf16.mxu0 0
    %685 = vmatpush1.bf16.msra.mxu0 0
    %686 = vmatprep.subr.bf16.mxu0 0
    %687 = vmatpush1.bf16.msra.mxu0 0
    %688 = vmatprep.subr.bf16.mxu0 0
    %689 = vmatpush1.bf16.msra.mxu0 0
    %690 = vmatprep.subr.bf16.mxu0 0
    %691 = vmatpush1.bf16.msra.mxu0 0
    %692 = vmatprep.subr.bf16.mxu0 0
    %693 = vmatpush1.bf16.msra.mxu0 0
    %694 = vmatprep.subr.bf16.mxu0 0
    %695 = vmatpush1.bf16.msra.mxu0 0
    %696 = vmatprep.subr.bf16.mxu0 0
    %697 = vmatpush1.bf16.msra.mxu0 0
    %698 = vmatprep.subr.bf16.mxu0 0
    %699 = vmatpush1.bf16.msra.mxu0 0
    %700 = vmatprep.mubr.bf16.mxu0 0
    %701 = vmatmul.mubr.bf16.gmra.mrb[0].mxu0 %v633
    %v702 = vpop.f32.mrb[0].mxu0
    %v703 = vadd.f32 0.0, %v702
    %v704 = vpop.f32.mrb[0].mxu0
    %v705 = vpop.f32.mrb[0].mxu0
    %v706 = vadd.f32 0.0, %v705
    %v707 = vpop.f32.mrb[0].mxu0
    %708 = vmatprep.mubr.bf16.mxu0 0
    %709 = vmatmul.mubr.bf16.gmra.mrb[0].mxu0 %v634
    %v710 = vpop.f32.mrb[0].mxu0
    %v711 = vadd.f32 0.0, %v710
    %v712 = vpop.f32.mrb[0].mxu0
    %v713 = vpop.f32.mrb[0].mxu0
    %v714 = vadd.f32 0.0, %v713
    %v715 = vpop.f32.mrb[0].mxu0
    %716 = vmatprep.mubr.bf16.mxu0 0
    %717 = vmatmul.mubr.bf16.gmra.mrb[0].mxu0 %v635
    %v718 = vpop.f32.mrb[0].mxu0
    %v719 = vadd.f32 0.0, %v718
    %v720 = vpop.f32.mrb[0].mxu0
    %v721 = vpop.f32.mrb[0].mxu0
    %v722 = vpop.f32.mrb[0].mxu0
    %723 = vdwg.mxu0
    %v724 = vmax.f32 %v612, 0.0
    %v725 = vmax.f32 %v615, 0.0
    %v726 = vmax.f32 %v620, 0.0
    %v727 = vmax.f32 %v623, 0.0
    %v728 = vmax.f32 %v628, 0.0
    %v729 = vmul.f32 %v724, %v703
    %v730 = vmul.f32 %v725, %v706
    %v731 = vmul.f32 %v726, %v711
    %v732 = vmul.f32 %v727, %v714
    %v733 = vmul.f32 %v728, %v719
    %v734 = vpack.c.bf16 %v730, %v729
    %v735 = vpack.c.bf16 %v732, %v731
    %v736 = vpack.c.bf16 %v733, %v733
    %v753 = vunpack.c.l.b16 %v116
    %v754 = vunpack.c.l.b16 %v117
    %v755 = vunpack.c.l.b16 %v118
    %v756 = vunpack.c.l.b16 %v119
    %v757 = vunpack.c.l.b16 %v120
    %v758 = vunpack.c.l.b16 %v121
    %v759 = vunpack.c.l.b16 %v122
    %v760 = vunpack.c.l.b16 %v123
    %v761 = vunpack.c.l.b16 %v124
    %v762 = vunpack.c.l.b16 %v125
    %v763 = vunpack.c.l.b16 %v126
    %v764 = vunpack.c.l.b16 %v127
    %v765 = vunpack.c.l.b16 %v128
    %v766 = vunpack.c.l.b16 %v129
    %v767 = vunpack.c.l.b16 %v130
    %v768 = vunpack.c.l.b16 %v131
    %v769 = vpack.c.b16 %v754, %v753
    %v770 = vpack.c.b16 %v756, %v755
    %v771 = vpack.c.b16 %v758, %v757
    %v772 = vpack.c.b16 %v760, %v759
    %v773 = vpack.c.b16 %v762, %v761
    %v774 = vpack.c.b16 %v764, %v763
    %v775 = vpack.c.b16 %v766, %v765
    %v776 = vpack.c.b16 %v768, %v767
    %785 = vmatprep.subr.bf16.mxu0 0
    %786 = vmatpush1.bf16.msra.mxu0 %v769
    %787 = vmatprep.subr.bf16.mxu0 0
    %788 = vmatpush1.bf16.msra.mxu0 %v770
    %789 = vmatprep.subr.bf16.mxu0 0
    %790 = vmatpush1.bf16.msra.mxu0 %v771
    %791 = vmatprep.subr.bf16.mxu0 0
    %792 = vmatpush1.bf16.msra.mxu0 %v772
    %793 = vmatprep.subr.bf16.mxu0 0
    %794 = vmatpush1.bf16.msra.mxu0 %v773
    %795 = vmatprep.subr.bf16.mxu0 0
    %796 = vmatpush1.bf16.msra.mxu0 %v774
    %797 = vmatprep.subr.bf16.mxu0 0
    %798 = vmatpush1.bf16.msra.mxu0 %v775
    %799 = vmatprep.subr.bf16.mxu0 0
    %800 = vmatpush1.bf16.msra.mxu0 %v776
    %801 = vmatprep.subr.bf16.mxu0 0
    %802 = vmatpush1.bf16.msra.mxu0 0
    %803 = vmatprep.subr.bf16.mxu0 0
    %804 = vmatpush1.bf16.msra.mxu0 0
    %805 = vmatprep.subr.bf16.mxu0 0
    %806 = vmatpush1.bf16.msra.mxu0 0
    %807 = vmatprep.subr.bf16.mxu0 0
    %808 = vmatpush1.bf16.msra.mxu0 0
    %809 = vmatprep.subr.bf16.mxu0 0
    %810 = vmatpush1.bf16.msra.mxu0 0
    %811 = vmatprep.subr.bf16.mxu0 0
    %812 = vmatpush1.bf16.msra.mxu0 0
    %813 = vmatprep.subr.bf16.mxu0 0
    %814 = vmatpush1.bf16.msra.mxu0 0
    %815 = vmatprep.subr.bf16.mxu0 0
    %816 = vmatpush1.bf16.msra.mxu0 0
    %817 = vmatprep.mubr.bf16.mxu0 0
    %818 = vmatmul.mubr.bf16.gmra.mrb[0].mxu0 %v734
    %v819 = vpop.f32.mrb[0].mxu0
    %v820 = vadd.f32 0.0, %v819
    %v821 = vpop.f32.mrb[0].mxu0
    %v822 = vpop.f32.mrb[0].mxu0
    %v823 = vadd.f32 0.0, %v822
    %v824 = vpop.f32.mrb[0].mxu0
    %825 = vmatprep.mubr.bf16.mxu0 0
    %826 = vmatmul.mubr.bf16.gmra.mrb[0].mxu0 %v735
    %v827 = vpop.f32.mrb[0].mxu0
    %v828 = vadd.f32 0.0, %v827
    %v829 = vpop.f32.mrb[0].mxu0
    %v830 = vpop.f32.mrb[0].mxu0
    %v831 = vadd.f32 0.0, %v830
    %v832 = vpop.f32.mrb[0].mxu0
    %833 = vmatprep.mubr.bf16.mxu0 0
    %834 = vmatmul.mubr.bf16.gmra.mrb[0].mxu0 %v736
    %v835 = vpop.f32.mrb[0].mxu0
    %v836 = vadd.f32 0.0, %v835
    %v837 = vpop.f32.mrb[0].mxu0
    %v838 = vpop.f32.mrb[0].mxu0
    %v839 = vpop.f32.mrb[0].mxu0
    %840 = vdwg.mxu0
    %v841 = vld [vmem:[#allocation10] sm:$0xff]
    %v842 = vld [vmem:[#allocation10 + $0x8] sm:$0xff]
    %v843 = vld [vmem:[#allocation10 + $0x10] sm:$0xff]
    %v844 = vld [vmem:[#allocation10 + $0x18] sm:$0xff]
    %v845 = vld [vmem:[#allocation10 + $0x20] sm:$0xff]
    %847 = vset.pattern.permute.xlu0 0
    %848 = vperm.xlu0 %847, %v841
    %v849 = vpop.permute.xlu0 %848
    %852 = vset.pattern.permute.xlu0 0
    %853 = vperm.xlu0 %852, %v842
    %v854 = vpop.permute.xlu0 %853
    %857 = vset.pattern.permute.xlu0 0
    %858 = vperm.xlu0 %857, %v843
    %v859 = vpop.permute.xlu0 %858
    %862 = vset.pattern.permute.xlu0 0
    %863 = vperm.xlu0 %862, %v844
    %v864 = vpop.permute.xlu0 %863
    %867 = vset.pattern.permute.xlu0 0
    %868 = vperm.xlu0 %867, %v845
    %v869 = vpop.permute.xlu0 %868
    %v871 = vmul.f32 %v820, %v849
    %v872 = vmul.f32 %v823, %v854
    %v873 = vmul.f32 %v828, %v859
    %v874 = vmul.f32 %v831, %v864
    %v875 = vmul.f32 %v836, %v869
    %876 = vst [vmem:[#allocation11] sm:$0xff] %v871
    %877 = vst [vmem:[#allocation11 + $0x8] sm:$0xff] %v872
    %878 = vst [vmem:[#allocation11 + $0x10] sm:$0xff] %v873
    %879 = vst [vmem:[#allocation11 + $0x18] sm:$0xff] %v874
    %880 = vst [vmem:[#allocation11 + $0x20] sm:$0xff] %v875
    // Predicated region
    $region42: #{metagin_forward.20} parent=1 // pred_check
      _
    $region43: #{metagin_forward.20} parent=1 // pred_check_branch
      %882 = sbr.rel (0) target = $region45
    $region44: #{metagin_forward.20} parent=1 // pred_region
      %s884 = ssub.s32 640, 640
      %885 = vsyncadd [#allocation4], %s884
      %s886 = sshll.u32 [#allocation11], 4
      %s887 = int_to_ptr.vmem [resolvable:$true] %s886
      %892 = dma.vmem_to_hbm [thread:$0]  %s887, 640, %s5, [#allocation4], 128, 128, 8
    $region45: #{metagin_forward.20} parent=1 // pred_fallthru
      _
    // Predicated region
    $region46: #{metagin_forward.20} parent=1 // pred_check
      _
    $region47: #{metagin_forward.20} parent=1 // pred_check_branch
      %894 = sbr.rel (0) target = $region49
    $region48: #{metagin_forward.20} parent=1 // pred_region
      %895 = dma.done [#allocation4], 640
    $region49: #{metagin_forward.20} parent=1 // pred_fallthru
      _
    %896 = vsyncpa [#allocation3], 1
    %897 = vsyncpa [#allocation6], 1
    %898 = vsyncpa [#allocation9], 1
    %899 = vsyncpa [#allocation4], 1

// kernel: metagin_forward.22
$region0: #{metagin_forward.22}
  #allocation0 [shape = 'u32[]', space=smem, size = 0x4, offset = 0x4, fixed_abs, tag = 'smem constant byte address 0x4 - core index']
  #allocation1 [shape = 'u32[144,128]{1,0:T(1,128)}', space=vmem, size = 0x12000, scoped, tag = 'internal scratch']
  %s0 = inlined_call_operand.hbm [shape: f32[24,128], index: 0, kind: input, shape index: {}]
  %s1 = inlined_call_operand.hbm [shape: f32[24,128], index: 1, kind: input, shape index: {}]
  %s2 = inlined_call_operand.hbm [shape: bf16[128,256], index: 2, kind: input, shape index: {}]
  %s3 = inlined_call_operand.hbm [shape: bf16[128,128], index: 3, kind: input, shape index: {}]
  %s4 = inlined_call_operand.hbm [shape: f32[24,1], index: 4, kind: input, shape index: {}]
  %s5 = inlined_call_operand.hbm [shape: f32[24,128], index: 5, kind: output, shape index: {}]
  %s6 = sld [smem:[#allocation0]]
  $region50: #{metagin_forward.22} parent=0
    _
  %s8 = ssub.s32 1, %s6
  %s9 = scalar_select 0, %s8, %s6
  $region1: #{metagin_forward.22} parent=0
    #allocation2 [shape = 'u8[12288]{0}', space=vmem, size = 0x3000, scoped, tag = 'input window, operand 0, single buffered']
    #allocation3 [shape = 's32[1]{0}', space=sflag, size = 0x4, scoped, tag = 'scoped memory for metagin_forward.22']
    #allocation4 [shape = 's32[1]{0}', space=sflag, size = 0x4, scoped, tag = 'scoped memory for metagin_forward.22']
    #allocation5 [shape = 'u8[12288]{0}', space=vmem, size = 0x3000, scoped, tag = 'input window, operand 1, single buffered']
    #allocation6 [shape = 's32[1]{0}', space=sflag, size = 0x4, scoped, tag = 'scoped memory for metagin_forward.22']
    #allocation7 [shape = 'u8[65536]{0}', space=vmem, size = 0x10000, scoped, tag = 'input window, operand 2, single buffered']
    #allocation8 [shape = 'u8[32768]{0}', space=vmem, size = 0x8000, scoped, tag = 'input window, operand 3, single buffered']
    #allocation9 [shape = 's32[1]{0}', space=sflag, size = 0x4, scoped, tag = 'scoped memory for metagin_forward.22']
    #allocation10 [shape = 'u8[12288]{0}', space=vmem, size = 0x3000, scoped, tag = 'input window, operand 4, single buffered']
    #allocation11 [shape = 'u8[12288]{0}', space=vmem, size = 0x3000, scoped, tag = 'output window, operand 0, single buffered']
    %10 = vsyncpa [#allocation3], 0
    %11 = vsyncpa [#allocation6], 0
    %12 = vsyncpa [#allocation9], 0
    %13 = vsyncpa [#allocation4], 0
    // Predicated region
    $region2: #{metagin_forward.22} parent=1 // pred_check
      _
    $region3: #{metagin_forward.22} parent=1 // pred_check_branch
      %15 = sbr.rel (0) target = $region5
    $region4: #{metagin_forward.22} parent=1 // pred_region
      %s17 = ssub.s32 384, 384
      %18 = vsyncadd [#allocation3], %s17
      %s19 = sshll.u32 [#allocation2], 4
      %s20 = int_to_ptr.vmem [resolvable:$true] %s19
      %25 = dma.hbm_to_vmem [thread:$0]  %s0, 384, %s20, [#allocation3], 128, 128, 8
    $region5: #{metagin_forward.22} parent=1 // pred_fallthru
      _
    // Predicated region
    $region6: #{metagin_forward.22} parent=1 // pred_check
      _
    $region7: #{metagin_forward.22} parent=1 // pred_check_branch
      %27 = sbr.rel (0) target = $region9
    $region8: #{metagin_forward.22} parent=1 // pred_region
      %s29 = ssub.s32 384, 384
      %30 = vsyncadd [#allocation6], %s29
      %s31 = sshll.u32 [#allocation5], 4
      %s32 = int_to_ptr.vmem [resolvable:$true] %s31
      %37 = dma.hbm_to_vmem [thread:$0]  %s1, 384, %s32, [#allocation6], 128, 128, 8
    $region9: #{metagin_forward.22} parent=1 // pred_fallthru
      _
    // Predicated region
    $region10: #{metagin_forward.22} parent=1 // pred_check
      _
    $region11: #{metagin_forward.22} parent=1 // pred_check_branch
      %39 = sbr.rel (0) target = $region13
    $region12: #{metagin_forward.22} parent=1 // pred_region
      %s41 = ssub.s32 2048, 2048
      %42 = vsyncadd [#allocation6], %s41
      %s43 = sshll.u32 [#allocation7], 4
      %s44 = int_to_ptr.vmem [resolvable:$true] %s43
      %49 = dma.hbm_to_vmem [thread:$0]  %s2, 2048, %s44, [#allocation6], 128, 128, 8
    $region13: #{metagin_forward.22} parent=1 // pred_fallthru
      _
    // Predicated region
    $region14: #{metagin_forward.22} parent=1 // pred_check
      _
    $region15: #{metagin_forward.22} parent=1 // pred_check_branch
      %51 = sbr.rel (0) target = $region17
    $region16: #{metagin_forward.22} parent=1 // pred_region
      %s53 = ssub.s32 1024, 1024
      %54 = vsyncadd [#allocation9], %s53
      %s55 = sshll.u32 [#allocation8], 4
      %s56 = int_to_ptr.vmem [resolvable:$true] %s55
      %61 = dma.hbm_to_vmem [thread:$0]  %s3, 1024, %s56, [#allocation9], 64, 64, 4
    $region17: #{metagin_forward.22} parent=1 // pred_fallthru
      _
    // Predicated region
    $region18: #{metagin_forward.22} parent=1 // pred_check
      _
    $region19: #{metagin_forward.22} parent=1 // pred_check_branch
      %63 = sbr.rel (0) target = $region21
    $region20: #{metagin_forward.22} parent=1 // pred_region
      %s65 = ssub.s32 384, 384
      %66 = vsyncadd [#allocation9], %s65
      %s67 = sshll.u32 [#allocation10], 4
      %s68 = int_to_ptr.vmem [resolvable:$true] %s67
      %73 = dma.hbm_to_vmem [thread:$0]  %s4, 384, %s68, [#allocation9], 128, 128, 8
    $region21: #{metagin_forward.22} parent=1 // pred_fallthru
      _
    // Predicated region
    $region22: #{metagin_forward.22} parent=1 // pred_check
      _
    $region23: #{metagin_forward.22} parent=1 // pred_check_branch
      %75 = sbr.rel (0) target = $region25
    $region24: #{metagin_forward.22} parent=1 // pred_region
      %76 = dma.done [#allocation3], 384
    $region25: #{metagin_forward.22} parent=1 // pred_fallthru
      _
    // Predicated region
    $region26: #{metagin_forward.22} parent=1 // pred_check
      _
    $region27: #{metagin_forward.22} parent=1 // pred_check_branch
      %78 = sbr.rel (0) target = $region29
    $region28: #{metagin_forward.22} parent=1 // pred_region
      %79 = dma.done [#allocation6], 384
    $region29: #{metagin_forward.22} parent=1 // pred_fallthru
      _
    // Predicated region
    $region30: #{metagin_forward.22} parent=1 // pred_check
      _
    $region31: #{metagin_forward.22} parent=1 // pred_check_branch
      %81 = sbr.rel (0) target = $region33
    $region32: #{metagin_forward.22} parent=1 // pred_region
      %82 = dma.done [#allocation6], 2048
    $region33: #{metagin_forward.22} parent=1 // pred_fallthru
      _
    // Predicated region
    $region34: #{metagin_forward.22} parent=1 // pred_check
      _
    $region35: #{metagin_forward.22} parent=1 // pred_check_branch
      %84 = sbr.rel (0) target = $region37
    $region36: #{metagin_forward.22} parent=1 // pred_region
      %85 = dma.done [#allocation9], 1024
    $region37: #{metagin_forward.22} parent=1 // pred_fallthru
      _
    // Predicated region
    $region38: #{metagin_forward.22} parent=1 // pred_check
      _
    $region39: #{metagin_forward.22} parent=1 // pred_check_branch
      %87 = sbr.rel (0) target = $region41
    $region40: #{metagin_forward.22} parent=1 // pred_region
      %88 = dma.done [#allocation9], 384
    $region41: #{metagin_forward.22} parent=1 // pred_fallthru
      _
    %v90 = vld [vmem:[#allocation2] sm:$0xff]
    %v91 = vld [vmem:[#allocation2 + $0x8] sm:$0xff]
    %v92 = vld [vmem:[#allocation2 + $0x10] sm:$0xff]
    %v93 = vld [vmem:[#allocation5] sm:$0xff]
    %v94 = vld [vmem:[#allocation5 + $0x8] sm:$0xff]
    %v95 = vld [vmem:[#allocation5 + $0x10] sm:$0xff]
    %v96 = vld [vmem:[#allocation7] sm:$0xff]
    %v97 = vld [vmem:[#allocation7 + $0x8] sm:$0xff]
    %v98 = vld [vmem:[#allocation7 + $0x10] sm:$0xff]
    %v99 = vld [vmem:[#allocation7 + $0x18] sm:$0xff]
    %v100 = vld [vmem:[#allocation7 + $0x20] sm:$0xff]
    %v101 = vld [vmem:[#allocation7 + $0x28] sm:$0xff]
    %v102 = vld [vmem:[#allocation7 + $0x30] sm:$0xff]
    %v103 = vld [vmem:[#allocation7 + $0x38] sm:$0xff]
    %v104 = vld [vmem:[#allocation7 + $0x40] sm:$0xff]
    %v105 = vld [vmem:[#allocation7 + $0x48] sm:$0xff]
    %v106 = vld [vmem:[#allocation7 + $0x50] sm:$0xff]
    %v107 = vld [vmem:[#allocation7 + $0x58] sm:$0xff]
    %v108 = vld [vmem:[#allocation7 + $0x60] sm:$0xff]
    %v109 = vld [vmem:[#allocation7 + $0x68] sm:$0xff]
    %v110 = vld [vmem:[#allocation7 + $0x70] sm:$0xff]
    %v111 = vld [vmem:[#allocation7 + $0x78] sm:$0xff]
    %v112 = vld [vmem:[#allocation8] sm:$0xf]
    %v113 = vld [vmem:[#allocation8 + $0x4] sm:$0xf]
    %v114 = vld [vmem:[#allocation8 + $0x8] sm:$0xf]
    %v115 = vld [vmem:[#allocation8 + $0xc] sm:$0xf]
    %v116 = vld [vmem:[#allocation8 + $0x10] sm:$0xf]
    %v117 = vld [vmem:[#allocation8 + $0x14] sm:$0xf]
    %v118 = vld [vmem:[#allocation8 + $0x18] sm:$0xf]
    %v119 = vld [vmem:[#allocation8 + $0x1c] sm:$0xf]
    %v120 = vld [vmem:[#allocation8 + $0x20] sm:$0xf]
    %v121 = vld [vmem:[#allocation8 + $0x24] sm:$0xf]
    %v122 = vld [vmem:[#allocation8 + $0x28] sm:$0xf]
    %v123 = vld [vmem:[#allocation8 + $0x2c] sm:$0xf]
    %v124 = vld [vmem:[#allocation8 + $0x30] sm:$0xf]
    %v125 = vld [vmem:[#allocation8 + $0x34] sm:$0xf]
    %v126 = vld [vmem:[#allocation8 + $0x38] sm:$0xf]
    %v127 = vld [vmem:[#allocation8 + $0x3c] sm:$0xf]
    %vm128 = vcmask 261120
    %v129 = vsel %vm128, %v90, 0.0
    %130 = vadd.xlane.f32.xlu0 %v129
    %v131 = vpop.xlane.xlu0 %130
    %v132 = vsel %vm128, %v91, 0.0
    %133 = vadd.xlane.f32.xlu0 %v132
    %v134 = vpop.xlane.xlu0 %133
    %v135 = vsel %vm128, %v92, 0.0
    %136 = vadd.xlane.f32.xlu0 %v135
    %v137 = vpop.xlane.xlu0 %136
    %v138 = vrcp.pop 32.0
    %v139 = vmul.f32 %v131, %v138
    %v140 = vmul.f32 %v134, %v138
    %v141 = vmul.f32 %v137, %v138
    %v142 = vsub.f32 %v90, %v139
    %v143 = vsub.f32 %v91, %v140
    %v144 = vsub.f32 %v92, %v141
    %v145 = vmul.f32 %v142, %v142
    %v146 = vmul.f32 %v143, %v143
    %v147 = vmul.f32 %v144, %v144
    %v148 = vsel %vm128, %v145, 0.0
    %149 = vadd.xlane.f32.xlu0 %v148
    %v150 = vpop.xlane.xlu0 %149
    %v151 = vsel %vm128, %v146, 0.0
    %152 = vadd.xlane.f32.xlu0 %v151
    %v153 = vpop.xlane.xlu0 %152
    %v154 = vsel %vm128, %v147, 0.0
    %155 = vadd.xlane.f32.xlu0 %v154
    %v156 = vpop.xlane.xlu0 %155
    %v157 = vmul.f32 %v150, %v138
    %v158 = vmul.f32 %v153, %v138
    %v159 = vmul.f32 %v156, %v138
    %v160 = vadd.f32 %v157, 1e-05
    %v161 = vadd.f32 %v158, 1e-05
    %v162 = vadd.f32 %v159, 1e-05
    %v163 = vrsqrt.pop %v160
    %v164 = vrsqrt.pop %v161
    %v165 = vrsqrt.pop %v162
    %v166 = vmul.f32 %v142, %v163
    %v167 = vmul.f32 %v143, %v164
    %v168 = vmul.f32 %v144, %v165
    %172 = vrot.lane.b32.xlu0 %v90, 96
    %v173 = vpop.permute.xlu0 %172
    %174 = vrot.lane.b32.xlu0 %v91, 96
    %v175 = vpop.permute.xlu0 %174
    %176 = vrot.lane.b32.xlu0 %v92, 96
    %v177 = vpop.permute.xlu0 %176
    %v181 = vsel %vm128, %v173, 0.0
    %182 = vadd.xlane.f32.xlu0 %v181
    %v183 = vpop.xlane.xlu0 %182
    %v184 = vsel %vm128, %v175, 0.0
    %185 = vadd.xlane.f32.xlu0 %v184
    %v186 = vpop.xlane.xlu0 %185
    %v187 = vsel %vm128, %v177, 0.0
    %188 = vadd.xlane.f32.xlu0 %v187
    %v189 = vpop.xlane.xlu0 %188
    %v190 = vmul.f32 %v183, %v138
    %v191 = vmul.f32 %v186, %v138
    %v192 = vmul.f32 %v189, %v138
    %v193 = vsub.f32 %v90, %v190
    %v194 = vsub.f32 %v91, %v191
    %v195 = vsub.f32 %v92, %v192
    %v196 = vmul.f32 %v193, %v193
    %v197 = vmul.f32 %v194, %v194
    %v198 = vmul.f32 %v195, %v195
    %202 = vrot.lane.b32.xlu0 %v196, 96
    %v203 = vpop.permute.xlu0 %202
    %204 = vrot.lane.b32.xlu0 %v197, 96
    %v205 = vpop.permute.xlu0 %204
    %206 = vrot.lane.b32.xlu0 %v198, 96
    %v207 = vpop.permute.xlu0 %206
    %v211 = vsel %vm128, %v203, 0.0
    %212 = vadd.xlane.f32.xlu0 %v211
    %v213 = vpop.xlane.xlu0 %212
    %v214 = vsel %vm128, %v205, 0.0
    %215 = vadd.xlane.f32.xlu0 %v214
    %v216 = vpop.xlane.xlu0 %215
    %v217 = vsel %vm128, %v207, 0.0
    %218 = vadd.xlane.f32.xlu0 %v217
    %v219 = vpop.xlane.xlu0 %218
    %v220 = vmul.f32 %v213, %v138
    %v221 = vmul.f32 %v216, %v138
    %v222 = vmul.f32 %v219, %v138
    %v223 = vadd.f32 %v220, 1e-05
    %v224 = vadd.f32 %v221, 1e-05
    %v225 = vadd.f32 %v222, 1e-05
    %v226 = vrsqrt.pop %v223
    %v227 = vrsqrt.pop %v224
    %v228 = vrsqrt.pop %v225
    %v229 = vmul.f32 %v193, %v226
    %v230 = vmul.f32 %v194, %v227
    %v231 = vmul.f32 %v195, %v228
    %232 = vrot.lane.b32.xlu0 %v90, 64
    %v233 = vpop.permute.xlu0 %232
    %234 = vrot.lane.b32.xlu0 %v91, 64
    %v235 = vpop.permute.xlu0 %234
    %236 = vrot.lane.b32.xlu0 %v92, 64
    %v237 = vpop.permute.xlu0 %236
    %v241 = vsel %vm128, %v233, 0.0
    %242 = vadd.xlane.f32.xlu0 %v241
    %v243 = vpop.xlane.xlu0 %242
    %v244 = vsel %vm128, %v235, 0.0
    %245 = vadd.xlane.f32.xlu0 %v244
    %v246 = vpop.xlane.xlu0 %245
    %v247 = vsel %vm128, %v237, 0.0
    %248 = vadd.xlane.f32.xlu0 %v247
    %v249 = vpop.xlane.xlu0 %248
    %v250 = vmul.f32 %v243, %v138
    %v251 = vmul.f32 %v246, %v138
    %v252 = vmul.f32 %v249, %v138
    %v253 = vsub.f32 %v90, %v250
    %v254 = vsub.f32 %v91, %v251
    %v255 = vsub.f32 %v92, %v252
    %v256 = vmul.f32 %v253, %v253
    %v257 = vmul.f32 %v254, %v254
    %v258 = vmul.f32 %v255, %v255
    %262 = vrot.lane.b32.xlu0 %v256, 64
    %v263 = vpop.permute.xlu0 %262
    %264 = vrot.lane.b32.xlu0 %v257, 64
    %v265 = vpop.permute.xlu0 %264
    %266 = vrot.lane.b32.xlu0 %v258, 64
    %v267 = vpop.permute.xlu0 %266
    %v271 = vsel %vm128, %v263, 0.0
    %272 = vadd.xlane.f32.xlu0 %v271
    %v273 = vpop.xlane.xlu0 %272
    %v274 = vsel %vm128, %v265, 0.0
    %275 = vadd.xlane.f32.xlu0 %v274
    %v276 = vpop.xlane.xlu0 %275
    %v277 = vsel %vm128, %v267, 0.0
    %278 = vadd.xlane.f32.xlu0 %v277
    %v279 = vpop.xlane.xlu0 %278
    %v280 = vmul.f32 %v273, %v138
    %v281 = vmul.f32 %v276, %v138
    %v282 = vmul.f32 %v279, %v138
    %v283 = vadd.f32 %v280, 1e-05
    %v284 = vadd.f32 %v281, 1e-05
    %v285 = vadd.f32 %v282, 1e-05
    %v286 = vrsqrt.pop %v283
    %v287 = vrsqrt.pop %v284
    %v288 = vrsqrt.pop %v285
    %v289 = vmul.f32 %v253, %v286
    %v290 = vmul.f32 %v254, %v287
    %v291 = vmul.f32 %v255, %v288
    %292 = vrot.lane.b32.xlu0 %v90, 32
    %v293 = vpop.permute.xlu0 %292
    %294 = vrot.lane.b32.xlu0 %v91, 32
    %v295 = vpop.permute.xlu0 %294
    %296 = vrot.lane.b32.xlu0 %v92, 32
    %v297 = vpop.permute.xlu0 %296
    %v301 = vsel %vm128, %v293, 0.0
    %302 = vadd.xlane.f32.xlu0 %v301
    %v303 = vpop.xlane.xlu0 %302
    %v304 = vsel %vm128, %v295, 0.0
    %305 = vadd.xlane.f32.xlu0 %v304
    %v306 = vpop.xlane.xlu0 %305
    %v307 = vsel %vm128, %v297, 0.0
    %308 = vadd.xlane.f32.xlu0 %v307
    %v309 = vpop.xlane.xlu0 %308
    %v310 = vmul.f32 %v303, %v138
    %v311 = vmul.f32 %v306, %v138
    %v312 = vmul.f32 %v309, %v138
    %v313 = vsub.f32 %v90, %v310
    %v314 = vsub.f32 %v91, %v311
    %v315 = vsub.f32 %v92, %v312
    %v316 = vmul.f32 %v313, %v313
    %v317 = vmul.f32 %v314, %v314
    %v318 = vmul.f32 %v315, %v315
    %322 = vrot.lane.b32.xlu0 %v316, 32
    %v323 = vpop.permute.xlu0 %322
    %324 = vrot.lane.b32.xlu0 %v317, 32
    %v325 = vpop.permute.xlu0 %324
    %326 = vrot.lane.b32.xlu0 %v318, 32
    %v327 = vpop.permute.xlu0 %326
    %v331 = vsel %vm128, %v323, 0.0
    %332 = vadd.xlane.f32.xlu0 %v331
    %v333 = vpop.xlane.xlu0 %332
    %v334 = vsel %vm128, %v325, 0.0
    %335 = vadd.xlane.f32.xlu0 %v334
    %v336 = vpop.xlane.xlu0 %335
    %v337 = vsel %vm128, %v327, 0.0
    %338 = vadd.xlane.f32.xlu0 %v337
    %v339 = vpop.xlane.xlu0 %338
    %v340 = vmul.f32 %v333, %v138
    %v341 = vmul.f32 %v336, %v138
    %v342 = vmul.f32 %v339, %v138
    %v343 = vadd.f32 %v340, 1e-05
    %v344 = vadd.f32 %v341, 1e-05
    %v345 = vadd.f32 %v342, 1e-05
    %v346 = vrsqrt.pop %v343
    %v347 = vrsqrt.pop %v344
    %v348 = vrsqrt.pop %v345
    %v349 = vmul.f32 %v313, %v346
    %v350 = vmul.f32 %v314, %v347
    %v351 = vmul.f32 %v315, %v348
    %v352 = vsel %vm128, %v166, %v229
    %v353 = vsel %vm128, %v167, %v230
    %v354 = vsel %vm128, %v168, %v231
    %vm355 = vcmask 523264
    %v356 = vsel %vm355, %v352, %v289
    %v357 = vsel %vm355, %v353, %v290
    %v358 = vsel %vm355, %v354, %v291
    %vm359 = vcmask 785408
    %v360 = vsel %vm359, %v356, %v349
    %v361 = vsel %vm359, %v357, %v350
    %v362 = vsel %vm359, %v358, %v351
    %v363 = vadd.f32 %v360, %v93
    %v364 = vadd.f32 %v361, %v94
    %v365 = vadd.f32 %v362, %v95
    %v366 = vpack.c.bf16 %v364, %v363
    %v367 = vpack.c.bf16 %v365, %v365
    %v384 = vunpack.c.l.b16 %v96
    %v385 = vunpack.c.l.b16 %v97
    %v386 = vunpack.c.l.b16 %v98
    %v387 = vunpack.c.l.b16 %v99
    %v388 = vunpack.c.l.b16 %v100
    %v389 = vunpack.c.l.b16 %v101
    %v390 = vunpack.c.l.b16 %v102
    %v391 = vunpack.c.l.b16 %v103
    %v392 = vunpack.c.l.b16 %v104
    %v393 = vunpack.c.l.b16 %v105
    %v394 = vunpack.c.l.b16 %v106
    %v395 = vunpack.c.l.b16 %v107
    %v396 = vunpack.c.l.b16 %v108
    %v397 = vunpack.c.l.b16 %v109
    %v398 = vunpack.c.l.b16 %v110
    %v399 = vunpack.c.l.b16 %v111
    %v400 = vpack.c.b16 %v385, %v384
    %v401 = vpack.c.b16 %v387, %v386
    %v402 = vpack.c.b16 %v389, %v388
    %v403 = vpack.c.b16 %v391, %v390
    %v404 = vpack.c.b16 %v393, %v392
    %v405 = vpack.c.b16 %v395, %v394
    %v406 = vpack.c.b16 %v397, %v396
    %v407 = vpack.c.b16 %v399, %v398
    %416 = vmatprep.subr.bf16.mxu0 0
    %417 = vmatpush1.bf16.msra.mxu0 %v400
    %418 = vmatprep.subr.bf16.mxu0 0
    %419 = vmatpush1.bf16.msra.mxu0 %v401
    %420 = vmatprep.subr.bf16.mxu0 0
    %421 = vmatpush1.bf16.msra.mxu0 %v402
    %422 = vmatprep.subr.bf16.mxu0 0
    %423 = vmatpush1.bf16.msra.mxu0 %v403
    %424 = vmatprep.subr.bf16.mxu0 0
    %425 = vmatpush1.bf16.msra.mxu0 %v404
    %426 = vmatprep.subr.bf16.mxu0 0
    %427 = vmatpush1.bf16.msra.mxu0 %v405
    %428 = vmatprep.subr.bf16.mxu0 0
    %429 = vmatpush1.bf16.msra.mxu0 %v406
    %430 = vmatprep.subr.bf16.mxu0 0
    %431 = vmatpush1.bf16.msra.mxu0 %v407
    %432 = vmatprep.subr.bf16.mxu0 0
    %433 = vmatpush1.bf16.msra.mxu0 0
    %434 = vmatprep.subr.bf16.mxu0 0
    %435 = vmatpush1.bf16.msra.mxu0 0
    %436 = vmatprep.subr.bf16.mxu0 0
    %437 = vmatpush1.bf16.msra.mxu0 0
    %438 = vmatprep.subr.bf16.mxu0 0
    %439 = vmatpush1.bf16.msra.mxu0 0
    %440 = vmatprep.subr.bf16.mxu0 0
    %441 = vmatpush1.bf16.msra.mxu0 0
    %442 = vmatprep.subr.bf16.mxu0 0
    %443 = vmatpush1.bf16.msra.mxu0 0
    %444 = vmatprep.subr.bf16.mxu0 0
    %445 = vmatpush1.bf16.msra.mxu0 0
    %446 = vmatprep.subr.bf16.mxu0 0
    %447 = vmatpush1.bf16.msra.mxu0 0
    %448 = vmatprep.mubr.bf16.mxu0 0
    %449 = vmatmul.mubr.bf16.gmra.mrb[0].mxu0 %v366
    %v450 = vpop.f32.mrb[0].mxu0
    %v451 = vadd.f32 0.0, %v450
    %v452 = vpop.f32.mrb[0].mxu0
    %v453 = vpop.f32.mrb[0].mxu0
    %v454 = vadd.f32 0.0, %v453
    %v455 = vpop.f32.mrb[0].mxu0
    %456 = vmatprep.mubr.bf16.mxu0 0
    %457 = vmatmul.mubr.bf16.gmra.mrb[0].mxu0 %v367
    %v458 = vpop.f32.mrb[0].mxu0
    %v459 = vadd.f32 0.0, %v458
    %v460 = vpop.f32.mrb[0].mxu0
    %v461 = vpop.f32.mrb[0].mxu0
    %v462 = vpop.f32.mrb[0].mxu0
    %463 = vdwg.mxu0
    %v464 = vpack.c.bf16 %v361, %v360
    %v465 = vpack.c.bf16 %v362, %v362
    %v466 = vunpack.c.h.b16 %v96
    %v467 = vunpack.c.h.b16 %v97
    %v468 = vunpack.c.h.b16 %v98
    %v469 = vunpack.c.h.b16 %v99
    %v470 = vunpack.c.h.b16 %v100
    %v471 = vunpack.c.h.b16 %v101
    %v472 = vunpack.c.h.b16 %v102
    %v473 = vunpack.c.h.b16 %v103
    %v474 = vunpack.c.h.b16 %v104
    %v475 = vunpack.c.h.b16 %v105
    %v476 = vunpack.c.h.b16 %v106
    %v477 = vunpack.c.h.b16 %v107
    %v478 = vunpack.c.h.b16 %v108
    %v479 = vunpack.c.h.b16 %v109
    %v480 = vunpack.c.h.b16 %v110
    %v481 = vunpack.c.h.b16 %v111
    %v482 = vpack.c.b16 %v467, %v466
    %v483 = vpack.c.b16 %v469, %v468
    %v484 = vpack.c.b16 %v471, %v470
    %v485 = vpack.c.b16 %v473, %v472
    %v486 = vpack.c.b16 %v475, %v474
    %v487 = vpack.c.b16 %v477, %v476
    %v488 = vpack.c.b16 %v479, %v478
    %v489 = vpack.c.b16 %v481, %v480
    %498 = vmatprep.subr.bf16.mxu0 0
    %499 = vmatpush1.bf16.msra.mxu0 %v482
    %500 = vmatprep.subr.bf16.mxu0 0
    %501 = vmatpush1.bf16.msra.mxu0 %v483
    %502 = vmatprep.subr.bf16.mxu0 0
    %503 = vmatpush1.bf16.msra.mxu0 %v484
    %504 = vmatprep.subr.bf16.mxu0 0
    %505 = vmatpush1.bf16.msra.mxu0 %v485
    %506 = vmatprep.subr.bf16.mxu0 0
    %507 = vmatpush1.bf16.msra.mxu0 %v486
    %508 = vmatprep.subr.bf16.mxu0 0
    %509 = vmatpush1.bf16.msra.mxu0 %v487
    %510 = vmatprep.subr.bf16.mxu0 0
    %511 = vmatpush1.bf16.msra.mxu0 %v488
    %512 = vmatprep.subr.bf16.mxu0 0
    %513 = vmatpush1.bf16.msra.mxu0 %v489
    %514 = vmatprep.subr.bf16.mxu0 0
    %515 = vmatpush1.bf16.msra.mxu0 0
    %516 = vmatprep.subr.bf16.mxu0 0
    %517 = vmatpush1.bf16.msra.mxu0 0
    %518 = vmatprep.subr.bf16.mxu0 0
    %519 = vmatpush1.bf16.msra.mxu0 0
    %520 = vmatprep.subr.bf16.mxu0 0
    %521 = vmatpush1.bf16.msra.mxu0 0
    %522 = vmatprep.subr.bf16.mxu0 0
    %523 = vmatpush1.bf16.msra.mxu0 0
    %524 = vmatprep.subr.bf16.mxu0 0
    %525 = vmatpush1.bf16.msra.mxu0 0
    %526 = vmatprep.subr.bf16.mxu0 0
    %527 = vmatpush1.bf16.msra.mxu0 0
    %528 = vmatprep.subr.bf16.mxu0 0
    %529 = vmatpush1.bf16.msra.mxu0 0
    %530 = vmatprep.mubr.bf16.mxu0 0
    %531 = vmatmul.mubr.bf16.gmra.mrb[0].mxu0 %v464
    %v532 = vpop.f32.mrb[0].mxu0
    %v533 = vadd.f32 0.0, %v532
    %v534 = vpop.f32.mrb[0].mxu0
    %v535 = vpop.f32.mrb[0].mxu0
    %v536 = vadd.f32 0.0, %v535
    %v537 = vpop.f32.mrb[0].mxu0
    %538 = vmatprep.mubr.bf16.mxu0 0
    %539 = vmatmul.mubr.bf16.gmra.mrb[0].mxu0 %v465
    %v540 = vpop.f32.mrb[0].mxu0
    %v541 = vadd.f32 0.0, %v540
    %v542 = vpop.f32.mrb[0].mxu0
    %v543 = vpop.f32.mrb[0].mxu0
    %v544 = vpop.f32.mrb[0].mxu0
    %545 = vdwg.mxu0
    %v546 = vmax.f32 %v451, 0.0
    %v547 = vmax.f32 %v454, 0.0
    %v548 = vmax.f32 %v459, 0.0
    %v549 = vmul.f32 %v546, %v533
    %v550 = vmul.f32 %v547, %v536
    %v551 = vmul.f32 %v548, %v541
    %v552 = vpack.c.bf16 %v550, %v549
    %v553 = vpack.c.bf16 %v551, %v551
    %v570 = vunpack.c.l.b16 %v112
    %v571 = vunpack.c.l.b16 %v113
    %v572 = vunpack.c.l.b16 %v114
    %v573 = vunpack.c.l.b16 %v115
    %v574 = vunpack.c.l.b16 %v116
    %v575 = vunpack.c.l.b16 %v117
    %v576 = vunpack.c.l.b16 %v118
    %v577 = vunpack.c.l.b16 %v119
    %v578 = vunpack.c.l.b16 %v120
    %v579 = vunpack.c.l.b16 %v121
    %v580 = vunpack.c.l.b16 %v122
    %v581 = vunpack.c.l.b16 %v123
    %v582 = vunpack.c.l.b16 %v124
    %v583 = vunpack.c.l.b16 %v125
    %v584 = vunpack.c.l.b16 %v126
    %v585 = vunpack.c.l.b16 %v127
    %v586 = vpack.c.b16 %v571, %v570
    %v587 = vpack.c.b16 %v573, %v572
    %v588 = vpack.c.b16 %v575, %v574
    %v589 = vpack.c.b16 %v577, %v576
    %v590 = vpack.c.b16 %v579, %v578
    %v591 = vpack.c.b16 %v581, %v580
    %v592 = vpack.c.b16 %v583, %v582
    %v593 = vpack.c.b16 %v585, %v584
    %602 = vmatprep.subr.bf16.mxu0 0
    %603 = vmatpush1.bf16.msra.mxu0 %v586
    %604 = vmatprep.subr.bf16.mxu0 0
    %605 = vmatpush1.bf16.msra.mxu0 %v587
    %606 = vmatprep.subr.bf16.mxu0 0
    %607 = vmatpush1.bf16.msra.mxu0 %v588
    %608 = vmatprep.subr.bf16.mxu0 0
    %609 = vmatpush1.bf16.msra.mxu0 %v589
    %610 = vmatprep.subr.bf16.mxu0 0
    %611 = vmatpush1.bf16.msra.mxu0 %v590
    %612 = vmatprep.subr.bf16.mxu0 0
    %613 = vmatpush1.bf16.msra.mxu0 %v591
    %614 = vmatprep.subr.bf16.mxu0 0
    %615 = vmatpush1.bf16.msra.mxu0 %v592
    %616 = vmatprep.subr.bf16.mxu0 0
    %617 = vmatpush1.bf16.msra.mxu0 %v593
    %618 = vmatprep.subr.bf16.mxu0 0
    %619 = vmatpush1.bf16.msra.mxu0 0
    %620 = vmatprep.subr.bf16.mxu0 0
    %621 = vmatpush1.bf16.msra.mxu0 0
    %622 = vmatprep.subr.bf16.mxu0 0
    %623 = vmatpush1.bf16.msra.mxu0 0
    %624 = vmatprep.subr.bf16.mxu0 0
    %625 = vmatpush1.bf16.msra.mxu0 0
    %626 = vmatprep.subr.bf16.mxu0 0
    %627 = vmatpush1.bf16.msra.mxu0 0
    %628 = vmatprep.subr.bf16.mxu0 0
    %629 = vmatpush1.bf16.msra.mxu0 0
    %630 = vmatprep.subr.bf16.mxu0 0
    %631 = vmatpush1.bf16.msra.mxu0 0
    %632 = vmatprep.subr.bf16.mxu0 0
    %633 = vmatpush1.bf16.msra.mxu0 0
    %634 = vmatprep.mubr.bf16.mxu0 0
    %635 = vmatmul.mubr.bf16.gmra.mrb[0].mxu0 %v552
    %v636 = vpop.f32.mrb[0].mxu0
    %v637 = vadd.f32 0.0, %v636
    %v638 = vpop.f32.mrb[0].mxu0
    %v639 = vpop.f32.mrb[0].mxu0
    %v640 = vadd.f32 0.0, %v639
    %v641 = vpop.f32.mrb[0].mxu0
    %642 = vmatprep.mubr.bf16.mxu0 0
    %643 = vmatmul.mubr.bf16.gmra.mrb[0].mxu0 %v553
    %v644 = vpop.f32.mrb[0].mxu0
    %v645 = vadd.f32 0.0, %v644
    %v646 = vpop.f32.mrb[0].mxu0
    %v647 = vpop.f32.mrb[0].mxu0
    %v648 = vpop.f32.mrb[0].mxu0
    %649 = vdwg.mxu0
    %v650 = vld [vmem:[#allocation10] sm:$0xff]
    %v651 = vld [vmem:[#allocation10 + $0x8] sm:$0xff]
    %v652 = vld [vmem:[#allocation10 + $0x10] sm:$0xff]
    %654 = vset.pattern.permute.xlu0 0
    %655 = vperm.xlu0 %654, %v650
    %v656 = vpop.permute.xlu0 %655
    %659 = vset.pattern.permute.xlu0 0
    %660 = vperm.xlu0 %659, %v651
    %v661 = vpop.permute.xlu0 %660
    %664 = vset.pattern.permute.xlu0 0
    %665 = vperm.xlu0 %664, %v652
    %v666 = vpop.permute.xlu0 %665
    %v668 = vmul.f32 %v637, %v656
    %v669 = vmul.f32 %v640, %v661
    %v670 = vmul.f32 %v645, %v666
    %671 = vst [vmem:[#allocation11] sm:$0xff] %v668
    %672 = vst [vmem:[#allocation11 + $0x8] sm:$0xff] %v669
    %673 = vst [vmem:[#allocation11 + $0x10] sm:$0xff] %v670
    // Predicated region
    $region42: #{metagin_forward.22} parent=1 // pred_check
      _
    $region43: #{metagin_forward.22} parent=1 // pred_check_branch
      %675 = sbr.rel (0) target = $region45
    $region44: #{metagin_forward.22} parent=1 // pred_region
      %s677 = ssub.s32 384, 384
      %678 = vsyncadd [#allocation4], %s677
      %s679 = sshll.u32 [#allocation11], 4
      %s680 = int_to_ptr.vmem [resolvable:$true] %s679
      %685 = dma.vmem_to_hbm [thread:$0]  %s680, 384, %s5, [#allocation4], 128, 128, 8
    $region45: #{metagin_forward.22} parent=1 // pred_fallthru
      _
    // Predicated region
    $region46: #{metagin_forward.22} parent=1 // pred_check
      _
    $region47: #{metagin_forward.22} parent=1 // pred_check_branch
      %687 = sbr.rel (0) target = $region49
    $region48: #{metagin_forward.22} parent=1 // pred_region
      %688 = dma.done [#allocation4], 384
    $region49: #{metagin_forward.22} parent=1 // pred_fallthru
      _
    %689 = vsyncpa [#allocation3], 1
    %690 = vsyncpa [#allocation6], 1
    %691 = vsyncpa [#allocation9], 1
    %692 = vsyncpa [#allocation4], 1

// kernel: metagin_forward.23
$region0: #{metagin_forward.23}
  #allocation0 [shape = 'u32[]', space=smem, size = 0x4, offset = 0x4, fixed_abs, tag = 'smem constant byte address 0x4 - core index']
  #allocation1 [shape = 'u32[144,128]{1,0:T(1,128)}', space=vmem, size = 0x12000, scoped, tag = 'internal scratch']
  %s0 = inlined_call_operand.hbm [shape: f32[24,128], index: 0, kind: input, shape index: {}]
  %s1 = inlined_call_operand.hbm [shape: f32[24,128], index: 1, kind: input, shape index: {}]
  %s2 = inlined_call_operand.hbm [shape: f32[1,128], index: 2, kind: input, shape index: {}]
  %s3 = inlined_call_operand.hbm [shape: f32[1,128], index: 3, kind: input, shape index: {}]
  %s4 = inlined_call_operand.hbm [shape: bf16[128,128], index: 4, kind: input, shape index: {}]
  %s5 = inlined_call_operand.hbm [shape: bf16[128,256], index: 5, kind: input, shape index: {}]
  %s6 = inlined_call_operand.hbm [shape: bf16[128,128], index: 6, kind: input, shape index: {}]
  %s7 = inlined_call_operand.hbm [shape: f32[1,128], index: 7, kind: input, shape index: {}]
  %s8 = inlined_call_operand.hbm [shape: f32[1,128], index: 8, kind: input, shape index: {}]
  %s9 = inlined_call_operand.hbm [shape: f32[24,128], index: 9, kind: output, shape index: {}]
  %s10 = sld [smem:[#allocation0]]
  $region82: #{metagin_forward.23} parent=0
    _
  %s12 = ssub.s32 1, %s10
  %s13 = scalar_select 0, %s12, %s10
  $region1: #{metagin_forward.23} parent=0
    #allocation2 [shape = 'u8[12288]{0}', space=vmem, size = 0x3000, scoped, tag = 'input window, operand 0, single buffered']
    #allocation3 [shape = 's32[1]{0}', space=sflag, size = 0x4, scoped, tag = 'scoped memory for metagin_forward.23']
    #allocation4 [shape = 's32[1]{0}', space=sflag, size = 0x4, scoped, tag = 'scoped memory for metagin_forward.23']
    #allocation5 [shape = 'u8[12288]{0}', space=vmem, size = 0x3000, scoped, tag = 'input window, operand 1, single buffered']
    #allocation6 [shape = 's32[1]{0}', space=sflag, size = 0x4, scoped, tag = 'scoped memory for metagin_forward.23']
    #allocation7 [shape = 'u8[512]{0}', space=vmem, size = 0x400, scoped, tag = 'input window, operand 2, single buffered']
    #allocation8 [shape = 'u8[512]{0}', space=vmem, size = 0x400, scoped, tag = 'input window, operand 3, single buffered']
    #allocation9 [shape = 's32[1]{0}', space=sflag, size = 0x4, scoped, tag = 'scoped memory for metagin_forward.23']
    #allocation10 [shape = 'u8[32768]{0}', space=vmem, size = 0x8000, scoped, tag = 'input window, operand 4, single buffered']
    #allocation11 [shape = 'u8[65536]{0}', space=vmem, size = 0x10000, scoped, tag = 'input window, operand 5, single buffered']
    #allocation12 [shape = 's32[1]{0}', space=sflag, size = 0x4, scoped, tag = 'scoped memory for metagin_forward.23']
    #allocation13 [shape = 'u8[32768]{0}', space=vmem, size = 0x8000, scoped, tag = 'input window, operand 6, single buffered']
    #allocation14 [shape = 'u8[512]{0}', space=vmem, size = 0x400, scoped, tag = 'input window, operand 7, single buffered']
    #allocation15 [shape = 's32[1]{0}', space=sflag, size = 0x4, scoped, tag = 'scoped memory for metagin_forward.23']
    #allocation16 [shape = 'u8[512]{0}', space=vmem, size = 0x400, scoped, tag = 'input window, operand 8, single buffered']
    #allocation17 [shape = 'u8[12288]{0}', space=vmem, size = 0x3000, scoped, tag = 'output window, operand 0, single buffered']
    %14 = vsyncpa [#allocation3], 0
    %15 = vsyncpa [#allocation6], 0
    %16 = vsyncpa [#allocation9], 0
    %17 = vsyncpa [#allocation12], 0
    %18 = vsyncpa [#allocation15], 0
    %19 = vsyncpa [#allocation4], 0
    // Predicated region
    $region2: #{metagin_forward.23} parent=1 // pred_check
      _
    $region3: #{metagin_forward.23} parent=1 // pred_check_branch
      %21 = sbr.rel (0) target = $region5
    $region4: #{metagin_forward.23} parent=1 // pred_region
      %s23 = ssub.s32 384, 384
      %24 = vsyncadd [#allocation3], %s23
      %s25 = sshll.u32 [#allocation2], 4
      %s26 = int_to_ptr.vmem [resolvable:$true] %s25
      %31 = dma.hbm_to_vmem [thread:$0]  %s0, 384, %s26, [#allocation3], 128, 128, 8
    $region5: #{metagin_forward.23} parent=1 // pred_fallthru
      _
    // Predicated region
    $region6: #{metagin_forward.23} parent=1 // pred_check
      _
    $region7: #{metagin_forward.23} parent=1 // pred_check_branch
      %33 = sbr.rel (0) target = $region9
    $region8: #{metagin_forward.23} parent=1 // pred_region
      %s35 = ssub.s32 384, 384
      %36 = vsyncadd [#allocation6], %s35
      %s37 = sshll.u32 [#allocation5], 4
      %s38 = int_to_ptr.vmem [resolvable:$true] %s37
      %43 = dma.hbm_to_vmem [thread:$0]  %s1, 384, %s38, [#allocation6], 128, 128, 8
    $region9: #{metagin_forward.23} parent=1 // pred_fallthru
      _
    // Predicated region
    $region10: #{metagin_forward.23} parent=1 // pred_check
      _
    $region11: #{metagin_forward.23} parent=1 // pred_check_branch
      %45 = sbr.rel (0) target = $region13
    $region12: #{metagin_forward.23} parent=1 // pred_region
      %s47 = ssub.s32 16, 16
      %48 = vsyncadd [#allocation6], %s47
      %s50 = sshll.u32 [#allocation7], 4
      %s51 = int_to_ptr.vmem [resolvable:$true] %s50
      %53 = dma.hbm_to_vmem [thread:$0]  %s2, 16, %s51, [#allocation6]
    $region13: #{metagin_forward.23} parent=1 // pred_fallthru
      _
    // Predicated region
    $region14: #{metagin_forward.23} parent=1 // pred_check
      _
    $region15: #{metagin_forward.23} parent=1 // pred_check_branch
      %55 = sbr.rel (0) target = $region17
    $region16: #{metagin_forward.23} parent=1 // pred_region
      %s57 = ssub.s32 16, 16
      %58 = vsyncadd [#allocation9], %s57
      %s60 = sshll.u32 [#allocation8], 4
      %s61 = int_to_ptr.vmem [resolvable:$true] %s60
      %63 = dma.hbm_to_vmem [thread:$0]  %s3, 16, %s61, [#allocation9]
    $region17: #{metagin_forward.23} parent=1 // pred_fallthru
      _
    // Predicated region
    $region18: #{metagin_forward.23} parent=1 // pred_check
      _
    $region19: #{metagin_forward.23} parent=1 // pred_check_branch
      %65 = sbr.rel (0) target = $region21
    $region20: #{metagin_forward.23} parent=1 // pred_region
      %s67 = ssub.s32 1024, 1024
      %68 = vsyncadd [#allocation9], %s67
      %s69 = sshll.u32 [#allocation10], 4
      %s70 = int_to_ptr.vmem [resolvable:$true] %s69
      %75 = dma.hbm_to_vmem [thread:$0]  %s4, 1024, %s70, [#allocation9], 64, 64, 4
    $region21: #{metagin_forward.23} parent=1 // pred_fallthru
      _
    // Predicated region
    $region22: #{metagin_forward.23} parent=1 // pred_check
      _
    $region23: #{metagin_forward.23} parent=1 // pred_check_branch
      %77 = sbr.rel (0) target = $region25
    $region24: #{metagin_forward.23} parent=1 // pred_region
      %s79 = ssub.s32 2048, 2048
      %80 = vsyncadd [#allocation12], %s79
      %s81 = sshll.u32 [#allocation11], 4
      %s82 = int_to_ptr.vmem [resolvable:$true] %s81
      %87 = dma.hbm_to_vmem [thread:$0]  %s5, 2048, %s82, [#allocation12], 128, 128, 8
    $region25: #{metagin_forward.23} parent=1 // pred_fallthru
      _
    // Predicated region
    $region26: #{metagin_forward.23} parent=1 // pred_check
      _
    $region27: #{metagin_forward.23} parent=1 // pred_check_branch
      %89 = sbr.rel (0) target = $region29
    $region28: #{metagin_forward.23} parent=1 // pred_region
      %s91 = ssub.s32 1024, 1024
      %92 = vsyncadd [#allocation12], %s91
      %s93 = sshll.u32 [#allocation13], 4
      %s94 = int_to_ptr.vmem [resolvable:$true] %s93
      %99 = dma.hbm_to_vmem [thread:$0]  %s6, 1024, %s94, [#allocation12], 64, 64, 4
    $region29: #{metagin_forward.23} parent=1 // pred_fallthru
      _
    // Predicated region
    $region30: #{metagin_forward.23} parent=1 // pred_check
      _
    $region31: #{metagin_forward.23} parent=1 // pred_check_branch
      %101 = sbr.rel (0) target = $region33
    $region32: #{metagin_forward.23} parent=1 // pred_region
      %s103 = ssub.s32 16, 16
      %104 = vsyncadd [#allocation15], %s103
      %s106 = sshll.u32 [#allocation14], 4
      %s107 = int_to_ptr.vmem [resolvable:$true] %s106
      %109 = dma.hbm_to_vmem [thread:$0]  %s7, 16, %s107, [#allocation15]
    $region33: #{metagin_forward.23} parent=1 // pred_fallthru
      _
    // Predicated region
    $region34: #{metagin_forward.23} parent=1 // pred_check
      _
    $region35: #{metagin_forward.23} parent=1 // pred_check_branch
      %111 = sbr.rel (0) target = $region37
    $region36: #{metagin_forward.23} parent=1 // pred_region
      %s113 = ssub.s32 16, 16
      %114 = vsyncadd [#allocation15], %s113
      %s116 = sshll.u32 [#allocation16], 4
      %s117 = int_to_ptr.vmem [resolvable:$true] %s116
      %119 = dma.hbm_to_vmem [thread:$0]  %s8, 16, %s117, [#allocation15]
    $region37: #{metagin_forward.23} parent=1 // pred_fallthru
      _
    // Predicated region
    $region38: #{metagin_forward.23} parent=1 // pred_check
      _
    $region39: #{metagin_forward.23} parent=1 // pred_check_branch
      %121 = sbr.rel (0) target = $region41
    $region40: #{metagin_forward.23} parent=1 // pred_region
      %122 = dma.done [#allocation3], 384
    $region41: #{metagin_forward.23} parent=1 // pred_fallthru
      _
    // Predicated region
    $region42: #{metagin_forward.23} parent=1 // pred_check
      _
    $region43: #{metagin_forward.23} parent=1 // pred_check_branch
      %124 = sbr.rel (0) target = $region45
    $region44: #{metagin_forward.23} parent=1 // pred_region
      %125 = dma.done [#allocation6], 384
    $region45: #{metagin_forward.23} parent=1 // pred_fallthru
      _
    // Predicated region
    $region46: #{metagin_forward.23} parent=1 // pred_check
      _
    $region47: #{metagin_forward.23} parent=1 // pred_check_branch
      %127 = sbr.rel (0) target = $region49
    $region48: #{metagin_forward.23} parent=1 // pred_region
      %128 = dma.done [#allocation6], 16
    $region49: #{metagin_forward.23} parent=1 // pred_fallthru
      _
    // Predicated region
    $region50: #{metagin_forward.23} parent=1 // pred_check
      _
    $region51: #{metagin_forward.23} parent=1 // pred_check_branch
      %130 = sbr.rel (0) target = $region53
    $region52: #{metagin_forward.23} parent=1 // pred_region
      %131 = dma.done [#allocation9], 16
    $region53: #{metagin_forward.23} parent=1 // pred_fallthru
      _
    // Predicated region
    $region54: #{metagin_forward.23} parent=1 // pred_check
      _
    $region55: #{metagin_forward.23} parent=1 // pred_check_branch
      %133 = sbr.rel (0) target = $region57
    $region56: #{metagin_forward.23} parent=1 // pred_region
      %134 = dma.done [#allocation9], 1024
    $region57: #{metagin_forward.23} parent=1 // pred_fallthru
      _
    // Predicated region
    $region58: #{metagin_forward.23} parent=1 // pred_check
      _
    $region59: #{metagin_forward.23} parent=1 // pred_check_branch
      %136 = sbr.rel (0) target = $region61
    $region60: #{metagin_forward.23} parent=1 // pred_region
      %137 = dma.done [#allocation12], 2048
    $region61: #{metagin_forward.23} parent=1 // pred_fallthru
      _
    // Predicated region
    $region62: #{metagin_forward.23} parent=1 // pred_check
      _
    $region63: #{metagin_forward.23} parent=1 // pred_check_branch
      %139 = sbr.rel (0) target = $region65
    $region64: #{metagin_forward.23} parent=1 // pred_region
      %140 = dma.done [#allocation12], 1024
    $region65: #{metagin_forward.23} parent=1 // pred_fallthru
      _
    // Predicated region
    $region66: #{metagin_forward.23} parent=1 // pred_check
      _
    $region67: #{metagin_forward.23} parent=1 // pred_check_branch
      %142 = sbr.rel (0) target = $region69
    $region68: #{metagin_forward.23} parent=1 // pred_region
      %143 = dma.done [#allocation15], 16
    $region69: #{metagin_forward.23} parent=1 // pred_fallthru
      _
    // Predicated region
    $region70: #{metagin_forward.23} parent=1 // pred_check
      _
    $region71: #{metagin_forward.23} parent=1 // pred_check_branch
      %145 = sbr.rel (0) target = $region73
    $region72: #{metagin_forward.23} parent=1 // pred_region
      %146 = dma.done [#allocation15], 16
    $region73: #{metagin_forward.23} parent=1 // pred_fallthru
      _
    %v148 = vld [vmem:[#allocation2] sm:$0xff]
    %v149 = vld [vmem:[#allocation2 + $0x8] sm:$0xff]
    %v150 = vld [vmem:[#allocation2 + $0x10] sm:$0xff]
    %v151 = vld [vmem:[#allocation5] sm:$0xff]
    %v152 = vld [vmem:[#allocation5 + $0x8] sm:$0xff]
    %v153 = vld [vmem:[#allocation5 + $0x10] sm:$0xff]
    %v154 = vld [vmem:[#allocation7] sm:$0x1]
    %v155 = vld [vmem:[#allocation8] sm:$0x1]
    %v157 = vlaneseq
    %v158 = vshrl.u32 %v157, 7
    %v159 = vsub.s32 0, %v158
    %v160 = vrot.slane %v154, %v159
    %v162 = vmul.f32 %v160, %v148
    %v163 = vmul.f32 %v160, %v149
    %v164 = vmul.f32 %v160, %v150
    %v166 = vlaneseq
    %v167 = vshrl.u32 %v166, 7
    %v168 = vsub.s32 0, %v167
    %v169 = vrot.slane %v155, %v168
    %v171 = vadd.f32 %v162, %v169
    %v172 = vadd.f32 %v163, %v169
    %v173 = vadd.f32 %v164, %v169
    %v174 = vadd.f32 %v171, %v151
    %v175 = vadd.f32 %v172, %v152
    %v176 = vadd.f32 %v173, %v153
    %v177 = vld [vmem:[#allocation10] sm:$0xf]
    %v178 = vld [vmem:[#allocation10 + $0x4] sm:$0xf]
    %v179 = vld [vmem:[#allocation10 + $0x8] sm:$0xf]
    %v180 = vld [vmem:[#allocation10 + $0xc] sm:$0xf]
    %v181 = vld [vmem:[#allocation10 + $0x10] sm:$0xf]
    %v182 = vld [vmem:[#allocation10 + $0x14] sm:$0xf]
    %v183 = vld [vmem:[#allocation10 + $0x18] sm:$0xf]
    %v184 = vld [vmem:[#allocation10 + $0x1c] sm:$0xf]
    %v185 = vld [vmem:[#allocation10 + $0x20] sm:$0xf]
    %v186 = vld [vmem:[#allocation10 + $0x24] sm:$0xf]
    %v187 = vld [vmem:[#allocation10 + $0x28] sm:$0xf]
    %v188 = vld [vmem:[#allocation10 + $0x2c] sm:$0xf]
    %v189 = vld [vmem:[#allocation10 + $0x30] sm:$0xf]
    %v190 = vld [vmem:[#allocation10 + $0x34] sm:$0xf]
    %v191 = vld [vmem:[#allocation10 + $0x38] sm:$0xf]
    %v192 = vld [vmem:[#allocation10 + $0x3c] sm:$0xf]
    %v193 = vpack.c.bf16 %v175, %v174
    %v194 = vpack.c.bf16 %v176, %v176
    %v211 = vunpack.c.l.b16 %v177
    %v212 = vunpack.c.l.b16 %v178
    %v213 = vunpack.c.l.b16 %v179
    %v214 = vunpack.c.l.b16 %v180
    %v215 = vunpack.c.l.b16 %v181
    %v216 = vunpack.c.l.b16 %v182
    %v217 = vunpack.c.l.b16 %v183
    %v218 = vunpack.c.l.b16 %v184
    %v219 = vunpack.c.l.b16 %v185
    %v220 = vunpack.c.l.b16 %v186
    %v221 = vunpack.c.l.b16 %v187
    %v222 = vunpack.c.l.b16 %v188
    %v223 = vunpack.c.l.b16 %v189
    %v224 = vunpack.c.l.b16 %v190
    %v225 = vunpack.c.l.b16 %v191
    %v226 = vunpack.c.l.b16 %v192
    %v227 = vpack.c.b16 %v212, %v211
    %v228 = vpack.c.b16 %v214, %v213
    %v229 = vpack.c.b16 %v216, %v215
    %v230 = vpack.c.b16 %v218, %v217
    %v231 = vpack.c.b16 %v220, %v219
    %v232 = vpack.c.b16 %v222, %v221
    %v233 = vpack.c.b16 %v224, %v223
    %v234 = vpack.c.b16 %v226, %v225
    %243 = vmatprep.subr.bf16.mxu0 0
    %244 = vmatpush1.bf16.msra.mxu0 %v227
    %245 = vmatprep.subr.bf16.mxu0 0
    %246 = vmatpush1.bf16.msra.mxu0 %v228
    %247 = vmatprep.subr.bf16.mxu0 0
    %248 = vmatpush1.bf16.msra.mxu0 %v229
    %249 = vmatprep.subr.bf16.mxu0 0
    %250 = vmatpush1.bf16.msra.mxu0 %v230
    %251 = vmatprep.subr.bf16.mxu0 0
    %252 = vmatpush1.bf16.msra.mxu0 %v231
    %253 = vmatprep.subr.bf16.mxu0 0
    %254 = vmatpush1.bf16.msra.mxu0 %v232
    %255 = vmatprep.subr.bf16.mxu0 0
    %256 = vmatpush1.bf16.msra.mxu0 %v233
    %257 = vmatprep.subr.bf16.mxu0 0
    %258 = vmatpush1.bf16.msra.mxu0 %v234
    %259 = vmatprep.subr.bf16.mxu0 0
    %260 = vmatpush1.bf16.msra.mxu0 0
    %261 = vmatprep.subr.bf16.mxu0 0
    %262 = vmatpush1.bf16.msra.mxu0 0
    %263 = vmatprep.subr.bf16.mxu0 0
    %264 = vmatpush1.bf16.msra.mxu0 0
    %265 = vmatprep.subr.bf16.mxu0 0
    %266 = vmatpush1.bf16.msra.mxu0 0
    %267 = vmatprep.subr.bf16.mxu0 0
    %268 = vmatpush1.bf16.msra.mxu0 0
    %269 = vmatprep.subr.bf16.mxu0 0
    %270 = vmatpush1.bf16.msra.mxu0 0
    %271 = vmatprep.subr.bf16.mxu0 0
    %272 = vmatpush1.bf16.msra.mxu0 0
    %273 = vmatprep.subr.bf16.mxu0 0
    %274 = vmatpush1.bf16.msra.mxu0 0
    %275 = vmatprep.mubr.bf16.mxu0 0
    %276 = vmatmul.mubr.bf16.gmra.mrb[0].mxu0 %v193
    %v277 = vpop.f32.mrb[0].mxu0
    %v278 = vadd.f32 0.0, %v277
    %v279 = vpop.f32.mrb[0].mxu0
    %v280 = vpop.f32.mrb[0].mxu0
    %v281 = vadd.f32 0.0, %v280
    %v282 = vpop.f32.mrb[0].mxu0
    %283 = vmatprep.mubr.bf16.mxu0 0
    %284 = vmatmul.mubr.bf16.gmra.mrb[0].mxu0 %v194
    %v285 = vpop.f32.mrb[0].mxu0
    %v286 = vadd.f32 0.0, %v285
    %v287 = vpop.f32.mrb[0].mxu0
    %v288 = vpop.f32.mrb[0].mxu0
    %v289 = vpop.f32.mrb[0].mxu0
    %290 = vdwg.mxu0
    %v291 = vld [vmem:[#allocation11] sm:$0xff]
    %v292 = vld [vmem:[#allocation11 + $0x8] sm:$0xff]
    %v293 = vld [vmem:[#allocation11 + $0x10] sm:$0xff]
    %v294 = vld [vmem:[#allocation11 + $0x18] sm:$0xff]
    %v295 = vld [vmem:[#allocation11 + $0x20] sm:$0xff]
    %v296 = vld [vmem:[#allocation11 + $0x28] sm:$0xff]
    %v297 = vld [vmem:[#allocation11 + $0x30] sm:$0xff]
    %v298 = vld [vmem:[#allocation11 + $0x38] sm:$0xff]
    %v299 = vld [vmem:[#allocation11 + $0x40] sm:$0xff]
    %v300 = vld [vmem:[#allocation11 + $0x48] sm:$0xff]
    %v301 = vld [vmem:[#allocation11 + $0x50] sm:$0xff]
    %v302 = vld [vmem:[#allocation11 + $0x58] sm:$0xff]
    %v303 = vld [vmem:[#allocation11 + $0x60] sm:$0xff]
    %v304 = vld [vmem:[#allocation11 + $0x68] sm:$0xff]
    %v305 = vld [vmem:[#allocation11 + $0x70] sm:$0xff]
    %v306 = vld [vmem:[#allocation11 + $0x78] sm:$0xff]
    %v307 = vld [vmem:[#allocation13] sm:$0xf]
    %v308 = vld [vmem:[#allocation13 + $0x4] sm:$0xf]
    %v309 = vld [vmem:[#allocation13 + $0x8] sm:$0xf]
    %v310 = vld [vmem:[#allocation13 + $0xc] sm:$0xf]
    %v311 = vld [vmem:[#allocation13 + $0x10] sm:$0xf]
    %v312 = vld [vmem:[#allocation13 + $0x14] sm:$0xf]
    %v313 = vld [vmem:[#allocation13 + $0x18] sm:$0xf]
    %v314 = vld [vmem:[#allocation13 + $0x1c] sm:$0xf]
    %v315 = vld [vmem:[#allocation13 + $0x20] sm:$0xf]
    %v316 = vld [vmem:[#allocation13 + $0x24] sm:$0xf]
    %v317 = vld [vmem:[#allocation13 + $0x28] sm:$0xf]
    %v318 = vld [vmem:[#allocation13 + $0x2c] sm:$0xf]
    %v319 = vld [vmem:[#allocation13 + $0x30] sm:$0xf]
    %v320 = vld [vmem:[#allocation13 + $0x34] sm:$0xf]
    %v321 = vld [vmem:[#allocation13 + $0x38] sm:$0xf]
    %v322 = vld [vmem:[#allocation13 + $0x3c] sm:$0xf]
    %vm323 = vcmask 261120
    %v324 = vsel %vm323, %v278, 0.0
    %325 = vadd.xlane.f32.xlu0 %v324
    %v326 = vpop.xlane.xlu0 %325
    %v327 = vsel %vm323, %v281, 0.0
    %328 = vadd.xlane.f32.xlu0 %v327
    %v329 = vpop.xlane.xlu0 %328
    %v330 = vsel %vm323, %v286, 0.0
    %331 = vadd.xlane.f32.xlu0 %v330
    %v332 = vpop.xlane.xlu0 %331
    %v333 = vrcp.pop 32.0
    %v334 = vmul.f32 %v326, %v333
    %v335 = vmul.f32 %v329, %v333
    %v336 = vmul.f32 %v332, %v333
    %v337 = vsub.f32 %v278, %v334
    %v338 = vsub.f32 %v281, %v335
    %v339 = vsub.f32 %v286, %v336
    %v340 = vmul.f32 %v337, %v337
    %v341 = vmul.f32 %v338, %v338
    %v342 = vmul.f32 %v339, %v339
    %v343 = vsel %vm323, %v340, 0.0
    %344 = vadd.xlane.f32.xlu0 %v343
    %v345 = vpop.xlane.xlu0 %344
    %v346 = vsel %vm323, %v341, 0.0
    %347 = vadd.xlane.f32.xlu0 %v346
    %v348 = vpop.xlane.xlu0 %347
    %v349 = vsel %vm323, %v342, 0.0
    %350 = vadd.xlane.f32.xlu0 %v349
    %v351 = vpop.xlane.xlu0 %350
    %v352 = vmul.f32 %v345, %v333
    %v353 = vmul.f32 %v348, %v333
    %v354 = vmul.f32 %v351, %v333
    %v355 = vadd.f32 %v352, 1e-05
    %v356 = vadd.f32 %v353, 1e-05
    %v357 = vadd.f32 %v354, 1e-05
    %v358 = vrsqrt.pop %v355
    %v359 = vrsqrt.pop %v356
    %v360 = vrsqrt.pop %v357
    %v361 = vmul.f32 %v337, %v358
    %v362 = vmul.f32 %v338, %v359
    %v363 = vmul.f32 %v339, %v360
    %367 = vrot.lane.b32.xlu0 %v278, 96
    %v368 = vpop.permute.xlu0 %367
    %369 = vrot.lane.b32.xlu0 %v281, 96
    %v370 = vpop.permute.xlu0 %369
    %371 = vrot.lane.b32.xlu0 %v286, 96
    %v372 = vpop.permute.xlu0 %371
    %v376 = vsel %vm323, %v368, 0.0
    %377 = vadd.xlane.f32.xlu0 %v376
    %v378 = vpop.xlane.xlu0 %377
    %v379 = vsel %vm323, %v370, 0.0
    %380 = vadd.xlane.f32.xlu0 %v379
    %v381 = vpop.xlane.xlu0 %380
    %v382 = vsel %vm323, %v372, 0.0
    %383 = vadd.xlane.f32.xlu0 %v382
    %v384 = vpop.xlane.xlu0 %383
    %v385 = vmul.f32 %v378, %v333
    %v386 = vmul.f32 %v381, %v333
    %v387 = vmul.f32 %v384, %v333
    %v388 = vsub.f32 %v278, %v385
    %v389 = vsub.f32 %v281, %v386
    %v390 = vsub.f32 %v286, %v387
    %v391 = vmul.f32 %v388, %v388
    %v392 = vmul.f32 %v389, %v389
    %v393 = vmul.f32 %v390, %v390
    %397 = vrot.lane.b32.xlu0 %v391, 96
    %v398 = vpop.permute.xlu0 %397
    %399 = vrot.lane.b32.xlu0 %v392, 96
    %v400 = vpop.permute.xlu0 %399
    %401 = vrot.lane.b32.xlu0 %v393, 96
    %v402 = vpop.permute.xlu0 %401
    %v406 = vsel %vm323, %v398, 0.0
    %407 = vadd.xlane.f32.xlu0 %v406
    %v408 = vpop.xlane.xlu0 %407
    %v409 = vsel %vm323, %v400, 0.0
    %410 = vadd.xlane.f32.xlu0 %v409
    %v411 = vpop.xlane.xlu0 %410
    %v412 = vsel %vm323, %v402, 0.0
    %413 = vadd.xlane.f32.xlu0 %v412
    %v414 = vpop.xlane.xlu0 %413
    %v415 = vmul.f32 %v408, %v333
    %v416 = vmul.f32 %v411, %v333
    %v417 = vmul.f32 %v414, %v333
    %v418 = vadd.f32 %v415, 1e-05
    %v419 = vadd.f32 %v416, 1e-05
    %v420 = vadd.f32 %v417, 1e-05
    %v421 = vrsqrt.pop %v418
    %v422 = vrsqrt.pop %v419
    %v423 = vrsqrt.pop %v420
    %v424 = vmul.f32 %v388, %v421
    %v425 = vmul.f32 %v389, %v422
    %v426 = vmul.f32 %v390, %v423
    %427 = vrot.lane.b32.xlu0 %v278, 64
    %v428 = vpop.permute.xlu0 %427
    %429 = vrot.lane.b32.xlu0 %v281, 64
    %v430 = vpop.permute.xlu0 %429
    %431 = vrot.lane.b32.xlu0 %v286, 64
    %v432 = vpop.permute.xlu0 %431
    %v436 = vsel %vm323, %v428, 0.0
    %437 = vadd.xlane.f32.xlu0 %v436
    %v438 = vpop.xlane.xlu0 %437
    %v439 = vsel %vm323, %v430, 0.0
    %440 = vadd.xlane.f32.xlu0 %v439
    %v441 = vpop.xlane.xlu0 %440
    %v442 = vsel %vm323, %v432, 0.0
    %443 = vadd.xlane.f32.xlu0 %v442
    %v444 = vpop.xlane.xlu0 %443
    %v445 = vmul.f32 %v438, %v333
    %v446 = vmul.f32 %v441, %v333
    %v447 = vmul.f32 %v444, %v333
    %v448 = vsub.f32 %v278, %v445
    %v449 = vsub.f32 %v281, %v446
    %v450 = vsub.f32 %v286, %v447
    %v451 = vmul.f32 %v448, %v448
    %v452 = vmul.f32 %v449, %v449
    %v453 = vmul.f32 %v450, %v450
    %457 = vrot.lane.b32.xlu0 %v451, 64
    %v458 = vpop.permute.xlu0 %457
    %459 = vrot.lane.b32.xlu0 %v452, 64
    %v460 = vpop.permute.xlu0 %459
    %461 = vrot.lane.b32.xlu0 %v453, 64
    %v462 = vpop.permute.xlu0 %461
    %v466 = vsel %vm323, %v458, 0.0
    %467 = vadd.xlane.f32.xlu0 %v466
    %v468 = vpop.xlane.xlu0 %467
    %v469 = vsel %vm323, %v460, 0.0
    %470 = vadd.xlane.f32.xlu0 %v469
    %v471 = vpop.xlane.xlu0 %470
    %v472 = vsel %vm323, %v462, 0.0
    %473 = vadd.xlane.f32.xlu0 %v472
    %v474 = vpop.xlane.xlu0 %473
    %v475 = vmul.f32 %v468, %v333
    %v476 = vmul.f32 %v471, %v333
    %v477 = vmul.f32 %v474, %v333
    %v478 = vadd.f32 %v475, 1e-05
    %v479 = vadd.f32 %v476, 1e-05
    %v480 = vadd.f32 %v477, 1e-05
    %v481 = vrsqrt.pop %v478
    %v482 = vrsqrt.pop %v479
    %v483 = vrsqrt.pop %v480
    %v484 = vmul.f32 %v448, %v481
    %v485 = vmul.f32 %v449, %v482
    %v486 = vmul.f32 %v450, %v483
    %487 = vrot.lane.b32.xlu0 %v278, 32
    %v488 = vpop.permute.xlu0 %487
    %489 = vrot.lane.b32.xlu0 %v281, 32
    %v490 = vpop.permute.xlu0 %489
    %491 = vrot.lane.b32.xlu0 %v286, 32
    %v492 = vpop.permute.xlu0 %491
    %v496 = vsel %vm323, %v488, 0.0
    %497 = vadd.xlane.f32.xlu0 %v496
    %v498 = vpop.xlane.xlu0 %497
    %v499 = vsel %vm323, %v490, 0.0
    %500 = vadd.xlane.f32.xlu0 %v499
    %v501 = vpop.xlane.xlu0 %500
    %v502 = vsel %vm323, %v492, 0.0
    %503 = vadd.xlane.f32.xlu0 %v502
    %v504 = vpop.xlane.xlu0 %503
    %v505 = vmul.f32 %v498, %v333
    %v506 = vmul.f32 %v501, %v333
    %v507 = vmul.f32 %v504, %v333
    %v508 = vsub.f32 %v278, %v505
    %v509 = vsub.f32 %v281, %v506
    %v510 = vsub.f32 %v286, %v507
    %v511 = vmul.f32 %v508, %v508
    %v512 = vmul.f32 %v509, %v509
    %v513 = vmul.f32 %v510, %v510
    %517 = vrot.lane.b32.xlu0 %v511, 32
    %v518 = vpop.permute.xlu0 %517
    %519 = vrot.lane.b32.xlu0 %v512, 32
    %v520 = vpop.permute.xlu0 %519
    %521 = vrot.lane.b32.xlu0 %v513, 32
    %v522 = vpop.permute.xlu0 %521
    %v526 = vsel %vm323, %v518, 0.0
    %527 = vadd.xlane.f32.xlu0 %v526
    %v528 = vpop.xlane.xlu0 %527
    %v529 = vsel %vm323, %v520, 0.0
    %530 = vadd.xlane.f32.xlu0 %v529
    %v531 = vpop.xlane.xlu0 %530
    %v532 = vsel %vm323, %v522, 0.0
    %533 = vadd.xlane.f32.xlu0 %v532
    %v534 = vpop.xlane.xlu0 %533
    %v535 = vmul.f32 %v528, %v333
    %v536 = vmul.f32 %v531, %v333
    %v537 = vmul.f32 %v534, %v333
    %v538 = vadd.f32 %v535, 1e-05
    %v539 = vadd.f32 %v536, 1e-05
    %v540 = vadd.f32 %v537, 1e-05
    %v541 = vrsqrt.pop %v538
    %v542 = vrsqrt.pop %v539
    %v543 = vrsqrt.pop %v540
    %v544 = vmul.f32 %v508, %v541
    %v545 = vmul.f32 %v509, %v542
    %v546 = vmul.f32 %v510, %v543
    %v547 = vsel %vm323, %v361, %v424
    %v548 = vsel %vm323, %v362, %v425
    %v549 = vsel %vm323, %v363, %v426
    %vm550 = vcmask 523264
    %v551 = vsel %vm550, %v547, %v484
    %v552 = vsel %vm550, %v548, %v485
    %v553 = vsel %vm550, %v549, %v486
    %vm554 = vcmask 785408
    %v555 = vsel %vm554, %v551, %v544
    %v556 = vsel %vm554, %v552, %v545
    %v557 = vsel %vm554, %v553, %v546
    %v558 = vpack.c.bf16 %v556, %v555
    %v559 = vpack.c.bf16 %v557, %v557
    %v576 = vunpack.c.l.b16 %v291
    %v577 = vunpack.c.h.b16 %v291
    %v578 = vunpack.c.l.b16 %v292
    %v579 = vunpack.c.h.b16 %v292
    %v580 = vunpack.c.l.b16 %v293
    %v581 = vunpack.c.h.b16 %v293
    %v582 = vunpack.c.l.b16 %v294
    %v583 = vunpack.c.h.b16 %v294
    %v584 = vunpack.c.l.b16 %v295
    %v585 = vunpack.c.h.b16 %v295
    %v586 = vunpack.c.l.b16 %v296
    %v587 = vunpack.c.h.b16 %v296
    %v588 = vunpack.c.l.b16 %v297
    %v589 = vunpack.c.h.b16 %v297
    %v590 = vunpack.c.l.b16 %v298
    %v591 = vunpack.c.h.b16 %v298
    %v592 = vunpack.c.l.b16 %v299
    %v593 = vunpack.c.h.b16 %v299
    %v594 = vunpack.c.l.b16 %v300
    %v595 = vunpack.c.h.b16 %v300
    %v596 = vunpack.c.l.b16 %v301
    %v597 = vunpack.c.h.b16 %v301
    %v598 = vunpack.c.l.b16 %v302
    %v599 = vunpack.c.h.b16 %v302
    %v600 = vunpack.c.l.b16 %v303
    %v601 = vunpack.c.h.b16 %v303
    %v602 = vunpack.c.l.b16 %v304
    %v603 = vunpack.c.h.b16 %v304
    %v604 = vunpack.c.l.b16 %v305
    %v605 = vunpack.c.h.b16 %v305
    %v606 = vunpack.c.l.b16 %v306
    %v607 = vunpack.c.h.b16 %v306
    %v608 = vpack.c.b16 %v578, %v576
    %v609 = vpack.c.b16 %v579, %v577
    %v610 = vpack.c.b16 %v582, %v580
    %v611 = vpack.c.b16 %v583, %v581
    %v612 = vpack.c.b16 %v586, %v584
    %v613 = vpack.c.b16 %v587, %v585
    %v614 = vpack.c.b16 %v590, %v588
    %v615 = vpack.c.b16 %v591, %v589
    %v616 = vpack.c.b16 %v594, %v592
    %v617 = vpack.c.b16 %v595, %v593
    %v618 = vpack.c.b16 %v598, %v596
    %v619 = vpack.c.b16 %v599, %v597
    %v620 = vpack.c.b16 %v602, %v600
    %v621 = vpack.c.b16 %v603, %v601
    %v622 = vpack.c.b16 %v606, %v604
    %v623 = vpack.c.b16 %v607, %v605
    %640 = vmatprep.subr.bf16.mxu0 %v609
    %641 = vmatpush1.bf16.msra.mxu0 %v608
    %642 = vmatprep.subr.bf16.mxu0 %v611
    %643 = vmatpush1.bf16.msra.mxu0 %v610
    %644 = vmatprep.subr.bf16.mxu0 %v613
    %645 = vmatpush1.bf16.msra.mxu0 %v612
    %646 = vmatprep.subr.bf16.mxu0 %v615
    %647 = vmatpush1.bf16.msra.mxu0 %v614
    %648 = vmatprep.subr.bf16.mxu0 %v617
    %649 = vmatpush1.bf16.msra.mxu0 %v616
    %650 = vmatprep.subr.bf16.mxu0 %v619
    %651 = vmatpush1.bf16.msra.mxu0 %v618
    %652 = vmatprep.subr.bf16.mxu0 %v621
    %653 = vmatpush1.bf16.msra.mxu0 %v620
    %654 = vmatprep.subr.bf16.mxu0 %v623
    %655 = vmatpush1.bf16.msra.mxu0 %v622
    %656 = vmatprep.subr.bf16.mxu0 0
    %657 = vmatpush1.bf16.msra.mxu0 0
    %658 = vmatprep.subr.bf16.mxu0 0
    %659 = vmatpush1.bf16.msra.mxu0 0
    %660 = vmatprep.subr.bf16.mxu0 0
    %661 = vmatpush1.bf16.msra.mxu0 0
    %662 = vmatprep.subr.bf16.mxu0 0
    %663 = vmatpush1.bf16.msra.mxu0 0
    %664 = vmatprep.subr.bf16.mxu0 0
    %665 = vmatpush1.bf16.msra.mxu0 0
    %666 = vmatprep.subr.bf16.mxu0 0
    %667 = vmatpush1.bf16.msra.mxu0 0
    %668 = vmatprep.subr.bf16.mxu0 0
    %669 = vmatpush1.bf16.msra.mxu0 0
    %670 = vmatprep.subr.bf16.mxu0 0
    %671 = vmatpush1.bf16.msra.mxu0 0
    %672 = vmatprep.mubr.bf16.mxu0 0
    %673 = vmatmul.mubr.bf16.gmra.mrb[0].mxu0 %v558
    %v674 = vpop.f32.mrb[0].mxu0
    %v675 = vadd.f32 0.0, %v674
    %v676 = vpop.f32.mrb[0].mxu0
    %v677 = vadd.f32 0.0, %v676
    %v678 = vpop.f32.mrb[0].mxu0
    %v679 = vadd.f32 0.0, %v678
    %v680 = vpop.f32.mrb[0].mxu0
    %v681 = vadd.f32 0.0, %v680
    %682 = vmatprep.mubr.bf16.mxu0 0
    %683 = vmatmul.mubr.bf16.gmra.mrb[0].mxu0 %v559
    %v684 = vpop.f32.mrb[0].mxu0
    %v685 = vadd.f32 0.0, %v684
    %v686 = vpop.f32.mrb[0].mxu0
    %v687 = vadd.f32 0.0, %v686
    %v688 = vpop.f32.mrb[0].mxu0
    %v689 = vpop.f32.mrb[0].mxu0
    %690 = vdwg.mxu0
    %v691 = vmax.f32 %v675, 0.0
    %v692 = vmax.f32 %v679, 0.0
    %v693 = vmax.f32 %v685, 0.0
    %v694 = vmul.f32 %v691, %v677
    %v695 = vmul.f32 %v692, %v681
    %v696 = vmul.f32 %v693, %v687
    %v697 = vpack.c.bf16 %v695, %v694
    %v698 = vpack.c.bf16 %v696, %v696
    %v715 = vunpack.c.l.b16 %v307
    %v716 = vunpack.c.l.b16 %v308
    %v717 = vunpack.c.l.b16 %v309
    %v718 = vunpack.c.l.b16 %v310
    %v719 = vunpack.c.l.b16 %v311
    %v720 = vunpack.c.l.b16 %v312
    %v721 = vunpack.c.l.b16 %v313
    %v722 = vunpack.c.l.b16 %v314
    %v723 = vunpack.c.l.b16 %v315
    %v724 = vunpack.c.l.b16 %v316
    %v725 = vunpack.c.l.b16 %v317
    %v726 = vunpack.c.l.b16 %v318
    %v727 = vunpack.c.l.b16 %v319
    %v728 = vunpack.c.l.b16 %v320
    %v729 = vunpack.c.l.b16 %v321
    %v730 = vunpack.c.l.b16 %v322
    %v731 = vpack.c.b16 %v716, %v715
    %v732 = vpack.c.b16 %v718, %v717
    %v733 = vpack.c.b16 %v720, %v719
    %v734 = vpack.c.b16 %v722, %v721
    %v735 = vpack.c.b16 %v724, %v723
    %v736 = vpack.c.b16 %v726, %v725
    %v737 = vpack.c.b16 %v728, %v727
    %v738 = vpack.c.b16 %v730, %v729
    %747 = vmatprep.subr.bf16.mxu0 0
    %748 = vmatpush1.bf16.msra.mxu0 %v731
    %749 = vmatprep.subr.bf16.mxu0 0
    %750 = vmatpush1.bf16.msra.mxu0 %v732
    %751 = vmatprep.subr.bf16.mxu0 0
    %752 = vmatpush1.bf16.msra.mxu0 %v733
    %753 = vmatprep.subr.bf16.mxu0 0
    %754 = vmatpush1.bf16.msra.mxu0 %v734
    %755 = vmatprep.subr.bf16.mxu0 0
    %756 = vmatpush1.bf16.msra.mxu0 %v735
    %757 = vmatprep.subr.bf16.mxu0 0
    %758 = vmatpush1.bf16.msra.mxu0 %v736
    %759 = vmatprep.subr.bf16.mxu0 0
    %760 = vmatpush1.bf16.msra.mxu0 %v737
    %761 = vmatprep.subr.bf16.mxu0 0
    %762 = vmatpush1.bf16.msra.mxu0 %v738
    %763 = vmatprep.subr.bf16.mxu0 0
    %764 = vmatpush1.bf16.msra.mxu0 0
    %765 = vmatprep.subr.bf16.mxu0 0
    %766 = vmatpush1.bf16.msra.mxu0 0
    %767 = vmatprep.subr.bf16.mxu0 0
    %768 = vmatpush1.bf16.msra.mxu0 0
    %769 = vmatprep.subr.bf16.mxu0 0
    %770 = vmatpush1.bf16.msra.mxu0 0
    %771 = vmatprep.subr.bf16.mxu0 0
    %772 = vmatpush1.bf16.msra.mxu0 0
    %773 = vmatprep.subr.bf16.mxu0 0
    %774 = vmatpush1.bf16.msra.mxu0 0
    %775 = vmatprep.subr.bf16.mxu0 0
    %776 = vmatpush1.bf16.msra.mxu0 0
    %777 = vmatprep.subr.bf16.mxu0 0
    %778 = vmatpush1.bf16.msra.mxu0 0
    %779 = vmatprep.mubr.bf16.mxu0 0
    %780 = vmatmul.mubr.bf16.gmra.mrb[0].mxu0 %v697
    %v781 = vpop.f32.mrb[0].mxu0
    %v782 = vadd.f32 0.0, %v781
    %v783 = vpop.f32.mrb[0].mxu0
    %v784 = vpop.f32.mrb[0].mxu0
    %v785 = vadd.f32 0.0, %v784
    %v786 = vpop.f32.mrb[0].mxu0
    %787 = vmatprep.mubr.bf16.mxu0 0
    %788 = vmatmul.mubr.bf16.gmra.mrb[0].mxu0 %v698
    %v789 = vpop.f32.mrb[0].mxu0
    %v790 = vadd.f32 0.0, %v789
    %v791 = vpop.f32.mrb[0].mxu0
    %v792 = vpop.f32.mrb[0].mxu0
    %v793 = vpop.f32.mrb[0].mxu0
    %794 = vdwg.mxu0
    %v795 = vld [vmem:[#allocation14] sm:$0x1]
    %v796 = vld [vmem:[#allocation16] sm:$0x1]
    %v798 = vlaneseq
    %v799 = vshrl.u32 %v798, 7
    %v800 = vsub.s32 0, %v799
    %v801 = vrot.slane %v795, %v800
    %v803 = vmul.f32 %v801, %v174
    %v804 = vmul.f32 %v801, %v175
    %v805 = vmul.f32 %v801, %v176
    %v807 = vlaneseq
    %v808 = vshrl.u32 %v807, 7
    %v809 = vsub.s32 0, %v808
    %v810 = vrot.slane %v796, %v809
    %v812 = vadd.f32 %v803, %v810
    %v813 = vadd.f32 %v804, %v810
    %v814 = vadd.f32 %v805, %v810
    %v815 = vadd.f32 %v812, %v782
    %v816 = vadd.f32 %v813, %v785
    %v817 = vadd.f32 %v814, %v790
    %818 = vst [vmem:[#allocation17] sm:$0xff] %v815
    %819 = vst [vmem:[#allocation17 + $0x8] sm:$0xff] %v816
    %820 = vst [vmem:[#allocation17 + $0x10] sm:$0xff] %v817
    // Predicated region
    $region74: #{metagin_forward.23} parent=1 // pred_check
      _
    $region75: #{metagin_forward.23} parent=1 // pred_check_branch
      %822 = sbr.rel (0) target = $region77
    $region76: #{metagin_forward.23} parent=1 // pred_region
      %s824 = ssub.s32 384, 384
      %825 = vsyncadd [#allocation4], %s824
      %s826 = sshll.u32 [#allocation17], 4
      %s827 = int_to_ptr.vmem [resolvable:$true] %s826
      %832 = dma.vmem_to_hbm [thread:$0]  %s827, 384, %s9, [#allocation4], 128, 128, 8
    $region77: #{metagin_forward.23} parent=1 // pred_fallthru
      _
    // Predicated region
    $region78: #{metagin_forward.23} parent=1 // pred_check
      _
    $region79: #{metagin_forward.23} parent=1 // pred_check_branch
      %834 = sbr.rel (0) target = $region81
    $region80: #{metagin_forward.23} parent=1 // pred_region
      %835 = dma.done [#allocation4], 384
    $region81: #{metagin_forward.23} parent=1 // pred_fallthru
      _
    %836 = vsyncpa [#allocation3], 1
    %837 = vsyncpa [#allocation6], 1
    %838 = vsyncpa [#allocation9], 1
    %839 = vsyncpa [#allocation12], 1
    %840 = vsyncpa [#allocation15], 1
    %841 = vsyncpa [#allocation4], 1

// kernel: metagin_forward.28
$region0: #{metagin_forward.28}
  #allocation0 [shape = 'u32[]', space=smem, size = 0x4, offset = 0x4, fixed_abs, tag = 'smem constant byte address 0x4 - core index']
  #allocation1 [shape = 'u32[144,128]{1,0:T(1,128)}', space=vmem, size = 0x12000, scoped, tag = 'internal scratch']
  %s0 = inlined_call_operand.hbm [shape: f32[24,128], index: 0, kind: input, shape index: {}]
  %s1 = inlined_call_operand.hbm [shape: f32[24,128], index: 1, kind: input, shape index: {}]
  %s2 = inlined_call_operand.hbm [shape: f32[1,128], index: 2, kind: input, shape index: {}]
  %s3 = inlined_call_operand.hbm [shape: f32[1,128], index: 3, kind: input, shape index: {}]
  %s4 = inlined_call_operand.hbm [shape: bf16[128,128], index: 4, kind: input, shape index: {}]
  %s5 = inlined_call_operand.hbm [shape: bf16[128,256], index: 5, kind: input, shape index: {}]
  %s6 = inlined_call_operand.hbm [shape: bf16[128,128], index: 6, kind: input, shape index: {}]
  %s7 = inlined_call_operand.hbm [shape: f32[24,128], index: 7, kind: output, shape index: {}]
  %s8 = sld [smem:[#allocation0]]
  $region66: #{metagin_forward.28} parent=0
    _
  %s10 = ssub.s32 1, %s8
  %s11 = scalar_select 0, %s10, %s8
  $region1: #{metagin_forward.28} parent=0
    #allocation2 [shape = 'u8[12288]{0}', space=vmem, size = 0x3000, scoped, tag = 'input window, operand 0, single buffered']
    #allocation3 [shape = 's32[1]{0}', space=sflag, size = 0x4, scoped, tag = 'scoped memory for metagin_forward.28']
    #allocation4 [shape = 's32[1]{0}', space=sflag, size = 0x4, scoped, tag = 'scoped memory for metagin_forward.28']
    #allocation5 [shape = 'u8[12288]{0}', space=vmem, size = 0x3000, scoped, tag = 'input window, operand 1, single buffered']
    #allocation6 [shape = 's32[1]{0}', space=sflag, size = 0x4, scoped, tag = 'scoped memory for metagin_forward.28']
    #allocation7 [shape = 'u8[512]{0}', space=vmem, size = 0x400, scoped, tag = 'input window, operand 2, single buffered']
    #allocation8 [shape = 'u8[512]{0}', space=vmem, size = 0x400, scoped, tag = 'input window, operand 3, single buffered']
    #allocation9 [shape = 's32[1]{0}', space=sflag, size = 0x4, scoped, tag = 'scoped memory for metagin_forward.28']
    #allocation10 [shape = 'u8[32768]{0}', space=vmem, size = 0x8000, scoped, tag = 'input window, operand 4, single buffered']
    #allocation11 [shape = 'u8[65536]{0}', space=vmem, size = 0x10000, scoped, tag = 'input window, operand 5, single buffered']
    #allocation12 [shape = 's32[1]{0}', space=sflag, size = 0x4, scoped, tag = 'scoped memory for metagin_forward.28']
    #allocation13 [shape = 'u8[32768]{0}', space=vmem, size = 0x8000, scoped, tag = 'input window, operand 6, single buffered']
    #allocation14 [shape = 'u8[12288]{0}', space=vmem, size = 0x3000, scoped, tag = 'output window, operand 0, single buffered']
    %12 = vsyncpa [#allocation3], 0
    %13 = vsyncpa [#allocation6], 0
    %14 = vsyncpa [#allocation9], 0
    %15 = vsyncpa [#allocation12], 0
    %16 = vsyncpa [#allocation4], 0
    // Predicated region
    $region2: #{metagin_forward.28} parent=1 // pred_check
      _
    $region3: #{metagin_forward.28} parent=1 // pred_check_branch
      %18 = sbr.rel (0) target = $region5
    $region4: #{metagin_forward.28} parent=1 // pred_region
      %s20 = ssub.s32 384, 384
      %21 = vsyncadd [#allocation3], %s20
      %s22 = sshll.u32 [#allocation2], 4
      %s23 = int_to_ptr.vmem [resolvable:$true] %s22
      %28 = dma.hbm_to_vmem [thread:$0]  %s0, 384, %s23, [#allocation3], 128, 128, 8
    $region5: #{metagin_forward.28} parent=1 // pred_fallthru
      _
    // Predicated region
    $region6: #{metagin_forward.28} parent=1 // pred_check
      _
    $region7: #{metagin_forward.28} parent=1 // pred_check_branch
      %30 = sbr.rel (0) target = $region9
    $region8: #{metagin_forward.28} parent=1 // pred_region
      %s32 = ssub.s32 384, 384
      %33 = vsyncadd [#allocation6], %s32
      %s34 = sshll.u32 [#allocation5], 4
      %s35 = int_to_ptr.vmem [resolvable:$true] %s34
      %40 = dma.hbm_to_vmem [thread:$0]  %s1, 384, %s35, [#allocation6], 128, 128, 8
    $region9: #{metagin_forward.28} parent=1 // pred_fallthru
      _
    // Predicated region
    $region10: #{metagin_forward.28} parent=1 // pred_check
      _
    $region11: #{metagin_forward.28} parent=1 // pred_check_branch
      %42 = sbr.rel (0) target = $region13
    $region12: #{metagin_forward.28} parent=1 // pred_region
      %s44 = ssub.s32 16, 16
      %45 = vsyncadd [#allocation6], %s44
      %s47 = sshll.u32 [#allocation7], 4
      %s48 = int_to_ptr.vmem [resolvable:$true] %s47
      %50 = dma.hbm_to_vmem [thread:$0]  %s2, 16, %s48, [#allocation6]
    $region13: #{metagin_forward.28} parent=1 // pred_fallthru
      _
    // Predicated region
    $region14: #{metagin_forward.28} parent=1 // pred_check
      _
    $region15: #{metagin_forward.28} parent=1 // pred_check_branch
      %52 = sbr.rel (0) target = $region17
    $region16: #{metagin_forward.28} parent=1 // pred_region
      %s54 = ssub.s32 16, 16
      %55 = vsyncadd [#allocation9], %s54
      %s57 = sshll.u32 [#allocation8], 4
      %s58 = int_to_ptr.vmem [resolvable:$true] %s57
      %60 = dma.hbm_to_vmem [thread:$0]  %s3, 16, %s58, [#allocation9]
    $region17: #{metagin_forward.28} parent=1 // pred_fallthru
      _
    // Predicated region
    $region18: #{metagin_forward.28} parent=1 // pred_check
      _
    $region19: #{metagin_forward.28} parent=1 // pred_check_branch
      %62 = sbr.rel (0) target = $region21
    $region20: #{metagin_forward.28} parent=1 // pred_region
      %s64 = ssub.s32 1024, 1024
      %65 = vsyncadd [#allocation9], %s64
      %s66 = sshll.u32 [#allocation10], 4
      %s67 = int_to_ptr.vmem [resolvable:$true] %s66
      %72 = dma.hbm_to_vmem [thread:$0]  %s4, 1024, %s67, [#allocation9], 64, 64, 4
    $region21: #{metagin_forward.28} parent=1 // pred_fallthru
      _
    // Predicated region
    $region22: #{metagin_forward.28} parent=1 // pred_check
      _
    $region23: #{metagin_forward.28} parent=1 // pred_check_branch
      %74 = sbr.rel (0) target = $region25
    $region24: #{metagin_forward.28} parent=1 // pred_region
      %s76 = ssub.s32 2048, 2048
      %77 = vsyncadd [#allocation12], %s76
      %s78 = sshll.u32 [#allocation11], 4
      %s79 = int_to_ptr.vmem [resolvable:$true] %s78
      %84 = dma.hbm_to_vmem [thread:$0]  %s5, 2048, %s79, [#allocation12], 128, 128, 8
    $region25: #{metagin_forward.28} parent=1 // pred_fallthru
      _
    // Predicated region
    $region26: #{metagin_forward.28} parent=1 // pred_check
      _
    $region27: #{metagin_forward.28} parent=1 // pred_check_branch
      %86 = sbr.rel (0) target = $region29
    $region28: #{metagin_forward.28} parent=1 // pred_region
      %s88 = ssub.s32 1024, 1024
      %89 = vsyncadd [#allocation12], %s88
      %s90 = sshll.u32 [#allocation13], 4
      %s91 = int_to_ptr.vmem [resolvable:$true] %s90
      %96 = dma.hbm_to_vmem [thread:$0]  %s6, 1024, %s91, [#allocation12], 64, 64, 4
    $region29: #{metagin_forward.28} parent=1 // pred_fallthru
      _
    // Predicated region
    $region30: #{metagin_forward.28} parent=1 // pred_check
      _
    $region31: #{metagin_forward.28} parent=1 // pred_check_branch
      %98 = sbr.rel (0) target = $region33
    $region32: #{metagin_forward.28} parent=1 // pred_region
      %99 = dma.done [#allocation3], 384
    $region33: #{metagin_forward.28} parent=1 // pred_fallthru
      _
    // Predicated region
    $region34: #{metagin_forward.28} parent=1 // pred_check
      _
    $region35: #{metagin_forward.28} parent=1 // pred_check_branch
      %101 = sbr.rel (0) target = $region37
    $region36: #{metagin_forward.28} parent=1 // pred_region
      %102 = dma.done [#allocation6], 384
    $region37: #{metagin_forward.28} parent=1 // pred_fallthru
      _
    // Predicated region
    $region38: #{metagin_forward.28} parent=1 // pred_check
      _
    $region39: #{metagin_forward.28} parent=1 // pred_check_branch
      %104 = sbr.rel (0) target = $region41
    $region40: #{metagin_forward.28} parent=1 // pred_region
      %105 = dma.done [#allocation6], 16
    $region41: #{metagin_forward.28} parent=1 // pred_fallthru
      _
    // Predicated region
    $region42: #{metagin_forward.28} parent=1 // pred_check
      _
    $region43: #{metagin_forward.28} parent=1 // pred_check_branch
      %107 = sbr.rel (0) target = $region45
    $region44: #{metagin_forward.28} parent=1 // pred_region
      %108 = dma.done [#allocation9], 16
    $region45: #{metagin_forward.28} parent=1 // pred_fallthru
      _
    // Predicated region
    $region46: #{metagin_forward.28} parent=1 // pred_check
      _
    $region47: #{metagin_forward.28} parent=1 // pred_check_branch
      %110 = sbr.rel (0) target = $region49
    $region48: #{metagin_forward.28} parent=1 // pred_region
      %111 = dma.done [#allocation9], 1024
    $region49: #{metagin_forward.28} parent=1 // pred_fallthru
      _
    // Predicated region
    $region50: #{metagin_forward.28} parent=1 // pred_check
      _
    $region51: #{metagin_forward.28} parent=1 // pred_check_branch
      %113 = sbr.rel (0) target = $region53
    $region52: #{metagin_forward.28} parent=1 // pred_region
      %114 = dma.done [#allocation12], 2048
    $region53: #{metagin_forward.28} parent=1 // pred_fallthru
      _
    // Predicated region
    $region54: #{metagin_forward.28} parent=1 // pred_check
      _
    $region55: #{metagin_forward.28} parent=1 // pred_check_branch
      %116 = sbr.rel (0) target = $region57
    $region56: #{metagin_forward.28} parent=1 // pred_region
      %117 = dma.done [#allocation12], 1024
    $region57: #{metagin_forward.28} parent=1 // pred_fallthru
      _
    %v119 = vld [vmem:[#allocation2] sm:$0xff]
    %v120 = vld [vmem:[#allocation2 + $0x8] sm:$0xff]
    %v121 = vld [vmem:[#allocation2 + $0x10] sm:$0xff]
    %v122 = vld [vmem:[#allocation5] sm:$0xff]
    %v123 = vld [vmem:[#allocation5 + $0x8] sm:$0xff]
    %v124 = vld [vmem:[#allocation5 + $0x10] sm:$0xff]
    %v125 = vld [vmem:[#allocation7] sm:$0x1]
    %v126 = vld [vmem:[#allocation8] sm:$0x1]
    %v128 = vlaneseq
    %v129 = vshrl.u32 %v128, 7
    %v130 = vsub.s32 0, %v129
    %v131 = vrot.slane %v125, %v130
    %v133 = vmul.f32 %v131, %v119
    %v134 = vmul.f32 %v131, %v120
    %v135 = vmul.f32 %v131, %v121
    %v137 = vlaneseq
    %v138 = vshrl.u32 %v137, 7
    %v139 = vsub.s32 0, %v138
    %v140 = vrot.slane %v126, %v139
    %v142 = vadd.f32 %v133, %v140
    %v143 = vadd.f32 %v134, %v140
    %v144 = vadd.f32 %v135, %v140
    %v145 = vadd.f32 %v142, %v122
    %v146 = vadd.f32 %v143, %v123
    %v147 = vadd.f32 %v144, %v124
    %v148 = vld [vmem:[#allocation10] sm:$0xf]
    %v149 = vld [vmem:[#allocation10 + $0x4] sm:$0xf]
    %v150 = vld [vmem:[#allocation10 + $0x8] sm:$0xf]
    %v151 = vld [vmem:[#allocation10 + $0xc] sm:$0xf]
    %v152 = vld [vmem:[#allocation10 + $0x10] sm:$0xf]
    %v153 = vld [vmem:[#allocation10 + $0x14] sm:$0xf]
    %v154 = vld [vmem:[#allocation10 + $0x18] sm:$0xf]
    %v155 = vld [vmem:[#allocation10 + $0x1c] sm:$0xf]
    %v156 = vld [vmem:[#allocation10 + $0x20] sm:$0xf]
    %v157 = vld [vmem:[#allocation10 + $0x24] sm:$0xf]
    %v158 = vld [vmem:[#allocation10 + $0x28] sm:$0xf]
    %v159 = vld [vmem:[#allocation10 + $0x2c] sm:$0xf]
    %v160 = vld [vmem:[#allocation10 + $0x30] sm:$0xf]
    %v161 = vld [vmem:[#allocation10 + $0x34] sm:$0xf]
    %v162 = vld [vmem:[#allocation10 + $0x38] sm:$0xf]
    %v163 = vld [vmem:[#allocation10 + $0x3c] sm:$0xf]
    %v164 = vpack.c.bf16 %v146, %v145
    %v165 = vpack.c.bf16 %v147, %v147
    %v182 = vunpack.c.l.b16 %v148
    %v183 = vunpack.c.l.b16 %v149
    %v184 = vunpack.c.l.b16 %v150
    %v185 = vunpack.c.l.b16 %v151
    %v186 = vunpack.c.l.b16 %v152
    %v187 = vunpack.c.l.b16 %v153
    %v188 = vunpack.c.l.b16 %v154
    %v189 = vunpack.c.l.b16 %v155
    %v190 = vunpack.c.l.b16 %v156
    %v191 = vunpack.c.l.b16 %v157
    %v192 = vunpack.c.l.b16 %v158
    %v193 = vunpack.c.l.b16 %v159
    %v194 = vunpack.c.l.b16 %v160
    %v195 = vunpack.c.l.b16 %v161
    %v196 = vunpack.c.l.b16 %v162
    %v197 = vunpack.c.l.b16 %v163
    %v198 = vpack.c.b16 %v183, %v182
    %v199 = vpack.c.b16 %v185, %v184
    %v200 = vpack.c.b16 %v187, %v186
    %v201 = vpack.c.b16 %v189, %v188
    %v202 = vpack.c.b16 %v191, %v190
    %v203 = vpack.c.b16 %v193, %v192
    %v204 = vpack.c.b16 %v195, %v194
    %v205 = vpack.c.b16 %v197, %v196
    %214 = vmatprep.subr.bf16.mxu0 0
    %215 = vmatpush1.bf16.msra.mxu0 %v198
    %216 = vmatprep.subr.bf16.mxu0 0
    %217 = vmatpush1.bf16.msra.mxu0 %v199
    %218 = vmatprep.subr.bf16.mxu0 0
    %219 = vmatpush1.bf16.msra.mxu0 %v200
    %220 = vmatprep.subr.bf16.mxu0 0
    %221 = vmatpush1.bf16.msra.mxu0 %v201
    %222 = vmatprep.subr.bf16.mxu0 0
    %223 = vmatpush1.bf16.msra.mxu0 %v202
    %224 = vmatprep.subr.bf16.mxu0 0
    %225 = vmatpush1.bf16.msra.mxu0 %v203
    %226 = vmatprep.subr.bf16.mxu0 0
    %227 = vmatpush1.bf16.msra.mxu0 %v204
    %228 = vmatprep.subr.bf16.mxu0 0
    %229 = vmatpush1.bf16.msra.mxu0 %v205
    %230 = vmatprep.subr.bf16.mxu0 0
    %231 = vmatpush1.bf16.msra.mxu0 0
    %232 = vmatprep.subr.bf16.mxu0 0
    %233 = vmatpush1.bf16.msra.mxu0 0
    %234 = vmatprep.subr.bf16.mxu0 0
    %235 = vmatpush1.bf16.msra.mxu0 0
    %236 = vmatprep.subr.bf16.mxu0 0
    %237 = vmatpush1.bf16.msra.mxu0 0
    %238 = vmatprep.subr.bf16.mxu0 0
    %239 = vmatpush1.bf16.msra.mxu0 0
    %240 = vmatprep.subr.bf16.mxu0 0
    %241 = vmatpush1.bf16.msra.mxu0 0
    %242 = vmatprep.subr.bf16.mxu0 0
    %243 = vmatpush1.bf16.msra.mxu0 0
    %244 = vmatprep.subr.bf16.mxu0 0
    %245 = vmatpush1.bf16.msra.mxu0 0
    %246 = vmatprep.mubr.bf16.mxu0 0
    %247 = vmatmul.mubr.bf16.gmra.mrb[0].mxu0 %v164
    %v248 = vpop.f32.mrb[0].mxu0
    %v249 = vadd.f32 0.0, %v248
    %v250 = vpop.f32.mrb[0].mxu0
    %v251 = vpop.f32.mrb[0].mxu0
    %v252 = vadd.f32 0.0, %v251
    %v253 = vpop.f32.mrb[0].mxu0
    %254 = vmatprep.mubr.bf16.mxu0 0
    %255 = vmatmul.mubr.bf16.gmra.mrb[0].mxu0 %v165
    %v256 = vpop.f32.mrb[0].mxu0
    %v257 = vadd.f32 0.0, %v256
    %v258 = vpop.f32.mrb[0].mxu0
    %v259 = vpop.f32.mrb[0].mxu0
    %v260 = vpop.f32.mrb[0].mxu0
    %261 = vdwg.mxu0
    %v262 = vld [vmem:[#allocation11] sm:$0xff]
    %v263 = vld [vmem:[#allocation11 + $0x8] sm:$0xff]
    %v264 = vld [vmem:[#allocation11 + $0x10] sm:$0xff]
    %v265 = vld [vmem:[#allocation11 + $0x18] sm:$0xff]
    %v266 = vld [vmem:[#allocation11 + $0x20] sm:$0xff]
    %v267 = vld [vmem:[#allocation11 + $0x28] sm:$0xff]
    %v268 = vld [vmem:[#allocation11 + $0x30] sm:$0xff]
    %v269 = vld [vmem:[#allocation11 + $0x38] sm:$0xff]
    %v270 = vld [vmem:[#allocation11 + $0x40] sm:$0xff]
    %v271 = vld [vmem:[#allocation11 + $0x48] sm:$0xff]
    %v272 = vld [vmem:[#allocation11 + $0x50] sm:$0xff]
    %v273 = vld [vmem:[#allocation11 + $0x58] sm:$0xff]
    %v274 = vld [vmem:[#allocation11 + $0x60] sm:$0xff]
    %v275 = vld [vmem:[#allocation11 + $0x68] sm:$0xff]
    %v276 = vld [vmem:[#allocation11 + $0x70] sm:$0xff]
    %v277 = vld [vmem:[#allocation11 + $0x78] sm:$0xff]
    %v278 = vld [vmem:[#allocation13] sm:$0xf]
    %v279 = vld [vmem:[#allocation13 + $0x4] sm:$0xf]
    %v280 = vld [vmem:[#allocation13 + $0x8] sm:$0xf]
    %v281 = vld [vmem:[#allocation13 + $0xc] sm:$0xf]
    %v282 = vld [vmem:[#allocation13 + $0x10] sm:$0xf]
    %v283 = vld [vmem:[#allocation13 + $0x14] sm:$0xf]
    %v284 = vld [vmem:[#allocation13 + $0x18] sm:$0xf]
    %v285 = vld [vmem:[#allocation13 + $0x1c] sm:$0xf]
    %v286 = vld [vmem:[#allocation13 + $0x20] sm:$0xf]
    %v287 = vld [vmem:[#allocation13 + $0x24] sm:$0xf]
    %v288 = vld [vmem:[#allocation13 + $0x28] sm:$0xf]
    %v289 = vld [vmem:[#allocation13 + $0x2c] sm:$0xf]
    %v290 = vld [vmem:[#allocation13 + $0x30] sm:$0xf]
    %v291 = vld [vmem:[#allocation13 + $0x34] sm:$0xf]
    %v292 = vld [vmem:[#allocation13 + $0x38] sm:$0xf]
    %v293 = vld [vmem:[#allocation13 + $0x3c] sm:$0xf]
    %vm294 = vcmask 261120
    %v295 = vsel %vm294, %v249, 0.0
    %296 = vadd.xlane.f32.xlu0 %v295
    %v297 = vpop.xlane.xlu0 %296
    %v298 = vsel %vm294, %v252, 0.0
    %299 = vadd.xlane.f32.xlu0 %v298
    %v300 = vpop.xlane.xlu0 %299
    %v301 = vsel %vm294, %v257, 0.0
    %302 = vadd.xlane.f32.xlu0 %v301
    %v303 = vpop.xlane.xlu0 %302
    %v304 = vrcp.pop 32.0
    %v305 = vmul.f32 %v297, %v304
    %v306 = vmul.f32 %v300, %v304
    %v307 = vmul.f32 %v303, %v304
    %v308 = vsub.f32 %v249, %v305
    %v309 = vsub.f32 %v252, %v306
    %v310 = vsub.f32 %v257, %v307
    %v311 = vmul.f32 %v308, %v308
    %v312 = vmul.f32 %v309, %v309
    %v313 = vmul.f32 %v310, %v310
    %v314 = vsel %vm294, %v311, 0.0
    %315 = vadd.xlane.f32.xlu0 %v314
    %v316 = vpop.xlane.xlu0 %315
    %v317 = vsel %vm294, %v312, 0.0
    %318 = vadd.xlane.f32.xlu0 %v317
    %v319 = vpop.xlane.xlu0 %318
    %v320 = vsel %vm294, %v313, 0.0
    %321 = vadd.xlane.f32.xlu0 %v320
    %v322 = vpop.xlane.xlu0 %321
    %v323 = vmul.f32 %v316, %v304
    %v324 = vmul.f32 %v319, %v304
    %v325 = vmul.f32 %v322, %v304
    %v326 = vadd.f32 %v323, 1e-05
    %v327 = vadd.f32 %v324, 1e-05
    %v328 = vadd.f32 %v325, 1e-05
    %v329 = vrsqrt.pop %v326
    %v330 = vrsqrt.pop %v327
    %v331 = vrsqrt.pop %v328
    %v332 = vmul.f32 %v308, %v329
    %v333 = vmul.f32 %v309, %v330
    %v334 = vmul.f32 %v310, %v331
    %338 = vrot.lane.b32.xlu0 %v249, 96
    %v339 = vpop.permute.xlu0 %338
    %340 = vrot.lane.b32.xlu0 %v252, 96
    %v341 = vpop.permute.xlu0 %340
    %342 = vrot.lane.b32.xlu0 %v257, 96
    %v343 = vpop.permute.xlu0 %342
    %v347 = vsel %vm294, %v339, 0.0
    %348 = vadd.xlane.f32.xlu0 %v347
    %v349 = vpop.xlane.xlu0 %348
    %v350 = vsel %vm294, %v341, 0.0
    %351 = vadd.xlane.f32.xlu0 %v350
    %v352 = vpop.xlane.xlu0 %351
    %v353 = vsel %vm294, %v343, 0.0
    %354 = vadd.xlane.f32.xlu0 %v353
    %v355 = vpop.xlane.xlu0 %354
    %v356 = vmul.f32 %v349, %v304
    %v357 = vmul.f32 %v352, %v304
    %v358 = vmul.f32 %v355, %v304
    %v359 = vsub.f32 %v249, %v356
    %v360 = vsub.f32 %v252, %v357
    %v361 = vsub.f32 %v257, %v358
    %v362 = vmul.f32 %v359, %v359
    %v363 = vmul.f32 %v360, %v360
    %v364 = vmul.f32 %v361, %v361
    %368 = vrot.lane.b32.xlu0 %v362, 96
    %v369 = vpop.permute.xlu0 %368
    %370 = vrot.lane.b32.xlu0 %v363, 96
    %v371 = vpop.permute.xlu0 %370
    %372 = vrot.lane.b32.xlu0 %v364, 96
    %v373 = vpop.permute.xlu0 %372
    %v377 = vsel %vm294, %v369, 0.0
    %378 = vadd.xlane.f32.xlu0 %v377
    %v379 = vpop.xlane.xlu0 %378
    %v380 = vsel %vm294, %v371, 0.0
    %381 = vadd.xlane.f32.xlu0 %v380
    %v382 = vpop.xlane.xlu0 %381
    %v383 = vsel %vm294, %v373, 0.0
    %384 = vadd.xlane.f32.xlu0 %v383
    %v385 = vpop.xlane.xlu0 %384
    %v386 = vmul.f32 %v379, %v304
    %v387 = vmul.f32 %v382, %v304
    %v388 = vmul.f32 %v385, %v304
    %v389 = vadd.f32 %v386, 1e-05
    %v390 = vadd.f32 %v387, 1e-05
    %v391 = vadd.f32 %v388, 1e-05
    %v392 = vrsqrt.pop %v389
    %v393 = vrsqrt.pop %v390
    %v394 = vrsqrt.pop %v391
    %v395 = vmul.f32 %v359, %v392
    %v396 = vmul.f32 %v360, %v393
    %v397 = vmul.f32 %v361, %v394
    %398 = vrot.lane.b32.xlu0 %v249, 64
    %v399 = vpop.permute.xlu0 %398
    %400 = vrot.lane.b32.xlu0 %v252, 64
    %v401 = vpop.permute.xlu0 %400
    %402 = vrot.lane.b32.xlu0 %v257, 64
    %v403 = vpop.permute.xlu0 %402
    %v407 = vsel %vm294, %v399, 0.0
    %408 = vadd.xlane.f32.xlu0 %v407
    %v409 = vpop.xlane.xlu0 %408
    %v410 = vsel %vm294, %v401, 0.0
    %411 = vadd.xlane.f32.xlu0 %v410
    %v412 = vpop.xlane.xlu0 %411
    %v413 = vsel %vm294, %v403, 0.0
    %414 = vadd.xlane.f32.xlu0 %v413
    %v415 = vpop.xlane.xlu0 %414
    %v416 = vmul.f32 %v409, %v304
    %v417 = vmul.f32 %v412, %v304
    %v418 = vmul.f32 %v415, %v304
    %v419 = vsub.f32 %v249, %v416
    %v420 = vsub.f32 %v252, %v417
    %v421 = vsub.f32 %v257, %v418
    %v422 = vmul.f32 %v419, %v419
    %v423 = vmul.f32 %v420, %v420
    %v424 = vmul.f32 %v421, %v421
    %428 = vrot.lane.b32.xlu0 %v422, 64
    %v429 = vpop.permute.xlu0 %428
    %430 = vrot.lane.b32.xlu0 %v423, 64
    %v431 = vpop.permute.xlu0 %430
    %432 = vrot.lane.b32.xlu0 %v424, 64
    %v433 = vpop.permute.xlu0 %432
    %v437 = vsel %vm294, %v429, 0.0
    %438 = vadd.xlane.f32.xlu0 %v437
    %v439 = vpop.xlane.xlu0 %438
    %v440 = vsel %vm294, %v431, 0.0
    %441 = vadd.xlane.f32.xlu0 %v440
    %v442 = vpop.xlane.xlu0 %441
    %v443 = vsel %vm294, %v433, 0.0
    %444 = vadd.xlane.f32.xlu0 %v443
    %v445 = vpop.xlane.xlu0 %444
    %v446 = vmul.f32 %v439, %v304
    %v447 = vmul.f32 %v442, %v304
    %v448 = vmul.f32 %v445, %v304
    %v449 = vadd.f32 %v446, 1e-05
    %v450 = vadd.f32 %v447, 1e-05
    %v451 = vadd.f32 %v448, 1e-05
    %v452 = vrsqrt.pop %v449
    %v453 = vrsqrt.pop %v450
    %v454 = vrsqrt.pop %v451
    %v455 = vmul.f32 %v419, %v452
    %v456 = vmul.f32 %v420, %v453
    %v457 = vmul.f32 %v421, %v454
    %458 = vrot.lane.b32.xlu0 %v249, 32
    %v459 = vpop.permute.xlu0 %458
    %460 = vrot.lane.b32.xlu0 %v252, 32
    %v461 = vpop.permute.xlu0 %460
    %462 = vrot.lane.b32.xlu0 %v257, 32
    %v463 = vpop.permute.xlu0 %462
    %v467 = vsel %vm294, %v459, 0.0
    %468 = vadd.xlane.f32.xlu0 %v467
    %v469 = vpop.xlane.xlu0 %468
    %v470 = vsel %vm294, %v461, 0.0
    %471 = vadd.xlane.f32.xlu0 %v470
    %v472 = vpop.xlane.xlu0 %471
    %v473 = vsel %vm294, %v463, 0.0
    %474 = vadd.xlane.f32.xlu0 %v473
    %v475 = vpop.xlane.xlu0 %474
    %v476 = vmul.f32 %v469, %v304
    %v477 = vmul.f32 %v472, %v304
    %v478 = vmul.f32 %v475, %v304
    %v479 = vsub.f32 %v249, %v476
    %v480 = vsub.f32 %v252, %v477
    %v481 = vsub.f32 %v257, %v478
    %v482 = vmul.f32 %v479, %v479
    %v483 = vmul.f32 %v480, %v480
    %v484 = vmul.f32 %v481, %v481
    %488 = vrot.lane.b32.xlu0 %v482, 32
    %v489 = vpop.permute.xlu0 %488
    %490 = vrot.lane.b32.xlu0 %v483, 32
    %v491 = vpop.permute.xlu0 %490
    %492 = vrot.lane.b32.xlu0 %v484, 32
    %v493 = vpop.permute.xlu0 %492
    %v497 = vsel %vm294, %v489, 0.0
    %498 = vadd.xlane.f32.xlu0 %v497
    %v499 = vpop.xlane.xlu0 %498
    %v500 = vsel %vm294, %v491, 0.0
    %501 = vadd.xlane.f32.xlu0 %v500
    %v502 = vpop.xlane.xlu0 %501
    %v503 = vsel %vm294, %v493, 0.0
    %504 = vadd.xlane.f32.xlu0 %v503
    %v505 = vpop.xlane.xlu0 %504
    %v506 = vmul.f32 %v499, %v304
    %v507 = vmul.f32 %v502, %v304
    %v508 = vmul.f32 %v505, %v304
    %v509 = vadd.f32 %v506, 1e-05
    %v510 = vadd.f32 %v507, 1e-05
    %v511 = vadd.f32 %v508, 1e-05
    %v512 = vrsqrt.pop %v509
    %v513 = vrsqrt.pop %v510
    %v514 = vrsqrt.pop %v511
    %v515 = vmul.f32 %v479, %v512
    %v516 = vmul.f32 %v480, %v513
    %v517 = vmul.f32 %v481, %v514
    %v518 = vsel %vm294, %v332, %v395
    %v519 = vsel %vm294, %v333, %v396
    %v520 = vsel %vm294, %v334, %v397
    %vm521 = vcmask 523264
    %v522 = vsel %vm521, %v518, %v455
    %v523 = vsel %vm521, %v519, %v456
    %v524 = vsel %vm521, %v520, %v457
    %vm525 = vcmask 785408
    %v526 = vsel %vm525, %v522, %v515
    %v527 = vsel %vm525, %v523, %v516
    %v528 = vsel %vm525, %v524, %v517
    %v529 = vpack.c.bf16 %v527, %v526
    %v530 = vpack.c.bf16 %v528, %v528
    %v547 = vunpack.c.l.b16 %v262
    %v548 = vunpack.c.h.b16 %v262
    %v549 = vunpack.c.l.b16 %v263
    %v550 = vunpack.c.h.b16 %v263
    %v551 = vunpack.c.l.b16 %v264
    %v552 = vunpack.c.h.b16 %v264
    %v553 = vunpack.c.l.b16 %v265
    %v554 = vunpack.c.h.b16 %v265
    %v555 = vunpack.c.l.b16 %v266
    %v556 = vunpack.c.h.b16 %v266
    %v557 = vunpack.c.l.b16 %v267
    %v558 = vunpack.c.h.b16 %v267
    %v559 = vunpack.c.l.b16 %v268
    %v560 = vunpack.c.h.b16 %v268
    %v561 = vunpack.c.l.b16 %v269
    %v562 = vunpack.c.h.b16 %v269
    %v563 = vunpack.c.l.b16 %v270
    %v564 = vunpack.c.h.b16 %v270
    %v565 = vunpack.c.l.b16 %v271
    %v566 = vunpack.c.h.b16 %v271
    %v567 = vunpack.c.l.b16 %v272
    %v568 = vunpack.c.h.b16 %v272
    %v569 = vunpack.c.l.b16 %v273
    %v570 = vunpack.c.h.b16 %v273
    %v571 = vunpack.c.l.b16 %v274
    %v572 = vunpack.c.h.b16 %v274
    %v573 = vunpack.c.l.b16 %v275
    %v574 = vunpack.c.h.b16 %v275
    %v575 = vunpack.c.l.b16 %v276
    %v576 = vunpack.c.h.b16 %v276
    %v577 = vunpack.c.l.b16 %v277
    %v578 = vunpack.c.h.b16 %v277
    %v579 = vpack.c.b16 %v549, %v547
    %v580 = vpack.c.b16 %v550, %v548
    %v581 = vpack.c.b16 %v553, %v551
    %v582 = vpack.c.b16 %v554, %v552
    %v583 = vpack.c.b16 %v557, %v555
    %v584 = vpack.c.b16 %v558, %v556
    %v585 = vpack.c.b16 %v561, %v559
    %v586 = vpack.c.b16 %v562, %v560
    %v587 = vpack.c.b16 %v565, %v563
    %v588 = vpack.c.b16 %v566, %v564
    %v589 = vpack.c.b16 %v569, %v567
    %v590 = vpack.c.b16 %v570, %v568
    %v591 = vpack.c.b16 %v573, %v571
    %v592 = vpack.c.b16 %v574, %v572
    %v593 = vpack.c.b16 %v577, %v575
    %v594 = vpack.c.b16 %v578, %v576
    %611 = vmatprep.subr.bf16.mxu0 %v580
    %612 = vmatpush1.bf16.msra.mxu0 %v579
    %613 = vmatprep.subr.bf16.mxu0 %v582
    %614 = vmatpush1.bf16.msra.mxu0 %v581
    %615 = vmatprep.subr.bf16.mxu0 %v584
    %616 = vmatpush1.bf16.msra.mxu0 %v583
    %617 = vmatprep.subr.bf16.mxu0 %v586
    %618 = vmatpush1.bf16.msra.mxu0 %v585
    %619 = vmatprep.subr.bf16.mxu0 %v588
    %620 = vmatpush1.bf16.msra.mxu0 %v587
    %621 = vmatprep.subr.bf16.mxu0 %v590
    %622 = vmatpush1.bf16.msra.mxu0 %v589
    %623 = vmatprep.subr.bf16.mxu0 %v592
    %624 = vmatpush1.bf16.msra.mxu0 %v591
    %625 = vmatprep.subr.bf16.mxu0 %v594
    %626 = vmatpush1.bf16.msra.mxu0 %v593
    %627 = vmatprep.subr.bf16.mxu0 0
    %628 = vmatpush1.bf16.msra.mxu0 0
    %629 = vmatprep.subr.bf16.mxu0 0
    %630 = vmatpush1.bf16.msra.mxu0 0
    %631 = vmatprep.subr.bf16.mxu0 0
    %632 = vmatpush1.bf16.msra.mxu0 0
    %633 = vmatprep.subr.bf16.mxu0 0
    %634 = vmatpush1.bf16.msra.mxu0 0
    %635 = vmatprep.subr.bf16.mxu0 0
    %636 = vmatpush1.bf16.msra.mxu0 0
    %637 = vmatprep.subr.bf16.mxu0 0
    %638 = vmatpush1.bf16.msra.mxu0 0
    %639 = vmatprep.subr.bf16.mxu0 0
    %640 = vmatpush1.bf16.msra.mxu0 0
    %641 = vmatprep.subr.bf16.mxu0 0
    %642 = vmatpush1.bf16.msra.mxu0 0
    %643 = vmatprep.mubr.bf16.mxu0 0
    %644 = vmatmul.mubr.bf16.gmra.mrb[0].mxu0 %v529
    %v645 = vpop.f32.mrb[0].mxu0
    %v646 = vadd.f32 0.0, %v645
    %v647 = vpop.f32.mrb[0].mxu0
    %v648 = vadd.f32 0.0, %v647
    %v649 = vpop.f32.mrb[0].mxu0
    %v650 = vadd.f32 0.0, %v649
    %v651 = vpop.f32.mrb[0].mxu0
    %v652 = vadd.f32 0.0, %v651
    %653 = vmatprep.mubr.bf16.mxu0 0
    %654 = vmatmul.mubr.bf16.gmra.mrb[0].mxu0 %v530
    %v655 = vpop.f32.mrb[0].mxu0
    %v656 = vadd.f32 0.0, %v655
    %v657 = vpop.f32.mrb[0].mxu0
    %v658 = vadd.f32 0.0, %v657
    %v659 = vpop.f32.mrb[0].mxu0
    %v660 = vpop.f32.mrb[0].mxu0
    %661 = vdwg.mxu0
    %v662 = vmax.f32 %v646, 0.0
    %v663 = vmax.f32 %v650, 0.0
    %v664 = vmax.f32 %v656, 0.0
    %v665 = vmul.f32 %v662, %v648
    %v666 = vmul.f32 %v663, %v652
    %v667 = vmul.f32 %v664, %v658
    %v668 = vpack.c.bf16 %v666, %v665
    %v669 = vpack.c.bf16 %v667, %v667
    %v686 = vunpack.c.l.b16 %v278
    %v687 = vunpack.c.l.b16 %v279
    %v688 = vunpack.c.l.b16 %v280
    %v689 = vunpack.c.l.b16 %v281
    %v690 = vunpack.c.l.b16 %v282
    %v691 = vunpack.c.l.b16 %v283
    %v692 = vunpack.c.l.b16 %v284
    %v693 = vunpack.c.l.b16 %v285
    %v694 = vunpack.c.l.b16 %v286
    %v695 = vunpack.c.l.b16 %v287
    %v696 = vunpack.c.l.b16 %v288
    %v697 = vunpack.c.l.b16 %v289
    %v698 = vunpack.c.l.b16 %v290
    %v699 = vunpack.c.l.b16 %v291
    %v700 = vunpack.c.l.b16 %v292
    %v701 = vunpack.c.l.b16 %v293
    %v702 = vpack.c.b16 %v687, %v686
    %v703 = vpack.c.b16 %v689, %v688
    %v704 = vpack.c.b16 %v691, %v690
    %v705 = vpack.c.b16 %v693, %v692
    %v706 = vpack.c.b16 %v695, %v694
    %v707 = vpack.c.b16 %v697, %v696
    %v708 = vpack.c.b16 %v699, %v698
    %v709 = vpack.c.b16 %v701, %v700
    %718 = vmatprep.subr.bf16.mxu0 0
    %719 = vmatpush1.bf16.msra.mxu0 %v702
    %720 = vmatprep.subr.bf16.mxu0 0
    %721 = vmatpush1.bf16.msra.mxu0 %v703
    %722 = vmatprep.subr.bf16.mxu0 0
    %723 = vmatpush1.bf16.msra.mxu0 %v704
    %724 = vmatprep.subr.bf16.mxu0 0
    %725 = vmatpush1.bf16.msra.mxu0 %v705
    %726 = vmatprep.subr.bf16.mxu0 0
    %727 = vmatpush1.bf16.msra.mxu0 %v706
    %728 = vmatprep.subr.bf16.mxu0 0
    %729 = vmatpush1.bf16.msra.mxu0 %v707
    %730 = vmatprep.subr.bf16.mxu0 0
    %731 = vmatpush1.bf16.msra.mxu0 %v708
    %732 = vmatprep.subr.bf16.mxu0 0
    %733 = vmatpush1.bf16.msra.mxu0 %v709
    %734 = vmatprep.subr.bf16.mxu0 0
    %735 = vmatpush1.bf16.msra.mxu0 0
    %736 = vmatprep.subr.bf16.mxu0 0
    %737 = vmatpush1.bf16.msra.mxu0 0
    %738 = vmatprep.subr.bf16.mxu0 0
    %739 = vmatpush1.bf16.msra.mxu0 0
    %740 = vmatprep.subr.bf16.mxu0 0
    %741 = vmatpush1.bf16.msra.mxu0 0
    %742 = vmatprep.subr.bf16.mxu0 0
    %743 = vmatpush1.bf16.msra.mxu0 0
    %744 = vmatprep.subr.bf16.mxu0 0
    %745 = vmatpush1.bf16.msra.mxu0 0
    %746 = vmatprep.subr.bf16.mxu0 0
    %747 = vmatpush1.bf16.msra.mxu0 0
    %748 = vmatprep.subr.bf16.mxu0 0
    %749 = vmatpush1.bf16.msra.mxu0 0
    %750 = vmatprep.mubr.bf16.mxu0 0
    %751 = vmatmul.mubr.bf16.gmra.mrb[0].mxu0 %v668
    %v752 = vpop.f32.mrb[0].mxu0
    %v753 = vadd.f32 0.0, %v752
    %v754 = vpop.f32.mrb[0].mxu0
    %v755 = vpop.f32.mrb[0].mxu0
    %v756 = vadd.f32 0.0, %v755
    %v757 = vpop.f32.mrb[0].mxu0
    %758 = vmatprep.mubr.bf16.mxu0 0
    %759 = vmatmul.mubr.bf16.gmra.mrb[0].mxu0 %v669
    %v760 = vpop.f32.mrb[0].mxu0
    %v761 = vadd.f32 0.0, %v760
    %v762 = vpop.f32.mrb[0].mxu0
    %v763 = vpop.f32.mrb[0].mxu0
    %v764 = vpop.f32.mrb[0].mxu0
    %765 = vdwg.mxu0
    %766 = vst [vmem:[#allocation14] sm:$0xff] %v753
    %767 = vst [vmem:[#allocation14 + $0x8] sm:$0xff] %v756
    %768 = vst [vmem:[#allocation14 + $0x10] sm:$0xff] %v761
    // Predicated region
    $region58: #{metagin_forward.28} parent=1 // pred_check
      _
    $region59: #{metagin_forward.28} parent=1 // pred_check_branch
      %770 = sbr.rel (0) target = $region61
    $region60: #{metagin_forward.28} parent=1 // pred_region
      %s772 = ssub.s32 384, 384
      %773 = vsyncadd [#allocation4], %s772
      %s774 = sshll.u32 [#allocation14], 4
      %s775 = int_to_ptr.vmem [resolvable:$true] %s774
      %780 = dma.vmem_to_hbm [thread:$0]  %s775, 384, %s7, [#allocation4], 128, 128, 8
    $region61: #{metagin_forward.28} parent=1 // pred_fallthru
      _
    // Predicated region
    $region62: #{metagin_forward.28} parent=1 // pred_check
      _
    $region63: #{metagin_forward.28} parent=1 // pred_check_branch
      %782 = sbr.rel (0) target = $region65
    $region64: #{metagin_forward.28} parent=1 // pred_region
      %783 = dma.done [#allocation4], 384
    $region65: #{metagin_forward.28} parent=1 // pred_fallthru
      _
    %784 = vsyncpa [#allocation3], 1
    %785 = vsyncpa [#allocation6], 1
    %786 = vsyncpa [#allocation9], 1
    %787 = vsyncpa [#allocation12], 1
    %788 = vsyncpa [#allocation4], 1

// kernel: metagin_forward.29
$region0: #{metagin_forward.29}
  #allocation0 [shape = 'u32[]', space=smem, size = 0x4, offset = 0x4, fixed_abs, tag = 'smem constant byte address 0x4 - core index']
  #allocation1 [shape = 'u32[144,128]{1,0:T(1,128)}', space=vmem, size = 0x12000, scoped, tag = 'internal scratch']
  %s0 = inlined_call_operand.hbm [shape: f32[24,128], index: 0, kind: input, shape index: {}]
  %s1 = inlined_call_operand.hbm [shape: f32[24,128], index: 1, kind: input, shape index: {}]
  %s2 = inlined_call_operand.hbm [shape: bf16[128,128], index: 2, kind: input, shape index: {}]
  %s3 = inlined_call_operand.hbm [shape: f32[1,128], index: 3, kind: input, shape index: {}]
  %s4 = inlined_call_operand.hbm [shape: f32[1,128], index: 4, kind: input, shape index: {}]
  %s5 = inlined_call_operand.hbm [shape: bf16[128,128], index: 5, kind: input, shape index: {}]
  %s6 = inlined_call_operand.hbm [shape: bf16[128,256], index: 6, kind: input, shape index: {}]
  %s7 = inlined_call_operand.hbm [shape: bf16[128,128], index: 7, kind: input, shape index: {}]
  %s8 = inlined_call_operand.hbm [shape: f32[24,128], index: 8, kind: output, shape index: {}]
  %s9 = sld [smem:[#allocation0]]
  $region74: #{metagin_forward.29} parent=0
    _
  %s11 = ssub.s32 1, %s9
  %s12 = scalar_select 0, %s11, %s9
  $region1: #{metagin_forward.29} parent=0
    #allocation2 [shape = 'u8[12288]{0}', space=vmem, size = 0x3000, scoped, tag = 'input window, operand 0, single buffered']
    #allocation3 [shape = 's32[1]{0}', space=sflag, size = 0x4, scoped, tag = 'scoped memory for metagin_forward.29']
    #allocation4 [shape = 's32[1]{0}', space=sflag, size = 0x4, scoped, tag = 'scoped memory for metagin_forward.29']
    #allocation5 [shape = 'u8[12288]{0}', space=vmem, size = 0x3000, scoped, tag = 'input window, operand 1, single buffered']
    #allocation6 [shape = 's32[1]{0}', space=sflag, size = 0x4, scoped, tag = 'scoped memory for metagin_forward.29']
    #allocation7 [shape = 'u8[32768]{0}', space=vmem, size = 0x8000, scoped, tag = 'input window, operand 2, single buffered']
    #allocation8 [shape = 'u8[512]{0}', space=vmem, size = 0x400, scoped, tag = 'input window, operand 3, single buffered']
    #allocation9 [shape = 's32[1]{0}', space=sflag, size = 0x4, scoped, tag = 'scoped memory for metagin_forward.29']
    #allocation10 [shape = 'u8[512]{0}', space=vmem, size = 0x400, scoped, tag = 'input window, operand 4, single buffered']
    #allocation11 [shape = 'u8[32768]{0}', space=vmem, size = 0x8000, scoped, tag = 'input window, operand 5, single buffered']
    #allocation12 [shape = 's32[1]{0}', space=sflag, size = 0x4, scoped, tag = 'scoped memory for metagin_forward.29']
    #allocation13 [shape = 'u8[65536]{0}', space=vmem, size = 0x10000, scoped, tag = 'input window, operand 6, single buffered']
    #allocation14 [shape = 'u8[32768]{0}', space=vmem, size = 0x8000, scoped, tag = 'input window, operand 7, single buffered']
    #allocation15 [shape = 's32[1]{0}', space=sflag, size = 0x4, scoped, tag = 'scoped memory for metagin_forward.29']
    #allocation16 [shape = 'u8[12288]{0}', space=vmem, size = 0x3000, scoped, tag = 'output window, operand 0, single buffered']
    %13 = vsyncpa [#allocation3], 0
    %14 = vsyncpa [#allocation6], 0
    %15 = vsyncpa [#allocation9], 0
    %16 = vsyncpa [#allocation12], 0
    %17 = vsyncpa [#allocation15], 0
    %18 = vsyncpa [#allocation4], 0
    // Predicated region
    $region2: #{metagin_forward.29} parent=1 // pred_check
      _
    $region3: #{metagin_forward.29} parent=1 // pred_check_branch
      %20 = sbr.rel (0) target = $region5
    $region4: #{metagin_forward.29} parent=1 // pred_region
      %s22 = ssub.s32 384, 384
      %23 = vsyncadd [#allocation3], %s22
      %s24 = sshll.u32 [#allocation2], 4
      %s25 = int_to_ptr.vmem [resolvable:$true] %s24
      %30 = dma.hbm_to_vmem [thread:$0]  %s0, 384, %s25, [#allocation3], 128, 128, 8
    $region5: #{metagin_forward.29} parent=1 // pred_fallthru
      _
    // Predicated region
    $region6: #{metagin_forward.29} parent=1 // pred_check
      _
    $region7: #{metagin_forward.29} parent=1 // pred_check_branch
      %32 = sbr.rel (0) target = $region9
    $region8: #{metagin_forward.29} parent=1 // pred_region
      %s34 = ssub.s32 384, 384
      %35 = vsyncadd [#allocation6], %s34
      %s36 = sshll.u32 [#allocation5], 4
      %s37 = int_to_ptr.vmem [resolvable:$true] %s36
      %42 = dma.hbm_to_vmem [thread:$0]  %s1, 384, %s37, [#allocation6], 128, 128, 8
    $region9: #{metagin_forward.29} parent=1 // pred_fallthru
      _
    // Predicated region
    $region10: #{metagin_forward.29} parent=1 // pred_check
      _
    $region11: #{metagin_forward.29} parent=1 // pred_check_branch
      %44 = sbr.rel (0) target = $region13
    $region12: #{metagin_forward.29} parent=1 // pred_region
      %s46 = ssub.s32 1024, 1024
      %47 = vsyncadd [#allocation6], %s46
      %s48 = sshll.u32 [#allocation7], 4
      %s49 = int_to_ptr.vmem [resolvable:$true] %s48
      %54 = dma.hbm_to_vmem [thread:$0]  %s2, 1024, %s49, [#allocation6], 64, 64, 4
    $region13: #{metagin_forward.29} parent=1 // pred_fallthru
      _
    // Predicated region
    $region14: #{metagin_forward.29} parent=1 // pred_check
      _
    $region15: #{metagin_forward.29} parent=1 // pred_check_branch
      %56 = sbr.rel (0) target = $region17
    $region16: #{metagin_forward.29} parent=1 // pred_region
      %s58 = ssub.s32 16, 16
      %59 = vsyncadd [#allocation9], %s58
      %s61 = sshll.u32 [#allocation8], 4
      %s62 = int_to_ptr.vmem [resolvable:$true] %s61
      %64 = dma.hbm_to_vmem [thread:$0]  %s3, 16, %s62, [#allocation9]
    $region17: #{metagin_forward.29} parent=1 // pred_fallthru
      _
    // Predicated region
    $region18: #{metagin_forward.29} parent=1 // pred_check
      _
    $region19: #{metagin_forward.29} parent=1 // pred_check_branch
      %66 = sbr.rel (0) target = $region21
    $region20: #{metagin_forward.29} parent=1 // pred_region
      %s68 = ssub.s32 16, 16
      %69 = vsyncadd [#allocation9], %s68
      %s71 = sshll.u32 [#allocation10], 4
      %s72 = int_to_ptr.vmem [resolvable:$true] %s71
      %74 = dma.hbm_to_vmem [thread:$0]  %s4, 16, %s72, [#allocation9]
    $region21: #{metagin_forward.29} parent=1 // pred_fallthru
      _
    // Predicated region
    $region22: #{metagin_forward.29} parent=1 // pred_check
      _
    $region23: #{metagin_forward.29} parent=1 // pred_check_branch
      %76 = sbr.rel (0) target = $region25
    $region24: #{metagin_forward.29} parent=1 // pred_region
      %s78 = ssub.s32 1024, 1024
      %79 = vsyncadd [#allocation12], %s78
      %s80 = sshll.u32 [#allocation11], 4
      %s81 = int_to_ptr.vmem [resolvable:$true] %s80
      %86 = dma.hbm_to_vmem [thread:$0]  %s5, 1024, %s81, [#allocation12], 64, 64, 4
    $region25: #{metagin_forward.29} parent=1 // pred_fallthru
      _
    // Predicated region
    $region26: #{metagin_forward.29} parent=1 // pred_check
      _
    $region27: #{metagin_forward.29} parent=1 // pred_check_branch
      %88 = sbr.rel (0) target = $region29
    $region28: #{metagin_forward.29} parent=1 // pred_region
      %s90 = ssub.s32 2048, 2048
      %91 = vsyncadd [#allocation12], %s90
      %s92 = sshll.u32 [#allocation13], 4
      %s93 = int_to_ptr.vmem [resolvable:$true] %s92
      %98 = dma.hbm_to_vmem [thread:$0]  %s6, 2048, %s93, [#allocation12], 128, 128, 8
    $region29: #{metagin_forward.29} parent=1 // pred_fallthru
      _
    // Predicated region
    $region30: #{metagin_forward.29} parent=1 // pred_check
      _
    $region31: #{metagin_forward.29} parent=1 // pred_check_branch
      %100 = sbr.rel (0) target = $region33
    $region32: #{metagin_forward.29} parent=1 // pred_region
      %s102 = ssub.s32 1024, 1024
      %103 = vsyncadd [#allocation15], %s102
      %s104 = sshll.u32 [#allocation14], 4
      %s105 = int_to_ptr.vmem [resolvable:$true] %s104
      %110 = dma.hbm_to_vmem [thread:$0]  %s7, 1024, %s105, [#allocation15], 64, 64, 4
    $region33: #{metagin_forward.29} parent=1 // pred_fallthru
      _
    // Predicated region
    $region34: #{metagin_forward.29} parent=1 // pred_check
      _
    $region35: #{metagin_forward.29} parent=1 // pred_check_branch
      %112 = sbr.rel (0) target = $region37
    $region36: #{metagin_forward.29} parent=1 // pred_region
      %113 = dma.done [#allocation3], 384
    $region37: #{metagin_forward.29} parent=1 // pred_fallthru
      _
    // Predicated region
    $region38: #{metagin_forward.29} parent=1 // pred_check
      _
    $region39: #{metagin_forward.29} parent=1 // pred_check_branch
      %115 = sbr.rel (0) target = $region41
    $region40: #{metagin_forward.29} parent=1 // pred_region
      %116 = dma.done [#allocation6], 384
    $region41: #{metagin_forward.29} parent=1 // pred_fallthru
      _
    // Predicated region
    $region42: #{metagin_forward.29} parent=1 // pred_check
      _
    $region43: #{metagin_forward.29} parent=1 // pred_check_branch
      %118 = sbr.rel (0) target = $region45
    $region44: #{metagin_forward.29} parent=1 // pred_region
      %119 = dma.done [#allocation6], 1024
    $region45: #{metagin_forward.29} parent=1 // pred_fallthru
      _
    // Predicated region
    $region46: #{metagin_forward.29} parent=1 // pred_check
      _
    $region47: #{metagin_forward.29} parent=1 // pred_check_branch
      %121 = sbr.rel (0) target = $region49
    $region48: #{metagin_forward.29} parent=1 // pred_region
      %122 = dma.done [#allocation9], 16
    $region49: #{metagin_forward.29} parent=1 // pred_fallthru
      _
    // Predicated region
    $region50: #{metagin_forward.29} parent=1 // pred_check
      _
    $region51: #{metagin_forward.29} parent=1 // pred_check_branch
      %124 = sbr.rel (0) target = $region53
    $region52: #{metagin_forward.29} parent=1 // pred_region
      %125 = dma.done [#allocation9], 16
    $region53: #{metagin_forward.29} parent=1 // pred_fallthru
      _
    // Predicated region
    $region54: #{metagin_forward.29} parent=1 // pred_check
      _
    $region55: #{metagin_forward.29} parent=1 // pred_check_branch
      %127 = sbr.rel (0) target = $region57
    $region56: #{metagin_forward.29} parent=1 // pred_region
      %128 = dma.done [#allocation12], 1024
    $region57: #{metagin_forward.29} parent=1 // pred_fallthru
      _
    // Predicated region
    $region58: #{metagin_forward.29} parent=1 // pred_check
      _
    $region59: #{metagin_forward.29} parent=1 // pred_check_branch
      %130 = sbr.rel (0) target = $region61
    $region60: #{metagin_forward.29} parent=1 // pred_region
      %131 = dma.done [#allocation12], 2048
    $region61: #{metagin_forward.29} parent=1 // pred_fallthru
      _
    // Predicated region
    $region62: #{metagin_forward.29} parent=1 // pred_check
      _
    $region63: #{metagin_forward.29} parent=1 // pred_check_branch
      %133 = sbr.rel (0) target = $region65
    $region64: #{metagin_forward.29} parent=1 // pred_region
      %134 = dma.done [#allocation15], 1024
    $region65: #{metagin_forward.29} parent=1 // pred_fallthru
      _
    %v136 = vld [vmem:[#allocation2] sm:$0xff]
    %v137 = vld [vmem:[#allocation2 + $0x8] sm:$0xff]
    %v138 = vld [vmem:[#allocation2 + $0x10] sm:$0xff]
    %v139 = vld [vmem:[#allocation5] sm:$0xff]
    %v140 = vld [vmem:[#allocation5 + $0x8] sm:$0xff]
    %v141 = vld [vmem:[#allocation5 + $0x10] sm:$0xff]
    %v142 = vld [vmem:[#allocation7] sm:$0xf]
    %v143 = vld [vmem:[#allocation7 + $0x4] sm:$0xf]
    %v144 = vld [vmem:[#allocation7 + $0x8] sm:$0xf]
    %v145 = vld [vmem:[#allocation7 + $0xc] sm:$0xf]
    %v146 = vld [vmem:[#allocation7 + $0x10] sm:$0xf]
    %v147 = vld [vmem:[#allocation7 + $0x14] sm:$0xf]
    %v148 = vld [vmem:[#allocation7 + $0x18] sm:$0xf]
    %v149 = vld [vmem:[#allocation7 + $0x1c] sm:$0xf]
    %v150 = vld [vmem:[#allocation7 + $0x20] sm:$0xf]
    %v151 = vld [vmem:[#allocation7 + $0x24] sm:$0xf]
    %v152 = vld [vmem:[#allocation7 + $0x28] sm:$0xf]
    %v153 = vld [vmem:[#allocation7 + $0x2c] sm:$0xf]
    %v154 = vld [vmem:[#allocation7 + $0x30] sm:$0xf]
    %v155 = vld [vmem:[#allocation7 + $0x34] sm:$0xf]
    %v156 = vld [vmem:[#allocation7 + $0x38] sm:$0xf]
    %v157 = vld [vmem:[#allocation7 + $0x3c] sm:$0xf]
    %v158 = vld [vmem:[#allocation8] sm:$0x1]
    %v159 = vld [vmem:[#allocation10] sm:$0x1]
    %v160 = vpack.c.bf16 %v140, %v139
    %v161 = vpack.c.bf16 %v141, %v141
    %v178 = vunpack.c.l.b16 %v142
    %v179 = vunpack.c.l.b16 %v143
    %v180 = vunpack.c.l.b16 %v144
    %v181 = vunpack.c.l.b16 %v145
    %v182 = vunpack.c.l.b16 %v146
    %v183 = vunpack.c.l.b16 %v147
    %v184 = vunpack.c.l.b16 %v148
    %v185 = vunpack.c.l.b16 %v149
    %v186 = vunpack.c.l.b16 %v150
    %v187 = vunpack.c.l.b16 %v151
    %v188 = vunpack.c.l.b16 %v152
    %v189 = vunpack.c.l.b16 %v153
    %v190 = vunpack.c.l.b16 %v154
    %v191 = vunpack.c.l.b16 %v155
    %v192 = vunpack.c.l.b16 %v156
    %v193 = vunpack.c.l.b16 %v157
    %v194 = vpack.c.b16 %v179, %v178
    %v195 = vpack.c.b16 %v181, %v180
    %v196 = vpack.c.b16 %v183, %v182
    %v197 = vpack.c.b16 %v185, %v184
    %v198 = vpack.c.b16 %v187, %v186
    %v199 = vpack.c.b16 %v189, %v188
    %v200 = vpack.c.b16 %v191, %v190
    %v201 = vpack.c.b16 %v193, %v192
    %210 = vmatprep.subr.bf16.mxu0 0
    %211 = vmatpush1.bf16.msra.mxu0 %v194
    %212 = vmatprep.subr.bf16.mxu0 0
    %213 = vmatpush1.bf16.msra.mxu0 %v195
    %214 = vmatprep.subr.bf16.mxu0 0
    %215 = vmatpush1.bf16.msra.mxu0 %v196
    %216 = vmatprep.subr.bf16.mxu0 0
    %217 = vmatpush1.bf16.msra.mxu0 %v197
    %218 = vmatprep.subr.bf16.mxu0 0
    %219 = vmatpush1.bf16.msra.mxu0 %v198
    %220 = vmatprep.subr.bf16.mxu0 0
    %221 = vmatpush1.bf16.msra.mxu0 %v199
    %222 = vmatprep.subr.bf16.mxu0 0
    %223 = vmatpush1.bf16.msra.mxu0 %v200
    %224 = vmatprep.subr.bf16.mxu0 0
    %225 = vmatpush1.bf16.msra.mxu0 %v201
    %226 = vmatprep.subr.bf16.mxu0 0
    %227 = vmatpush1.bf16.msra.mxu0 0
    %228 = vmatprep.subr.bf16.mxu0 0
    %229 = vmatpush1.bf16.msra.mxu0 0
    %230 = vmatprep.subr.bf16.mxu0 0
    %231 = vmatpush1.bf16.msra.mxu0 0
    %232 = vmatprep.subr.bf16.mxu0 0
    %233 = vmatpush1.bf16.msra.mxu0 0
    %234 = vmatprep.subr.bf16.mxu0 0
    %235 = vmatpush1.bf16.msra.mxu0 0
    %236 = vmatprep.subr.bf16.mxu0 0
    %237 = vmatpush1.bf16.msra.mxu0 0
    %238 = vmatprep.subr.bf16.mxu0 0
    %239 = vmatpush1.bf16.msra.mxu0 0
    %240 = vmatprep.subr.bf16.mxu0 0
    %241 = vmatpush1.bf16.msra.mxu0 0
    %242 = vmatprep.mubr.bf16.mxu0 0
    %243 = vmatmul.mubr.bf16.gmra.mrb[0].mxu0 %v160
    %v244 = vpop.f32.mrb[0].mxu0
    %v245 = vadd.f32 0.0, %v244
    %v246 = vpop.f32.mrb[0].mxu0
    %v247 = vpop.f32.mrb[0].mxu0
    %v248 = vadd.f32 0.0, %v247
    %v249 = vpop.f32.mrb[0].mxu0
    %250 = vmatprep.mubr.bf16.mxu0 0
    %251 = vmatmul.mubr.bf16.gmra.mrb[0].mxu0 %v161
    %v252 = vpop.f32.mrb[0].mxu0
    %v253 = vadd.f32 0.0, %v252
    %v254 = vpop.f32.mrb[0].mxu0
    %v255 = vpop.f32.mrb[0].mxu0
    %v256 = vpop.f32.mrb[0].mxu0
    %257 = vdwg.mxu0
    %vm258 = vcmask 261120
    %v259 = vsel %vm258, %v245, 0.0
    %260 = vadd.xlane.f32.xlu0 %v259
    %v261 = vpop.xlane.xlu0 %260
    %v262 = vsel %vm258, %v248, 0.0
    %263 = vadd.xlane.f32.xlu0 %v262
    %v264 = vpop.xlane.xlu0 %263
    %v265 = vsel %vm258, %v253, 0.0
    %266 = vadd.xlane.f32.xlu0 %v265
    %v267 = vpop.xlane.xlu0 %266
    %v268 = vrcp.pop 32.0
    %v269 = vmul.f32 %v261, %v268
    %v270 = vmul.f32 %v264, %v268
    %v271 = vmul.f32 %v267, %v268
    %v272 = vsub.f32 %v245, %v269
    %v273 = vsub.f32 %v248, %v270
    %v274 = vsub.f32 %v253, %v271
    %v275 = vmul.f32 %v272, %v272
    %v276 = vmul.f32 %v273, %v273
    %v277 = vmul.f32 %v274, %v274
    %v278 = vsel %vm258, %v275, 0.0
    %279 = vadd.xlane.f32.xlu0 %v278
    %v280 = vpop.xlane.xlu0 %279
    %v281 = vsel %vm258, %v276, 0.0
    %282 = vadd.xlane.f32.xlu0 %v281
    %v283 = vpop.xlane.xlu0 %282
    %v284 = vsel %vm258, %v277, 0.0
    %285 = vadd.xlane.f32.xlu0 %v284
    %v286 = vpop.xlane.xlu0 %285
    %v287 = vmul.f32 %v280, %v268
    %v288 = vmul.f32 %v283, %v268
    %v289 = vmul.f32 %v286, %v268
    %v290 = vadd.f32 %v287, 1e-05
    %v291 = vadd.f32 %v288, 1e-05
    %v292 = vadd.f32 %v289, 1e-05
    %v293 = vrsqrt.pop %v290
    %v294 = vrsqrt.pop %v291
    %v295 = vrsqrt.pop %v292
    %v296 = vmul.f32 %v272, %v293
    %v297 = vmul.f32 %v273, %v294
    %v298 = vmul.f32 %v274, %v295
    %302 = vrot.lane.b32.xlu0 %v245, 96
    %v303 = vpop.permute.xlu0 %302
    %304 = vrot.lane.b32.xlu0 %v248, 96
    %v305 = vpop.permute.xlu0 %304
    %306 = vrot.lane.b32.xlu0 %v253, 96
    %v307 = vpop.permute.xlu0 %306
    %v311 = vsel %vm258, %v303, 0.0
    %312 = vadd.xlane.f32.xlu0 %v311
    %v313 = vpop.xlane.xlu0 %312
    %v314 = vsel %vm258, %v305, 0.0
    %315 = vadd.xlane.f32.xlu0 %v314
    %v316 = vpop.xlane.xlu0 %315
    %v317 = vsel %vm258, %v307, 0.0
    %318 = vadd.xlane.f32.xlu0 %v317
    %v319 = vpop.xlane.xlu0 %318
    %v320 = vmul.f32 %v313, %v268
    %v321 = vmul.f32 %v316, %v268
    %v322 = vmul.f32 %v319, %v268
    %v323 = vsub.f32 %v245, %v320
    %v324 = vsub.f32 %v248, %v321
    %v325 = vsub.f32 %v253, %v322
    %v326 = vmul.f32 %v323, %v323
    %v327 = vmul.f32 %v324, %v324
    %v328 = vmul.f32 %v325, %v325
    %332 = vrot.lane.b32.xlu0 %v326, 96
    %v333 = vpop.permute.xlu0 %332
    %334 = vrot.lane.b32.xlu0 %v327, 96
    %v335 = vpop.permute.xlu0 %334
    %336 = vrot.lane.b32.xlu0 %v328, 96
    %v337 = vpop.permute.xlu0 %336
    %v341 = vsel %vm258, %v333, 0.0
    %342 = vadd.xlane.f32.xlu0 %v341
    %v343 = vpop.xlane.xlu0 %342
    %v344 = vsel %vm258, %v335, 0.0
    %345 = vadd.xlane.f32.xlu0 %v344
    %v346 = vpop.xlane.xlu0 %345
    %v347 = vsel %vm258, %v337, 0.0
    %348 = vadd.xlane.f32.xlu0 %v347
    %v349 = vpop.xlane.xlu0 %348
    %v350 = vmul.f32 %v343, %v268
    %v351 = vmul.f32 %v346, %v268
    %v352 = vmul.f32 %v349, %v268
    %v353 = vadd.f32 %v350, 1e-05
    %v354 = vadd.f32 %v351, 1e-05
    %v355 = vadd.f32 %v352, 1e-05
    %v356 = vrsqrt.pop %v353
    %v357 = vrsqrt.pop %v354
    %v358 = vrsqrt.pop %v355
    %v359 = vmul.f32 %v323, %v356
    %v360 = vmul.f32 %v324, %v357
    %v361 = vmul.f32 %v325, %v358
    %362 = vrot.lane.b32.xlu0 %v245, 64
    %v363 = vpop.permute.xlu0 %362
    %364 = vrot.lane.b32.xlu0 %v248, 64
    %v365 = vpop.permute.xlu0 %364
    %366 = vrot.lane.b32.xlu0 %v253, 64
    %v367 = vpop.permute.xlu0 %366
    %v371 = vsel %vm258, %v363, 0.0
    %372 = vadd.xlane.f32.xlu0 %v371
    %v373 = vpop.xlane.xlu0 %372
    %v374 = vsel %vm258, %v365, 0.0
    %375 = vadd.xlane.f32.xlu0 %v374
    %v376 = vpop.xlane.xlu0 %375
    %v377 = vsel %vm258, %v367, 0.0
    %378 = vadd.xlane.f32.xlu0 %v377
    %v379 = vpop.xlane.xlu0 %378
    %v380 = vmul.f32 %v373, %v268
    %v381 = vmul.f32 %v376, %v268
    %v382 = vmul.f32 %v379, %v268
    %v383 = vsub.f32 %v245, %v380
    %v384 = vsub.f32 %v248, %v381
    %v385 = vsub.f32 %v253, %v382
    %v386 = vmul.f32 %v383, %v383
    %v387 = vmul.f32 %v384, %v384
    %v388 = vmul.f32 %v385, %v385
    %392 = vrot.lane.b32.xlu0 %v386, 64
    %v393 = vpop.permute.xlu0 %392
    %394 = vrot.lane.b32.xlu0 %v387, 64
    %v395 = vpop.permute.xlu0 %394
    %396 = vrot.lane.b32.xlu0 %v388, 64
    %v397 = vpop.permute.xlu0 %396
    %v401 = vsel %vm258, %v393, 0.0
    %402 = vadd.xlane.f32.xlu0 %v401
    %v403 = vpop.xlane.xlu0 %402
    %v404 = vsel %vm258, %v395, 0.0
    %405 = vadd.xlane.f32.xlu0 %v404
    %v406 = vpop.xlane.xlu0 %405
    %v407 = vsel %vm258, %v397, 0.0
    %408 = vadd.xlane.f32.xlu0 %v407
    %v409 = vpop.xlane.xlu0 %408
    %v410 = vmul.f32 %v403, %v268
    %v411 = vmul.f32 %v406, %v268
    %v412 = vmul.f32 %v409, %v268
    %v413 = vadd.f32 %v410, 1e-05
    %v414 = vadd.f32 %v411, 1e-05
    %v415 = vadd.f32 %v412, 1e-05
    %v416 = vrsqrt.pop %v413
    %v417 = vrsqrt.pop %v414
    %v418 = vrsqrt.pop %v415
    %v419 = vmul.f32 %v383, %v416
    %v420 = vmul.f32 %v384, %v417
    %v421 = vmul.f32 %v385, %v418
    %422 = vrot.lane.b32.xlu0 %v245, 32
    %v423 = vpop.permute.xlu0 %422
    %424 = vrot.lane.b32.xlu0 %v248, 32
    %v425 = vpop.permute.xlu0 %424
    %426 = vrot.lane.b32.xlu0 %v253, 32
    %v427 = vpop.permute.xlu0 %426
    %v431 = vsel %vm258, %v423, 0.0
    %432 = vadd.xlane.f32.xlu0 %v431
    %v433 = vpop.xlane.xlu0 %432
    %v434 = vsel %vm258, %v425, 0.0
    %435 = vadd.xlane.f32.xlu0 %v434
    %v436 = vpop.xlane.xlu0 %435
    %v437 = vsel %vm258, %v427, 0.0
    %438 = vadd.xlane.f32.xlu0 %v437
    %v439 = vpop.xlane.xlu0 %438
    %v440 = vmul.f32 %v433, %v268
    %v441 = vmul.f32 %v436, %v268
    %v442 = vmul.f32 %v439, %v268
    %v443 = vsub.f32 %v245, %v440
    %v444 = vsub.f32 %v248, %v441
    %v445 = vsub.f32 %v253, %v442
    %v446 = vmul.f32 %v443, %v443
    %v447 = vmul.f32 %v444, %v444
    %v448 = vmul.f32 %v445, %v445
    %452 = vrot.lane.b32.xlu0 %v446, 32
    %v453 = vpop.permute.xlu0 %452
    %454 = vrot.lane.b32.xlu0 %v447, 32
    %v455 = vpop.permute.xlu0 %454
    %456 = vrot.lane.b32.xlu0 %v448, 32
    %v457 = vpop.permute.xlu0 %456
    %v461 = vsel %vm258, %v453, 0.0
    %462 = vadd.xlane.f32.xlu0 %v461
    %v463 = vpop.xlane.xlu0 %462
    %v464 = vsel %vm258, %v455, 0.0
    %465 = vadd.xlane.f32.xlu0 %v464
    %v466 = vpop.xlane.xlu0 %465
    %v467 = vsel %vm258, %v457, 0.0
    %468 = vadd.xlane.f32.xlu0 %v467
    %v469 = vpop.xlane.xlu0 %468
    %v470 = vmul.f32 %v463, %v268
    %v471 = vmul.f32 %v466, %v268
    %v472 = vmul.f32 %v469, %v268
    %v473 = vadd.f32 %v470, 1e-05
    %v474 = vadd.f32 %v471, 1e-05
    %v475 = vadd.f32 %v472, 1e-05
    %v476 = vrsqrt.pop %v473
    %v477 = vrsqrt.pop %v474
    %v478 = vrsqrt.pop %v475
    %v479 = vmul.f32 %v443, %v476
    %v480 = vmul.f32 %v444, %v477
    %v481 = vmul.f32 %v445, %v478
    %v482 = vsel %vm258, %v296, %v359
    %v483 = vsel %vm258, %v297, %v360
    %v484 = vsel %vm258, %v298, %v361
    %vm485 = vcmask 523264
    %v486 = vsel %vm485, %v482, %v419
    %v487 = vsel %vm485, %v483, %v420
    %v488 = vsel %vm485, %v484, %v421
    %vm489 = vcmask 785408
    %v490 = vsel %vm489, %v486, %v479
    %v491 = vsel %vm489, %v487, %v480
    %v492 = vsel %vm489, %v488, %v481
    %v494 = vlaneseq
    %v495 = vshrl.u32 %v494, 7
    %v496 = vsub.s32 0, %v495
    %v497 = vrot.slane %v158, %v496
    %v499 = vmul.f32 %v497, %v490
    %v500 = vmul.f32 %v497, %v491
    %v501 = vmul.f32 %v497, %v492
    %v503 = vlaneseq
    %v504 = vshrl.u32 %v503, 7
    %v505 = vsub.s32 0, %v504
    %v506 = vrot.slane %v159, %v505
    %v508 = vadd.f32 %v499, %v506
    %v509 = vadd.f32 %v500, %v506
    %v510 = vadd.f32 %v501, %v506
    %v511 = vld [vmem:[#allocation11] sm:$0xf]
    %v512 = vld [vmem:[#allocation11 + $0x4] sm:$0xf]
    %v513 = vld [vmem:[#allocation11 + $0x8] sm:$0xf]
    %v514 = vld [vmem:[#allocation11 + $0xc] sm:$0xf]
    %v515 = vld [vmem:[#allocation11 + $0x10] sm:$0xf]
    %v516 = vld [vmem:[#allocation11 + $0x14] sm:$0xf]
    %v517 = vld [vmem:[#allocation11 + $0x18] sm:$0xf]
    %v518 = vld [vmem:[#allocation11 + $0x1c] sm:$0xf]
    %v519 = vld [vmem:[#allocation11 + $0x20] sm:$0xf]
    %v520 = vld [vmem:[#allocation11 + $0x24] sm:$0xf]
    %v521 = vld [vmem:[#allocation11 + $0x28] sm:$0xf]
    %v522 = vld [vmem:[#allocation11 + $0x2c] sm:$0xf]
    %v523 = vld [vmem:[#allocation11 + $0x30] sm:$0xf]
    %v524 = vld [vmem:[#allocation11 + $0x34] sm:$0xf]
    %v525 = vld [vmem:[#allocation11 + $0x38] sm:$0xf]
    %v526 = vld [vmem:[#allocation11 + $0x3c] sm:$0xf]
    %v527 = vpack.c.bf16 %v137, %v136
    %v528 = vpack.c.bf16 %v138, %v138
    %v545 = vunpack.c.l.b16 %v511
    %v546 = vunpack.c.l.b16 %v512
    %v547 = vunpack.c.l.b16 %v513
    %v548 = vunpack.c.l.b16 %v514
    %v549 = vunpack.c.l.b16 %v515
    %v550 = vunpack.c.l.b16 %v516
    %v551 = vunpack.c.l.b16 %v517
    %v552 = vunpack.c.l.b16 %v518
    %v553 = vunpack.c.l.b16 %v519
    %v554 = vunpack.c.l.b16 %v520
    %v555 = vunpack.c.l.b16 %v521
    %v556 = vunpack.c.l.b16 %v522
    %v557 = vunpack.c.l.b16 %v523
    %v558 = vunpack.c.l.b16 %v524
    %v559 = vunpack.c.l.b16 %v525
    %v560 = vunpack.c.l.b16 %v526
    %v561 = vpack.c.b16 %v546, %v545
    %v562 = vpack.c.b16 %v548, %v547
    %v563 = vpack.c.b16 %v550, %v549
    %v564 = vpack.c.b16 %v552, %v551
    %v565 = vpack.c.b16 %v554, %v553
    %v566 = vpack.c.b16 %v556, %v555
    %v567 = vpack.c.b16 %v558, %v557
    %v568 = vpack.c.b16 %v560, %v559
    %577 = vmatprep.subr.bf16.mxu0 0
    %578 = vmatpush1.bf16.msra.mxu0 %v561
    %579 = vmatprep.subr.bf16.mxu0 0
    %580 = vmatpush1.bf16.msra.mxu0 %v562
    %581 = vmatprep.subr.bf16.mxu0 0
    %582 = vmatpush1.bf16.msra.mxu0 %v563
    %583 = vmatprep.subr.bf16.mxu0 0
    %584 = vmatpush1.bf16.msra.mxu0 %v564
    %585 = vmatprep.subr.bf16.mxu0 0
    %586 = vmatpush1.bf16.msra.mxu0 %v565
    %587 = vmatprep.subr.bf16.mxu0 0
    %588 = vmatpush1.bf16.msra.mxu0 %v566
    %589 = vmatprep.subr.bf16.mxu0 0
    %590 = vmatpush1.bf16.msra.mxu0 %v567
    %591 = vmatprep.subr.bf16.mxu0 0
    %592 = vmatpush1.bf16.msra.mxu0 %v568
    %593 = vmatprep.subr.bf16.mxu0 0
    %594 = vmatpush1.bf16.msra.mxu0 0
    %595 = vmatprep.subr.bf16.mxu0 0
    %596 = vmatpush1.bf16.msra.mxu0 0
    %597 = vmatprep.subr.bf16.mxu0 0
    %598 = vmatpush1.bf16.msra.mxu0 0
    %599 = vmatprep.subr.bf16.mxu0 0
    %600 = vmatpush1.bf16.msra.mxu0 0
    %601 = vmatprep.subr.bf16.mxu0 0
    %602 = vmatpush1.bf16.msra.mxu0 0
    %603 = vmatprep.subr.bf16.mxu0 0
    %604 = vmatpush1.bf16.msra.mxu0 0
    %605 = vmatprep.subr.bf16.mxu0 0
    %606 = vmatpush1.bf16.msra.mxu0 0
    %607 = vmatprep.subr.bf16.mxu0 0
    %608 = vmatpush1.bf16.msra.mxu0 0
    %609 = vmatprep.mubr.bf16.mxu0 0
    %610 = vmatmul.mubr.bf16.gmra.mrb[0].mxu0 %v527
    %v611 = vpop.f32.mrb[0].mxu0
    %v612 = vadd.f32 0.0, %v611
    %v613 = vpop.f32.mrb[0].mxu0
    %v614 = vpop.f32.mrb[0].mxu0
    %v615 = vadd.f32 0.0, %v614
    %v616 = vpop.f32.mrb[0].mxu0
    %617 = vmatprep.mubr.bf16.mxu0 0
    %618 = vmatmul.mubr.bf16.gmra.mrb[0].mxu0 %v528
    %v619 = vpop.f32.mrb[0].mxu0
    %v620 = vadd.f32 0.0, %v619
    %v621 = vpop.f32.mrb[0].mxu0
    %v622 = vpop.f32.mrb[0].mxu0
    %v623 = vpop.f32.mrb[0].mxu0
    %624 = vdwg.mxu0
    %v625 = vld [vmem:[#allocation13] sm:$0xff]
    %v626 = vld [vmem:[#allocation13 + $0x8] sm:$0xff]
    %v627 = vld [vmem:[#allocation13 + $0x10] sm:$0xff]
    %v628 = vld [vmem:[#allocation13 + $0x18] sm:$0xff]
    %v629 = vld [vmem:[#allocation13 + $0x20] sm:$0xff]
    %v630 = vld [vmem:[#allocation13 + $0x28] sm:$0xff]
    %v631 = vld [vmem:[#allocation13 + $0x30] sm:$0xff]
    %v632 = vld [vmem:[#allocation13 + $0x38] sm:$0xff]
    %v633 = vld [vmem:[#allocation13 + $0x40] sm:$0xff]
    %v634 = vld [vmem:[#allocation13 + $0x48] sm:$0xff]
    %v635 = vld [vmem:[#allocation13 + $0x50] sm:$0xff]
    %v636 = vld [vmem:[#allocation13 + $0x58] sm:$0xff]
    %v637 = vld [vmem:[#allocation13 + $0x60] sm:$0xff]
    %v638 = vld [vmem:[#allocation13 + $0x68] sm:$0xff]
    %v639 = vld [vmem:[#allocation13 + $0x70] sm:$0xff]
    %v640 = vld [vmem:[#allocation13 + $0x78] sm:$0xff]
    %v641 = vld [vmem:[#allocation14] sm:$0xf]
    %v642 = vld [vmem:[#allocation14 + $0x4] sm:$0xf]
    %v643 = vld [vmem:[#allocation14 + $0x8] sm:$0xf]
    %v644 = vld [vmem:[#allocation14 + $0xc] sm:$0xf]
    %v645 = vld [vmem:[#allocation14 + $0x10] sm:$0xf]
    %v646 = vld [vmem:[#allocation14 + $0x14] sm:$0xf]
    %v647 = vld [vmem:[#allocation14 + $0x18] sm:$0xf]
    %v648 = vld [vmem:[#allocation14 + $0x1c] sm:$0xf]
    %v649 = vld [vmem:[#allocation14 + $0x20] sm:$0xf]
    %v650 = vld [vmem:[#allocation14 + $0x24] sm:$0xf]
    %v651 = vld [vmem:[#allocation14 + $0x28] sm:$0xf]
    %v652 = vld [vmem:[#allocation14 + $0x2c] sm:$0xf]
    %v653 = vld [vmem:[#allocation14 + $0x30] sm:$0xf]
    %v654 = vld [vmem:[#allocation14 + $0x34] sm:$0xf]
    %v655 = vld [vmem:[#allocation14 + $0x38] sm:$0xf]
    %v656 = vld [vmem:[#allocation14 + $0x3c] sm:$0xf]
    %v657 = vsel %vm258, %v612, 0.0
    %658 = vadd.xlane.f32.xlu0 %v657
    %v659 = vpop.xlane.xlu0 %658
    %v660 = vsel %vm258, %v615, 0.0
    %661 = vadd.xlane.f32.xlu0 %v660
    %v662 = vpop.xlane.xlu0 %661
    %v663 = vsel %vm258, %v620, 0.0
    %664 = vadd.xlane.f32.xlu0 %v663
    %v665 = vpop.xlane.xlu0 %664
    %v666 = vmul.f32 %v659, %v268
    %v667 = vmul.f32 %v662, %v268
    %v668 = vmul.f32 %v665, %v268
    %v669 = vsub.f32 %v612, %v666
    %v670 = vsub.f32 %v615, %v667
    %v671 = vsub.f32 %v620, %v668
    %v672 = vmul.f32 %v669, %v669
    %v673 = vmul.f32 %v670, %v670
    %v674 = vmul.f32 %v671, %v671
    %v675 = vsel %vm258, %v672, 0.0
    %676 = vadd.xlane.f32.xlu0 %v675
    %v677 = vpop.xlane.xlu0 %676
    %v678 = vsel %vm258, %v673, 0.0
    %679 = vadd.xlane.f32.xlu0 %v678
    %v680 = vpop.xlane.xlu0 %679
    %v681 = vsel %vm258, %v674, 0.0
    %682 = vadd.xlane.f32.xlu0 %v681
    %v683 = vpop.xlane.xlu0 %682
    %v684 = vmul.f32 %v677, %v268
    %v685 = vmul.f32 %v680, %v268
    %v686 = vmul.f32 %v683, %v268
    %v687 = vadd.f32 %v684, 1e-05
    %v688 = vadd.f32 %v685, 1e-05
    %v689 = vadd.f32 %v686, 1e-05
    %v690 = vrsqrt.pop %v687
    %v691 = vrsqrt.pop %v688
    %v692 = vrsqrt.pop %v689
    %v693 = vmul.f32 %v669, %v690
    %v694 = vmul.f32 %v670, %v691
    %v695 = vmul.f32 %v671, %v692
    %699 = vrot.lane.b32.xlu0 %v612, 96
    %v700 = vpop.permute.xlu0 %699
    %701 = vrot.lane.b32.xlu0 %v615, 96
    %v702 = vpop.permute.xlu0 %701
    %703 = vrot.lane.b32.xlu0 %v620, 96
    %v704 = vpop.permute.xlu0 %703
    %v708 = vsel %vm258, %v700, 0.0
    %709 = vadd.xlane.f32.xlu0 %v708
    %v710 = vpop.xlane.xlu0 %709
    %v711 = vsel %vm258, %v702, 0.0
    %712 = vadd.xlane.f32.xlu0 %v711
    %v713 = vpop.xlane.xlu0 %712
    %v714 = vsel %vm258, %v704, 0.0
    %715 = vadd.xlane.f32.xlu0 %v714
    %v716 = vpop.xlane.xlu0 %715
    %v717 = vmul.f32 %v710, %v268
    %v718 = vmul.f32 %v713, %v268
    %v719 = vmul.f32 %v716, %v268
    %v720 = vsub.f32 %v612, %v717
    %v721 = vsub.f32 %v615, %v718
    %v722 = vsub.f32 %v620, %v719
    %v723 = vmul.f32 %v720, %v720
    %v724 = vmul.f32 %v721, %v721
    %v725 = vmul.f32 %v722, %v722
    %729 = vrot.lane.b32.xlu0 %v723, 96
    %v730 = vpop.permute.xlu0 %729
    %731 = vrot.lane.b32.xlu0 %v724, 96
    %v732 = vpop.permute.xlu0 %731
    %733 = vrot.lane.b32.xlu0 %v725, 96
    %v734 = vpop.permute.xlu0 %733
    %v738 = vsel %vm258, %v730, 0.0
    %739 = vadd.xlane.f32.xlu0 %v738
    %v740 = vpop.xlane.xlu0 %739
    %v741 = vsel %vm258, %v732, 0.0
    %742 = vadd.xlane.f32.xlu0 %v741
    %v743 = vpop.xlane.xlu0 %742
    %v744 = vsel %vm258, %v734, 0.0
    %745 = vadd.xlane.f32.xlu0 %v744
    %v746 = vpop.xlane.xlu0 %745
    %v747 = vmul.f32 %v740, %v268
    %v748 = vmul.f32 %v743, %v268
    %v749 = vmul.f32 %v746, %v268
    %v750 = vadd.f32 %v747, 1e-05
    %v751 = vadd.f32 %v748, 1e-05
    %v752 = vadd.f32 %v749, 1e-05
    %v753 = vrsqrt.pop %v750
    %v754 = vrsqrt.pop %v751
    %v755 = vrsqrt.pop %v752
    %v756 = vmul.f32 %v720, %v753
    %v757 = vmul.f32 %v721, %v754
    %v758 = vmul.f32 %v722, %v755
    %759 = vrot.lane.b32.xlu0 %v612, 64
    %v760 = vpop.permute.xlu0 %759
    %761 = vrot.lane.b32.xlu0 %v615, 64
    %v762 = vpop.permute.xlu0 %761
    %763 = vrot.lane.b32.xlu0 %v620, 64
    %v764 = vpop.permute.xlu0 %763
    %v768 = vsel %vm258, %v760, 0.0
    %769 = vadd.xlane.f32.xlu0 %v768
    %v770 = vpop.xlane.xlu0 %769
    %v771 = vsel %vm258, %v762, 0.0
    %772 = vadd.xlane.f32.xlu0 %v771
    %v773 = vpop.xlane.xlu0 %772
    %v774 = vsel %vm258, %v764, 0.0
    %775 = vadd.xlane.f32.xlu0 %v774
    %v776 = vpop.xlane.xlu0 %775
    %v777 = vmul.f32 %v770, %v268
    %v778 = vmul.f32 %v773, %v268
    %v779 = vmul.f32 %v776, %v268
    %v780 = vsub.f32 %v612, %v777
    %v781 = vsub.f32 %v615, %v778
    %v782 = vsub.f32 %v620, %v779
    %v783 = vmul.f32 %v780, %v780
    %v784 = vmul.f32 %v781, %v781
    %v785 = vmul.f32 %v782, %v782
    %789 = vrot.lane.b32.xlu0 %v783, 64
    %v790 = vpop.permute.xlu0 %789
    %791 = vrot.lane.b32.xlu0 %v784, 64
    %v792 = vpop.permute.xlu0 %791
    %793 = vrot.lane.b32.xlu0 %v785, 64
    %v794 = vpop.permute.xlu0 %793
    %v798 = vsel %vm258, %v790, 0.0
    %799 = vadd.xlane.f32.xlu0 %v798
    %v800 = vpop.xlane.xlu0 %799
    %v801 = vsel %vm258, %v792, 0.0
    %802 = vadd.xlane.f32.xlu0 %v801
    %v803 = vpop.xlane.xlu0 %802
    %v804 = vsel %vm258, %v794, 0.0
    %805 = vadd.xlane.f32.xlu0 %v804
    %v806 = vpop.xlane.xlu0 %805
    %v807 = vmul.f32 %v800, %v268
    %v808 = vmul.f32 %v803, %v268
    %v809 = vmul.f32 %v806, %v268
    %v810 = vadd.f32 %v807, 1e-05
    %v811 = vadd.f32 %v808, 1e-05
    %v812 = vadd.f32 %v809, 1e-05
    %v813 = vrsqrt.pop %v810
    %v814 = vrsqrt.pop %v811
    %v815 = vrsqrt.pop %v812
    %v816 = vmul.f32 %v780, %v813
    %v817 = vmul.f32 %v781, %v814
    %v818 = vmul.f32 %v782, %v815
    %819 = vrot.lane.b32.xlu0 %v612, 32
    %v820 = vpop.permute.xlu0 %819
    %821 = vrot.lane.b32.xlu0 %v615, 32
    %v822 = vpop.permute.xlu0 %821
    %823 = vrot.lane.b32.xlu0 %v620, 32
    %v824 = vpop.permute.xlu0 %823
    %v828 = vsel %vm258, %v820, 0.0
    %829 = vadd.xlane.f32.xlu0 %v828
    %v830 = vpop.xlane.xlu0 %829
    %v831 = vsel %vm258, %v822, 0.0
    %832 = vadd.xlane.f32.xlu0 %v831
    %v833 = vpop.xlane.xlu0 %832
    %v834 = vsel %vm258, %v824, 0.0
    %835 = vadd.xlane.f32.xlu0 %v834
    %v836 = vpop.xlane.xlu0 %835
    %v837 = vmul.f32 %v830, %v268
    %v838 = vmul.f32 %v833, %v268
    %v839 = vmul.f32 %v836, %v268
    %v840 = vsub.f32 %v612, %v837
    %v841 = vsub.f32 %v615, %v838
    %v842 = vsub.f32 %v620, %v839
    %v843 = vmul.f32 %v840, %v840
    %v844 = vmul.f32 %v841, %v841
    %v845 = vmul.f32 %v842, %v842
    %849 = vrot.lane.b32.xlu0 %v843, 32
    %v850 = vpop.permute.xlu0 %849
    %851 = vrot.lane.b32.xlu0 %v844, 32
    %v852 = vpop.permute.xlu0 %851
    %853 = vrot.lane.b32.xlu0 %v845, 32
    %v854 = vpop.permute.xlu0 %853
    %v858 = vsel %vm258, %v850, 0.0
    %859 = vadd.xlane.f32.xlu0 %v858
    %v860 = vpop.xlane.xlu0 %859
    %v861 = vsel %vm258, %v852, 0.0
    %862 = vadd.xlane.f32.xlu0 %v861
    %v863 = vpop.xlane.xlu0 %862
    %v864 = vsel %vm258, %v854, 0.0
    %865 = vadd.xlane.f32.xlu0 %v864
    %v866 = vpop.xlane.xlu0 %865
    %v867 = vmul.f32 %v860, %v268
    %v868 = vmul.f32 %v863, %v268
    %v869 = vmul.f32 %v866, %v268
    %v870 = vadd.f32 %v867, 1e-05
    %v871 = vadd.f32 %v868, 1e-05
    %v872 = vadd.f32 %v869, 1e-05
    %v873 = vrsqrt.pop %v870
    %v874 = vrsqrt.pop %v871
    %v875 = vrsqrt.pop %v872
    %v876 = vmul.f32 %v840, %v873
    %v877 = vmul.f32 %v841, %v874
    %v878 = vmul.f32 %v842, %v875
    %v879 = vsel %vm258, %v693, %v756
    %v880 = vsel %vm258, %v694, %v757
    %v881 = vsel %vm258, %v695, %v758
    %v882 = vsel %vm485, %v879, %v816
    %v883 = vsel %vm485, %v880, %v817
    %v884 = vsel %vm485, %v881, %v818
    %v885 = vsel %vm489, %v882, %v876
    %v886 = vsel %vm489, %v883, %v877
    %v887 = vsel %vm489, %v884, %v878
    %v888 = vadd.f32 %v885, %v508
    %v889 = vadd.f32 %v886, %v509
    %v890 = vadd.f32 %v887, %v510
    %v891 = vpack.c.bf16 %v889, %v888
    %v892 = vpack.c.bf16 %v890, %v890
    %v909 = vunpack.c.l.b16 %v625
    %v910 = vunpack.c.l.b16 %v626
    %v911 = vunpack.c.l.b16 %v627
    %v912 = vunpack.c.l.b16 %v628
    %v913 = vunpack.c.l.b16 %v629
    %v914 = vunpack.c.l.b16 %v630
    %v915 = vunpack.c.l.b16 %v631
    %v916 = vunpack.c.l.b16 %v632
    %v917 = vunpack.c.l.b16 %v633
    %v918 = vunpack.c.l.b16 %v634
    %v919 = vunpack.c.l.b16 %v635
    %v920 = vunpack.c.l.b16 %v636
    %v921 = vunpack.c.l.b16 %v637
    %v922 = vunpack.c.l.b16 %v638
    %v923 = vunpack.c.l.b16 %v639
    %v924 = vunpack.c.l.b16 %v640
    %v925 = vpack.c.b16 %v910, %v909
    %v926 = vpack.c.b16 %v912, %v911
    %v927 = vpack.c.b16 %v914, %v913
    %v928 = vpack.c.b16 %v916, %v915
    %v929 = vpack.c.b16 %v918, %v917
    %v930 = vpack.c.b16 %v920, %v919
    %v931 = vpack.c.b16 %v922, %v921
    %v932 = vpack.c.b16 %v924, %v923
    %941 = vmatprep.subr.bf16.mxu0 0
    %942 = vmatpush1.bf16.msra.mxu0 %v925
    %943 = vmatprep.subr.bf16.mxu0 0
    %944 = vmatpush1.bf16.msra.mxu0 %v926
    %945 = vmatprep.subr.bf16.mxu0 0
    %946 = vmatpush1.bf16.msra.mxu0 %v927
    %947 = vmatprep.subr.bf16.mxu0 0
    %948 = vmatpush1.bf16.msra.mxu0 %v928
    %949 = vmatprep.subr.bf16.mxu0 0
    %950 = vmatpush1.bf16.msra.mxu0 %v929
    %951 = vmatprep.subr.bf16.mxu0 0
    %952 = vmatpush1.bf16.msra.mxu0 %v930
    %953 = vmatprep.subr.bf16.mxu0 0
    %954 = vmatpush1.bf16.msra.mxu0 %v931
    %955 = vmatprep.subr.bf16.mxu0 0
    %956 = vmatpush1.bf16.msra.mxu0 %v932
    %957 = vmatprep.subr.bf16.mxu0 0
    %958 = vmatpush1.bf16.msra.mxu0 0
    %959 = vmatprep.subr.bf16.mxu0 0
    %960 = vmatpush1.bf16.msra.mxu0 0
    %961 = vmatprep.subr.bf16.mxu0 0
    %962 = vmatpush1.bf16.msra.mxu0 0
    %963 = vmatprep.subr.bf16.mxu0 0
    %964 = vmatpush1.bf16.msra.mxu0 0
    %965 = vmatprep.subr.bf16.mxu0 0
    %966 = vmatpush1.bf16.msra.mxu0 0
    %967 = vmatprep.subr.bf16.mxu0 0
    %968 = vmatpush1.bf16.msra.mxu0 0
    %969 = vmatprep.subr.bf16.mxu0 0
    %970 = vmatpush1.bf16.msra.mxu0 0
    %971 = vmatprep.subr.bf16.mxu0 0
    %972 = vmatpush1.bf16.msra.mxu0 0
    %973 = vmatprep.mubr.bf16.mxu0 0
    %974 = vmatmul.mubr.bf16.gmra.mrb[0].mxu0 %v891
    %v975 = vpop.f32.mrb[0].mxu0
    %v976 = vadd.f32 0.0, %v975
    %v977 = vpop.f32.mrb[0].mxu0
    %v978 = vpop.f32.mrb[0].mxu0
    %v979 = vadd.f32 0.0, %v978
    %v980 = vpop.f32.mrb[0].mxu0
    %981 = vmatprep.mubr.bf16.mxu0 0
    %982 = vmatmul.mubr.bf16.gmra.mrb[0].mxu0 %v892
    %v983 = vpop.f32.mrb[0].mxu0
    %v984 = vadd.f32 0.0, %v983
    %v985 = vpop.f32.mrb[0].mxu0
    %v986 = vpop.f32.mrb[0].mxu0
    %v987 = vpop.f32.mrb[0].mxu0
    %988 = vdwg.mxu0
    %v989 = vpack.c.bf16 %v886, %v885
    %v990 = vpack.c.bf16 %v887, %v887
    %v991 = vunpack.c.h.b16 %v625
    %v992 = vunpack.c.h.b16 %v626
    %v993 = vunpack.c.h.b16 %v627
    %v994 = vunpack.c.h.b16 %v628
    %v995 = vunpack.c.h.b16 %v629
    %v996 = vunpack.c.h.b16 %v630
    %v997 = vunpack.c.h.b16 %v631
    %v998 = vunpack.c.h.b16 %v632
    %v999 = vunpack.c.h.b16 %v633
    %v1000 = vunpack.c.h.b16 %v634
    %v1001 = vunpack.c.h.b16 %v635
    %v1002 = vunpack.c.h.b16 %v636
    %v1003 = vunpack.c.h.b16 %v637
    %v1004 = vunpack.c.h.b16 %v638
    %v1005 = vunpack.c.h.b16 %v639
    %v1006 = vunpack.c.h.b16 %v640
    %v1007 = vpack.c.b16 %v992, %v991
    %v1008 = vpack.c.b16 %v994, %v993
    %v1009 = vpack.c.b16 %v996, %v995
    %v1010 = vpack.c.b16 %v998, %v997
    %v1011 = vpack.c.b16 %v1000, %v999
    %v1012 = vpack.c.b16 %v1002, %v1001
    %v1013 = vpack.c.b16 %v1004, %v1003
    %v1014 = vpack.c.b16 %v1006, %v1005
    %1023 = vmatprep.subr.bf16.mxu0 0
    %1024 = vmatpush1.bf16.msra.mxu0 %v1007
    %1025 = vmatprep.subr.bf16.mxu0 0
    %1026 = vmatpush1.bf16.msra.mxu0 %v1008
    %1027 = vmatprep.subr.bf16.mxu0 0
    %1028 = vmatpush1.bf16.msra.mxu0 %v1009
    %1029 = vmatprep.subr.bf16.mxu0 0
    %1030 = vmatpush1.bf16.msra.mxu0 %v1010
    %1031 = vmatprep.subr.bf16.mxu0 0
    %1032 = vmatpush1.bf16.msra.mxu0 %v1011
    %1033 = vmatprep.subr.bf16.mxu0 0
    %1034 = vmatpush1.bf16.msra.mxu0 %v1012
    %1035 = vmatprep.subr.bf16.mxu0 0
    %1036 = vmatpush1.bf16.msra.mxu0 %v1013
    %1037 = vmatprep.subr.bf16.mxu0 0
    %1038 = vmatpush1.bf16.msra.mxu0 %v1014
    %1039 = vmatprep.subr.bf16.mxu0 0
    %1040 = vmatpush1.bf16.msra.mxu0 0
    %1041 = vmatprep.subr.bf16.mxu0 0
    %1042 = vmatpush1.bf16.msra.mxu0 0
    %1043 = vmatprep.subr.bf16.mxu0 0
    %1044 = vmatpush1.bf16.msra.mxu0 0
    %1045 = vmatprep.subr.bf16.mxu0 0
    %1046 = vmatpush1.bf16.msra.mxu0 0
    %1047 = vmatprep.subr.bf16.mxu0 0
    %1048 = vmatpush1.bf16.msra.mxu0 0
    %1049 = vmatprep.subr.bf16.mxu0 0
    %1050 = vmatpush1.bf16.msra.mxu0 0
    %1051 = vmatprep.subr.bf16.mxu0 0
    %1052 = vmatpush1.bf16.msra.mxu0 0
    %1053 = vmatprep.subr.bf16.mxu0 0
    %1054 = vmatpush1.bf16.msra.mxu0 0
    %1055 = vmatprep.mubr.bf16.mxu0 0
    %1056 = vmatmul.mubr.bf16.gmra.mrb[0].mxu0 %v989
    %v1057 = vpop.f32.mrb[0].mxu0
    %v1058 = vadd.f32 0.0, %v1057
    %v1059 = vpop.f32.mrb[0].mxu0
    %v1060 = vpop.f32.mrb[0].mxu0
    %v1061 = vadd.f32 0.0, %v1060
    %v1062 = vpop.f32.mrb[0].mxu0
    %1063 = vmatprep.mubr.bf16.mxu0 0
    %1064 = vmatmul.mubr.bf16.gmra.mrb[0].mxu0 %v990
    %v1065 = vpop.f32.mrb[0].mxu0
    %v1066 = vadd.f32 0.0, %v1065
    %v1067 = vpop.f32.mrb[0].mxu0
    %v1068 = vpop.f32.mrb[0].mxu0
    %v1069 = vpop.f32.mrb[0].mxu0
    %1070 = vdwg.mxu0
    %v1071 = vmax.f32 %v976, 0.0
    %v1072 = vmax.f32 %v979, 0.0
    %v1073 = vmax.f32 %v984, 0.0
    %v1074 = vmul.f32 %v1071, %v1058
    %v1075 = vmul.f32 %v1072, %v1061
    %v1076 = vmul.f32 %v1073, %v1066
    %v1077 = vpack.c.bf16 %v1075, %v1074
    %v1078 = vpack.c.bf16 %v1076, %v1076
    %v1095 = vunpack.c.l.b16 %v641
    %v1096 = vunpack.c.l.b16 %v642
    %v1097 = vunpack.c.l.b16 %v643
    %v1098 = vunpack.c.l.b16 %v644
    %v1099 = vunpack.c.l.b16 %v645
    %v1100 = vunpack.c.l.b16 %v646
    %v1101 = vunpack.c.l.b16 %v647
    %v1102 = vunpack.c.l.b16 %v648
    %v1103 = vunpack.c.l.b16 %v649
    %v1104 = vunpack.c.l.b16 %v650
    %v1105 = vunpack.c.l.b16 %v651
    %v1106 = vunpack.c.l.b16 %v652
    %v1107 = vunpack.c.l.b16 %v653
    %v1108 = vunpack.c.l.b16 %v654
    %v1109 = vunpack.c.l.b16 %v655
    %v1110 = vunpack.c.l.b16 %v656
    %v1111 = vpack.c.b16 %v1096, %v1095
    %v1112 = vpack.c.b16 %v1098, %v1097
    %v1113 = vpack.c.b16 %v1100, %v1099
    %v1114 = vpack.c.b16 %v1102, %v1101
    %v1115 = vpack.c.b16 %v1104, %v1103
    %v1116 = vpack.c.b16 %v1106, %v1105
    %v1117 = vpack.c.b16 %v1108, %v1107
    %v1118 = vpack.c.b16 %v1110, %v1109
    %1127 = vmatprep.subr.bf16.mxu0 0
    %1128 = vmatpush1.bf16.msra.mxu0 %v1111
    %1129 = vmatprep.subr.bf16.mxu0 0
    %1130 = vmatpush1.bf16.msra.mxu0 %v1112
    %1131 = vmatprep.subr.bf16.mxu0 0
    %1132 = vmatpush1.bf16.msra.mxu0 %v1113
    %1133 = vmatprep.subr.bf16.mxu0 0
    %1134 = vmatpush1.bf16.msra.mxu0 %v1114
    %1135 = vmatprep.subr.bf16.mxu0 0
    %1136 = vmatpush1.bf16.msra.mxu0 %v1115
    %1137 = vmatprep.subr.bf16.mxu0 0
    %1138 = vmatpush1.bf16.msra.mxu0 %v1116
    %1139 = vmatprep.subr.bf16.mxu0 0
    %1140 = vmatpush1.bf16.msra.mxu0 %v1117
    %1141 = vmatprep.subr.bf16.mxu0 0
    %1142 = vmatpush1.bf16.msra.mxu0 %v1118
    %1143 = vmatprep.subr.bf16.mxu0 0
    %1144 = vmatpush1.bf16.msra.mxu0 0
    %1145 = vmatprep.subr.bf16.mxu0 0
    %1146 = vmatpush1.bf16.msra.mxu0 0
    %1147 = vmatprep.subr.bf16.mxu0 0
    %1148 = vmatpush1.bf16.msra.mxu0 0
    %1149 = vmatprep.subr.bf16.mxu0 0
    %1150 = vmatpush1.bf16.msra.mxu0 0
    %1151 = vmatprep.subr.bf16.mxu0 0
    %1152 = vmatpush1.bf16.msra.mxu0 0
    %1153 = vmatprep.subr.bf16.mxu0 0
    %1154 = vmatpush1.bf16.msra.mxu0 0
    %1155 = vmatprep.subr.bf16.mxu0 0
    %1156 = vmatpush1.bf16.msra.mxu0 0
    %1157 = vmatprep.subr.bf16.mxu0 0
    %1158 = vmatpush1.bf16.msra.mxu0 0
    %1159 = vmatprep.mubr.bf16.mxu0 0
    %1160 = vmatmul.mubr.bf16.gmra.mrb[0].mxu0 %v1077
    %v1161 = vpop.f32.mrb[0].mxu0
    %v1162 = vadd.f32 0.0, %v1161
    %v1163 = vpop.f32.mrb[0].mxu0
    %v1164 = vpop.f32.mrb[0].mxu0
    %v1165 = vadd.f32 0.0, %v1164
    %v1166 = vpop.f32.mrb[0].mxu0
    %1167 = vmatprep.mubr.bf16.mxu0 0
    %1168 = vmatmul.mubr.bf16.gmra.mrb[0].mxu0 %v1078
    %v1169 = vpop.f32.mrb[0].mxu0
    %v1170 = vadd.f32 0.0, %v1169
    %v1171 = vpop.f32.mrb[0].mxu0
    %v1172 = vpop.f32.mrb[0].mxu0
    %v1173 = vpop.f32.mrb[0].mxu0
    %1174 = vdwg.mxu0
    %1175 = vst [vmem:[#allocation16] sm:$0xff] %v1162
    %1176 = vst [vmem:[#allocation16 + $0x8] sm:$0xff] %v1165
    %1177 = vst [vmem:[#allocation16 + $0x10] sm:$0xff] %v1170
    // Predicated region
    $region66: #{metagin_forward.29} parent=1 // pred_check
      _
    $region67: #{metagin_forward.29} parent=1 // pred_check_branch
      %1179 = sbr.rel (0) target = $region69
    $region68: #{metagin_forward.29} parent=1 // pred_region
      %s1181 = ssub.s32 384, 384
      %1182 = vsyncadd [#allocation4], %s1181
      %s1183 = sshll.u32 [#allocation16], 4
      %s1184 = int_to_ptr.vmem [resolvable:$true] %s1183
      %1189 = dma.vmem_to_hbm [thread:$0]  %s1184, 384, %s8, [#allocation4], 128, 128, 8
    $region69: #{metagin_forward.29} parent=1 // pred_fallthru
      _
    // Predicated region
    $region70: #{metagin_forward.29} parent=1 // pred_check
      _
    $region71: #{metagin_forward.29} parent=1 // pred_check_branch
      %1191 = sbr.rel (0) target = $region73
    $region72: #{metagin_forward.29} parent=1 // pred_region
      %1192 = dma.done [#allocation4], 384
    $region73: #{metagin_forward.29} parent=1 // pred_fallthru
      _
    %1193 = vsyncpa [#allocation3], 1
    %1194 = vsyncpa [#allocation6], 1
    %1195 = vsyncpa [#allocation9], 1
    %1196 = vsyncpa [#allocation12], 1
    %1197 = vsyncpa [#allocation15], 1
    %1198 = vsyncpa [#allocation4], 1

// kernel: metagin_forward.35
$region0: #{metagin_forward.35}
  #allocation0 [shape = 'u32[]', space=smem, size = 0x4, offset = 0x4, fixed_abs, tag = 'smem constant byte address 0x4 - core index']
  #allocation1 [shape = 'u32[144,128]{1,0:T(1,128)}', space=vmem, size = 0x12000, scoped, tag = 'internal scratch']
  %s0 = inlined_call_operand.hbm [shape: f32[8,128], index: 0, kind: input, shape index: {}]
  %s1 = inlined_call_operand.hbm [shape: bf16[128,128], index: 1, kind: input, shape index: {}]
  %s2 = inlined_call_operand.hbm [shape: bf16[128,256], index: 2, kind: input, shape index: {}]
  %s3 = inlined_call_operand.hbm [shape: bf16[128,1], index: 3, kind: input, shape index: {}]
  %s4 = inlined_call_operand.hbm [shape: f32[8,1], index: 4, kind: output, shape index: {}]
  %s5 = sld [smem:[#allocation0]]
  $region42: #{metagin_forward.35} parent=0
    _
  %s7 = ssub.s32 1, %s5
  %s8 = scalar_select 0, %s7, %s5
  $region1: #{metagin_forward.35} parent=0
    #allocation2 [shape = 'u8[4096]{0}', space=vmem, size = 0x1000, scoped, tag = 'input window, operand 0, single buffered']
    #allocation3 [shape = 's32[1]{0}', space=sflag, size = 0x4, scoped, tag = 'scoped memory for metagin_forward.35']
    #allocation4 [shape = 's32[1]{0}', space=sflag, size = 0x4, scoped, tag = 'scoped memory for metagin_forward.35']
    #allocation5 [shape = 'u8[32768]{0}', space=vmem, size = 0x8000, scoped, tag = 'input window, operand 1, single buffered']
    #allocation6 [shape = 's32[1]{0}', space=sflag, size = 0x4, scoped, tag = 'scoped memory for metagin_forward.35']
    #allocation7 [shape = 'u8[65536]{0}', space=vmem, size = 0x10000, scoped, tag = 'input window, operand 2, single buffered']
    #allocation8 [shape = 'u8[32768]{0}', space=vmem, size = 0x8000, scoped, tag = 'input window, operand 3, single buffered']
    #allocation9 [shape = 's32[1]{0}', space=sflag, size = 0x4, scoped, tag = 'scoped memory for metagin_forward.35']
    #allocation10 [shape = 'u8[4096]{0}', space=vmem, size = 0x1000, scoped, tag = 'output window, operand 0, single buffered']
    %9 = vsyncpa [#allocation3], 0
    %10 = vsyncpa [#allocation6], 0
    %11 = vsyncpa [#allocation9], 0
    %12 = vsyncpa [#allocation4], 0
    // Predicated region
    $region2: #{metagin_forward.35} parent=1 // pred_check
      _
    $region3: #{metagin_forward.35} parent=1 // pred_check_branch
      %14 = sbr.rel (0) target = $region5
    $region4: #{metagin_forward.35} parent=1 // pred_region
      %s16 = ssub.s32 128, 128
      %17 = vsyncadd [#allocation3], %s16
      %s19 = sshll.u32 [#allocation2], 4
      %s20 = int_to_ptr.vmem [resolvable:$true] %s19
      %22 = dma.hbm_to_vmem [thread:$0]  %s0, 128, %s20, [#allocation3]
    $region5: #{metagin_forward.35} parent=1 // pred_fallthru
      _
    // Predicated region
    $region6: #{metagin_forward.35} parent=1 // pred_check
      _
    $region7: #{metagin_forward.35} parent=1 // pred_check_branch
      %24 = sbr.rel (0) target = $region9
    $region8: #{metagin_forward.35} parent=1 // pred_region
      %s26 = ssub.s32 1024, 1024
      %27 = vsyncadd [#allocation6], %s26
      %s28 = sshll.u32 [#allocation5], 4
      %s29 = int_to_ptr.vmem [resolvable:$true] %s28
      %34 = dma.hbm_to_vmem [thread:$0]  %s1, 1024, %s29, [#allocation6], 64, 64, 4
    $region9: #{metagin_forward.35} parent=1 // pred_fallthru
      _
    // Predicated region
    $region10: #{metagin_forward.35} parent=1 // pred_check
      _
    $region11: #{metagin_forward.35} parent=1 // pred_check_branch
      %36 = sbr.rel (0) target = $region13
    $region12: #{metagin_forward.35} parent=1 // pred_region
      %s38 = ssub.s32 2048, 2048
      %39 = vsyncadd [#allocation6], %s38
      %s40 = sshll.u32 [#allocation7], 4
      %s41 = int_to_ptr.vmem [resolvable:$true] %s40
      %46 = dma.hbm_to_vmem [thread:$0]  %s2, 2048, %s41, [#allocation6], 128, 128, 8
    $region13: #{metagin_forward.35} parent=1 // pred_fallthru
      _
    // Predicated region
    $region14: #{metagin_forward.35} parent=1 // pred_check
      _
    $region15: #{metagin_forward.35} parent=1 // pred_check_branch
      %48 = sbr.rel (0) target = $region17
    $region16: #{metagin_forward.35} parent=1 // pred_region
      %s50 = ssub.s32 1024, 1024
      %51 = vsyncadd [#allocation9], %s50
      %s52 = sshll.u32 [#allocation8], 4
      %s53 = int_to_ptr.vmem [resolvable:$true] %s52
      %58 = dma.hbm_to_vmem [thread:$0]  %s3, 1024, %s53, [#allocation9], 64, 64, 4
    $region17: #{metagin_forward.35} parent=1 // pred_fallthru
      _
    // Predicated region
    $region18: #{metagin_forward.35} parent=1 // pred_check
      _
    $region19: #{metagin_forward.35} parent=1 // pred_check_branch
      %60 = sbr.rel (0) target = $region21
    $region20: #{metagin_forward.35} parent=1 // pred_region
      %61 = dma.done [#allocation3], 128
    $region21: #{metagin_forward.35} parent=1 // pred_fallthru
      _
    // Predicated region
    $region22: #{metagin_forward.35} parent=1 // pred_check
      _
    $region23: #{metagin_forward.35} parent=1 // pred_check_branch
      %63 = sbr.rel (0) target = $region25
    $region24: #{metagin_forward.35} parent=1 // pred_region
      %64 = dma.done [#allocation6], 1024
    $region25: #{metagin_forward.35} parent=1 // pred_fallthru
      _
    // Predicated region
    $region26: #{metagin_forward.35} parent=1 // pred_check
      _
    $region27: #{metagin_forward.35} parent=1 // pred_check_branch
      %66 = sbr.rel (0) target = $region29
    $region28: #{metagin_forward.35} parent=1 // pred_region
      %67 = dma.done [#allocation6], 2048
    $region29: #{metagin_forward.35} parent=1 // pred_fallthru
      _
    // Predicated region
    $region30: #{metagin_forward.35} parent=1 // pred_check
      _
    $region31: #{metagin_forward.35} parent=1 // pred_check_branch
      %69 = sbr.rel (0) target = $region33
    $region32: #{metagin_forward.35} parent=1 // pred_region
      %70 = dma.done [#allocation9], 1024
    $region33: #{metagin_forward.35} parent=1 // pred_fallthru
      _
    %v72 = vld [vmem:[#allocation2] sm:$0xff]
    %v73 = vld [vmem:[#allocation5] sm:$0xf]
    %v74 = vld [vmem:[#allocation5 + $0x4] sm:$0xf]
    %v75 = vld [vmem:[#allocation5 + $0x8] sm:$0xf]
    %v76 = vld [vmem:[#allocation5 + $0xc] sm:$0xf]
    %v77 = vld [vmem:[#allocation5 + $0x10] sm:$0xf]
    %v78 = vld [vmem:[#allocation5 + $0x14] sm:$0xf]
    %v79 = vld [vmem:[#allocation5 + $0x18] sm:$0xf]
    %v80 = vld [vmem:[#allocation5 + $0x1c] sm:$0xf]
    %v81 = vld [vmem:[#allocation5 + $0x20] sm:$0xf]
    %v82 = vld [vmem:[#allocation5 + $0x24] sm:$0xf]
    %v83 = vld [vmem:[#allocation5 + $0x28] sm:$0xf]
    %v84 = vld [vmem:[#allocation5 + $0x2c] sm:$0xf]
    %v85 = vld [vmem:[#allocation5 + $0x30] sm:$0xf]
    %v86 = vld [vmem:[#allocation5 + $0x34] sm:$0xf]
    %v87 = vld [vmem:[#allocation5 + $0x38] sm:$0xf]
    %v88 = vld [vmem:[#allocation5 + $0x3c] sm:$0xf]
    %v89 = vpack.c.bf16 %v72, %v72
    %v106 = vunpack.c.l.b16 %v73
    %v107 = vunpack.c.l.b16 %v74
    %v108 = vunpack.c.l.b16 %v75
    %v109 = vunpack.c.l.b16 %v76
    %v110 = vunpack.c.l.b16 %v77
    %v111 = vunpack.c.l.b16 %v78
    %v112 = vunpack.c.l.b16 %v79
    %v113 = vunpack.c.l.b16 %v80
    %v114 = vunpack.c.l.b16 %v81
    %v115 = vunpack.c.l.b16 %v82
    %v116 = vunpack.c.l.b16 %v83
    %v117 = vunpack.c.l.b16 %v84
    %v118 = vunpack.c.l.b16 %v85
    %v119 = vunpack.c.l.b16 %v86
    %v120 = vunpack.c.l.b16 %v87
    %v121 = vunpack.c.l.b16 %v88
    %v122 = vpack.c.b16 %v107, %v106
    %v123 = vpack.c.b16 %v109, %v108
    %v124 = vpack.c.b16 %v111, %v110
    %v125 = vpack.c.b16 %v113, %v112
    %v126 = vpack.c.b16 %v115, %v114
    %v127 = vpack.c.b16 %v117, %v116
    %v128 = vpack.c.b16 %v119, %v118
    %v129 = vpack.c.b16 %v121, %v120
    %138 = vmatprep.subr.bf16.mxu0 0
    %139 = vmatpush1.bf16.msra.mxu0 %v122
    %140 = vmatprep.subr.bf16.mxu0 0
    %141 = vmatpush1.bf16.msra.mxu0 %v123
    %142 = vmatprep.subr.bf16.mxu0 0
    %143 = vmatpush1.bf16.msra.mxu0 %v124
    %144 = vmatprep.subr.bf16.mxu0 0
    %145 = vmatpush1.bf16.msra.mxu0 %v125
    %146 = vmatprep.subr.bf16.mxu0 0
    %147 = vmatpush1.bf16.msra.mxu0 %v126
    %148 = vmatprep.subr.bf16.mxu0 0
    %149 = vmatpush1.bf16.msra.mxu0 %v127
    %150 = vmatprep.subr.bf16.mxu0 0
    %151 = vmatpush1.bf16.msra.mxu0 %v128
    %152 = vmatprep.subr.bf16.mxu0 0
    %153 = vmatpush1.bf16.msra.mxu0 %v129
    %154 = vmatprep.subr.bf16.mxu0 0
    %155 = vmatpush1.bf16.msra.mxu0 0
    %156 = vmatprep.subr.bf16.mxu0 0
    %157 = vmatpush1.bf16.msra.mxu0 0
    %158 = vmatprep.subr.bf16.mxu0 0
    %159 = vmatpush1.bf16.msra.mxu0 0
    %160 = vmatprep.subr.bf16.mxu0 0
    %161 = vmatpush1.bf16.msra.mxu0 0
    %162 = vmatprep.subr.bf16.mxu0 0
    %163 = vmatpush1.bf16.msra.mxu0 0
    %164 = vmatprep.subr.bf16.mxu0 0
    %165 = vmatpush1.bf16.msra.mxu0 0
    %166 = vmatprep.subr.bf16.mxu0 0
    %167 = vmatpush1.bf16.msra.mxu0 0
    %168 = vmatprep.subr.bf16.mxu0 0
    %169 = vmatpush1.bf16.msra.mxu0 0
    %170 = vmatprep.mubr.bf16.mxu0 0
    %171 = vmatmul.mubr.bf16.gmra.mrb[0].mxu0 %v89
    %v172 = vpop.f32.mrb[0].mxu0
    %v173 = vadd.f32 0.0, %v172
    %v174 = vpop.f32.mrb[0].mxu0
    %v175 = vpop.f32.mrb[0].mxu0
    %v176 = vpop.f32.mrb[0].mxu0
    %177 = vdwg.mxu0
    %v178 = vld [vmem:[#allocation7] sm:$0xff]
    %v179 = vld [vmem:[#allocation7 + $0x8] sm:$0xff]
    %v180 = vld [vmem:[#allocation7 + $0x10] sm:$0xff]
    %v181 = vld [vmem:[#allocation7 + $0x18] sm:$0xff]
    %v182 = vld [vmem:[#allocation7 + $0x20] sm:$0xff]
    %v183 = vld [vmem:[#allocation7 + $0x28] sm:$0xff]
    %v184 = vld [vmem:[#allocation7 + $0x30] sm:$0xff]
    %v185 = vld [vmem:[#allocation7 + $0x38] sm:$0xff]
    %v186 = vld [vmem:[#allocation7 + $0x40] sm:$0xff]
    %v187 = vld [vmem:[#allocation7 + $0x48] sm:$0xff]
    %v188 = vld [vmem:[#allocation7 + $0x50] sm:$0xff]
    %v189 = vld [vmem:[#allocation7 + $0x58] sm:$0xff]
    %v190 = vld [vmem:[#allocation7 + $0x60] sm:$0xff]
    %v191 = vld [vmem:[#allocation7 + $0x68] sm:$0xff]
    %v192 = vld [vmem:[#allocation7 + $0x70] sm:$0xff]
    %v193 = vld [vmem:[#allocation7 + $0x78] sm:$0xff]
    %v194 = vld [vmem:[#allocation8] sm:$0xf]
    %v195 = vld [vmem:[#allocation8 + $0x4] sm:$0xf]
    %v196 = vld [vmem:[#allocation8 + $0x8] sm:$0xf]
    %v197 = vld [vmem:[#allocation8 + $0xc] sm:$0xf]
    %v198 = vld [vmem:[#allocation8 + $0x10] sm:$0xf]
    %v199 = vld [vmem:[#allocation8 + $0x14] sm:$0xf]
    %v200 = vld [vmem:[#allocation8 + $0x18] sm:$0xf]
    %v201 = vld [vmem:[#allocation8 + $0x1c] sm:$0xf]
    %v202 = vld [vmem:[#allocation8 + $0x20] sm:$0xf]
    %v203 = vld [vmem:[#allocation8 + $0x24] sm:$0xf]
    %v204 = vld [vmem:[#allocation8 + $0x28] sm:$0xf]
    %v205 = vld [vmem:[#allocation8 + $0x2c] sm:$0xf]
    %v206 = vld [vmem:[#allocation8 + $0x30] sm:$0xf]
    %v207 = vld [vmem:[#allocation8 + $0x34] sm:$0xf]
    %v208 = vld [vmem:[#allocation8 + $0x38] sm:$0xf]
    %v209 = vld [vmem:[#allocation8 + $0x3c] sm:$0xf]
    %vm210 = vcmask 261120
    %v211 = vsel %vm210, %v173, 0.0
    %212 = vadd.xlane.f32.xlu0 %v211
    %v213 = vpop.xlane.xlu0 %212
    %v214 = vrcp.pop 32.0
    %v215 = vmul.f32 %v213, %v214
    %v216 = vsub.f32 %v173, %v215
    %v217 = vmul.f32 %v216, %v216
    %v218 = vsel %vm210, %v217, 0.0
    %219 = vadd.xlane.f32.xlu0 %v218
    %v220 = vpop.xlane.xlu0 %219
    %v221 = vmul.f32 %v220, %v214
    %v222 = vadd.f32 %v221, 1e-05
    %v223 = vrsqrt.pop %v222
    %v224 = vmul.f32 %v216, %v223
    %226 = vrot.lane.b32.xlu0 %v173, 96
    %v227 = vpop.permute.xlu0 %226
    %v229 = vsel %vm210, %v227, 0.0
    %230 = vadd.xlane.f32.xlu0 %v229
    %v231 = vpop.xlane.xlu0 %230
    %v232 = vmul.f32 %v231, %v214
    %v233 = vsub.f32 %v173, %v232
    %v234 = vmul.f32 %v233, %v233
    %236 = vrot.lane.b32.xlu0 %v234, 96
    %v237 = vpop.permute.xlu0 %236
    %v239 = vsel %vm210, %v237, 0.0
    %240 = vadd.xlane.f32.xlu0 %v239
    %v241 = vpop.xlane.xlu0 %240
    %v242 = vmul.f32 %v241, %v214
    %v243 = vadd.f32 %v242, 1e-05
    %v244 = vrsqrt.pop %v243
    %v245 = vmul.f32 %v233, %v244
    %246 = vrot.lane.b32.xlu0 %v173, 64
    %v247 = vpop.permute.xlu0 %246
    %v249 = vsel %vm210, %v247, 0.0
    %250 = vadd.xlane.f32.xlu0 %v249
    %v251 = vpop.xlane.xlu0 %250
    %v252 = vmul.f32 %v251, %v214
    %v253 = vsub.f32 %v173, %v252
    %v254 = vmul.f32 %v253, %v253
    %256 = vrot.lane.b32.xlu0 %v254, 64
    %v257 = vpop.permute.xlu0 %256
    %v259 = vsel %vm210, %v257, 0.0
    %260 = vadd.xlane.f32.xlu0 %v259
    %v261 = vpop.xlane.xlu0 %260
    %v262 = vmul.f32 %v261, %v214
    %v263 = vadd.f32 %v262, 1e-05
    %v264 = vrsqrt.pop %v263
    %v265 = vmul.f32 %v253, %v264
    %266 = vrot.lane.b32.xlu0 %v173, 32
    %v267 = vpop.permute.xlu0 %266
    %v269 = vsel %vm210, %v267, 0.0
    %270 = vadd.xlane.f32.xlu0 %v269
    %v271 = vpop.xlane.xlu0 %270
    %v272 = vmul.f32 %v271, %v214
    %v273 = vsub.f32 %v173, %v272
    %v274 = vmul.f32 %v273, %v273
    %276 = vrot.lane.b32.xlu0 %v274, 32
    %v277 = vpop.permute.xlu0 %276
    %v279 = vsel %vm210, %v277, 0.0
    %280 = vadd.xlane.f32.xlu0 %v279
    %v281 = vpop.xlane.xlu0 %280
    %v282 = vmul.f32 %v281, %v214
    %v283 = vadd.f32 %v282, 1e-05
    %v284 = vrsqrt.pop %v283
    %v285 = vmul.f32 %v273, %v284
    %v286 = vsel %vm210, %v224, %v245
    %vm287 = vcmask 523264
    %v288 = vsel %vm287, %v286, %v265
    %vm289 = vcmask 785408
    %v290 = vsel %vm289, %v288, %v285
    %v291 = vpack.c.bf16 %v290, %v290
    %v308 = vunpack.c.l.b16 %v178
    %v309 = vunpack.c.h.b16 %v178
    %v310 = vunpack.c.l.b16 %v179
    %v311 = vunpack.c.h.b16 %v179
    %v312 = vunpack.c.l.b16 %v180
    %v313 = vunpack.c.h.b16 %v180
    %v314 = vunpack.c.l.b16 %v181
    %v315 = vunpack.c.h.b16 %v181
    %v316 = vunpack.c.l.b16 %v182
    %v317 = vunpack.c.h.b16 %v182
    %v318 = vunpack.c.l.b16 %v183
    %v319 = vunpack.c.h.b16 %v183
    %v320 = vunpack.c.l.b16 %v184
    %v321 = vunpack.c.h.b16 %v184
    %v322 = vunpack.c.l.b16 %v185
    %v323 = vunpack.c.h.b16 %v185
    %v324 = vunpack.c.l.b16 %v186
    %v325 = vunpack.c.h.b16 %v186
    %v326 = vunpack.c.l.b16 %v187
    %v327 = vunpack.c.h.b16 %v187
    %v328 = vunpack.c.l.b16 %v188
    %v329 = vunpack.c.h.b16 %v188
    %v330 = vunpack.c.l.b16 %v189
    %v331 = vunpack.c.h.b16 %v189
    %v332 = vunpack.c.l.b16 %v190
    %v333 = vunpack.c.h.b16 %v190
    %v334 = vunpack.c.l.b16 %v191
    %v335 = vunpack.c.h.b16 %v191
    %v336 = vunpack.c.l.b16 %v192
    %v337 = vunpack.c.h.b16 %v192
    %v338 = vunpack.c.l.b16 %v193
    %v339 = vunpack.c.h.b16 %v193
    %v340 = vpack.c.b16 %v310, %v308
    %v341 = vpack.c.b16 %v311, %v309
    %v342 = vpack.c.b16 %v314, %v312
    %v343 = vpack.c.b16 %v315, %v313
    %v344 = vpack.c.b16 %v318, %v316
    %v345 = vpack.c.b16 %v319, %v317
    %v346 = vpack.c.b16 %v322, %v320
    %v347 = vpack.c.b16 %v323, %v321
    %v348 = vpack.c.b16 %v326, %v324
    %v349 = vpack.c.b16 %v327, %v325
    %v350 = vpack.c.b16 %v330, %v328
    %v351 = vpack.c.b16 %v331, %v329
    %v352 = vpack.c.b16 %v334, %v332
    %v353 = vpack.c.b16 %v335, %v333
    %v354 = vpack.c.b16 %v338, %v336
    %v355 = vpack.c.b16 %v339, %v337
    %372 = vmatprep.subr.bf16.mxu0 %v341
    %373 = vmatpush1.bf16.msra.mxu0 %v340
    %374 = vmatprep.subr.bf16.mxu0 %v343
    %375 = vmatpush1.bf16.msra.mxu0 %v342
    %376 = vmatprep.subr.bf16.mxu0 %v345
    %377 = vmatpush1.bf16.msra.mxu0 %v344
    %378 = vmatprep.subr.bf16.mxu0 %v347
    %379 = vmatpush1.bf16.msra.mxu0 %v346
    %380 = vmatprep.subr.bf16.mxu0 %v349
    %381 = vmatpush1.bf16.msra.mxu0 %v348
    %382 = vmatprep.subr.bf16.mxu0 %v351
    %383 = vmatpush1.bf16.msra.mxu0 %v350
    %384 = vmatprep.subr.bf16.mxu0 %v353
    %385 = vmatpush1.bf16.msra.mxu0 %v352
    %386 = vmatprep.subr.bf16.mxu0 %v355
    %387 = vmatpush1.bf16.msra.mxu0 %v354
    %388 = vmatprep.subr.bf16.mxu0 0
    %389 = vmatpush1.bf16.msra.mxu0 0
    %390 = vmatprep.subr.bf16.mxu0 0
    %391 = vmatpush1.bf16.msra.mxu0 0
    %392 = vmatprep.subr.bf16.mxu0 0
    %393 = vmatpush1.bf16.msra.mxu0 0
    %394 = vmatprep.subr.bf16.mxu0 0
    %395 = vmatpush1.bf16.msra.mxu0 0
    %396 = vmatprep.subr.bf16.mxu0 0
    %397 = vmatpush1.bf16.msra.mxu0 0
    %398 = vmatprep.subr.bf16.mxu0 0
    %399 = vmatpush1.bf16.msra.mxu0 0
    %400 = vmatprep.subr.bf16.mxu0 0
    %401 = vmatpush1.bf16.msra.mxu0 0
    %402 = vmatprep.subr.bf16.mxu0 0
    %403 = vmatpush1.bf16.msra.mxu0 0
    %404 = vmatprep.mubr.bf16.mxu0 0
    %405 = vmatmul.mubr.bf16.gmra.mrb[0].mxu0 %v291
    %v406 = vpop.f32.mrb[0].mxu0
    %v407 = vadd.f32 0.0, %v406
    %v408 = vpop.f32.mrb[0].mxu0
    %v409 = vadd.f32 0.0, %v408
    %v410 = vpop.f32.mrb[0].mxu0
    %v411 = vpop.f32.mrb[0].mxu0
    %412 = vdwg.mxu0
    %v413 = vmax.f32 %v407, 0.0
    %v414 = vmul.f32 %v413, %v409
    %v415 = vpack.c.bf16 %v414, %v414
    %v432 = vunpack.c.l.b16 %v194
    %v433 = vunpack.c.l.b16 %v195
    %v434 = vunpack.c.l.b16 %v196
    %v435 = vunpack.c.l.b16 %v197
    %v436 = vunpack.c.l.b16 %v198
    %v437 = vunpack.c.l.b16 %v199
    %v438 = vunpack.c.l.b16 %v200
    %v439 = vunpack.c.l.b16 %v201
    %v440 = vunpack.c.l.b16 %v202
    %v441 = vunpack.c.l.b16 %v203
    %v442 = vunpack.c.l.b16 %v204
    %v443 = vunpack.c.l.b16 %v205
    %v444 = vunpack.c.l.b16 %v206
    %v445 = vunpack.c.l.b16 %v207
    %v446 = vunpack.c.l.b16 %v208
    %v447 = vunpack.c.l.b16 %v209
    %v448 = vpack.c.b16 %v433, %v432
    %v449 = vpack.c.b16 %v435, %v434
    %v450 = vpack.c.b16 %v437, %v436
    %v451 = vpack.c.b16 %v439, %v438
    %v452 = vpack.c.b16 %v441, %v440
    %v453 = vpack.c.b16 %v443, %v442
    %v454 = vpack.c.b16 %v445, %v444
    %v455 = vpack.c.b16 %v447, %v446
    %464 = vmatprep.subr.bf16.mxu0 0
    %465 = vmatpush1.bf16.msra.mxu0 %v448
    %466 = vmatprep.subr.bf16.mxu0 0
    %467 = vmatpush1.bf16.msra.mxu0 %v449
    %468 = vmatprep.subr.bf16.mxu0 0
    %469 = vmatpush1.bf16.msra.mxu0 %v450
    %470 = vmatprep.subr.bf16.mxu0 0
    %471 = vmatpush1.bf16.msra.mxu0 %v451
    %472 = vmatprep.subr.bf16.mxu0 0
    %473 = vmatpush1.bf16.msra.mxu0 %v452
    %474 = vmatprep.subr.bf16.mxu0 0
    %475 = vmatpush1.bf16.msra.mxu0 %v453
    %476 = vmatprep.subr.bf16.mxu0 0
    %477 = vmatpush1.bf16.msra.mxu0 %v454
    %478 = vmatprep.subr.bf16.mxu0 0
    %479 = vmatpush1.bf16.msra.mxu0 %v455
    %480 = vmatprep.subr.bf16.mxu0 0
    %481 = vmatpush1.bf16.msra.mxu0 0
    %482 = vmatprep.subr.bf16.mxu0 0
    %483 = vmatpush1.bf16.msra.mxu0 0
    %484 = vmatprep.subr.bf16.mxu0 0
    %485 = vmatpush1.bf16.msra.mxu0 0
    %486 = vmatprep.subr.bf16.mxu0 0
    %487 = vmatpush1.bf16.msra.mxu0 0
    %488 = vmatprep.subr.bf16.mxu0 0
    %489 = vmatpush1.bf16.msra.mxu0 0
    %490 = vmatprep.subr.bf16.mxu0 0
    %491 = vmatpush1.bf16.msra.mxu0 0
    %492 = vmatprep.subr.bf16.mxu0 0
    %493 = vmatpush1.bf16.msra.mxu0 0
    %494 = vmatprep.subr.bf16.mxu0 0
    %495 = vmatpush1.bf16.msra.mxu0 0
    %496 = vmatprep.mubr.bf16.mxu0 0
    %497 = vmatmul.mubr.bf16.gmra.mrb[0].mxu0 %v415
    %v498 = vpop.f32.mrb[0].mxu0
    %v499 = vadd.f32 0.0, %v498
    %v500 = vpop.f32.mrb[0].mxu0
    %v501 = vpop.f32.mrb[0].mxu0
    %v502 = vpop.f32.mrb[0].mxu0
    %503 = vdwg.mxu0
    %vm504 = vcmask 7168
    %505 = vst.msk [vmem:[#allocation10] sm:$0xff] %vm504, %v499
    // Predicated region
    $region34: #{metagin_forward.35} parent=1 // pred_check
      _
    $region35: #{metagin_forward.35} parent=1 // pred_check_branch
      %507 = sbr.rel (0) target = $region37
    $region36: #{metagin_forward.35} parent=1 // pred_region
      %s509 = ssub.s32 128, 128
      %510 = vsyncadd [#allocation4], %s509
      %s512 = sshll.u32 [#allocation10], 4
      %s513 = int_to_ptr.vmem [resolvable:$true] %s512
      %515 = dma.vmem_to_hbm [thread:$0]  %s513, 128, %s4, [#allocation4]
    $region37: #{metagin_forward.35} parent=1 // pred_fallthru
      _
    // Predicated region
    $region38: #{metagin_forward.35} parent=1 // pred_check
      _
    $region39: #{metagin_forward.35} parent=1 // pred_check_branch
      %517 = sbr.rel (0) target = $region41
    $region40: #{metagin_forward.35} parent=1 // pred_region
      %518 = dma.done [#allocation4], 128
    $region41: #{metagin_forward.35} parent=1 // pred_fallthru
      _
    %519 = vsyncpa [#allocation3], 1
    %520 = vsyncpa [#allocation6], 1
    %521 = vsyncpa [#allocation9], 1
    %522 = vsyncpa [#allocation4], 1

</llo_original>
